<compile_context>
chip_gen: v5e
topology: v5e:2x2
jax: 0.10.0
libtpu: 0.0.40
codegen_flags: <defaults>
</compile_context>

<pallas_src>
import functools

import jax
import jax.numpy as jnp
from jax.experimental import pallas as pl
from jax.experimental.pallas import tpu as pltpu


# ----------------------------- Pallas kernels -----------------------------

def _stats_kernel(a_ref, w_ref, stat_ref):
    """Conv-as-matmul (bf16 operands, f32 acc); emit per-tile BN partial [sum; sumsq] only."""
    y = jnp.dot(a_ref[...], w_ref[...], preferred_element_type=jnp.float32)   # (rows, Cb) f32
    cb = y.shape[1]
    s = jnp.sum(y, axis=0, keepdims=True)          # (1, Cb) per-tile sum
    q = jnp.sum(y * y, axis=0, keepdims=True)      # (1, Cb) per-tile sum of squares
    rows = jax.lax.broadcasted_iota(jnp.int32, (8, cb), 0)
    # row 0 = sum, row 1 = sumsq, rows 2..7 = 0 (whole (8, Cb) block written in one store).
    stat_ref[...] = jnp.where(rows == 0, jnp.broadcast_to(s, (8, cb)),
                              jnp.where(rows == 1, jnp.broadcast_to(q, (8, cb)), 0.0))[None]


def _bn_relu_interleave_kernel(a_ref, w_ref, sc_ref, sh_ref, o_ref, *, tr, w_cols, cout):
    """Recompute matmul, apply BN scale/shift + ReLU, store with fused sub-pixel interleave.

    a_ref: (tr*W, 4*Cin) bf16, w_ref: (4*Cin, 4*Cout) bf16, sc/sh: (1, 4*Cout) f32.
    o_ref: (2*tr, W, 2*Cout) bf16 -- output rows already interleaved: even row = [EE|EO] per q,
    odd row = [OE|OO] per q, so (N*2H, W, 2*Cout).reshape(N, 2H, 2W, Cout) is final NHWC for free.
    """
    y = jnp.dot(a_ref[...], w_ref[...], preferred_element_type=jnp.float32)   # (tr*W, 4*Cout) f32
    z = jnp.maximum(y * sc_ref[...] + sh_ref[...], 0.0).astype(o_ref.dtype)
    for t in range(tr):                                   # static unroll; tr is small
        row = z[t * w_cols:(t + 1) * w_cols, :]           # (W, 4*Cout) = [EE|EO|OE|OO]
        o_ref[2 * t, :, :] = row[:, :2 * cout]            # even output row: per-q [EE, EO]
        o_ref[2 * t + 1, :, :] = row[:, 2 * cout:]        # odd  output row: per-q [OE, OO]


# ----------------------------- tiling helper -----------------------------

def _pick_row_tile(nh, w_cols, target_rows=1024):
    """Image rows per grid step: must divide nh, give an (tr*W) row block that is a multiple of 8
    (or cover everything), stay near target_rows, and keep >= 2 grid steps when possible (v7x)."""
    valid = [t for t in range(1, nh + 1)
             if nh % t == 0 and ((t * w_cols) % 8 == 0 or t == nh)]
    pref = [t for t in valid if nh // t >= 2] or valid
    fits = [t for t in pref if t * w_cols <= target_rows]
    return max(fits) if fits else min(pref)


# ----------------------------- weight packing (hoisted, done once) -----------------------------

def build_phase_weight(wt):
    """Pack a PyTorch ConvTranspose2d weight (Cin, Cout, 3, 3) into a (4*Cin, 4*Cout) matrix.

    For k=3, s=2, p=1, output_padding=1 the output pixel (2p+r, 2q+c) depends only on
      x00 = x[p, q], x01 = x[p, q+1], x10 = x[p+1, q], x11 = x[p+1, q+1]   (out of range -> 0):
        EE = x00.w[1,1]
        EO = x00.w[1,2] + x01.w[1,0]
        OE = x00.w[2,1] + x10.w[0,1]
        OO = x00.w[2,2] + x01.w[2,0] + x10.w[0,2] + x11.w[0,0]
    Row blocks: [x00, x01, x10, x11]; column blocks: [EE, EO, OE, OO], each Cout wide.
    """
    Cin, Cout = wt.shape[0], wt.shape[1]
    z = jnp.zeros((Cin, Cout), wt.dtype)
    row_x00 = jnp.concatenate([wt[:, :, 1, 1], wt[:, :, 1, 2], wt[:, :, 2, 1], wt[:, :, 2, 2]], axis=1)
    row_x01 = jnp.concatenate([z,              wt[:, :, 1, 0], z,              wt[:, :, 2, 0]], axis=1)
    row_x10 = jnp.concatenate([z,              z,              wt[:, :, 0, 1], wt[:, :, 0, 2]], axis=1)
    row_x11 = jnp.concatenate([z,              z,              z,              wt[:, :, 0, 0]], axis=1)
    return jnp.concatenate([row_x00, row_x01, row_x10, row_x11], axis=0)   # (4*Cin, 4*Cout)


def prepare_params(raw_params):
    """Precompute phase-packed bf16 weights once (out of the forward path).

    The ConvTranspose2d bias is dropped: it is exactly cancelled by the BatchNorm mean
    subtraction, so the forward output is unchanged.
    """
    prepared = []
    for (wt, _bias, gamma, beta) in raw_params:
        prepared.append((build_phase_weight(wt).astype(jnp.bfloat16),
                         gamma.astype(jnp.float32),
                         beta.astype(jnp.float32)))
    return prepared


# ----------------------------- one upscaling layer (NHWC) -----------------------------

def conv_transpose_bn_relu_nhwc(x, w_big, gamma, beta, eps=1e-5):
    """ConvTranspose2d(3, 2, 1, 1) + BatchNorm2d (training batch stats) + ReLU, NHWC in/out (bf16)."""
    N, H, W, Cin = x.shape
    K = 4 * Cin
    Cb = w_big.shape[1]
    assert Cb % 4 == 0
    Cout = Cb // 4
    NH, M = N * H, N * H * W

    # Prologue (bf16): shifted copies for the 4 sub-pixel phases (zero past right/bottom edge).
    x = x.astype(jnp.bfloat16)
    x01 = jnp.pad(x[:, :, 1:, :], ((0, 0), (0, 0), (0, 1), (0, 0)))
    x10 = jnp.pad(x[:, 1:, :, :], ((0, 0), (0, 1), (0, 0), (0, 0)))
    x11 = jnp.pad(x[:, 1:, 1:, :], ((0, 0), (0, 1), (0, 1), (0, 0)))
    a = jnp.concatenate([x, x01, x10, x11], axis=-1).reshape(M, K)

    tr = _pick_row_tile(NH, W, target_rows=1024)
    rows = tr * W
    grid = NH // tr

    # Pass A: BN batch statistics (tiny per-tile partials), no large intermediate written.
    stats = pl.pallas_call(
        _stats_kernel,
        out_shape=jax.ShapeDtypeStruct((grid, 8, Cb), jnp.float32),
        grid_spec=pltpu.PrefetchScalarGridSpec(
            num_scalar_prefetch=0,
            grid=(grid,),
            in_specs=[pl.BlockSpec((rows, K), lambda i: (i, 0)),
                      pl.BlockSpec((K, Cb), lambda i: (0, 0))],
            out_specs=pl.BlockSpec((1, 8, Cb), lambda i: (i, 0, 0)),
        ),
        compiler_params=pltpu.CompilerParams(dimension_semantics=("parallel",)),
    )(a, w_big)

    # Reduce the tiny partials in plain XLA -> training-mode BN scale/shift (biased variance).
    # TODO(synk): single-pass E[y^2]-E[y]^2 can lose precision when |mean| >> std; use a centered
    # second pass if BN-stat accuracy ever becomes critical.
    count = jnp.float32(4 * M)                                   # N * 2H * 2W outputs per channel
    tot = jnp.sum(stats[:, 0, :], axis=0).reshape(4, Cout).sum(axis=0)      # (Cout,)
    tot_sq = jnp.sum(stats[:, 1, :], axis=0).reshape(4, Cout).sum(axis=0)   # (Cout,)
    mean = tot / count
    var = jnp.maximum(tot_sq / count - mean * mean, 0.0)
    scale = gamma * jax.lax.rsqrt(var + eps)
    shift = beta - mean * scale
    scale4 = jnp.tile(scale, 4).reshape(1, Cb)
    shift4 = jnp.tile(shift, 4).reshape(1, Cb)

    # Pass B: recompute the small-K matmul, BN + ReLU, store with the phase interleave fused so
    # the result is already final NHWC up to a free row-major reshape.
    out = pl.pallas_call(
        functools.partial(_bn_relu_interleave_kernel, tr=tr, w_cols=W, cout=Cout),
        out_shape=jax.ShapeDtypeStruct((2 * NH, W, 2 * Cout), jnp.bfloat16),
        grid_spec=pltpu.PrefetchScalarGridSpec(
            num_scalar_prefetch=0,
            grid=(grid,),
            in_specs=[pl.BlockSpec((rows, K), lambda i: (i, 0)),
                      pl.BlockSpec((K, Cb), lambda i: (0, 0)),
                      pl.BlockSpec((1, Cb), lambda i: (0, 0)),
                      pl.BlockSpec((1, Cb), lambda i: (0, 0))],
            out_specs=pl.BlockSpec((2 * tr, W, 2 * Cout), lambda i: (i, 0, 0)),
        ),
        compiler_params=pltpu.CompilerParams(dimension_semantics=("parallel",)),
    )(a, w_big, scale4, shift4)

    return out.reshape(N, 2 * H, 2 * W, Cout)     # free (row-major) reshape to NHWC


# ----------------------------- PixelDecoder forward -----------------------------

@jax.jit
def pixel_decoder_forward(x_nchw, prepared_params):
    """Returns [x, up1, up2, up3] in NCHW / f32, matching the PyTorch module's forward."""
    # TODO(synk): PyTorch BatchNorm2d in training mode also updates running_mean/running_var;
    # only the forward batch-statistics path is implemented here (no module state returned).
    x = jnp.transpose(x_nchw, (0, 2, 3, 1)).astype(jnp.bfloat16)   # NCHW -> NHWC once, bf16
    feats = [x_nchw]
    for (w_big, gamma, beta) in prepared_params:
        x = conv_transpose_bn_relu_nhwc(x, w_big, gamma, beta)     # bf16 NHWC (next layer input)
        feats.append(jnp.transpose(x, (0, 3, 1, 2)).astype(jnp.float32))   # returned NCHW f32
    return feats


def init_params(key, input_channels, output_channels):
    chans = [input_channels, input_channels // 2, input_channels // 4, output_channels]
    params = []
    for li in range(3):
        cin, cout = chans[li], chans[li + 1]
        key, k1, k2 = jax.random.split(key, 3)
        wt = 0.1 * jax.random.normal(k1, (cin, cout, 3, 3), jnp.float32)   # PyTorch layout
        b = 0.1 * jax.random.normal(k2, (cout,), jnp.float32)
        gamma = jnp.ones((cout,), jnp.float32)
        beta = jnp.zeros((cout,), jnp.float32)
        params.append((wt, b, gamma, beta))
    return params


# ----------------------------- pure-XLA f32 reference (correctness gate) -----------------------------

def _reference_layer(x_nchw, wt, bias, gamma, beta, eps=1e-5):
    """Straightforward f32 reference: dilated-input conv + BatchNorm(train) + ReLU."""
    N, Cin, H, W = x_nchw.shape
    Cout = wt.shape[1]
    Ho, Wo = 2 * H, 2 * W
    x = jnp.transpose(x_nchw, (0, 2, 3, 1))
    d = jnp.zeros((N, 2 * H - 1, 2 * W - 1, Cin), x.dtype).at[:, ::2, ::2, :].set(x)
    xp = jnp.pad(d, ((0, 0), (1, 2), (1, 2), (0, 0)))
    patches = jnp.stack([xp[:, kh:kh + Ho, kw:kw + Wo, :]
                         for kh in range(3) for kw in range(3)], axis=3)
    A = patches.reshape(N * Ho * Wo, 9 * Cin)
    Wm = jnp.transpose(wt[:, :, ::-1, ::-1], (2, 3, 0, 1)).reshape(9 * Cin, Cout)
    y = A @ Wm + bias.reshape(1, Cout)
    mean = y.mean(axis=0)
    var = y.var(axis=0)
    z = jnp.maximum((y - mean) * gamma * jax.lax.rsqrt(var + eps) + beta, 0.0)
    return jnp.transpose(z.reshape(N, Ho, Wo, Cout), (0, 3, 1, 2))


if __name__ == "__main__":
    key = jax.random.PRNGKey(0)
    k_x, k_p = jax.random.split(key)

    input_channels = 16
    output_channels = 32
    N, H, W = 2, 8, 8

    x = jax.random.normal(k_x, (N, input_channels, H, W), jnp.float32)   # NCHW
    raw_params = init_params(k_p, input_channels, output_channels)
    params = prepare_params(raw_params)

    feats = pixel_decoder_forward(x, params)
    feats = [jax.block_until_ready(f) for f in feats]

    expected_shapes = [
        (N, input_channels, H, W),
        (N, input_channels // 2, 2 * H, 2 * W),
        (N, input_channels // 4, 4 * H, 4 * W),
        (N, output_channels, 8 * H, 8 * W),
    ]
    assert [tuple(f.shape) for f in feats] == expected_shapes, [tuple(f.shape) for f in feats]
    assert all(bool(jnp.all(jnp.isfinite(f))) for f in feats)

    # Numeric gate vs. the f32 reference (tolerances sized for the bf16 operand/output pipeline;
    # a phase-packing or interleave bug would produce O(1) relative error and fail loudly).
    ref_feats = [x]
    r = x
    for (wt, b, g, be) in raw_params:
        r = _reference_layer(r, wt, b, g, be)
        ref_feats.append(r)
    for idx, (f, rf) in enumerate(zip(feats, ref_feats)):
        max_abs = float(jnp.max(jnp.abs(f - rf)))
        rel_rms = float(jnp.sqrt(jnp.mean((f - rf) ** 2)) /
                        (jnp.sqrt(jnp.mean(rf ** 2)) + 1e-8))
        assert rel_rms < 0.03, f"feature {idx}: rel rms err {rel_rms}"
        assert max_abs < 0.5, f"feature {idx}: max abs err {max_abs}"

    print("KERNEL_OK")
</pallas_src>

<mosaic_0001>
module attributes {stable_mosaic.version = 11 : i64} {
  func.func @_stats_kernel(%arg0: i32, %arg1: memref<64x64xbf16, #tpu.memory_space<vmem>>, %arg2: memref<64x32xbf16, #tpu.memory_space<vmem>>, %arg3: memref<1x8x32xf32, #tpu.memory_space<vmem>>) attributes {dimension_semantics = [#tpu.dimension_semantics<parallel>], iteration_bounds = array<i64: 2>, scalar_prefetch = 0 : i64, scratch_operands = 0 : i64, tpu.core_type = #tpu.core_type<tc>, window_params = [{transform_indices = @transform_0, window_bounds = array<i64: 64, 64>}, {pipeline_mode = #tpu.pipeline_mode<synchronous>, transform_indices = @transform_1, window_bounds = array<i64: 64, 32>}, {transform_indices = @transform_2, window_bounds = array<i64: 1, 8, 32>}]} {
    %c0 = arith.constant 0 : index
    %c0_0 = arith.constant 0 : index
    %0 = vector.load %arg1[%c0, %c0_0] : memref<64x64xbf16, #tpu.memory_space<vmem>>, vector<64x64xbf16>
    %c0_1 = arith.constant 0 : index
    %c0_2 = arith.constant 0 : index
    %1 = vector.load %arg2[%c0_1, %c0_2] : memref<64x32xbf16, #tpu.memory_space<vmem>>, vector<64x32xbf16>
    %cst = arith.constant dense<0.000000e+00> : vector<64x32xf32>
    %2 = tpu.matmul %0, %1, %cst {dimension_numbers = #tpu.dot_dimension_numbers<[1], [0], [0], [1], [0, 0, 1, 1], [], []>} : vector<64x64xbf16>, vector<64x32xbf16>, vector<64x32xf32> -> vector<64x32xf32>
    %cst_3 = arith.constant dense<0.000000e+00> : vector<32xf32>
    %3 = vector.multi_reduction <add>, %2, %cst_3 [0] : vector<64x32xf32> to vector<32xf32>
    %4 = vector.shape_cast %3 : vector<32xf32> to vector<1x32xf32>
    %5 = arith.mulf %2, %2 : vector<64x32xf32>
    %cst_4 = arith.constant dense<0.000000e+00> : vector<32xf32>
    %6 = vector.multi_reduction <add>, %5, %cst_4 [0] : vector<64x32xf32> to vector<32xf32>
    %7 = vector.shape_cast %6 : vector<32xf32> to vector<1x32xf32>
    %8 = tpu.iota {dimensions = array<i32: 0>} : vector<8x32xi32>
    %c0_i32 = arith.constant 0 : i32
    %9 = vector.broadcast %c0_i32 : i32 to vector<8x32xi32>
    %10 = arith.cmpi eq, %8, %9 : vector<8x32xi32>
    %11 = vector.shape_cast %4 : vector<1x32xf32> to vector<1x32xf32>
    %12 = vector.broadcast %11 : vector<1x32xf32> to vector<8x32xf32>
    %c1_i32 = arith.constant 1 : i32
    %13 = vector.broadcast %c1_i32 : i32 to vector<8x32xi32>
    %14 = arith.cmpi eq, %8, %13 : vector<8x32xi32>
    %15 = vector.shape_cast %7 : vector<1x32xf32> to vector<1x32xf32>
    %16 = vector.broadcast %15 : vector<1x32xf32> to vector<8x32xf32>
    %cst_5 = arith.constant 0.000000e+00 : f32
    %17 = vector.broadcast %cst_5 : f32 to vector<8x32xf32>
    %18 = arith.select %14, %16, %17 : vector<8x32xi1>, vector<8x32xf32>
    %19 = arith.select %10, %12, %18 : vector<8x32xi1>, vector<8x32xf32>
    %20 = vector.shape_cast %19 : vector<8x32xf32> to vector<1x8x32xf32>
    %c0_6 = arith.constant 0 : index
    %c0_7 = arith.constant 0 : index
    %c0_8 = arith.constant 0 : index
    %21 = vector.load %arg3[%c0_6, %c0_7, %c0_8] : memref<1x8x32xf32, #tpu.memory_space<vmem>>, vector<1x8x32xf32>
    tpu.vector_store %arg3[%c0_6, %c0_7, %c0_8], %20 {strides = array<i32>} : memref<1x8x32xf32, #tpu.memory_space<vmem>>, vector<1x8x32xf32>,
    return
  }
  func.func @transform_0(%arg0: i32) -> (i32, i32) {
    %c0_i32 = arith.constant 0 : i32
    %c0_i32_0 = arith.constant 0 : i32
    return %arg0, %c0_i32 : i32, i32
  }
  func.func @transform_1(%arg0: i32) -> (i32, i32) {
    %c0_i32 = arith.constant 0 : i32
    %c0_i32_0 = arith.constant 0 : i32
    %c0_i32_1 = arith.constant 0 : i32
    return %c0_i32, %c0_i32_0 : i32, i32
  }
  func.func @transform_2(%arg0: i32) -> (i32, i32, i32) {
    %c0_i32 = arith.constant 0 : i32
    %c0_i32_0 = arith.constant 0 : i32
    %c0_i32_1 = arith.constant 0 : i32
    return %arg0, %c0_i32, %c0_i32_0 : i32, i32, i32
  }
}

module attributes {stable_mosaic.version = 11 : i64} {
  func.func @_bn_relu_interleave_kernel(%arg0: i32, %arg1: memref<64x64xbf16, #tpu.memory_space<vmem>>, %arg2: memref<64x32xbf16, #tpu.memory_space<vmem>>, %arg3: memref<1x32xf32, #tpu.memory_space<vmem>>, %arg4: memref<1x32xf32, #tpu.memory_space<vmem>>, %arg5: memref<16x8x16xbf16, #tpu.memory_space<vmem>>) attributes {dimension_semantics = [#tpu.dimension_semantics<parallel>], iteration_bounds = array<i64: 2>, scalar_prefetch = 0 : i64, scratch_operands = 0 : i64, tpu.core_type = #tpu.core_type<tc>, window_params = [{transform_indices = @transform_0, window_bounds = array<i64: 64, 64>}, {pipeline_mode = #tpu.pipeline_mode<synchronous>, transform_indices = @transform_1, window_bounds = array<i64: 64, 32>}, {pipeline_mode = #tpu.pipeline_mode<synchronous>, transform_indices = @transform_2, window_bounds = array<i64: 1, 32>}, {pipeline_mode = #tpu.pipeline_mode<synchronous>, transform_indices = @transform_3, window_bounds = array<i64: 1, 32>}, {transform_indices = @transform_4, window_bounds = array<i64: 16, 8, 16>}]} {
    %c0 = arith.constant 0 : index
    %c0_0 = arith.constant 0 : index
    %0 = vector.load %arg1[%c0, %c0_0] : memref<64x64xbf16, #tpu.memory_space<vmem>>, vector<64x64xbf16>
    %c0_1 = arith.constant 0 : index
    %c0_2 = arith.constant 0 : index
    %1 = vector.load %arg2[%c0_1, %c0_2] : memref<64x32xbf16, #tpu.memory_space<vmem>>, vector<64x32xbf16>
    %cst = arith.constant dense<0.000000e+00> : vector<64x32xf32>
    %2 = tpu.matmul %0, %1, %cst {dimension_numbers = #tpu.dot_dimension_numbers<[1], [0], [0], [1], [0, 0, 1, 1], [], []>} : vector<64x64xbf16>, vector<64x32xbf16>, vector<64x32xf32> -> vector<64x32xf32>
    %c0_3 = arith.constant 0 : index
    %c0_4 = arith.constant 0 : index
    %3 = vector.load %arg3[%c0_3, %c0_4] : memref<1x32xf32, #tpu.memory_space<vmem>>, vector<1x32xf32>
    %4 = vector.broadcast %3 : vector<1x32xf32> to vector<64x32xf32>
    %5 = arith.mulf %2, %4 : vector<64x32xf32>
    %c0_5 = arith.constant 0 : index
    %c0_6 = arith.constant 0 : index
    %6 = vector.load %arg4[%c0_5, %c0_6] : memref<1x32xf32, #tpu.memory_space<vmem>>, vector<1x32xf32>
    %7 = vector.broadcast %6 : vector<1x32xf32> to vector<64x32xf32>
    %8 = arith.addf %5, %7 : vector<64x32xf32>
    %cst_7 = arith.constant 0.000000e+00 : f32
    %9 = vector.broadcast %cst_7 : f32 to vector<64x32xf32>
    %10 = arith.maximumf %8, %9 : vector<64x32xf32>
    %11 = arith.truncf %10 : vector<64x32xf32> to vector<64x32xbf16>
    %12 = vector.extract_strided_slice %11 {offsets = [0, 0], sizes = [8, 32], strides = [1, 1]} : vector<64x32xbf16> to vector<8x32xbf16>
    %13 = vector.extract_strided_slice %12 {offsets = [0, 0], sizes = [8, 16], strides = [1, 1]} : vector<8x32xbf16> to vector<8x16xbf16>
    %c0_8 = arith.constant 0 : index
    %c0_9 = arith.constant 0 : index
    %c0_10 = arith.constant 0 : index
    %14 = vector.load %arg5[%c0_8, %c0_9, %c0_10] : memref<16x8x16xbf16, #tpu.memory_space<vmem>>, vector<1x8x16xbf16>
    %15 = vector.shape_cast %14 : vector<1x8x16xbf16> to vector<8x16xbf16>
    %16 = vector.shape_cast %13 : vector<8x16xbf16> to vector<1x8x16xbf16>
    tpu.vector_store %arg5[%c0_8, %c0_9, %c0_10], %16 {strides = array<i32>} : memref<16x8x16xbf16, #tpu.memory_space<vmem>>, vector<1x8x16xbf16>,
    %17 = vector.extract_strided_slice %12 {offsets = [0, 16], sizes = [8, 16], strides = [1, 1]} : vector<8x32xbf16> to vector<8x16xbf16>
    %c1 = arith.constant 1 : index
    %c0_11 = arith.constant 0 : index
    %c0_12 = arith.constant 0 : index
    %18 = vector.load %arg5[%c1, %c0_11, %c0_12] : memref<16x8x16xbf16, #tpu.memory_space<vmem>>, vector<1x8x16xbf16>
    %19 = vector.shape_cast %18 : vector<1x8x16xbf16> to vector<8x16xbf16>
    %20 = vector.shape_cast %17 : vector<8x16xbf16> to vector<1x8x16xbf16>
    tpu.vector_store %arg5[%c1, %c0_11, %c0_12], %20 {strides = array<i32>} : memref<16x8x16xbf16, #tpu.memory_space<vmem>>, vector<1x8x16xbf16>,
    %21 = vector.extract_strided_slice %11 {offsets = [8, 0], sizes = [8, 32], strides = [1, 1]} : vector<64x32xbf16> to vector<8x32xbf16>
    %22 = vector.extract_strided_slice %21 {offsets = [0, 0], sizes = [8, 16], strides = [1, 1]} : vector<8x32xbf16> to vector<8x16xbf16>
    %c2 = arith.constant 2 : index
    %c0_13 = arith.constant 0 : index
    %c0_14 = arith.constant 0 : index
    %23 = vector.load %arg5[%c2, %c0_13, %c0_14] : memref<16x8x16xbf16, #tpu.memory_space<vmem>>, vector<1x8x16xbf16>
    %24 = vector.shape_cast %23 : vector<1x8x16xbf16> to vector<8x16xbf16>
    %25 = vector.shape_cast %22 : vector<8x16xbf16> to vector<1x8x16xbf16>
    tpu.vector_store %arg5[%c2, %c0_13, %c0_14], %25 {strides = array<i32>} : memref<16x8x16xbf16, #tpu.memory_space<vmem>>, vector<1x8x16xbf16>,
    %26 = vector.extract_strided_slice %21 {offsets = [0, 16], sizes = [8, 16], strides = [1, 1]} : vector<8x32xbf16> to vector<8x16xbf16>
    %c3 = arith.constant 3 : index
    %c0_15 = arith.constant 0 : index
    %c0_16 = arith.constant 0 : index
    %27 = vector.load %arg5[%c3, %c0_15, %c0_16] : memref<16x8x16xbf16, #tpu.memory_space<vmem>>, vector<1x8x16xbf16>
    %28 = vector.shape_cast %27 : vector<1x8x16xbf16> to vector<8x16xbf16>
    %29 = vector.shape_cast %26 : vector<8x16xbf16> to vector<1x8x16xbf16>
    tpu.vector_store %arg5[%c3, %c0_15, %c0_16], %29 {strides = array<i32>} : memref<16x8x16xbf16, #tpu.memory_space<vmem>>, vector<1x8x16xbf16>,
    %30 = vector.extract_strided_slice %11 {offsets = [16, 0], sizes = [8, 32], strides = [1, 1]} : vector<64x32xbf16> to vector<8x32xbf16>
    %31 = vector.extract_strided_slice %30 {offsets = [0, 0], sizes = [8, 16], strides = [1, 1]} : vector<8x32xbf16> to vector<8x16xbf16>
    %c4 = arith.constant 4 : index
    %c0_17 = arith.constant 0 : index
    %c0_18 = arith.constant 0 : index
    %32 = vector.load %arg5[%c4, %c0_17, %c0_18] : memref<16x8x16xbf16, #tpu.memory_space<vmem>>, vector<1x8x16xbf16>
    %33 = vector.shape_cast %32 : vector<1x8x16xbf16> to vector<8x16xbf16>
    %34 = vector.shape_cast %31 : vector<8x16xbf16> to vector<1x8x16xbf16>
    tpu.vector_store %arg5[%c4, %c0_17, %c0_18], %34 {strides = array<i32>} : memref<16x8x16xbf16, #tpu.memory_space<vmem>>, vector<1x8x16xbf16>,
    %35 = vector.extract_strided_slice %30 {offsets = [0, 16], sizes = [8, 16], strides = [1, 1]} : vector<8x32xbf16> to vector<8x16xbf16>
    %c5 = arith.constant 5 : index
    %c0_19 = arith.constant 0 : index
    %c0_20 = arith.constant 0 : index
    %36 = vector.load %arg5[%c5, %c0_19, %c0_20] : memref<16x8x16xbf16, #tpu.memory_space<vmem>>, vector<1x8x16xbf16>
    %37 = vector.shape_cast %36 : vector<1x8x16xbf16> to vector<8x16xbf16>
    %38 = vector.shape_cast %35 : vector<8x16xbf16> to vector<1x8x16xbf16>
    tpu.vector_store %arg5[%c5, %c0_19, %c0_20], %38 {strides = array<i32>} : memref<16x8x16xbf16, #tpu.memory_space<vmem>>, vector<1x8x16xbf16>,
    %39 = vector.extract_strided_slice %11 {offsets = [24, 0], sizes = [8, 32], strides = [1, 1]} : vector<64x32xbf16> to vector<8x32xbf16>
    %40 = vector.extract_strided_slice %39 {offsets = [0, 0], sizes = [8, 16], strides = [1, 1]} : vector<8x32xbf16> to vector<8x16xbf16>
    %c6 = arith.constant 6 : index
    %c0_21 = arith.constant 0 : index
    %c0_22 = arith.constant 0 : index
    %41 = vector.load %arg5[%c6, %c0_21, %c0_22] : memref<16x8x16xbf16, #tpu.memory_space<vmem>>, vector<1x8x16xbf16>
    %42 = vector.shape_cast %41 : vector<1x8x16xbf16> to vector<8x16xbf16>
    %43 = vector.shape_cast %40 : vector<8x16xbf16> to vector<1x8x16xbf16>
    tpu.vector_store %arg5[%c6, %c0_21, %c0_22], %43 {strides = array<i32>} : memref<16x8x16xbf16, #tpu.memory_space<vmem>>, vector<1x8x16xbf16>,
    %44 = vector.extract_strided_slice %39 {offsets = [0, 16], sizes = [8, 16], strides = [1, 1]} : vector<8x32xbf16> to vector<8x16xbf16>
    %c7 = arith.constant 7 : index
    %c0_23 = arith.constant 0 : index
    %c0_24 = arith.constant 0 : index
    %45 = vector.load %arg5[%c7, %c0_23, %c0_24] : memref<16x8x16xbf16, #tpu.memory_space<vmem>>, vector<1x8x16xbf16>
    %46 = vector.shape_cast %45 : vector<1x8x16xbf16> to vector<8x16xbf16>
    %47 = vector.shape_cast %44 : vector<8x16xbf16> to vector<1x8x16xbf16>
    tpu.vector_store %arg5[%c7, %c0_23, %c0_24], %47 {strides = array<i32>} : memref<16x8x16xbf16, #tpu.memory_space<vmem>>, vector<1x8x16xbf16>,
    %48 = vector.extract_strided_slice %11 {offsets = [32, 0], sizes = [8, 32], strides = [1, 1]} : vector<64x32xbf16> to vector<8x32xbf16>
    %49 = vector.extract_strided_slice %48 {offsets = [0, 0], sizes = [8, 16], strides = [1, 1]} : vector<8x32xbf16> to vector<8x16xbf16>
    %c8 = arith.constant 8 : index
    %c0_25 = arith.constant 0 : index
    %c0_26 = arith.constant 0 : index
    %50 = vector.load %arg5[%c8, %c0_25, %c0_26] : memref<16x8x16xbf16, #tpu.memory_space<vmem>>, vector<1x8x16xbf16>
    %51 = vector.shape_cast %50 : vector<1x8x16xbf16> to vector<8x16xbf16>
    %52 = vector.shape_cast %49 : vector<8x16xbf16> to vector<1x8x16xbf16>
    tpu.vector_store %arg5[%c8, %c0_25, %c0_26], %52 {strides = array<i32>} : memref<16x8x16xbf16, #tpu.memory_space<vmem>>, vector<1x8x16xbf16>,
    %53 = vector.extract_strided_slice %48 {offsets = [0, 16], sizes = [8, 16], strides = [1, 1]} : vector<8x32xbf16> to vector<8x16xbf16>
    %c9 = arith.constant 9 : index
    %c0_27 = arith.constant 0 : index
    %c0_28 = arith.constant 0 : index
    %54 = vector.load %arg5[%c9, %c0_27, %c0_28] : memref<16x8x16xbf16, #tpu.memory_space<vmem>>, vector<1x8x16xbf16>
    %55 = vector.shape_cast %54 : vector<1x8x16xbf16> to vector<8x16xbf16>
    %56 = vector.shape_cast %53 : vector<8x16xbf16> to vector<1x8x16xbf16>
    tpu.vector_store %arg5[%c9, %c0_27, %c0_28], %56 {strides = array<i32>} : memref<16x8x16xbf16, #tpu.memory_space<vmem>>, vector<1x8x16xbf16>,
    %57 = vector.extract_strided_slice %11 {offsets = [40, 0], sizes = [8, 32], strides = [1, 1]} : vector<64x32xbf16> to vector<8x32xbf16>
    %58 = vector.extract_strided_slice %57 {offsets = [0, 0], sizes = [8, 16], strides = [1, 1]} : vector<8x32xbf16> to vector<8x16xbf16>
    %c10 = arith.constant 10 : index
    %c0_29 = arith.constant 0 : index
    %c0_30 = arith.constant 0 : index
    %59 = vector.load %arg5[%c10, %c0_29, %c0_30] : memref<16x8x16xbf16, #tpu.memory_space<vmem>>, vector<1x8x16xbf16>
    %60 = vector.shape_cast %59 : vector<1x8x16xbf16> to vector<8x16xbf16>
    %61 = vector.shape_cast %58 : vector<8x16xbf16> to vector<1x8x16xbf16>
    tpu.vector_store %arg5[%c10, %c0_29, %c0_30], %61 {strides = array<i32>} : memref<16x8x16xbf16, #tpu.memory_space<vmem>>, vector<1x8x16xbf16>,
    %62 = vector.extract_strided_slice %57 {offsets = [0, 16], sizes = [8, 16], strides = [1, 1]} : vector<8x32xbf16> to vector<8x16xbf16>
    %c11 = arith.constant 11 : index
    %c0_31 = arith.constant 0 : index
    %c0_32 = arith.constant 0 : index
    %63 = vector.load %arg5[%c11, %c0_31, %c0_32] : memref<16x8x16xbf16, #tpu.memory_space<vmem>>, vector<1x8x16xbf16>
    %64 = vector.shape_cast %63 : vector<1x8x16xbf16> to vector<8x16xbf16>
    %65 = vector.shape_cast %62 : vector<8x16xbf16> to vector<1x8x16xbf16>
    tpu.vector_store %arg5[%c11, %c0_31, %c0_32], %65 {strides = array<i32>} : memref<16x8x16xbf16, #tpu.memory_space<vmem>>, vector<1x8x16xbf16>,
    %66 = vector.extract_strided_slice %11 {offsets = [48, 0], sizes = [8, 32], strides = [1, 1]} : vector<64x32xbf16> to vector<8x32xbf16>
    %67 = vector.extract_strided_slice %66 {offsets = [0, 0], sizes = [8, 16], strides = [1, 1]} : vector<8x32xbf16> to vector<8x16xbf16>
    %c12 = arith.constant 12 : index
    %c0_33 = arith.constant 0 : index
    %c0_34 = arith.constant 0 : index
    %68 = vector.load %arg5[%c12, %c0_33, %c0_34] : memref<16x8x16xbf16, #tpu.memory_space<vmem>>, vector<1x8x16xbf16>
    %69 = vector.shape_cast %68 : vector<1x8x16xbf16> to vector<8x16xbf16>
    %70 = vector.shape_cast %67 : vector<8x16xbf16> to vector<1x8x16xbf16>
    tpu.vector_store %arg5[%c12, %c0_33, %c0_34], %70 {strides = array<i32>} : memref<16x8x16xbf16, #tpu.memory_space<vmem>>, vector<1x8x16xbf16>,
    %71 = vector.extract_strided_slice %66 {offsets = [0, 16], sizes = [8, 16], strides = [1, 1]} : vector<8x32xbf16> to vector<8x16xbf16>
    %c13 = arith.constant 13 : index
    %c0_35 = arith.constant 0 : index
    %c0_36 = arith.constant 0 : index
    %72 = vector.load %arg5[%c13, %c0_35, %c0_36] : memref<16x8x16xbf16, #tpu.memory_space<vmem>>, vector<1x8x16xbf16>
    %73 = vector.shape_cast %72 : vector<1x8x16xbf16> to vector<8x16xbf16>
    %74 = vector.shape_cast %71 : vector<8x16xbf16> to vector<1x8x16xbf16>
    tpu.vector_store %arg5[%c13, %c0_35, %c0_36], %74 {strides = array<i32>} : memref<16x8x16xbf16, #tpu.memory_space<vmem>>, vector<1x8x16xbf16>,
    %75 = vector.extract_strided_slice %11 {offsets = [56, 0], sizes = [8, 32], strides = [1, 1]} : vector<64x32xbf16> to vector<8x32xbf16>
    %76 = vector.extract_strided_slice %75 {offsets = [0, 0], sizes = [8, 16], strides = [1, 1]} : vector<8x32xbf16> to vector<8x16xbf16>
    %c14 = arith.constant 14 : index
    %c0_37 = arith.constant 0 : index
    %c0_38 = arith.constant 0 : index
    %77 = vector.load %arg5[%c14, %c0_37, %c0_38] : memref<16x8x16xbf16, #tpu.memory_space<vmem>>, vector<1x8x16xbf16>
    %78 = vector.shape_cast %77 : vector<1x8x16xbf16> to vector<8x16xbf16>
    %79 = vector.shape_cast %76 : vector<8x16xbf16> to vector<1x8x16xbf16>
    tpu.vector_store %arg5[%c14, %c0_37, %c0_38], %79 {strides = array<i32>} : memref<16x8x16xbf16, #tpu.memory_space<vmem>>, vector<1x8x16xbf16>,
    %80 = vector.extract_strided_slice %75 {offsets = [0, 16], sizes = [8, 16], strides = [1, 1]} : vector<8x32xbf16> to vector<8x16xbf16>
    %c15 = arith.constant 15 : index
    %c0_39 = arith.constant 0 : index
    %c0_40 = arith.constant 0 : index
    %81 = vector.load %arg5[%c15, %c0_39, %c0_40] : memref<16x8x16xbf16, #tpu.memory_space<vmem>>, vector<1x8x16xbf16>
    %82 = vector.shape_cast %81 : vector<1x8x16xbf16> to vector<8x16xbf16>
    %83 = vector.shape_cast %80 : vector<8x16xbf16> to vector<1x8x16xbf16>
    tpu.vector_store %arg5[%c15, %c0_39, %c0_40], %83 {strides = array<i32>} : memref<16x8x16xbf16, #tpu.memory_space<vmem>>, vector<1x8x16xbf16>,
    return
  }
  func.func @transform_0(%arg0: i32) -> (i32, i32) {
    %c0_i32 = arith.constant 0 : i32
    %c0_i32_0 = arith.constant 0 : i32
    return %arg0, %c0_i32 : i32, i32
  }
  func.func @transform_1(%arg0: i32) -> (i32, i32) {
    %c0_i32 = arith.constant 0 : i32
    %c0_i32_0 = arith.constant 0 : i32
    %c0_i32_1 = arith.constant 0 : i32
    return %c0_i32, %c0_i32_0 : i32, i32
  }
  func.func @transform_2(%arg0: i32) -> (i32, i32) {
    %c0_i32 = arith.constant 0 : i32
    %c0_i32_0 = arith.constant 0 : i32
    %c0_i32_1 = arith.constant 0 : i32
    return %c0_i32, %c0_i32_0 : i32, i32
  }
  func.func @transform_3(%arg0: i32) -> (i32, i32) {
    %c0_i32 = arith.constant 0 : i32
    %c0_i32_0 = arith.constant 0 : i32
    %c0_i32_1 = arith.constant 0 : i32
    return %c0_i32, %c0_i32_0 : i32, i32
  }
  func.func @transform_4(%arg0: i32) -> (i32, i32, i32) {
    %c0_i32 = arith.constant 0 : i32
    %c0_i32_0 = arith.constant 0 : i32
    %c0_i32_1 = arith.constant 0 : i32
    return %arg0, %c0_i32, %c0_i32_0 : i32, i32, i32
  }
}

module attributes {stable_mosaic.version = 11 : i64} {
  func.func @_stats_kernel(%arg0: i32, %arg1: memref<256x32xbf16, #tpu.memory_space<vmem>>, %arg2: memref<32x16xbf16, #tpu.memory_space<vmem>>, %arg3: memref<1x8x16xf32, #tpu.memory_space<vmem>>) attributes {dimension_semantics = [#tpu.dimension_semantics<parallel>], iteration_bounds = array<i64: 2>, scalar_prefetch = 0 : i64, scratch_operands = 0 : i64, tpu.core_type = #tpu.core_type<tc>, window_params = [{transform_indices = @transform_0, window_bounds = array<i64: 256, 32>}, {pipeline_mode = #tpu.pipeline_mode<synchronous>, transform_indices = @transform_1, window_bounds = array<i64: 32, 16>}, {transform_indices = @transform_2, window_bounds = array<i64: 1, 8, 16>}]} {
    %c0 = arith.constant 0 : index
    %c0_0 = arith.constant 0 : index
    %0 = vector.load %arg1[%c0, %c0_0] : memref<256x32xbf16, #tpu.memory_space<vmem>>, vector<256x32xbf16>
    %c0_1 = arith.constant 0 : index
    %c0_2 = arith.constant 0 : index
    %1 = vector.load %arg2[%c0_1, %c0_2] : memref<32x16xbf16, #tpu.memory_space<vmem>>, vector<32x16xbf16>
    %cst = arith.constant dense<0.000000e+00> : vector<256x16xf32>
    %2 = tpu.matmul %0, %1, %cst {dimension_numbers = #tpu.dot_dimension_numbers<[1], [0], [0], [1], [0, 0, 1, 1], [], []>} : vector<256x32xbf16>, vector<32x16xbf16>, vector<256x16xf32> -> vector<256x16xf32>
    %cst_3 = arith.constant dense<0.000000e+00> : vector<16xf32>
    %3 = vector.multi_reduction <add>, %2, %cst_3 [0] : vector<256x16xf32> to vector<16xf32>
    %4 = vector.shape_cast %3 : vector<16xf32> to vector<1x16xf32>
    %5 = arith.mulf %2, %2 : vector<256x16xf32>
    %cst_4 = arith.constant dense<0.000000e+00> : vector<16xf32>
    %6 = vector.multi_reduction <add>, %5, %cst_4 [0] : vector<256x16xf32> to vector<16xf32>
    %7 = vector.shape_cast %6 : vector<16xf32> to vector<1x16xf32>
    %8 = tpu.iota {dimensions = array<i32: 0>} : vector<8x16xi32>
    %c0_i32 = arith.constant 0 : i32
    %9 = vector.broadcast %c0_i32 : i32 to vector<8x16xi32>
    %10 = arith.cmpi eq, %8, %9 : vector<8x16xi32>
    %11 = vector.shape_cast %4 : vector<1x16xf32> to vector<1x16xf32>
    %12 = vector.broadcast %11 : vector<1x16xf32> to vector<8x16xf32>
    %c1_i32 = arith.constant 1 : i32
    %13 = vector.broadcast %c1_i32 : i32 to vector<8x16xi32>
    %14 = arith.cmpi eq, %8, %13 : vector<8x16xi32>
    %15 = vector.shape_cast %7 : vector<1x16xf32> to vector<1x16xf32>
    %16 = vector.broadcast %15 : vector<1x16xf32> to vector<8x16xf32>
    %cst_5 = arith.constant 0.000000e+00 : f32
    %17 = vector.broadcast %cst_5 : f32 to vector<8x16xf32>
    %18 = arith.select %14, %16, %17 : vector<8x16xi1>, vector<8x16xf32>
    %19 = arith.select %10, %12, %18 : vector<8x16xi1>, vector<8x16xf32>
    %20 = vector.shape_cast %19 : vector<8x16xf32> to vector<1x8x16xf32>
    %c0_6 = arith.constant 0 : index
    %c0_7 = arith.constant 0 : index
    %c0_8 = arith.constant 0 : index
    %21 = vector.load %arg3[%c0_6, %c0_7, %c0_8] : memref<1x8x16xf32, #tpu.memory_space<vmem>>, vector<1x8x16xf32>
    tpu.vector_store %arg3[%c0_6, %c0_7, %c0_8], %20 {strides = array<i32>} : memref<1x8x16xf32, #tpu.memory_space<vmem>>, vector<1x8x16xf32>,
    return
  }
  func.func @transform_0(%arg0: i32) -> (i32, i32) {
    %c0_i32 = arith.constant 0 : i32
    %c0_i32_0 = arith.constant 0 : i32
    return %arg0, %c0_i32 : i32, i32
  }
  func.func @transform_1(%arg0: i32) -> (i32, i32) {
    %c0_i32 = arith.constant 0 : i32
    %c0_i32_0 = arith.constant 0 : i32
    %c0_i32_1 = arith.constant 0 : i32
    return %c0_i32, %c0_i32_0 : i32, i32
  }
  func.func @transform_2(%arg0: i32) -> (i32, i32, i32) {
    %c0_i32 = arith.constant 0 : i32
    %c0_i32_0 = arith.constant 0 : i32
    %c0_i32_1 = arith.constant 0 : i32
    return %arg0, %c0_i32, %c0_i32_0 : i32, i32, i32
  }
}

module attributes {stable_mosaic.version = 11 : i64} {
  func.func @_bn_relu_interleave_kernel(%arg0: i32, %arg1: memref<256x32xbf16, #tpu.memory_space<vmem>>, %arg2: memref<32x16xbf16, #tpu.memory_space<vmem>>, %arg3: memref<1x16xf32, #tpu.memory_space<vmem>>, %arg4: memref<1x16xf32, #tpu.memory_space<vmem>>, %arg5: memref<32x16x8xbf16, #tpu.memory_space<vmem>>) attributes {dimension_semantics = [#tpu.dimension_semantics<parallel>], iteration_bounds = array<i64: 2>, scalar_prefetch = 0 : i64, scratch_operands = 0 : i64, tpu.core_type = #tpu.core_type<tc>, window_params = [{transform_indices = @transform_0, window_bounds = array<i64: 256, 32>}, {pipeline_mode = #tpu.pipeline_mode<synchronous>, transform_indices = @transform_1, window_bounds = array<i64: 32, 16>}, {pipeline_mode = #tpu.pipeline_mode<synchronous>, transform_indices = @transform_2, window_bounds = array<i64: 1, 16>}, {pipeline_mode = #tpu.pipeline_mode<synchronous>, transform_indices = @transform_3, window_bounds = array<i64: 1, 16>}, {transform_indices = @transform_4, window_bounds = array<i64: 32, 16, 8>}]} {
    %c0 = arith.constant 0 : index
    %c0_0 = arith.constant 0 : index
    %0 = vector.load %arg1[%c0, %c0_0] : memref<256x32xbf16, #tpu.memory_space<vmem>>, vector<256x32xbf16>
    %c0_1 = arith.constant 0 : index
    %c0_2 = arith.constant 0 : index
    %1 = vector.load %arg2[%c0_1, %c0_2] : memref<32x16xbf16, #tpu.memory_space<vmem>>, vector<32x16xbf16>
    %cst = arith.constant dense<0.000000e+00> : vector<256x16xf32>
    %2 = tpu.matmul %0, %1, %cst {dimension_numbers = #tpu.dot_dimension_numbers<[1], [0], [0], [1], [0, 0, 1, 1], [], []>} : vector<256x32xbf16>, vector<32x16xbf16>, vector<256x16xf32> -> vector<256x16xf32>
    %c0_3 = arith.constant 0 : index
    %c0_4 = arith.constant 0 : index
    %3 = vector.load %arg3[%c0_3, %c0_4] : memref<1x16xf32, #tpu.memory_space<vmem>>, vector<1x16xf32>
    %4 = vector.broadcast %3 : vector<1x16xf32> to vector<256x16xf32>
    %5 = arith.mulf %2, %4 : vector<256x16xf32>
    %c0_5 = arith.constant 0 : index
    %c0_6 = arith.constant 0 : index
    %6 = vector.load %arg4[%c0_5, %c0_6] : memref<1x16xf32, #tpu.memory_space<vmem>>, vector<1x16xf32>
    %7 = vector.broadcast %6 : vector<1x16xf32> to vector<256x16xf32>
    %8 = arith.addf %5, %7 : vector<256x16xf32>
    %cst_7 = arith.constant 0.000000e+00 : f32
    %9 = vector.broadcast %cst_7 : f32 to vector<256x16xf32>
    %10 = arith.maximumf %8, %9 : vector<256x16xf32>
    %11 = arith.truncf %10 : vector<256x16xf32> to vector<256x16xbf16>
    %12 = vector.extract_strided_slice %11 {offsets = [0, 0], sizes = [16, 16], strides = [1, 1]} : vector<256x16xbf16> to vector<16x16xbf16>
    %13 = vector.extract_strided_slice %12 {offsets = [0, 0], sizes = [16, 8], strides = [1, 1]} : vector<16x16xbf16> to vector<16x8xbf16>
    %c0_8 = arith.constant 0 : index
    %c0_9 = arith.constant 0 : index
    %c0_10 = arith.constant 0 : index
    %14 = vector.load %arg5[%c0_8, %c0_9, %c0_10] : memref<32x16x8xbf16, #tpu.memory_space<vmem>>, vector<1x16x8xbf16>
    %15 = vector.shape_cast %14 : vector<1x16x8xbf16> to vector<16x8xbf16>
    %16 = vector.shape_cast %13 : vector<16x8xbf16> to vector<1x16x8xbf16>
    tpu.vector_store %arg5[%c0_8, %c0_9, %c0_10], %16 {strides = array<i32>} : memref<32x16x8xbf16, #tpu.memory_space<vmem>>, vector<1x16x8xbf16>,
    %17 = vector.extract_strided_slice %12 {offsets = [0, 8], sizes = [16, 8], strides = [1, 1]} : vector<16x16xbf16> to vector<16x8xbf16>
    %c1 = arith.constant 1 : index
    %c0_11 = arith.constant 0 : index
    %c0_12 = arith.constant 0 : index
    %18 = vector.load %arg5[%c1, %c0_11, %c0_12] : memref<32x16x8xbf16, #tpu.memory_space<vmem>>, vector<1x16x8xbf16>
    %19 = vector.shape_cast %18 : vector<1x16x8xbf16> to vector<16x8xbf16>
    %20 = vector.shape_cast %17 : vector<16x8xbf16> to vector<1x16x8xbf16>
    tpu.vector_store %arg5[%c1, %c0_11, %c0_12], %20 {strides = array<i32>} : memref<32x16x8xbf16, #tpu.memory_space<vmem>>, vector<1x16x8xbf16>,
    %21 = vector.extract_strided_slice %11 {offsets = [16, 0], sizes = [16, 16], strides = [1, 1]} : vector<256x16xbf16> to vector<16x16xbf16>
    %22 = vector.extract_strided_slice %21 {offsets = [0, 0], sizes = [16, 8], strides = [1, 1]} : vector<16x16xbf16> to vector<16x8xbf16>
    %c2 = arith.constant 2 : index
    %c0_13 = arith.constant 0 : index
    %c0_14 = arith.constant 0 : index
    %23 = vector.load %arg5[%c2, %c0_13, %c0_14] : memref<32x16x8xbf16, #tpu.memory_space<vmem>>, vector<1x16x8xbf16>
    %24 = vector.shape_cast %23 : vector<1x16x8xbf16> to vector<16x8xbf16>
    %25 = vector.shape_cast %22 : vector<16x8xbf16> to vector<1x16x8xbf16>
    tpu.vector_store %arg5[%c2, %c0_13, %c0_14], %25 {strides = array<i32>} : memref<32x16x8xbf16, #tpu.memory_space<vmem>>, vector<1x16x8xbf16>,
    %26 = vector.extract_strided_slice %21 {offsets = [0, 8], sizes = [16, 8], strides = [1, 1]} : vector<16x16xbf16> to vector<16x8xbf16>
    %c3 = arith.constant 3 : index
    %c0_15 = arith.constant 0 : index
    %c0_16 = arith.constant 0 : index
    %27 = vector.load %arg5[%c3, %c0_15, %c0_16] : memref<32x16x8xbf16, #tpu.memory_space<vmem>>, vector<1x16x8xbf16>
    %28 = vector.shape_cast %27 : vector<1x16x8xbf16> to vector<16x8xbf16>
    %29 = vector.shape_cast %26 : vector<16x8xbf16> to vector<1x16x8xbf16>
    tpu.vector_store %arg5[%c3, %c0_15, %c0_16], %29 {strides = array<i32>} : memref<32x16x8xbf16, #tpu.memory_space<vmem>>, vector<1x16x8xbf16>,
    %30 = vector.extract_strided_slice %11 {offsets = [32, 0], sizes = [16, 16], strides = [1, 1]} : vector<256x16xbf16> to vector<16x16xbf16>
    %31 = vector.extract_strided_slice %30 {offsets = [0, 0], sizes = [16, 8], strides = [1, 1]} : vector<16x16xbf16> to vector<16x8xbf16>
    %c4 = arith.constant 4 : index
    %c0_17 = arith.constant 0 : index
    %c0_18 = arith.constant 0 : index
    %32 = vector.load %arg5[%c4, %c0_17, %c0_18] : memref<32x16x8xbf16, #tpu.memory_space<vmem>>, vector<1x16x8xbf16>
    %33 = vector.shape_cast %32 : vector<1x16x8xbf16> to vector<16x8xbf16>
    %34 = vector.shape_cast %31 : vector<16x8xbf16> to vector<1x16x8xbf16>
    tpu.vector_store %arg5[%c4, %c0_17, %c0_18], %34 {strides = array<i32>} : memref<32x16x8xbf16, #tpu.memory_space<vmem>>, vector<1x16x8xbf16>,
    %35 = vector.extract_strided_slice %30 {offsets = [0, 8], sizes = [16, 8], strides = [1, 1]} : vector<16x16xbf16> to vector<16x8xbf16>
    %c5 = arith.constant 5 : index
    %c0_19 = arith.constant 0 : index
    %c0_20 = arith.constant 0 : index
    %36 = vector.load %arg5[%c5, %c0_19, %c0_20] : memref<32x16x8xbf16, #tpu.memory_space<vmem>>, vector<1x16x8xbf16>
    %37 = vector.shape_cast %36 : vector<1x16x8xbf16> to vector<16x8xbf16>
    %38 = vector.shape_cast %35 : vector<16x8xbf16> to vector<1x16x8xbf16>
    tpu.vector_store %arg5[%c5, %c0_19, %c0_20], %38 {strides = array<i32>} : memref<32x16x8xbf16, #tpu.memory_space<vmem>>, vector<1x16x8xbf16>,
    %39 = vector.extract_strided_slice %11 {offsets = [48, 0], sizes = [16, 16], strides = [1, 1]} : vector<256x16xbf16> to vector<16x16xbf16>
    %40 = vector.extract_strided_slice %39 {offsets = [0, 0], sizes = [16, 8], strides = [1, 1]} : vector<16x16xbf16> to vector<16x8xbf16>
    %c6 = arith.constant 6 : index
    %c0_21 = arith.constant 0 : index
    %c0_22 = arith.constant 0 : index
    %41 = vector.load %arg5[%c6, %c0_21, %c0_22] : memref<32x16x8xbf16, #tpu.memory_space<vmem>>, vector<1x16x8xbf16>
    %42 = vector.shape_cast %41 : vector<1x16x8xbf16> to vector<16x8xbf16>
    %43 = vector.shape_cast %40 : vector<16x8xbf16> to vector<1x16x8xbf16>
    tpu.vector_store %arg5[%c6, %c0_21, %c0_22], %43 {strides = array<i32>} : memref<32x16x8xbf16, #tpu.memory_space<vmem>>, vector<1x16x8xbf16>,
    %44 = vector.extract_strided_slice %39 {offsets = [0, 8], sizes = [16, 8], strides = [1, 1]} : vector<16x16xbf16> to vector<16x8xbf16>
    %c7 = arith.constant 7 : index
    %c0_23 = arith.constant 0 : index
    %c0_24 = arith.constant 0 : index
    %45 = vector.load %arg5[%c7, %c0_23, %c0_24] : memref<32x16x8xbf16, #tpu.memory_space<vmem>>, vector<1x16x8xbf16>
    %46 = vector.shape_cast %45 : vector<1x16x8xbf16> to vector<16x8xbf16>
    %47 = vector.shape_cast %44 : vector<16x8xbf16> to vector<1x16x8xbf16>
    tpu.vector_store %arg5[%c7, %c0_23, %c0_24], %47 {strides = array<i32>} : memref<32x16x8xbf16, #tpu.memory_space<vmem>>, vector<1x16x8xbf16>,
    %48 = vector.extract_strided_slice %11 {offsets = [64, 0], sizes = [16, 16], strides = [1, 1]} : vector<256x16xbf16> to vector<16x16xbf16>
    %49 = vector.extract_strided_slice %48 {offsets = [0, 0], sizes = [16, 8], strides = [1, 1]} : vector<16x16xbf16> to vector<16x8xbf16>
    %c8 = arith.constant 8 : index
    %c0_25 = arith.constant 0 : index
    %c0_26 = arith.constant 0 : index
    %50 = vector.load %arg5[%c8, %c0_25, %c0_26] : memref<32x16x8xbf16, #tpu.memory_space<vmem>>, vector<1x16x8xbf16>
    %51 = vector.shape_cast %50 : vector<1x16x8xbf16> to vector<16x8xbf16>
    %52 = vector.shape_cast %49 : vector<16x8xbf16> to vector<1x16x8xbf16>
    tpu.vector_store %arg5[%c8, %c0_25, %c0_26], %52 {strides = array<i32>} : memref<32x16x8xbf16, #tpu.memory_space<vmem>>, vector<1x16x8xbf16>,
    %53 = vector.extract_strided_slice %48 {offsets = [0, 8], sizes = [16, 8], strides = [1, 1]} : vector<16x16xbf16> to vector<16x8xbf16>
    %c9 = arith.constant 9 : index
    %c0_27 = arith.constant 0 : index
    %c0_28 = arith.constant 0 : index
    %54 = vector.load %arg5[%c9, %c0_27, %c0_28] : memref<32x16x8xbf16, #tpu.memory_space<vmem>>, vector<1x16x8xbf16>
    %55 = vector.shape_cast %54 : vector<1x16x8xbf16> to vector<16x8xbf16>
    %56 = vector.shape_cast %53 : vector<16x8xbf16> to vector<1x16x8xbf16>
    tpu.vector_store %arg5[%c9, %c0_27, %c0_28], %56 {strides = array<i32>} : memref<32x16x8xbf16, #tpu.memory_space<vmem>>, vector<1x16x8xbf16>,
    %57 = vector.extract_strided_slice %11 {offsets = [80, 0], sizes = [16, 16], strides = [1, 1]} : vector<256x16xbf16> to vector<16x16xbf16>
    %58 = vector.extract_strided_slice %57 {offsets = [0, 0], sizes = [16, 8], strides = [1, 1]} : vector<16x16xbf16> to vector<16x8xbf16>
    %c10 = arith.constant 10 : index
    %c0_29 = arith.constant 0 : index
    %c0_30 = arith.constant 0 : index
    %59 = vector.load %arg5[%c10, %c0_29, %c0_30] : memref<32x16x8xbf16, #tpu.memory_space<vmem>>, vector<1x16x8xbf16>
    %60 = vector.shape_cast %59 : vector<1x16x8xbf16> to vector<16x8xbf16>
    %61 = vector.shape_cast %58 : vector<16x8xbf16> to vector<1x16x8xbf16>
    tpu.vector_store %arg5[%c10, %c0_29, %c0_30], %61 {strides = array<i32>} : memref<32x16x8xbf16, #tpu.memory_space<vmem>>, vector<1x16x8xbf16>,
    %62 = vector.extract_strided_slice %57 {offsets = [0, 8], sizes = [16, 8], strides = [1, 1]} : vector<16x16xbf16> to vector<16x8xbf16>
    %c11 = arith.constant 11 : index
    %c0_31 = arith.constant 0 : index
    %c0_32 = arith.constant 0 : index
    %63 = vector.load %arg5[%c11, %c0_31, %c0_32] : memref<32x16x8xbf16, #tpu.memory_space<vmem>>, vector<1x16x8xbf16>
    %64 = vector.shape_cast %63 : vector<1x16x8xbf16> to vector<16x8xbf16>
    %65 = vector.shape_cast %62 : vector<16x8xbf16> to vector<1x16x8xbf16>
    tpu.vector_store %arg5[%c11, %c0_31, %c0_32], %65 {strides = array<i32>} : memref<32x16x8xbf16, #tpu.memory_space<vmem>>, vector<1x16x8xbf16>,
    %66 = vector.extract_strided_slice %11 {offsets = [96, 0], sizes = [16, 16], strides = [1, 1]} : vector<256x16xbf16> to vector<16x16xbf16>
    %67 = vector.extract_strided_slice %66 {offsets = [0, 0], sizes = [16, 8], strides = [1, 1]} : vector<16x16xbf16> to vector<16x8xbf16>
    %c12 = arith.constant 12 : index
    %c0_33 = arith.constant 0 : index
    %c0_34 = arith.constant 0 : index
    %68 = vector.load %arg5[%c12, %c0_33, %c0_34] : memref<32x16x8xbf16, #tpu.memory_space<vmem>>, vector<1x16x8xbf16>
    %69 = vector.shape_cast %68 : vector<1x16x8xbf16> to vector<16x8xbf16>
    %70 = vector.shape_cast %67 : vector<16x8xbf16> to vector<1x16x8xbf16>
    tpu.vector_store %arg5[%c12, %c0_33, %c0_34], %70 {strides = array<i32>} : memref<32x16x8xbf16, #tpu.memory_space<vmem>>, vector<1x16x8xbf16>,
    %71 = vector.extract_strided_slice %66 {offsets = [0, 8], sizes = [16, 8], strides = [1, 1]} : vector<16x16xbf16> to vector<16x8xbf16>
    %c13 = arith.constant 13 : index
    %c0_35 = arith.constant 0 : index
    %c0_36 = arith.constant 0 : index
    %72 = vector.load %arg5[%c13, %c0_35, %c0_36] : memref<32x16x8xbf16, #tpu.memory_space<vmem>>, vector<1x16x8xbf16>
    %73 = vector.shape_cast %72 : vector<1x16x8xbf16> to vector<16x8xbf16>
    %74 = vector.shape_cast %71 : vector<16x8xbf16> to vector<1x16x8xbf16>
    tpu.vector_store %arg5[%c13, %c0_35, %c0_36], %74 {strides = array<i32>} : memref<32x16x8xbf16, #tpu.memory_space<vmem>>, vector<1x16x8xbf16>,
    %75 = vector.extract_strided_slice %11 {offsets = [112, 0], sizes = [16, 16], strides = [1, 1]} : vector<256x16xbf16> to vector<16x16xbf16>
    %76 = vector.extract_strided_slice %75 {offsets = [0, 0], sizes = [16, 8], strides = [1, 1]} : vector<16x16xbf16> to vector<16x8xbf16>
    %c14 = arith.constant 14 : index
    %c0_37 = arith.constant 0 : index
    %c0_38 = arith.constant 0 : index
    %77 = vector.load %arg5[%c14, %c0_37, %c0_38] : memref<32x16x8xbf16, #tpu.memory_space<vmem>>, vector<1x16x8xbf16>
    %78 = vector.shape_cast %77 : vector<1x16x8xbf16> to vector<16x8xbf16>
    %79 = vector.shape_cast %76 : vector<16x8xbf16> to vector<1x16x8xbf16>
    tpu.vector_store %arg5[%c14, %c0_37, %c0_38], %79 {strides = array<i32>} : memref<32x16x8xbf16, #tpu.memory_space<vmem>>, vector<1x16x8xbf16>,
    %80 = vector.extract_strided_slice %75 {offsets = [0, 8], sizes = [16, 8], strides = [1, 1]} : vector<16x16xbf16> to vector<16x8xbf16>
    %c15 = arith.constant 15 : index
    %c0_39 = arith.constant 0 : index
    %c0_40 = arith.constant 0 : index
    %81 = vector.load %arg5[%c15, %c0_39, %c0_40] : memref<32x16x8xbf16, #tpu.memory_space<vmem>>, vector<1x16x8xbf16>
    %82 = vector.shape_cast %81 : vector<1x16x8xbf16> to vector<16x8xbf16>
    %83 = vector.shape_cast %80 : vector<16x8xbf16> to vector<1x16x8xbf16>
    tpu.vector_store %arg5[%c15, %c0_39, %c0_40], %83 {strides = array<i32>} : memref<32x16x8xbf16, #tpu.memory_space<vmem>>, vector<1x16x8xbf16>,
    %84 = vector.extract_strided_slice %11 {offsets = [128, 0], sizes = [16, 16], strides = [1, 1]} : vector<256x16xbf16> to vector<16x16xbf16>
    %85 = vector.extract_strided_slice %84 {offsets = [0, 0], sizes = [16, 8], strides = [1, 1]} : vector<16x16xbf16> to vector<16x8xbf16>
    %c16 = arith.constant 16 : index
    %c0_41 = arith.constant 0 : index
    %c0_42 = arith.constant 0 : index
    %86 = vector.load %arg5[%c16, %c0_41, %c0_42] : memref<32x16x8xbf16, #tpu.memory_space<vmem>>, vector<1x16x8xbf16>
    %87 = vector.shape_cast %86 : vector<1x16x8xbf16> to vector<16x8xbf16>
    %88 = vector.shape_cast %85 : vector<16x8xbf16> to vector<1x16x8xbf16>
    tpu.vector_store %arg5[%c16, %c0_41, %c0_42], %88 {strides = array<i32>} : memref<32x16x8xbf16, #tpu.memory_space<vmem>>, vector<1x16x8xbf16>,
    %89 = vector.extract_strided_slice %84 {offsets = [0, 8], sizes = [16, 8], strides = [1, 1]} : vector<16x16xbf16> to vector<16x8xbf16>
    %c17 = arith.constant 17 : index
    %c0_43 = arith.constant 0 : index
    %c0_44 = arith.constant 0 : index
    %90 = vector.load %arg5[%c17, %c0_43, %c0_44] : memref<32x16x8xbf16, #tpu.memory_space<vmem>>, vector<1x16x8xbf16>
    %91 = vector.shape_cast %90 : vector<1x16x8xbf16> to vector<16x8xbf16>
    %92 = vector.shape_cast %89 : vector<16x8xbf16> to vector<1x16x8xbf16>
    tpu.vector_store %arg5[%c17, %c0_43, %c0_44], %92 {strides = array<i32>} : memref<32x16x8xbf16, #tpu.memory_space<vmem>>, vector<1x16x8xbf16>,
    %93 = vector.extract_strided_slice %11 {offsets = [144, 0], sizes = [16, 16], strides = [1, 1]} : vector<256x16xbf16> to vector<16x16xbf16>
    %94 = vector.extract_strided_slice %93 {offsets = [0, 0], sizes = [16, 8], strides = [1, 1]} : vector<16x16xbf16> to vector<16x8xbf16>
    %c18 = arith.constant 18 : index
    %c0_45 = arith.constant 0 : index
    %c0_46 = arith.constant 0 : index
    %95 = vector.load %arg5[%c18, %c0_45, %c0_46] : memref<32x16x8xbf16, #tpu.memory_space<vmem>>, vector<1x16x8xbf16>
    %96 = vector.shape_cast %95 : vector<1x16x8xbf16> to vector<16x8xbf16>
    %97 = vector.shape_cast %94 : vector<16x8xbf16> to vector<1x16x8xbf16>
    tpu.vector_store %arg5[%c18, %c0_45, %c0_46], %97 {strides = array<i32>} : memref<32x16x8xbf16, #tpu.memory_space<vmem>>, vector<1x16x8xbf16>,
    %98 = vector.extract_strided_slice %93 {offsets = [0, 8], sizes = [16, 8], strides = [1, 1]} : vector<16x16xbf16> to vector<16x8xbf16>
    %c19 = arith.constant 19 : index
    %c0_47 = arith.constant 0 : index
    %c0_48 = arith.constant 0 : index
    %99 = vector.load %arg5[%c19, %c0_47, %c0_48] : memref<32x16x8xbf16, #tpu.memory_space<vmem>>, vector<1x16x8xbf16>
    %100 = vector.shape_cast %99 : vector<1x16x8xbf16> to vector<16x8xbf16>
    %101 = vector.shape_cast %98 : vector<16x8xbf16> to vector<1x16x8xbf16>
    tpu.vector_store %arg5[%c19, %c0_47, %c0_48], %101 {strides = array<i32>} : memref<32x16x8xbf16, #tpu.memory_space<vmem>>, vector<1x16x8xbf16>,
    %102 = vector.extract_strided_slice %11 {offsets = [160, 0], sizes = [16, 16], strides = [1, 1]} : vector<256x16xbf16> to vector<16x16xbf16>
    %103 = vector.extract_strided_slice %102 {offsets = [0, 0], sizes = [16, 8], strides = [1, 1]} : vector<16x16xbf16> to vector<16x8xbf16>
    %c20 = arith.constant 20 : index
    %c0_49 = arith.constant 0 : index
    %c0_50 = arith.constant 0 : index
    %104 = vector.load %arg5[%c20, %c0_49, %c0_50] : memref<32x16x8xbf16, #tpu.memory_space<vmem>>, vector<1x16x8xbf16>
    %105 = vector.shape_cast %104 : vector<1x16x8xbf16> to vector<16x8xbf16>
    %106 = vector.shape_cast %103 : vector<16x8xbf16> to vector<1x16x8xbf16>
    tpu.vector_store %arg5[%c20, %c0_49, %c0_50], %106 {strides = array<i32>} : memref<32x16x8xbf16, #tpu.memory_space<vmem>>, vector<1x16x8xbf16>,
    %107 = vector.extract_strided_slice %102 {offsets = [0, 8], sizes = [16, 8], strides = [1, 1]} : vector<16x16xbf16> to vector<16x8xbf16>
    %c21 = arith.constant 21 : index
    %c0_51 = arith.constant 0 : index
    %c0_52 = arith.constant 0 : index
    %108 = vector.load %arg5[%c21, %c0_51, %c0_52] : memref<32x16x8xbf16, #tpu.memory_space<vmem>>, vector<1x16x8xbf16>
    %109 = vector.shape_cast %108 : vector<1x16x8xbf16> to vector<16x8xbf16>
    %110 = vector.shape_cast %107 : vector<16x8xbf16> to vector<1x16x8xbf16>
    tpu.vector_store %arg5[%c21, %c0_51, %c0_52], %110 {strides = array<i32>} : memref<32x16x8xbf16, #tpu.memory_space<vmem>>, vector<1x16x8xbf16>,
    %111 = vector.extract_strided_slice %11 {offsets = [176, 0], sizes = [16, 16], strides = [1, 1]} : vector<256x16xbf16> to vector<16x16xbf16>
    %112 = vector.extract_strided_slice %111 {offsets = [0, 0], sizes = [16, 8], strides = [1, 1]} : vector<16x16xbf16> to vector<16x8xbf16>
    %c22 = arith.constant 22 : index
    %c0_53 = arith.constant 0 : index
    %c0_54 = arith.constant 0 : index
    %113 = vector.load %arg5[%c22, %c0_53, %c0_54] : memref<32x16x8xbf16, #tpu.memory_space<vmem>>, vector<1x16x8xbf16>
    %114 = vector.shape_cast %113 : vector<1x16x8xbf16> to vector<16x8xbf16>
    %115 = vector.shape_cast %112 : vector<16x8xbf16> to vector<1x16x8xbf16>
    tpu.vector_store %arg5[%c22, %c0_53, %c0_54], %115 {strides = array<i32>} : memref<32x16x8xbf16, #tpu.memory_space<vmem>>, vector<1x16x8xbf16>,
    %116 = vector.extract_strided_slice %111 {offsets = [0, 8], sizes = [16, 8], strides = [1, 1]} : vector<16x16xbf16> to vector<16x8xbf16>
    %c23 = arith.constant 23 : index
    %c0_55 = arith.constant 0 : index
    %c0_56 = arith.constant 0 : index
    %117 = vector.load %arg5[%c23, %c0_55, %c0_56] : memref<32x16x8xbf16, #tpu.memory_space<vmem>>, vector<1x16x8xbf16>
    %118 = vector.shape_cast %117 : vector<1x16x8xbf16> to vector<16x8xbf16>
    %119 = vector.shape_cast %116 : vector<16x8xbf16> to vector<1x16x8xbf16>
    tpu.vector_store %arg5[%c23, %c0_55, %c0_56], %119 {strides = array<i32>} : memref<32x16x8xbf16, #tpu.memory_space<vmem>>, vector<1x16x8xbf16>,
    %120 = vector.extract_strided_slice %11 {offsets = [192, 0], sizes = [16, 16], strides = [1, 1]} : vector<256x16xbf16> to vector<16x16xbf16>
    %121 = vector.extract_strided_slice %120 {offsets = [0, 0], sizes = [16, 8], strides = [1, 1]} : vector<16x16xbf16> to vector<16x8xbf16>
    %c24 = arith.constant 24 : index
    %c0_57 = arith.constant 0 : index
    %c0_58 = arith.constant 0 : index
    %122 = vector.load %arg5[%c24, %c0_57, %c0_58] : memref<32x16x8xbf16, #tpu.memory_space<vmem>>, vector<1x16x8xbf16>
    %123 = vector.shape_cast %122 : vector<1x16x8xbf16> to vector<16x8xbf16>
    %124 = vector.shape_cast %121 : vector<16x8xbf16> to vector<1x16x8xbf16>
    tpu.vector_store %arg5[%c24, %c0_57, %c0_58], %124 {strides = array<i32>} : memref<32x16x8xbf16, #tpu.memory_space<vmem>>, vector<1x16x8xbf16>,
    %125 = vector.extract_strided_slice %120 {offsets = [0, 8], sizes = [16, 8], strides = [1, 1]} : vector<16x16xbf16> to vector<16x8xbf16>
    %c25 = arith.constant 25 : index
    %c0_59 = arith.constant 0 : index
    %c0_60 = arith.constant 0 : index
    %126 = vector.load %arg5[%c25, %c0_59, %c0_60] : memref<32x16x8xbf16, #tpu.memory_space<vmem>>, vector<1x16x8xbf16>
    %127 = vector.shape_cast %126 : vector<1x16x8xbf16> to vector<16x8xbf16>
    %128 = vector.shape_cast %125 : vector<16x8xbf16> to vector<1x16x8xbf16>
    tpu.vector_store %arg5[%c25, %c0_59, %c0_60], %128 {strides = array<i32>} : memref<32x16x8xbf16, #tpu.memory_space<vmem>>, vector<1x16x8xbf16>,
    %129 = vector.extract_strided_slice %11 {offsets = [208, 0], sizes = [16, 16], strides = [1, 1]} : vector<256x16xbf16> to vector<16x16xbf16>
    %130 = vector.extract_strided_slice %129 {offsets = [0, 0], sizes = [16, 8], strides = [1, 1]} : vector<16x16xbf16> to vector<16x8xbf16>
    %c26 = arith.constant 26 : index
    %c0_61 = arith.constant 0 : index
    %c0_62 = arith.constant 0 : index
    %131 = vector.load %arg5[%c26, %c0_61, %c0_62] : memref<32x16x8xbf16, #tpu.memory_space<vmem>>, vector<1x16x8xbf16>
    %132 = vector.shape_cast %131 : vector<1x16x8xbf16> to vector<16x8xbf16>
    %133 = vector.shape_cast %130 : vector<16x8xbf16> to vector<1x16x8xbf16>
    tpu.vector_store %arg5[%c26, %c0_61, %c0_62], %133 {strides = array<i32>} : memref<32x16x8xbf16, #tpu.memory_space<vmem>>, vector<1x16x8xbf16>,
    %134 = vector.extract_strided_slice %129 {offsets = [0, 8], sizes = [16, 8], strides = [1, 1]} : vector<16x16xbf16> to vector<16x8xbf16>
    %c27 = arith.constant 27 : index
    %c0_63 = arith.constant 0 : index
    %c0_64 = arith.constant 0 : index
    %135 = vector.load %arg5[%c27, %c0_63, %c0_64] : memref<32x16x8xbf16, #tpu.memory_space<vmem>>, vector<1x16x8xbf16>
    %136 = vector.shape_cast %135 : vector<1x16x8xbf16> to vector<16x8xbf16>
    %137 = vector.shape_cast %134 : vector<16x8xbf16> to vector<1x16x8xbf16>
    tpu.vector_store %arg5[%c27, %c0_63, %c0_64], %137 {strides = array<i32>} : memref<32x16x8xbf16, #tpu.memory_space<vmem>>, vector<1x16x8xbf16>,
    %138 = vector.extract_strided_slice %11 {offsets = [224, 0], sizes = [16, 16], strides = [1, 1]} : vector<256x16xbf16> to vector<16x16xbf16>
    %139 = vector.extract_strided_slice %138 {offsets = [0, 0], sizes = [16, 8], strides = [1, 1]} : vector<16x16xbf16> to vector<16x8xbf16>
    %c28 = arith.constant 28 : index
    %c0_65 = arith.constant 0 : index
    %c0_66 = arith.constant 0 : index
    %140 = vector.load %arg5[%c28, %c0_65, %c0_66] : memref<32x16x8xbf16, #tpu.memory_space<vmem>>, vector<1x16x8xbf16>
    %141 = vector.shape_cast %140 : vector<1x16x8xbf16> to vector<16x8xbf16>
    %142 = vector.shape_cast %139 : vector<16x8xbf16> to vector<1x16x8xbf16>
    tpu.vector_store %arg5[%c28, %c0_65, %c0_66], %142 {strides = array<i32>} : memref<32x16x8xbf16, #tpu.memory_space<vmem>>, vector<1x16x8xbf16>,
    %143 = vector.extract_strided_slice %138 {offsets = [0, 8], sizes = [16, 8], strides = [1, 1]} : vector<16x16xbf16> to vector<16x8xbf16>
    %c29 = arith.constant 29 : index
    %c0_67 = arith.constant 0 : index
    %c0_68 = arith.constant 0 : index
    %144 = vector.load %arg5[%c29, %c0_67, %c0_68] : memref<32x16x8xbf16, #tpu.memory_space<vmem>>, vector<1x16x8xbf16>
    %145 = vector.shape_cast %144 : vector<1x16x8xbf16> to vector<16x8xbf16>
    %146 = vector.shape_cast %143 : vector<16x8xbf16> to vector<1x16x8xbf16>
    tpu.vector_store %arg5[%c29, %c0_67, %c0_68], %146 {strides = array<i32>} : memref<32x16x8xbf16, #tpu.memory_space<vmem>>, vector<1x16x8xbf16>,
    %147 = vector.extract_strided_slice %11 {offsets = [240, 0], sizes = [16, 16], strides = [1, 1]} : vector<256x16xbf16> to vector<16x16xbf16>
    %148 = vector.extract_strided_slice %147 {offsets = [0, 0], sizes = [16, 8], strides = [1, 1]} : vector<16x16xbf16> to vector<16x8xbf16>
    %c30 = arith.constant 30 : index
    %c0_69 = arith.constant 0 : index
    %c0_70 = arith.constant 0 : index
    %149 = vector.load %arg5[%c30, %c0_69, %c0_70] : memref<32x16x8xbf16, #tpu.memory_space<vmem>>, vector<1x16x8xbf16>
    %150 = vector.shape_cast %149 : vector<1x16x8xbf16> to vector<16x8xbf16>
    %151 = vector.shape_cast %148 : vector<16x8xbf16> to vector<1x16x8xbf16>
    tpu.vector_store %arg5[%c30, %c0_69, %c0_70], %151 {strides = array<i32>} : memref<32x16x8xbf16, #tpu.memory_space<vmem>>, vector<1x16x8xbf16>,
    %152 = vector.extract_strided_slice %147 {offsets = [0, 8], sizes = [16, 8], strides = [1, 1]} : vector<16x16xbf16> to vector<16x8xbf16>
    %c31 = arith.constant 31 : index
    %c0_71 = arith.constant 0 : index
    %c0_72 = arith.constant 0 : index
    %153 = vector.load %arg5[%c31, %c0_71, %c0_72] : memref<32x16x8xbf16, #tpu.memory_space<vmem>>, vector<1x16x8xbf16>
    %154 = vector.shape_cast %153 : vector<1x16x8xbf16> to vector<16x8xbf16>
    %155 = vector.shape_cast %152 : vector<16x8xbf16> to vector<1x16x8xbf16>
    tpu.vector_store %arg5[%c31, %c0_71, %c0_72], %155 {strides = array<i32>} : memref<32x16x8xbf16, #tpu.memory_space<vmem>>, vector<1x16x8xbf16>,
    return
  }
  func.func @transform_0(%arg0: i32) -> (i32, i32) {
    %c0_i32 = arith.constant 0 : i32
    %c0_i32_0 = arith.constant 0 : i32
    return %arg0, %c0_i32 : i32, i32
  }
  func.func @transform_1(%arg0: i32) -> (i32, i32) {
    %c0_i32 = arith.constant 0 : i32
    %c0_i32_0 = arith.constant 0 : i32
    %c0_i32_1 = arith.constant 0 : i32
    return %c0_i32, %c0_i32_0 : i32, i32
  }
  func.func @transform_2(%arg0: i32) -> (i32, i32) {
    %c0_i32 = arith.constant 0 : i32
    %c0_i32_0 = arith.constant 0 : i32
    %c0_i32_1 = arith.constant 0 : i32
    return %c0_i32, %c0_i32_0 : i32, i32
  }
  func.func @transform_3(%arg0: i32) -> (i32, i32) {
    %c0_i32 = arith.constant 0 : i32
    %c0_i32_0 = arith.constant 0 : i32
    %c0_i32_1 = arith.constant 0 : i32
    return %c0_i32, %c0_i32_0 : i32, i32
  }
  func.func @transform_4(%arg0: i32) -> (i32, i32, i32) {
    %c0_i32 = arith.constant 0 : i32
    %c0_i32_0 = arith.constant 0 : i32
    %c0_i32_1 = arith.constant 0 : i32
    return %arg0, %c0_i32, %c0_i32_0 : i32, i32, i32
  }
}

module attributes {stable_mosaic.version = 11 : i64} {
  func.func @_stats_kernel(%arg0: i32, %arg1: memref<1024x16xbf16, #tpu.memory_space<vmem>>, %arg2: memref<16x128xbf16, #tpu.memory_space<vmem>>, %arg3: memref<1x8x128xf32, #tpu.memory_space<vmem>>) attributes {dimension_semantics = [#tpu.dimension_semantics<parallel>], iteration_bounds = array<i64: 2>, scalar_prefetch = 0 : i64, scratch_operands = 0 : i64, tpu.core_type = #tpu.core_type<tc>, window_params = [{transform_indices = @transform_0, window_bounds = array<i64: 1024, 16>}, {pipeline_mode = #tpu.pipeline_mode<synchronous>, transform_indices = @transform_1, window_bounds = array<i64: 16, 128>}, {transform_indices = @transform_2, window_bounds = array<i64: 1, 8, 128>}]} {
    %c0 = arith.constant 0 : index
    %c0_0 = arith.constant 0 : index
    %0 = vector.load %arg1[%c0, %c0_0] : memref<1024x16xbf16, #tpu.memory_space<vmem>>, vector<1024x16xbf16>
    %c0_1 = arith.constant 0 : index
    %c0_2 = arith.constant 0 : index
    %1 = vector.load %arg2[%c0_1, %c0_2] : memref<16x128xbf16, #tpu.memory_space<vmem>>, vector<16x128xbf16>
    %cst = arith.constant dense<0.000000e+00> : vector<1024x128xf32>
    %2 = tpu.matmul %0, %1, %cst {dimension_numbers = #tpu.dot_dimension_numbers<[1], [0], [0], [1], [0, 0, 1, 1], [], []>} : vector<1024x16xbf16>, vector<16x128xbf16>, vector<1024x128xf32> -> vector<1024x128xf32>
    %cst_3 = arith.constant dense<0.000000e+00> : vector<128xf32>
    %3 = vector.multi_reduction <add>, %2, %cst_3 [0] : vector<1024x128xf32> to vector<128xf32>
    %4 = vector.shape_cast %3 : vector<128xf32> to vector<1x128xf32>
    %5 = arith.mulf %2, %2 : vector<1024x128xf32>
    %cst_4 = arith.constant dense<0.000000e+00> : vector<128xf32>
    %6 = vector.multi_reduction <add>, %5, %cst_4 [0] : vector<1024x128xf32> to vector<128xf32>
    %7 = vector.shape_cast %6 : vector<128xf32> to vector<1x128xf32>
    %8 = tpu.iota {dimensions = array<i32: 0>} : vector<8x128xi32>
    %c0_i32 = arith.constant 0 : i32
    %9 = vector.broadcast %c0_i32 : i32 to vector<8x128xi32>
    %10 = arith.cmpi eq, %8, %9 : vector<8x128xi32>
    %11 = vector.shape_cast %4 : vector<1x128xf32> to vector<1x128xf32>
    %12 = vector.broadcast %11 : vector<1x128xf32> to vector<8x128xf32>
    %c1_i32 = arith.constant 1 : i32
    %13 = vector.broadcast %c1_i32 : i32 to vector<8x128xi32>
    %14 = arith.cmpi eq, %8, %13 : vector<8x128xi32>
    %15 = vector.shape_cast %7 : vector<1x128xf32> to vector<1x128xf32>
    %16 = vector.broadcast %15 : vector<1x128xf32> to vector<8x128xf32>
    %cst_5 = arith.constant 0.000000e+00 : f32
    %17 = vector.broadcast %cst_5 : f32 to vector<8x128xf32>
    %18 = arith.select %14, %16, %17 : vector<8x128xi1>, vector<8x128xf32>
    %19 = arith.select %10, %12, %18 : vector<8x128xi1>, vector<8x128xf32>
    %20 = vector.shape_cast %19 : vector<8x128xf32> to vector<1x8x128xf32>
    %c0_6 = arith.constant 0 : index
    %c0_7 = arith.constant 0 : index
    %c0_8 = arith.constant 0 : index
    %21 = vector.load %arg3[%c0_6, %c0_7, %c0_8] : memref<1x8x128xf32, #tpu.memory_space<vmem>>, vector<1x8x128xf32>
    tpu.vector_store %arg3[%c0_6, %c0_7, %c0_8], %20 {strides = array<i32>} : memref<1x8x128xf32, #tpu.memory_space<vmem>>, vector<1x8x128xf32>,
    return
  }
  func.func @transform_0(%arg0: i32) -> (i32, i32) {
    %c0_i32 = arith.constant 0 : i32
    %c0_i32_0 = arith.constant 0 : i32
    return %arg0, %c0_i32 : i32, i32
  }
  func.func @transform_1(%arg0: i32) -> (i32, i32) {
    %c0_i32 = arith.constant 0 : i32
    %c0_i32_0 = arith.constant 0 : i32
    %c0_i32_1 = arith.constant 0 : i32
    return %c0_i32, %c0_i32_0 : i32, i32
  }
  func.func @transform_2(%arg0: i32) -> (i32, i32, i32) {
    %c0_i32 = arith.constant 0 : i32
    %c0_i32_0 = arith.constant 0 : i32
    %c0_i32_1 = arith.constant 0 : i32
    return %arg0, %c0_i32, %c0_i32_0 : i32, i32, i32
  }
}

module attributes {stable_mosaic.version = 11 : i64} {
  func.func @_bn_relu_interleave_kernel(%arg0: i32, %arg1: memref<1024x16xbf16, #tpu.memory_space<vmem>>, %arg2: memref<16x128xbf16, #tpu.memory_space<vmem>>, %arg3: memref<1x128xf32, #tpu.memory_space<vmem>>, %arg4: memref<1x128xf32, #tpu.memory_space<vmem>>, %arg5: memref<64x32x64xbf16, #tpu.memory_space<vmem>>) attributes {dimension_semantics = [#tpu.dimension_semantics<parallel>], iteration_bounds = array<i64: 2>, scalar_prefetch = 0 : i64, scratch_operands = 0 : i64, tpu.core_type = #tpu.core_type<tc>, window_params = [{transform_indices = @transform_0, window_bounds = array<i64: 1024, 16>}, {pipeline_mode = #tpu.pipeline_mode<synchronous>, transform_indices = @transform_1, window_bounds = array<i64: 16, 128>}, {pipeline_mode = #tpu.pipeline_mode<synchronous>, transform_indices = @transform_2, window_bounds = array<i64: 1, 128>}, {pipeline_mode = #tpu.pipeline_mode<synchronous>, transform_indices = @transform_3, window_bounds = array<i64: 1, 128>}, {transform_indices = @transform_4, window_bounds = array<i64: 64, 32, 64>}]} {
    %c0 = arith.constant 0 : index
    %c0_0 = arith.constant 0 : index
    %0 = vector.load %arg1[%c0, %c0_0] : memref<1024x16xbf16, #tpu.memory_space<vmem>>, vector<1024x16xbf16>
    %c0_1 = arith.constant 0 : index
    %c0_2 = arith.constant 0 : index
    %1 = vector.load %arg2[%c0_1, %c0_2] : memref<16x128xbf16, #tpu.memory_space<vmem>>, vector<16x128xbf16>
    %cst = arith.constant dense<0.000000e+00> : vector<1024x128xf32>
    %2 = tpu.matmul %0, %1, %cst {dimension_numbers = #tpu.dot_dimension_numbers<[1], [0], [0], [1], [0, 0, 1, 1], [], []>} : vector<1024x16xbf16>, vector<16x128xbf16>, vector<1024x128xf32> -> vector<1024x128xf32>
    %c0_3 = arith.constant 0 : index
    %c0_4 = arith.constant 0 : index
    %3 = vector.load %arg3[%c0_3, %c0_4] : memref<1x128xf32, #tpu.memory_space<vmem>>, vector<1x128xf32>
    %4 = vector.broadcast %3 : vector<1x128xf32> to vector<1024x128xf32>
    %5 = arith.mulf %2, %4 : vector<1024x128xf32>
    %c0_5 = arith.constant 0 : index
    %c0_6 = arith.constant 0 : index
    %6 = vector.load %arg4[%c0_5, %c0_6] : memref<1x128xf32, #tpu.memory_space<vmem>>, vector<1x128xf32>
    %7 = vector.broadcast %6 : vector<1x128xf32> to vector<1024x128xf32>
    %8 = arith.addf %5, %7 : vector<1024x128xf32>
    %cst_7 = arith.constant 0.000000e+00 : f32
    %9 = vector.broadcast %cst_7 : f32 to vector<1024x128xf32>
    %10 = arith.maximumf %8, %9 : vector<1024x128xf32>
    %11 = arith.truncf %10 : vector<1024x128xf32> to vector<1024x128xbf16>
    %12 = vector.extract_strided_slice %11 {offsets = [0, 0], sizes = [32, 128], strides = [1, 1]} : vector<1024x128xbf16> to vector<32x128xbf16>
    %13 = vector.extract_strided_slice %12 {offsets = [0, 0], sizes = [32, 64], strides = [1, 1]} : vector<32x128xbf16> to vector<32x64xbf16>
    %c0_8 = arith.constant 0 : index
    %c0_9 = arith.constant 0 : index
    %c0_10 = arith.constant 0 : index
    %14 = vector.load %arg5[%c0_8, %c0_9, %c0_10] : memref<64x32x64xbf16, #tpu.memory_space<vmem>>, vector<1x32x64xbf16>
    %15 = vector.shape_cast %14 : vector<1x32x64xbf16> to vector<32x64xbf16>
    %16 = vector.shape_cast %13 : vector<32x64xbf16> to vector<1x32x64xbf16>
    tpu.vector_store %arg5[%c0_8, %c0_9, %c0_10], %16 {strides = array<i32>} : memref<64x32x64xbf16, #tpu.memory_space<vmem>>, vector<1x32x64xbf16>,
    %17 = vector.extract_strided_slice %12 {offsets = [0, 64], sizes = [32, 64], strides = [1, 1]} : vector<32x128xbf16> to vector<32x64xbf16>
    %c1 = arith.constant 1 : index
    %c0_11 = arith.constant 0 : index
    %c0_12 = arith.constant 0 : index
    %18 = vector.load %arg5[%c1, %c0_11, %c0_12] : memref<64x32x64xbf16, #tpu.memory_space<vmem>>, vector<1x32x64xbf16>
    %19 = vector.shape_cast %18 : vector<1x32x64xbf16> to vector<32x64xbf16>
    %20 = vector.shape_cast %17 : vector<32x64xbf16> to vector<1x32x64xbf16>
    tpu.vector_store %arg5[%c1, %c0_11, %c0_12], %20 {strides = array<i32>} : memref<64x32x64xbf16, #tpu.memory_space<vmem>>, vector<1x32x64xbf16>,
    %21 = vector.extract_strided_slice %11 {offsets = [32, 0], sizes = [32, 128], strides = [1, 1]} : vector<1024x128xbf16> to vector<32x128xbf16>
    %22 = vector.extract_strided_slice %21 {offsets = [0, 0], sizes = [32, 64], strides = [1, 1]} : vector<32x128xbf16> to vector<32x64xbf16>
    %c2 = arith.constant 2 : index
    %c0_13 = arith.constant 0 : index
    %c0_14 = arith.constant 0 : index
    %23 = vector.load %arg5[%c2, %c0_13, %c0_14] : memref<64x32x64xbf16, #tpu.memory_space<vmem>>, vector<1x32x64xbf16>
    %24 = vector.shape_cast %23 : vector<1x32x64xbf16> to vector<32x64xbf16>
    %25 = vector.shape_cast %22 : vector<32x64xbf16> to vector<1x32x64xbf16>
    tpu.vector_store %arg5[%c2, %c0_13, %c0_14], %25 {strides = array<i32>} : memref<64x32x64xbf16, #tpu.memory_space<vmem>>, vector<1x32x64xbf16>,
    %26 = vector.extract_strided_slice %21 {offsets = [0, 64], sizes = [32, 64], strides = [1, 1]} : vector<32x128xbf16> to vector<32x64xbf16>
    %c3 = arith.constant 3 : index
    %c0_15 = arith.constant 0 : index
    %c0_16 = arith.constant 0 : index
    %27 = vector.load %arg5[%c3, %c0_15, %c0_16] : memref<64x32x64xbf16, #tpu.memory_space<vmem>>, vector<1x32x64xbf16>
    %28 = vector.shape_cast %27 : vector<1x32x64xbf16> to vector<32x64xbf16>
    %29 = vector.shape_cast %26 : vector<32x64xbf16> to vector<1x32x64xbf16>
    tpu.vector_store %arg5[%c3, %c0_15, %c0_16], %29 {strides = array<i32>} : memref<64x32x64xbf16, #tpu.memory_space<vmem>>, vector<1x32x64xbf16>,
    %30 = vector.extract_strided_slice %11 {offsets = [64, 0], sizes = [32, 128], strides = [1, 1]} : vector<1024x128xbf16> to vector<32x128xbf16>
    %31 = vector.extract_strided_slice %30 {offsets = [0, 0], sizes = [32, 64], strides = [1, 1]} : vector<32x128xbf16> to vector<32x64xbf16>
    %c4 = arith.constant 4 : index
    %c0_17 = arith.constant 0 : index
    %c0_18 = arith.constant 0 : index
    %32 = vector.load %arg5[%c4, %c0_17, %c0_18] : memref<64x32x64xbf16, #tpu.memory_space<vmem>>, vector<1x32x64xbf16>
    %33 = vector.shape_cast %32 : vector<1x32x64xbf16> to vector<32x64xbf16>
    %34 = vector.shape_cast %31 : vector<32x64xbf16> to vector<1x32x64xbf16>
    tpu.vector_store %arg5[%c4, %c0_17, %c0_18], %34 {strides = array<i32>} : memref<64x32x64xbf16, #tpu.memory_space<vmem>>, vector<1x32x64xbf16>,
    %35 = vector.extract_strided_slice %30 {offsets = [0, 64], sizes = [32, 64], strides = [1, 1]} : vector<32x128xbf16> to vector<32x64xbf16>
    %c5 = arith.constant 5 : index
    %c0_19 = arith.constant 0 : index
    %c0_20 = arith.constant 0 : index
    %36 = vector.load %arg5[%c5, %c0_19, %c0_20] : memref<64x32x64xbf16, #tpu.memory_space<vmem>>, vector<1x32x64xbf16>
    %37 = vector.shape_cast %36 : vector<1x32x64xbf16> to vector<32x64xbf16>
    %38 = vector.shape_cast %35 : vector<32x64xbf16> to vector<1x32x64xbf16>
    tpu.vector_store %arg5[%c5, %c0_19, %c0_20], %38 {strides = array<i32>} : memref<64x32x64xbf16, #tpu.memory_space<vmem>>, vector<1x32x64xbf16>,
    %39 = vector.extract_strided_slice %11 {offsets = [96, 0], sizes = [32, 128], strides = [1, 1]} : vector<1024x128xbf16> to vector<32x128xbf16>
    %40 = vector.extract_strided_slice %39 {offsets = [0, 0], sizes = [32, 64], strides = [1, 1]} : vector<32x128xbf16> to vector<32x64xbf16>
    %c6 = arith.constant 6 : index
    %c0_21 = arith.constant 0 : index
    %c0_22 = arith.constant 0 : index
    %41 = vector.load %arg5[%c6, %c0_21, %c0_22] : memref<64x32x64xbf16, #tpu.memory_space<vmem>>, vector<1x32x64xbf16>
    %42 = vector.shape_cast %41 : vector<1x32x64xbf16> to vector<32x64xbf16>
    %43 = vector.shape_cast %40 : vector<32x64xbf16> to vector<1x32x64xbf16>
    tpu.vector_store %arg5[%c6, %c0_21, %c0_22], %43 {strides = array<i32>} : memref<64x32x64xbf16, #tpu.memory_space<vmem>>, vector<1x32x64xbf16>,
    %44 = vector.extract_strided_slice %39 {offsets = [0, 64], sizes = [32, 64], strides = [1, 1]} : vector<32x128xbf16> to vector<32x64xbf16>
    %c7 = arith.constant 7 : index
    %c0_23 = arith.constant 0 : index
    %c0_24 = arith.constant 0 : index
    %45 = vector.load %arg5[%c7, %c0_23, %c0_24] : memref<64x32x64xbf16, #tpu.memory_space<vmem>>, vector<1x32x64xbf16>
    %46 = vector.shape_cast %45 : vector<1x32x64xbf16> to vector<32x64xbf16>
    %47 = vector.shape_cast %44 : vector<32x64xbf16> to vector<1x32x64xbf16>
    tpu.vector_store %arg5[%c7, %c0_23, %c0_24], %47 {strides = array<i32>} : memref<64x32x64xbf16, #tpu.memory_space<vmem>>, vector<1x32x64xbf16>,
    %48 = vector.extract_strided_slice %11 {offsets = [128, 0], sizes = [32, 128], strides = [1, 1]} : vector<1024x128xbf16> to vector<32x128xbf16>
    %49 = vector.extract_strided_slice %48 {offsets = [0, 0], sizes = [32, 64], strides = [1, 1]} : vector<32x128xbf16> to vector<32x64xbf16>
    %c8 = arith.constant 8 : index
    %c0_25 = arith.constant 0 : index
    %c0_26 = arith.constant 0 : index
    %50 = vector.load %arg5[%c8, %c0_25, %c0_26] : memref<64x32x64xbf16, #tpu.memory_space<vmem>>, vector<1x32x64xbf16>
    %51 = vector.shape_cast %50 : vector<1x32x64xbf16> to vector<32x64xbf16>
    %52 = vector.shape_cast %49 : vector<32x64xbf16> to vector<1x32x64xbf16>
    tpu.vector_store %arg5[%c8, %c0_25, %c0_26], %52 {strides = array<i32>} : memref<64x32x64xbf16, #tpu.memory_space<vmem>>, vector<1x32x64xbf16>,
    %53 = vector.extract_strided_slice %48 {offsets = [0, 64], sizes = [32, 64], strides = [1, 1]} : vector<32x128xbf16> to vector<32x64xbf16>
    %c9 = arith.constant 9 : index
    %c0_27 = arith.constant 0 : index
    %c0_28 = arith.constant 0 : index
    %54 = vector.load %arg5[%c9, %c0_27, %c0_28] : memref<64x32x64xbf16, #tpu.memory_space<vmem>>, vector<1x32x64xbf16>
    %55 = vector.shape_cast %54 : vector<1x32x64xbf16> to vector<32x64xbf16>
    %56 = vector.shape_cast %53 : vector<32x64xbf16> to vector<1x32x64xbf16>
    tpu.vector_store %arg5[%c9, %c0_27, %c0_28], %56 {strides = array<i32>} : memref<64x32x64xbf16, #tpu.memory_space<vmem>>, vector<1x32x64xbf16>,
    %57 = vector.extract_strided_slice %11 {offsets = [160, 0], sizes = [32, 128], strides = [1, 1]} : vector<1024x128xbf16> to vector<32x128xbf16>
    %58 = vector.extract_strided_slice %57 {offsets = [0, 0], sizes = [32, 64], strides = [1, 1]} : vector<32x128xbf16> to vector<32x64xbf16>
    %c10 = arith.constant 10 : index
    %c0_29 = arith.constant 0 : index
    %c0_30 = arith.constant 0 : index
    %59 = vector.load %arg5[%c10, %c0_29, %c0_30] : memref<64x32x64xbf16, #tpu.memory_space<vmem>>, vector<1x32x64xbf16>
    %60 = vector.shape_cast %59 : vector<1x32x64xbf16> to vector<32x64xbf16>
    %61 = vector.shape_cast %58 : vector<32x64xbf16> to vector<1x32x64xbf16>
    tpu.vector_store %arg5[%c10, %c0_29, %c0_30], %61 {strides = array<i32>} : memref<64x32x64xbf16, #tpu.memory_space<vmem>>, vector<1x32x64xbf16>,
    %62 = vector.extract_strided_slice %57 {offsets = [0, 64], sizes = [32, 64], strides = [1, 1]} : vector<32x128xbf16> to vector<32x64xbf16>
    %c11 = arith.constant 11 : index
    %c0_31 = arith.constant 0 : index
    %c0_32 = arith.constant 0 : index
    %63 = vector.load %arg5[%c11, %c0_31, %c0_32] : memref<64x32x64xbf16, #tpu.memory_space<vmem>>, vector<1x32x64xbf16>
    %64 = vector.shape_cast %63 : vector<1x32x64xbf16> to vector<32x64xbf16>
    %65 = vector.shape_cast %62 : vector<32x64xbf16> to vector<1x32x64xbf16>
    tpu.vector_store %arg5[%c11, %c0_31, %c0_32], %65 {strides = array<i32>} : memref<64x32x64xbf16, #tpu.memory_space<vmem>>, vector<1x32x64xbf16>,
    %66 = vector.extract_strided_slice %11 {offsets = [192, 0], sizes = [32, 128], strides = [1, 1]} : vector<1024x128xbf16> to vector<32x128xbf16>
    %67 = vector.extract_strided_slice %66 {offsets = [0, 0], sizes = [32, 64], strides = [1, 1]} : vector<32x128xbf16> to vector<32x64xbf16>
    %c12 = arith.constant 12 : index
    %c0_33 = arith.constant 0 : index
    %c0_34 = arith.constant 0 : index
    %68 = vector.load %arg5[%c12, %c0_33, %c0_34] : memref<64x32x64xbf16, #tpu.memory_space<vmem>>, vector<1x32x64xbf16>
    %69 = vector.shape_cast %68 : vector<1x32x64xbf16> to vector<32x64xbf16>
    %70 = vector.shape_cast %67 : vector<32x64xbf16> to vector<1x32x64xbf16>
    tpu.vector_store %arg5[%c12, %c0_33, %c0_34], %70 {strides = array<i32>} : memref<64x32x64xbf16, #tpu.memory_space<vmem>>, vector<1x32x64xbf16>,
    %71 = vector.extract_strided_slice %66 {offsets = [0, 64], sizes = [32, 64], strides = [1, 1]} : vector<32x128xbf16> to vector<32x64xbf16>
    %c13 = arith.constant 13 : index
    %c0_35 = arith.constant 0 : index
    %c0_36 = arith.constant 0 : index
    %72 = vector.load %arg5[%c13, %c0_35, %c0_36] : memref<64x32x64xbf16, #tpu.memory_space<vmem>>, vector<1x32x64xbf16>
    %73 = vector.shape_cast %72 : vector<1x32x64xbf16> to vector<32x64xbf16>
    %74 = vector.shape_cast %71 : vector<32x64xbf16> to vector<1x32x64xbf16>
    tpu.vector_store %arg5[%c13, %c0_35, %c0_36], %74 {strides = array<i32>} : memref<64x32x64xbf16, #tpu.memory_space<vmem>>, vector<1x32x64xbf16>,
    %75 = vector.extract_strided_slice %11 {offsets = [224, 0], sizes = [32, 128], strides = [1, 1]} : vector<1024x128xbf16> to vector<32x128xbf16>
    %76 = vector.extract_strided_slice %75 {offsets = [0, 0], sizes = [32, 64], strides = [1, 1]} : vector<32x128xbf16> to vector<32x64xbf16>
    %c14 = arith.constant 14 : index
    %c0_37 = arith.constant 0 : index
    %c0_38 = arith.constant 0 : index
    %77 = vector.load %arg5[%c14, %c0_37, %c0_38] : memref<64x32x64xbf16, #tpu.memory_space<vmem>>, vector<1x32x64xbf16>
    %78 = vector.shape_cast %77 : vector<1x32x64xbf16> to vector<32x64xbf16>
    %79 = vector.shape_cast %76 : vector<32x64xbf16> to vector<1x32x64xbf16>
    tpu.vector_store %arg5[%c14, %c0_37, %c0_38], %79 {strides = array<i32>} : memref<64x32x64xbf16, #tpu.memory_space<vmem>>, vector<1x32x64xbf16>,
    %80 = vector.extract_strided_slice %75 {offsets = [0, 64], sizes = [32, 64], strides = [1, 1]} : vector<32x128xbf16> to vector<32x64xbf16>
    %c15 = arith.constant 15 : index
    %c0_39 = arith.constant 0 : index
    %c0_40 = arith.constant 0 : index
    %81 = vector.load %arg5[%c15, %c0_39, %c0_40] : memref<64x32x64xbf16, #tpu.memory_space<vmem>>, vector<1x32x64xbf16>
    %82 = vector.shape_cast %81 : vector<1x32x64xbf16> to vector<32x64xbf16>
    %83 = vector.shape_cast %80 : vector<32x64xbf16> to vector<1x32x64xbf16>
    tpu.vector_store %arg5[%c15, %c0_39, %c0_40], %83 {strides = array<i32>} : memref<64x32x64xbf16, #tpu.memory_space<vmem>>, vector<1x32x64xbf16>,
    %84 = vector.extract_strided_slice %11 {offsets = [256, 0], sizes = [32, 128], strides = [1, 1]} : vector<1024x128xbf16> to vector<32x128xbf16>
    %85 = vector.extract_strided_slice %84 {offsets = [0, 0], sizes = [32, 64], strides = [1, 1]} : vector<32x128xbf16> to vector<32x64xbf16>
    %c16 = arith.constant 16 : index
    %c0_41 = arith.constant 0 : index
    %c0_42 = arith.constant 0 : index
    %86 = vector.load %arg5[%c16, %c0_41, %c0_42] : memref<64x32x64xbf16, #tpu.memory_space<vmem>>, vector<1x32x64xbf16>
    %87 = vector.shape_cast %86 : vector<1x32x64xbf16> to vector<32x64xbf16>
    %88 = vector.shape_cast %85 : vector<32x64xbf16> to vector<1x32x64xbf16>
    tpu.vector_store %arg5[%c16, %c0_41, %c0_42], %88 {strides = array<i32>} : memref<64x32x64xbf16, #tpu.memory_space<vmem>>, vector<1x32x64xbf16>,
    %89 = vector.extract_strided_slice %84 {offsets = [0, 64], sizes = [32, 64], strides = [1, 1]} : vector<32x128xbf16> to vector<32x64xbf16>
    %c17 = arith.constant 17 : index
    %c0_43 = arith.constant 0 : index
    %c0_44 = arith.constant 0 : index
    %90 = vector.load %arg5[%c17, %c0_43, %c0_44] : memref<64x32x64xbf16, #tpu.memory_space<vmem>>, vector<1x32x64xbf16>
    %91 = vector.shape_cast %90 : vector<1x32x64xbf16> to vector<32x64xbf16>
    %92 = vector.shape_cast %89 : vector<32x64xbf16> to vector<1x32x64xbf16>
    tpu.vector_store %arg5[%c17, %c0_43, %c0_44], %92 {strides = array<i32>} : memref<64x32x64xbf16, #tpu.memory_space<vmem>>, vector<1x32x64xbf16>,
    %93 = vector.extract_strided_slice %11 {offsets = [288, 0], sizes = [32, 128], strides = [1, 1]} : vector<1024x128xbf16> to vector<32x128xbf16>
    %94 = vector.extract_strided_slice %93 {offsets = [0, 0], sizes = [32, 64], strides = [1, 1]} : vector<32x128xbf16> to vector<32x64xbf16>
    %c18 = arith.constant 18 : index
    %c0_45 = arith.constant 0 : index
    %c0_46 = arith.constant 0 : index
    %95 = vector.load %arg5[%c18, %c0_45, %c0_46] : memref<64x32x64xbf16, #tpu.memory_space<vmem>>, vector<1x32x64xbf16>
    %96 = vector.shape_cast %95 : vector<1x32x64xbf16> to vector<32x64xbf16>
    %97 = vector.shape_cast %94 : vector<32x64xbf16> to vector<1x32x64xbf16>
    tpu.vector_store %arg5[%c18, %c0_45, %c0_46], %97 {strides = array<i32>} : memref<64x32x64xbf16, #tpu.memory_space<vmem>>, vector<1x32x64xbf16>,
    %98 = vector.extract_strided_slice %93 {offsets = [0, 64], sizes = [32, 64], strides = [1, 1]} : vector<32x128xbf16> to vector<32x64xbf16>
    %c19 = arith.constant 19 : index
    %c0_47 = arith.constant 0 : index
    %c0_48 = arith.constant 0 : index
    %99 = vector.load %arg5[%c19, %c0_47, %c0_48] : memref<64x32x64xbf16, #tpu.memory_space<vmem>>, vector<1x32x64xbf16>
    %100 = vector.shape_cast %99 : vector<1x32x64xbf16> to vector<32x64xbf16>
    %101 = vector.shape_cast %98 : vector<32x64xbf16> to vector<1x32x64xbf16>
    tpu.vector_store %arg5[%c19, %c0_47, %c0_48], %101 {strides = array<i32>} : memref<64x32x64xbf16, #tpu.memory_space<vmem>>, vector<1x32x64xbf16>,
    %102 = vector.extract_strided_slice %11 {offsets = [320, 0], sizes = [32, 128], strides = [1, 1]} : vector<1024x128xbf16> to vector<32x128xbf16>
    %103 = vector.extract_strided_slice %102 {offsets = [0, 0], sizes = [32, 64], strides = [1, 1]} : vector<32x128xbf16> to vector<32x64xbf16>
    %c20 = arith.constant 20 : index
    %c0_49 = arith.constant 0 : index
    %c0_50 = arith.constant 0 : index
    %104 = vector.load %arg5[%c20, %c0_49, %c0_50] : memref<64x32x64xbf16, #tpu.memory_space<vmem>>, vector<1x32x64xbf16>
    %105 = vector.shape_cast %104 : vector<1x32x64xbf16> to vector<32x64xbf16>
    %106 = vector.shape_cast %103 : vector<32x64xbf16> to vector<1x32x64xbf16>
    tpu.vector_store %arg5[%c20, %c0_49, %c0_50], %106 {strides = array<i32>} : memref<64x32x64xbf16, #tpu.memory_space<vmem>>, vector<1x32x64xbf16>,
    %107 = vector.extract_strided_slice %102 {offsets = [0, 64], sizes = [32, 64], strides = [1, 1]} : vector<32x128xbf16> to vector<32x64xbf16>
    %c21 = arith.constant 21 : index
    %c0_51 = arith.constant 0 : index
    %c0_52 = arith.constant 0 : index
    %108 = vector.load %arg5[%c21, %c0_51, %c0_52] : memref<64x32x64xbf16, #tpu.memory_space<vmem>>, vector<1x32x64xbf16>
    %109 = vector.shape_cast %108 : vector<1x32x64xbf16> to vector<32x64xbf16>
    %110 = vector.shape_cast %107 : vector<32x64xbf16> to vector<1x32x64xbf16>
    tpu.vector_store %arg5[%c21, %c0_51, %c0_52], %110 {strides = array<i32>} : memref<64x32x64xbf16, #tpu.memory_space<vmem>>, vector<1x32x64xbf16>,
    %111 = vector.extract_strided_slice %11 {offsets = [352, 0], sizes = [32, 128], strides = [1, 1]} : vector<1024x128xbf16> to vector<32x128xbf16>
    %112 = vector.extract_strided_slice %111 {offsets = [0, 0], sizes = [32, 64], strides = [1, 1]} : vector<32x128xbf16> to vector<32x64xbf16>
    %c22 = arith.constant 22 : index
    %c0_53 = arith.constant 0 : index
    %c0_54 = arith.constant 0 : index
    %113 = vector.load %arg5[%c22, %c0_53, %c0_54] : memref<64x32x64xbf16, #tpu.memory_space<vmem>>, vector<1x32x64xbf16>
    %114 = vector.shape_cast %113 : vector<1x32x64xbf16> to vector<32x64xbf16>
    %115 = vector.shape_cast %112 : vector<32x64xbf16> to vector<1x32x64xbf16>
    tpu.vector_store %arg5[%c22, %c0_53, %c0_54], %115 {strides = array<i32>} : memref<64x32x64xbf16, #tpu.memory_space<vmem>>, vector<1x32x64xbf16>,
    %116 = vector.extract_strided_slice %111 {offsets = [0, 64], sizes = [32, 64], strides = [1, 1]} : vector<32x128xbf16> to vector<32x64xbf16>
    %c23 = arith.constant 23 : index
    %c0_55 = arith.constant 0 : index
    %c0_56 = arith.constant 0 : index
    %117 = vector.load %arg5[%c23, %c0_55, %c0_56] : memref<64x32x64xbf16, #tpu.memory_space<vmem>>, vector<1x32x64xbf16>
    %118 = vector.shape_cast %117 : vector<1x32x64xbf16> to vector<32x64xbf16>
    %119 = vector.shape_cast %116 : vector<32x64xbf16> to vector<1x32x64xbf16>
    tpu.vector_store %arg5[%c23, %c0_55, %c0_56], %119 {strides = array<i32>} : memref<64x32x64xbf16, #tpu.memory_space<vmem>>, vector<1x32x64xbf16>,
    %120 = vector.extract_strided_slice %11 {offsets = [384, 0], sizes = [32, 128], strides = [1, 1]} : vector<1024x128xbf16> to vector<32x128xbf16>
    %121 = vector.extract_strided_slice %120 {offsets = [0, 0], sizes = [32, 64], strides = [1, 1]} : vector<32x128xbf16> to vector<32x64xbf16>
    %c24 = arith.constant 24 : index
    %c0_57 = arith.constant 0 : index
    %c0_58 = arith.constant 0 : index
    %122 = vector.load %arg5[%c24, %c0_57, %c0_58] : memref<64x32x64xbf16, #tpu.memory_space<vmem>>, vector<1x32x64xbf16>
    %123 = vector.shape_cast %122 : vector<1x32x64xbf16> to vector<32x64xbf16>
    %124 = vector.shape_cast %121 : vector<32x64xbf16> to vector<1x32x64xbf16>
    tpu.vector_store %arg5[%c24, %c0_57, %c0_58], %124 {strides = array<i32>} : memref<64x32x64xbf16, #tpu.memory_space<vmem>>, vector<1x32x64xbf16>,
    %125 = vector.extract_strided_slice %120 {offsets = [0, 64], sizes = [32, 64], strides = [1, 1]} : vector<32x128xbf16> to vector<32x64xbf16>
    %c25 = arith.constant 25 : index
    %c0_59 = arith.constant 0 : index
    %c0_60 = arith.constant 0 : index
    %126 = vector.load %arg5[%c25, %c0_59, %c0_60] : memref<64x32x64xbf16, #tpu.memory_space<vmem>>, vector<1x32x64xbf16>
    %127 = vector.shape_cast %126 : vector<1x32x64xbf16> to vector<32x64xbf16>
    %128 = vector.shape_cast %125 : vector<32x64xbf16> to vector<1x32x64xbf16>
    tpu.vector_store %arg5[%c25, %c0_59, %c0_60], %128 {strides = array<i32>} : memref<64x32x64xbf16, #tpu.memory_space<vmem>>, vector<1x32x64xbf16>,
    %129 = vector.extract_strided_slice %11 {offsets = [416, 0], sizes = [32, 128], strides = [1, 1]} : vector<1024x128xbf16> to vector<32x128xbf16>
    %130 = vector.extract_strided_slice %129 {offsets = [0, 0], sizes = [32, 64], strides = [1, 1]} : vector<32x128xbf16> to vector<32x64xbf16>
    %c26 = arith.constant 26 : index
    %c0_61 = arith.constant 0 : index
    %c0_62 = arith.constant 0 : index
    %131 = vector.load %arg5[%c26, %c0_61, %c0_62] : memref<64x32x64xbf16, #tpu.memory_space<vmem>>, vector<1x32x64xbf16>
    %132 = vector.shape_cast %131 : vector<1x32x64xbf16> to vector<32x64xbf16>
    %133 = vector.shape_cast %130 : vector<32x64xbf16> to vector<1x32x64xbf16>
    tpu.vector_store %arg5[%c26, %c0_61, %c0_62], %133 {strides = array<i32>} : memref<64x32x64xbf16, #tpu.memory_space<vmem>>, vector<1x32x64xbf16>,
    %134 = vector.extract_strided_slice %129 {offsets = [0, 64], sizes = [32, 64], strides = [1, 1]} : vector<32x128xbf16> to vector<32x64xbf16>
    %c27 = arith.constant 27 : index
    %c0_63 = arith.constant 0 : index
    %c0_64 = arith.constant 0 : index
    %135 = vector.load %arg5[%c27, %c0_63, %c0_64] : memref<64x32x64xbf16, #tpu.memory_space<vmem>>, vector<1x32x64xbf16>
    %136 = vector.shape_cast %135 : vector<1x32x64xbf16> to vector<32x64xbf16>
    %137 = vector.shape_cast %134 : vector<32x64xbf16> to vector<1x32x64xbf16>
    tpu.vector_store %arg5[%c27, %c0_63, %c0_64], %137 {strides = array<i32>} : memref<64x32x64xbf16, #tpu.memory_space<vmem>>, vector<1x32x64xbf16>,
    %138 = vector.extract_strided_slice %11 {offsets = [448, 0], sizes = [32, 128], strides = [1, 1]} : vector<1024x128xbf16> to vector<32x128xbf16>
    %139 = vector.extract_strided_slice %138 {offsets = [0, 0], sizes = [32, 64], strides = [1, 1]} : vector<32x128xbf16> to vector<32x64xbf16>
    %c28 = arith.constant 28 : index
    %c0_65 = arith.constant 0 : index
    %c0_66 = arith.constant 0 : index
    %140 = vector.load %arg5[%c28, %c0_65, %c0_66] : memref<64x32x64xbf16, #tpu.memory_space<vmem>>, vector<1x32x64xbf16>
    %141 = vector.shape_cast %140 : vector<1x32x64xbf16> to vector<32x64xbf16>
    %142 = vector.shape_cast %139 : vector<32x64xbf16> to vector<1x32x64xbf16>
    tpu.vector_store %arg5[%c28, %c0_65, %c0_66], %142 {strides = array<i32>} : memref<64x32x64xbf16, #tpu.memory_space<vmem>>, vector<1x32x64xbf16>,
    %143 = vector.extract_strided_slice %138 {offsets = [0, 64], sizes = [32, 64], strides = [1, 1]} : vector<32x128xbf16> to vector<32x64xbf16>
    %c29 = arith.constant 29 : index
    %c0_67 = arith.constant 0 : index
    %c0_68 = arith.constant 0 : index
    %144 = vector.load %arg5[%c29, %c0_67, %c0_68] : memref<64x32x64xbf16, #tpu.memory_space<vmem>>, vector<1x32x64xbf16>
    %145 = vector.shape_cast %144 : vector<1x32x64xbf16> to vector<32x64xbf16>
    %146 = vector.shape_cast %143 : vector<32x64xbf16> to vector<1x32x64xbf16>
    tpu.vector_store %arg5[%c29, %c0_67, %c0_68], %146 {strides = array<i32>} : memref<64x32x64xbf16, #tpu.memory_space<vmem>>, vector<1x32x64xbf16>,
    %147 = vector.extract_strided_slice %11 {offsets = [480, 0], sizes = [32, 128], strides = [1, 1]} : vector<1024x128xbf16> to vector<32x128xbf16>
    %148 = vector.extract_strided_slice %147 {offsets = [0, 0], sizes = [32, 64], strides = [1, 1]} : vector<32x128xbf16> to vector<32x64xbf16>
    %c30 = arith.constant 30 : index
    %c0_69 = arith.constant 0 : index
    %c0_70 = arith.constant 0 : index
    %149 = vector.load %arg5[%c30, %c0_69, %c0_70] : memref<64x32x64xbf16, #tpu.memory_space<vmem>>, vector<1x32x64xbf16>
    %150 = vector.shape_cast %149 : vector<1x32x64xbf16> to vector<32x64xbf16>
    %151 = vector.shape_cast %148 : vector<32x64xbf16> to vector<1x32x64xbf16>
    tpu.vector_store %arg5[%c30, %c0_69, %c0_70], %151 {strides = array<i32>} : memref<64x32x64xbf16, #tpu.memory_space<vmem>>, vector<1x32x64xbf16>,
    %152 = vector.extract_strided_slice %147 {offsets = [0, 64], sizes = [32, 64], strides = [1, 1]} : vector<32x128xbf16> to vector<32x64xbf16>
    %c31 = arith.constant 31 : index
    %c0_71 = arith.constant 0 : index
    %c0_72 = arith.constant 0 : index
    %153 = vector.load %arg5[%c31, %c0_71, %c0_72] : memref<64x32x64xbf16, #tpu.memory_space<vmem>>, vector<1x32x64xbf16>
    %154 = vector.shape_cast %153 : vector<1x32x64xbf16> to vector<32x64xbf16>
    %155 = vector.shape_cast %152 : vector<32x64xbf16> to vector<1x32x64xbf16>
    tpu.vector_store %arg5[%c31, %c0_71, %c0_72], %155 {strides = array<i32>} : memref<64x32x64xbf16, #tpu.memory_space<vmem>>, vector<1x32x64xbf16>,
    %156 = vector.extract_strided_slice %11 {offsets = [512, 0], sizes = [32, 128], strides = [1, 1]} : vector<1024x128xbf16> to vector<32x128xbf16>
    %157 = vector.extract_strided_slice %156 {offsets = [0, 0], sizes = [32, 64], strides = [1, 1]} : vector<32x128xbf16> to vector<32x64xbf16>
    %c32 = arith.constant 32 : index
    %c0_73 = arith.constant 0 : index
    %c0_74 = arith.constant 0 : index
    %158 = vector.load %arg5[%c32, %c0_73, %c0_74] : memref<64x32x64xbf16, #tpu.memory_space<vmem>>, vector<1x32x64xbf16>
    %159 = vector.shape_cast %158 : vector<1x32x64xbf16> to vector<32x64xbf16>
    %160 = vector.shape_cast %157 : vector<32x64xbf16> to vector<1x32x64xbf16>
    tpu.vector_store %arg5[%c32, %c0_73, %c0_74], %160 {strides = array<i32>} : memref<64x32x64xbf16, #tpu.memory_space<vmem>>, vector<1x32x64xbf16>,
    %161 = vector.extract_strided_slice %156 {offsets = [0, 64], sizes = [32, 64], strides = [1, 1]} : vector<32x128xbf16> to vector<32x64xbf16>
    %c33 = arith.constant 33 : index
    %c0_75 = arith.constant 0 : index
    %c0_76 = arith.constant 0 : index
    %162 = vector.load %arg5[%c33, %c0_75, %c0_76] : memref<64x32x64xbf16, #tpu.memory_space<vmem>>, vector<1x32x64xbf16>
    %163 = vector.shape_cast %162 : vector<1x32x64xbf16> to vector<32x64xbf16>
    %164 = vector.shape_cast %161 : vector<32x64xbf16> to vector<1x32x64xbf16>
    tpu.vector_store %arg5[%c33, %c0_75, %c0_76], %164 {strides = array<i32>} : memref<64x32x64xbf16, #tpu.memory_space<vmem>>, vector<1x32x64xbf16>,
    %165 = vector.extract_strided_slice %11 {offsets = [544, 0], sizes = [32, 128], strides = [1, 1]} : vector<1024x128xbf16> to vector<32x128xbf16>
    %166 = vector.extract_strided_slice %165 {offsets = [0, 0], sizes = [32, 64], strides = [1, 1]} : vector<32x128xbf16> to vector<32x64xbf16>
    %c34 = arith.constant 34 : index
    %c0_77 = arith.constant 0 : index
    %c0_78 = arith.constant 0 : index
    %167 = vector.load %arg5[%c34, %c0_77, %c0_78] : memref<64x32x64xbf16, #tpu.memory_space<vmem>>, vector<1x32x64xbf16>
    %168 = vector.shape_cast %167 : vector<1x32x64xbf16> to vector<32x64xbf16>
    %169 = vector.shape_cast %166 : vector<32x64xbf16> to vector<1x32x64xbf16>
    tpu.vector_store %arg5[%c34, %c0_77, %c0_78], %169 {strides = array<i32>} : memref<64x32x64xbf16, #tpu.memory_space<vmem>>, vector<1x32x64xbf16>,
    %170 = vector.extract_strided_slice %165 {offsets = [0, 64], sizes = [32, 64], strides = [1, 1]} : vector<32x128xbf16> to vector<32x64xbf16>
    %c35 = arith.constant 35 : index
    %c0_79 = arith.constant 0 : index
    %c0_80 = arith.constant 0 : index
    %171 = vector.load %arg5[%c35, %c0_79, %c0_80] : memref<64x32x64xbf16, #tpu.memory_space<vmem>>, vector<1x32x64xbf16>
    %172 = vector.shape_cast %171 : vector<1x32x64xbf16> to vector<32x64xbf16>
    %173 = vector.shape_cast %170 : vector<32x64xbf16> to vector<1x32x64xbf16>
    tpu.vector_store %arg5[%c35, %c0_79, %c0_80], %173 {strides = array<i32>} : memref<64x32x64xbf16, #tpu.memory_space<vmem>>, vector<1x32x64xbf16>,
    %174 = vector.extract_strided_slice %11 {offsets = [576, 0], sizes = [32, 128], strides = [1, 1]} : vector<1024x128xbf16> to vector<32x128xbf16>
    %175 = vector.extract_strided_slice %174 {offsets = [0, 0], sizes = [32, 64], strides = [1, 1]} : vector<32x128xbf16> to vector<32x64xbf16>
    %c36 = arith.constant 36 : index
    %c0_81 = arith.constant 0 : index
    %c0_82 = arith.constant 0 : index
    %176 = vector.load %arg5[%c36, %c0_81, %c0_82] : memref<64x32x64xbf16, #tpu.memory_space<vmem>>, vector<1x32x64xbf16>
    %177 = vector.shape_cast %176 : vector<1x32x64xbf16> to vector<32x64xbf16>
    %178 = vector.shape_cast %175 : vector<32x64xbf16> to vector<1x32x64xbf16>
    tpu.vector_store %arg5[%c36, %c0_81, %c0_82], %178 {strides = array<i32>} : memref<64x32x64xbf16, #tpu.memory_space<vmem>>, vector<1x32x64xbf16>,
    %179 = vector.extract_strided_slice %174 {offsets = [0, 64], sizes = [32, 64], strides = [1, 1]} : vector<32x128xbf16> to vector<32x64xbf16>
    %c37 = arith.constant 37 : index
    %c0_83 = arith.constant 0 : index
    %c0_84 = arith.constant 0 : index
    %180 = vector.load %arg5[%c37, %c0_83, %c0_84] : memref<64x32x64xbf16, #tpu.memory_space<vmem>>, vector<1x32x64xbf16>
    %181 = vector.shape_cast %180 : vector<1x32x64xbf16> to vector<32x64xbf16>
    %182 = vector.shape_cast %179 : vector<32x64xbf16> to vector<1x32x64xbf16>
    tpu.vector_store %arg5[%c37, %c0_83, %c0_84], %182 {strides = array<i32>} : memref<64x32x64xbf16, #tpu.memory_space<vmem>>, vector<1x32x64xbf16>,
    %183 = vector.extract_strided_slice %11 {offsets = [608, 0], sizes = [32, 128], strides = [1, 1]} : vector<1024x128xbf16> to vector<32x128xbf16>
    %184 = vector.extract_strided_slice %183 {offsets = [0, 0], sizes = [32, 64], strides = [1, 1]} : vector<32x128xbf16> to vector<32x64xbf16>
    %c38 = arith.constant 38 : index
    %c0_85 = arith.constant 0 : index
    %c0_86 = arith.constant 0 : index
    %185 = vector.load %arg5[%c38, %c0_85, %c0_86] : memref<64x32x64xbf16, #tpu.memory_space<vmem>>, vector<1x32x64xbf16>
    %186 = vector.shape_cast %185 : vector<1x32x64xbf16> to vector<32x64xbf16>
    %187 = vector.shape_cast %184 : vector<32x64xbf16> to vector<1x32x64xbf16>
    tpu.vector_store %arg5[%c38, %c0_85, %c0_86], %187 {strides = array<i32>} : memref<64x32x64xbf16, #tpu.memory_space<vmem>>, vector<1x32x64xbf16>,
    %188 = vector.extract_strided_slice %183 {offsets = [0, 64], sizes = [32, 64], strides = [1, 1]} : vector<32x128xbf16> to vector<32x64xbf16>
    %c39 = arith.constant 39 : index
    %c0_87 = arith.constant 0 : index
    %c0_88 = arith.constant 0 : index
    %189 = vector.load %arg5[%c39, %c0_87, %c0_88] : memref<64x32x64xbf16, #tpu.memory_space<vmem>>, vector<1x32x64xbf16>
    %190 = vector.shape_cast %189 : vector<1x32x64xbf16> to vector<32x64xbf16>
    %191 = vector.shape_cast %188 : vector<32x64xbf16> to vector<1x32x64xbf16>
    tpu.vector_store %arg5[%c39, %c0_87, %c0_88], %191 {strides = array<i32>} : memref<64x32x64xbf16, #tpu.memory_space<vmem>>, vector<1x32x64xbf16>,
    %192 = vector.extract_strided_slice %11 {offsets = [640, 0], sizes = [32, 128], strides = [1, 1]} : vector<1024x128xbf16> to vector<32x128xbf16>
    %193 = vector.extract_strided_slice %192 {offsets = [0, 0], sizes = [32, 64], strides = [1, 1]} : vector<32x128xbf16> to vector<32x64xbf16>
    %c40 = arith.constant 40 : index
    %c0_89 = arith.constant 0 : index
    %c0_90 = arith.constant 0 : index
    %194 = vector.load %arg5[%c40, %c0_89, %c0_90] : memref<64x32x64xbf16, #tpu.memory_space<vmem>>, vector<1x32x64xbf16>
    %195 = vector.shape_cast %194 : vector<1x32x64xbf16> to vector<32x64xbf16>
    %196 = vector.shape_cast %193 : vector<32x64xbf16> to vector<1x32x64xbf16>
    tpu.vector_store %arg5[%c40, %c0_89, %c0_90], %196 {strides = array<i32>} : memref<64x32x64xbf16, #tpu.memory_space<vmem>>, vector<1x32x64xbf16>,
    %197 = vector.extract_strided_slice %192 {offsets = [0, 64], sizes = [32, 64], strides = [1, 1]} : vector<32x128xbf16> to vector<32x64xbf16>
    %c41 = arith.constant 41 : index
    %c0_91 = arith.constant 0 : index
    %c0_92 = arith.constant 0 : index
    %198 = vector.load %arg5[%c41, %c0_91, %c0_92] : memref<64x32x64xbf16, #tpu.memory_space<vmem>>, vector<1x32x64xbf16>
    %199 = vector.shape_cast %198 : vector<1x32x64xbf16> to vector<32x64xbf16>
    %200 = vector.shape_cast %197 : vector<32x64xbf16> to vector<1x32x64xbf16>
    tpu.vector_store %arg5[%c41, %c0_91, %c0_92], %200 {strides = array<i32>} : memref<64x32x64xbf16, #tpu.memory_space<vmem>>, vector<1x32x64xbf16>,
    %201 = vector.extract_strided_slice %11 {offsets = [672, 0], sizes = [32, 128], strides = [1, 1]} : vector<1024x128xbf16> to vector<32x128xbf16>
    %202 = vector.extract_strided_slice %201 {offsets = [0, 0], sizes = [32, 64], strides = [1, 1]} : vector<32x128xbf16> to vector<32x64xbf16>
    %c42 = arith.constant 42 : index
    %c0_93 = arith.constant 0 : index
    %c0_94 = arith.constant 0 : index
    %203 = vector.load %arg5[%c42, %c0_93, %c0_94] : memref<64x32x64xbf16, #tpu.memory_space<vmem>>, vector<1x32x64xbf16>
    %204 = vector.shape_cast %203 : vector<1x32x64xbf16> to vector<32x64xbf16>
    %205 = vector.shape_cast %202 : vector<32x64xbf16> to vector<1x32x64xbf16>
    tpu.vector_store %arg5[%c42, %c0_93, %c0_94], %205 {strides = array<i32>} : memref<64x32x64xbf16, #tpu.memory_space<vmem>>, vector<1x32x64xbf16>,
    %206 = vector.extract_strided_slice %201 {offsets = [0, 64], sizes = [32, 64], strides = [1, 1]} : vector<32x128xbf16> to vector<32x64xbf16>
    %c43 = arith.constant 43 : index
    %c0_95 = arith.constant 0 : index
    %c0_96 = arith.constant 0 : index
    %207 = vector.load %arg5[%c43, %c0_95, %c0_96] : memref<64x32x64xbf16, #tpu.memory_space<vmem>>, vector<1x32x64xbf16>
    %208 = vector.shape_cast %207 : vector<1x32x64xbf16> to vector<32x64xbf16>
    %209 = vector.shape_cast %206 : vector<32x64xbf16> to vector<1x32x64xbf16>
    tpu.vector_store %arg5[%c43, %c0_95, %c0_96], %209 {strides = array<i32>} : memref<64x32x64xbf16, #tpu.memory_space<vmem>>, vector<1x32x64xbf16>,
    %210 = vector.extract_strided_slice %11 {offsets = [704, 0], sizes = [32, 128], strides = [1, 1]} : vector<1024x128xbf16> to vector<32x128xbf16>
    %211 = vector.extract_strided_slice %210 {offsets = [0, 0], sizes = [32, 64], strides = [1, 1]} : vector<32x128xbf16> to vector<32x64xbf16>
    %c44 = arith.constant 44 : index
    %c0_97 = arith.constant 0 : index
    %c0_98 = arith.constant 0 : index
    %212 = vector.load %arg5[%c44, %c0_97, %c0_98] : memref<64x32x64xbf16, #tpu.memory_space<vmem>>, vector<1x32x64xbf16>
    %213 = vector.shape_cast %212 : vector<1x32x64xbf16> to vector<32x64xbf16>
    %214 = vector.shape_cast %211 : vector<32x64xbf16> to vector<1x32x64xbf16>
    tpu.vector_store %arg5[%c44, %c0_97, %c0_98], %214 {strides = array<i32>} : memref<64x32x64xbf16, #tpu.memory_space<vmem>>, vector<1x32x64xbf16>,
    %215 = vector.extract_strided_slice %210 {offsets = [0, 64], sizes = [32, 64], strides = [1, 1]} : vector<32x128xbf16> to vector<32x64xbf16>
    %c45 = arith.constant 45 : index
    %c0_99 = arith.constant 0 : index
    %c0_100 = arith.constant 0 : index
    %216 = vector.load %arg5[%c45, %c0_99, %c0_100] : memref<64x32x64xbf16, #tpu.memory_space<vmem>>, vector<1x32x64xbf16>
    %217 = vector.shape_cast %216 : vector<1x32x64xbf16> to vector<32x64xbf16>
    %218 = vector.shape_cast %215 : vector<32x64xbf16> to vector<1x32x64xbf16>
    tpu.vector_store %arg5[%c45, %c0_99, %c0_100], %218 {strides = array<i32>} : memref<64x32x64xbf16, #tpu.memory_space<vmem>>, vector<1x32x64xbf16>,
    %219 = vector.extract_strided_slice %11 {offsets = [736, 0], sizes = [32, 128], strides = [1, 1]} : vector<1024x128xbf16> to vector<32x128xbf16>
    %220 = vector.extract_strided_slice %219 {offsets = [0, 0], sizes = [32, 64], strides = [1, 1]} : vector<32x128xbf16> to vector<32x64xbf16>
    %c46 = arith.constant 46 : index
    %c0_101 = arith.constant 0 : index
    %c0_102 = arith.constant 0 : index
    %221 = vector.load %arg5[%c46, %c0_101, %c0_102] : memref<64x32x64xbf16, #tpu.memory_space<vmem>>, vector<1x32x64xbf16>
    %222 = vector.shape_cast %221 : vector<1x32x64xbf16> to vector<32x64xbf16>
    %223 = vector.shape_cast %220 : vector<32x64xbf16> to vector<1x32x64xbf16>
    tpu.vector_store %arg5[%c46, %c0_101, %c0_102], %223 {strides = array<i32>} : memref<64x32x64xbf16, #tpu.memory_space<vmem>>, vector<1x32x64xbf16>,
    %224 = vector.extract_strided_slice %219 {offsets = [0, 64], sizes = [32, 64], strides = [1, 1]} : vector<32x128xbf16> to vector<32x64xbf16>
    %c47 = arith.constant 47 : index
    %c0_103 = arith.constant 0 : index
    %c0_104 = arith.constant 0 : index
    %225 = vector.load %arg5[%c47, %c0_103, %c0_104] : memref<64x32x64xbf16, #tpu.memory_space<vmem>>, vector<1x32x64xbf16>
    %226 = vector.shape_cast %225 : vector<1x32x64xbf16> to vector<32x64xbf16>
    %227 = vector.shape_cast %224 : vector<32x64xbf16> to vector<1x32x64xbf16>
    tpu.vector_store %arg5[%c47, %c0_103, %c0_104], %227 {strides = array<i32>} : memref<64x32x64xbf16, #tpu.memory_space<vmem>>, vector<1x32x64xbf16>,
    %228 = vector.extract_strided_slice %11 {offsets = [768, 0], sizes = [32, 128], strides = [1, 1]} : vector<1024x128xbf16> to vector<32x128xbf16>
    %229 = vector.extract_strided_slice %228 {offsets = [0, 0], sizes = [32, 64], strides = [1, 1]} : vector<32x128xbf16> to vector<32x64xbf16>
    %c48 = arith.constant 48 : index
    %c0_105 = arith.constant 0 : index
    %c0_106 = arith.constant 0 : index
    %230 = vector.load %arg5[%c48, %c0_105, %c0_106] : memref<64x32x64xbf16, #tpu.memory_space<vmem>>, vector<1x32x64xbf16>
    %231 = vector.shape_cast %230 : vector<1x32x64xbf16> to vector<32x64xbf16>
    %232 = vector.shape_cast %229 : vector<32x64xbf16> to vector<1x32x64xbf16>
    tpu.vector_store %arg5[%c48, %c0_105, %c0_106], %232 {strides = array<i32>} : memref<64x32x64xbf16, #tpu.memory_space<vmem>>, vector<1x32x64xbf16>,
    %233 = vector.extract_strided_slice %228 {offsets = [0, 64], sizes = [32, 64], strides = [1, 1]} : vector<32x128xbf16> to vector<32x64xbf16>
    %c49 = arith.constant 49 : index
    %c0_107 = arith.constant 0 : index
    %c0_108 = arith.constant 0 : index
    %234 = vector.load %arg5[%c49, %c0_107, %c0_108] : memref<64x32x64xbf16, #tpu.memory_space<vmem>>, vector<1x32x64xbf16>
    %235 = vector.shape_cast %234 : vector<1x32x64xbf16> to vector<32x64xbf16>
    %236 = vector.shape_cast %233 : vector<32x64xbf16> to vector<1x32x64xbf16>
    tpu.vector_store %arg5[%c49, %c0_107, %c0_108], %236 {strides = array<i32>} : memref<64x32x64xbf16, #tpu.memory_space<vmem>>, vector<1x32x64xbf16>,
    %237 = vector.extract_strided_slice %11 {offsets = [800, 0], sizes = [32, 128], strides = [1, 1]} : vector<1024x128xbf16> to vector<32x128xbf16>
    %238 = vector.extract_strided_slice %237 {offsets = [0, 0], sizes = [32, 64], strides = [1, 1]} : vector<32x128xbf16> to vector<32x64xbf16>
    %c50 = arith.constant 50 : index
    %c0_109 = arith.constant 0 : index
    %c0_110 = arith.constant 0 : index
    %239 = vector.load %arg5[%c50, %c0_109, %c0_110] : memref<64x32x64xbf16, #tpu.memory_space<vmem>>, vector<1x32x64xbf16>
    %240 = vector.shape_cast %239 : vector<1x32x64xbf16> to vector<32x64xbf16>
    %241 = vector.shape_cast %238 : vector<32x64xbf16> to vector<1x32x64xbf16>
    tpu.vector_store %arg5[%c50, %c0_109, %c0_110], %241 {strides = array<i32>} : memref<64x32x64xbf16, #tpu.memory_space<vmem>>, vector<1x32x64xbf16>,
    %242 = vector.extract_strided_slice %237 {offsets = [0, 64], sizes = [32, 64], strides = [1, 1]} : vector<32x128xbf16> to vector<32x64xbf16>
    %c51 = arith.constant 51 : index
    %c0_111 = arith.constant 0 : index
    %c0_112 = arith.constant 0 : index
    %243 = vector.load %arg5[%c51, %c0_111, %c0_112] : memref<64x32x64xbf16, #tpu.memory_space<vmem>>, vector<1x32x64xbf16>
    %244 = vector.shape_cast %243 : vector<1x32x64xbf16> to vector<32x64xbf16>
    %245 = vector.shape_cast %242 : vector<32x64xbf16> to vector<1x32x64xbf16>
    tpu.vector_store %arg5[%c51, %c0_111, %c0_112], %245 {strides = array<i32>} : memref<64x32x64xbf16, #tpu.memory_space<vmem>>, vector<1x32x64xbf16>,
    %246 = vector.extract_strided_slice %11 {offsets = [832, 0], sizes = [32, 128], strides = [1, 1]} : vector<1024x128xbf16> to vector<32x128xbf16>
    %247 = vector.extract_strided_slice %246 {offsets = [0, 0], sizes = [32, 64], strides = [1, 1]} : vector<32x128xbf16> to vector<32x64xbf16>
    %c52 = arith.constant 52 : index
    %c0_113 = arith.constant 0 : index
    %c0_114 = arith.constant 0 : index
    %248 = vector.load %arg5[%c52, %c0_113, %c0_114] : memref<64x32x64xbf16, #tpu.memory_space<vmem>>, vector<1x32x64xbf16>
    %249 = vector.shape_cast %248 : vector<1x32x64xbf16> to vector<32x64xbf16>
    %250 = vector.shape_cast %247 : vector<32x64xbf16> to vector<1x32x64xbf16>
    tpu.vector_store %arg5[%c52, %c0_113, %c0_114], %250 {strides = array<i32>} : memref<64x32x64xbf16, #tpu.memory_space<vmem>>, vector<1x32x64xbf16>,
    %251 = vector.extract_strided_slice %246 {offsets = [0, 64], sizes = [32, 64], strides = [1, 1]} : vector<32x128xbf16> to vector<32x64xbf16>
    %c53 = arith.constant 53 : index
    %c0_115 = arith.constant 0 : index
    %c0_116 = arith.constant 0 : index
    %252 = vector.load %arg5[%c53, %c0_115, %c0_116] : memref<64x32x64xbf16, #tpu.memory_space<vmem>>, vector<1x32x64xbf16>
    %253 = vector.shape_cast %252 : vector<1x32x64xbf16> to vector<32x64xbf16>
    %254 = vector.shape_cast %251 : vector<32x64xbf16> to vector<1x32x64xbf16>
    tpu.vector_store %arg5[%c53, %c0_115, %c0_116], %254 {strides = array<i32>} : memref<64x32x64xbf16, #tpu.memory_space<vmem>>, vector<1x32x64xbf16>,
    %255 = vector.extract_strided_slice %11 {offsets = [864, 0], sizes = [32, 128], strides = [1, 1]} : vector<1024x128xbf16> to vector<32x128xbf16>
    %256 = vector.extract_strided_slice %255 {offsets = [0, 0], sizes = [32, 64], strides = [1, 1]} : vector<32x128xbf16> to vector<32x64xbf16>
    %c54 = arith.constant 54 : index
    %c0_117 = arith.constant 0 : index
    %c0_118 = arith.constant 0 : index
    %257 = vector.load %arg5[%c54, %c0_117, %c0_118] : memref<64x32x64xbf16, #tpu.memory_space<vmem>>, vector<1x32x64xbf16>
    %258 = vector.shape_cast %257 : vector<1x32x64xbf16> to vector<32x64xbf16>
    %259 = vector.shape_cast %256 : vector<32x64xbf16> to vector<1x32x64xbf16>
    tpu.vector_store %arg5[%c54, %c0_117, %c0_118], %259 {strides = array<i32>} : memref<64x32x64xbf16, #tpu.memory_space<vmem>>, vector<1x32x64xbf16>,
    %260 = vector.extract_strided_slice %255 {offsets = [0, 64], sizes = [32, 64], strides = [1, 1]} : vector<32x128xbf16> to vector<32x64xbf16>
    %c55 = arith.constant 55 : index
    %c0_119 = arith.constant 0 : index
    %c0_120 = arith.constant 0 : index
    %261 = vector.load %arg5[%c55, %c0_119, %c0_120] : memref<64x32x64xbf16, #tpu.memory_space<vmem>>, vector<1x32x64xbf16>
    %262 = vector.shape_cast %261 : vector<1x32x64xbf16> to vector<32x64xbf16>
    %263 = vector.shape_cast %260 : vector<32x64xbf16> to vector<1x32x64xbf16>
    tpu.vector_store %arg5[%c55, %c0_119, %c0_120], %263 {strides = array<i32>} : memref<64x32x64xbf16, #tpu.memory_space<vmem>>, vector<1x32x64xbf16>,
    %264 = vector.extract_strided_slice %11 {offsets = [896, 0], sizes = [32, 128], strides = [1, 1]} : vector<1024x128xbf16> to vector<32x128xbf16>
    %265 = vector.extract_strided_slice %264 {offsets = [0, 0], sizes = [32, 64], strides = [1, 1]} : vector<32x128xbf16> to vector<32x64xbf16>
    %c56 = arith.constant 56 : index
    %c0_121 = arith.constant 0 : index
    %c0_122 = arith.constant 0 : index
    %266 = vector.load %arg5[%c56, %c0_121, %c0_122] : memref<64x32x64xbf16, #tpu.memory_space<vmem>>, vector<1x32x64xbf16>
    %267 = vector.shape_cast %266 : vector<1x32x64xbf16> to vector<32x64xbf16>
    %268 = vector.shape_cast %265 : vector<32x64xbf16> to vector<1x32x64xbf16>
    tpu.vector_store %arg5[%c56, %c0_121, %c0_122], %268 {strides = array<i32>} : memref<64x32x64xbf16, #tpu.memory_space<vmem>>, vector<1x32x64xbf16>,
    %269 = vector.extract_strided_slice %264 {offsets = [0, 64], sizes = [32, 64], strides = [1, 1]} : vector<32x128xbf16> to vector<32x64xbf16>
    %c57 = arith.constant 57 : index
    %c0_123 = arith.constant 0 : index
    %c0_124 = arith.constant 0 : index
    %270 = vector.load %arg5[%c57, %c0_123, %c0_124] : memref<64x32x64xbf16, #tpu.memory_space<vmem>>, vector<1x32x64xbf16>
    %271 = vector.shape_cast %270 : vector<1x32x64xbf16> to vector<32x64xbf16>
    %272 = vector.shape_cast %269 : vector<32x64xbf16> to vector<1x32x64xbf16>
    tpu.vector_store %arg5[%c57, %c0_123, %c0_124], %272 {strides = array<i32>} : memref<64x32x64xbf16, #tpu.memory_space<vmem>>, vector<1x32x64xbf16>,
    %273 = vector.extract_strided_slice %11 {offsets = [928, 0], sizes = [32, 128], strides = [1, 1]} : vector<1024x128xbf16> to vector<32x128xbf16>
    %274 = vector.extract_strided_slice %273 {offsets = [0, 0], sizes = [32, 64], strides = [1, 1]} : vector<32x128xbf16> to vector<32x64xbf16>
    %c58 = arith.constant 58 : index
    %c0_125 = arith.constant 0 : index
    %c0_126 = arith.constant 0 : index
    %275 = vector.load %arg5[%c58, %c0_125, %c0_126] : memref<64x32x64xbf16, #tpu.memory_space<vmem>>, vector<1x32x64xbf16>
    %276 = vector.shape_cast %275 : vector<1x32x64xbf16> to vector<32x64xbf16>
    %277 = vector.shape_cast %274 : vector<32x64xbf16> to vector<1x32x64xbf16>
    tpu.vector_store %arg5[%c58, %c0_125, %c0_126], %277 {strides = array<i32>} : memref<64x32x64xbf16, #tpu.memory_space<vmem>>, vector<1x32x64xbf16>,
    %278 = vector.extract_strided_slice %273 {offsets = [0, 64], sizes = [32, 64], strides = [1, 1]} : vector<32x128xbf16> to vector<32x64xbf16>
    %c59 = arith.constant 59 : index
    %c0_127 = arith.constant 0 : index
    %c0_128 = arith.constant 0 : index
    %279 = vector.load %arg5[%c59, %c0_127, %c0_128] : memref<64x32x64xbf16, #tpu.memory_space<vmem>>, vector<1x32x64xbf16>
    %280 = vector.shape_cast %279 : vector<1x32x64xbf16> to vector<32x64xbf16>
    %281 = vector.shape_cast %278 : vector<32x64xbf16> to vector<1x32x64xbf16>
    tpu.vector_store %arg5[%c59, %c0_127, %c0_128], %281 {strides = array<i32>} : memref<64x32x64xbf16, #tpu.memory_space<vmem>>, vector<1x32x64xbf16>,
    %282 = vector.extract_strided_slice %11 {offsets = [960, 0], sizes = [32, 128], strides = [1, 1]} : vector<1024x128xbf16> to vector<32x128xbf16>
    %283 = vector.extract_strided_slice %282 {offsets = [0, 0], sizes = [32, 64], strides = [1, 1]} : vector<32x128xbf16> to vector<32x64xbf16>
    %c60 = arith.constant 60 : index
    %c0_129 = arith.constant 0 : index
    %c0_130 = arith.constant 0 : index
    %284 = vector.load %arg5[%c60, %c0_129, %c0_130] : memref<64x32x64xbf16, #tpu.memory_space<vmem>>, vector<1x32x64xbf16>
    %285 = vector.shape_cast %284 : vector<1x32x64xbf16> to vector<32x64xbf16>
    %286 = vector.shape_cast %283 : vector<32x64xbf16> to vector<1x32x64xbf16>
    tpu.vector_store %arg5[%c60, %c0_129, %c0_130], %286 {strides = array<i32>} : memref<64x32x64xbf16, #tpu.memory_space<vmem>>, vector<1x32x64xbf16>,
    %287 = vector.extract_strided_slice %282 {offsets = [0, 64], sizes = [32, 64], strides = [1, 1]} : vector<32x128xbf16> to vector<32x64xbf16>
    %c61 = arith.constant 61 : index
    %c0_131 = arith.constant 0 : index
    %c0_132 = arith.constant 0 : index
    %288 = vector.load %arg5[%c61, %c0_131, %c0_132] : memref<64x32x64xbf16, #tpu.memory_space<vmem>>, vector<1x32x64xbf16>
    %289 = vector.shape_cast %288 : vector<1x32x64xbf16> to vector<32x64xbf16>
    %290 = vector.shape_cast %287 : vector<32x64xbf16> to vector<1x32x64xbf16>
    tpu.vector_store %arg5[%c61, %c0_131, %c0_132], %290 {strides = array<i32>} : memref<64x32x64xbf16, #tpu.memory_space<vmem>>, vector<1x32x64xbf16>,
    %291 = vector.extract_strided_slice %11 {offsets = [992, 0], sizes = [32, 128], strides = [1, 1]} : vector<1024x128xbf16> to vector<32x128xbf16>
    %292 = vector.extract_strided_slice %291 {offsets = [0, 0], sizes = [32, 64], strides = [1, 1]} : vector<32x128xbf16> to vector<32x64xbf16>
    %c62 = arith.constant 62 : index
    %c0_133 = arith.constant 0 : index
    %c0_134 = arith.constant 0 : index
    %293 = vector.load %arg5[%c62, %c0_133, %c0_134] : memref<64x32x64xbf16, #tpu.memory_space<vmem>>, vector<1x32x64xbf16>
    %294 = vector.shape_cast %293 : vector<1x32x64xbf16> to vector<32x64xbf16>
    %295 = vector.shape_cast %292 : vector<32x64xbf16> to vector<1x32x64xbf16>
    tpu.vector_store %arg5[%c62, %c0_133, %c0_134], %295 {strides = array<i32>} : memref<64x32x64xbf16, #tpu.memory_space<vmem>>, vector<1x32x64xbf16>,
    %296 = vector.extract_strided_slice %291 {offsets = [0, 64], sizes = [32, 64], strides = [1, 1]} : vector<32x128xbf16> to vector<32x64xbf16>
    %c63 = arith.constant 63 : index
    %c0_135 = arith.constant 0 : index
    %c0_136 = arith.constant 0 : index
    %297 = vector.load %arg5[%c63, %c0_135, %c0_136] : memref<64x32x64xbf16, #tpu.memory_space<vmem>>, vector<1x32x64xbf16>
    %298 = vector.shape_cast %297 : vector<1x32x64xbf16> to vector<32x64xbf16>
    %299 = vector.shape_cast %296 : vector<32x64xbf16> to vector<1x32x64xbf16>
    tpu.vector_store %arg5[%c63, %c0_135, %c0_136], %299 {strides = array<i32>} : memref<64x32x64xbf16, #tpu.memory_space<vmem>>, vector<1x32x64xbf16>,
    return
  }
  func.func @transform_0(%arg0: i32) -> (i32, i32) {
    %c0_i32 = arith.constant 0 : i32
    %c0_i32_0 = arith.constant 0 : i32
    return %arg0, %c0_i32 : i32, i32
  }
  func.func @transform_1(%arg0: i32) -> (i32, i32) {
    %c0_i32 = arith.constant 0 : i32
    %c0_i32_0 = arith.constant 0 : i32
    %c0_i32_1 = arith.constant 0 : i32
    return %c0_i32, %c0_i32_0 : i32, i32
  }
  func.func @transform_2(%arg0: i32) -> (i32, i32) {
    %c0_i32 = arith.constant 0 : i32
    %c0_i32_0 = arith.constant 0 : i32
    %c0_i32_1 = arith.constant 0 : i32
    return %c0_i32, %c0_i32_0 : i32, i32
  }
  func.func @transform_3(%arg0: i32) -> (i32, i32) {
    %c0_i32 = arith.constant 0 : i32
    %c0_i32_0 = arith.constant 0 : i32
    %c0_i32_1 = arith.constant 0 : i32
    return %c0_i32, %c0_i32_0 : i32, i32
  }
  func.func @transform_4(%arg0: i32) -> (i32, i32, i32) {
    %c0_i32 = arith.constant 0 : i32
    %c0_i32_0 = arith.constant 0 : i32
    %c0_i32_1 = arith.constant 0 : i32
    return %arg0, %c0_i32, %c0_i32_0 : i32, i32, i32
  }
}

</mosaic_0001>

<llo_original>
// kernel: tile.33
$region0: #{tile.33}
  #allocation0 [shape = 's32[1]{0}', space=sflag, size = 0x4, scoped, tag = 'scoped memory for tile.33']
  %s0 = inlined_call_operand.vmem [shape: f32[8], index: 0, kind: input, shape index: {}]
  %s1 = inlined_call_operand.vmem [shape: f32[4,8], index: 1, kind: output, shape index: {}]
  // Predicated region
  $region2: #{tile.33} parent=0 // pred_check
    _
  $region3: #{tile.33} parent=0 // pred_check_branch
    %3 = sbr.rel (0) target = $region5
  $region4: #{tile.33} parent=0 // pred_region
    _
  $region5: #{tile.33} parent=0 // pred_fallthru
    _
  %v4 = vld [vmem:[%s0] ss:$0 sm:$0xff]
  %5 = vst [vmem:[%s1] sm:$0xf] %v4

// kernel: tile.34
$region0: #{tile.34}
  %s0 = inlined_call_operand.vmem [shape: f32[4,8], index: 0, kind: input, shape index: {}]
  %s1 = inlined_call_operand.vmem [shape: f32[1,32], index: 1, kind: output, shape index: {}]
  $region1: #{tile.34} parent=0
    #allocation0 [shape = 'u8[4096]{0}', space=vmem, size = 0x1000, scoped, tag = 'scoped mem for output reshape']
    #allocation1 [shape = 'u8[4096]{0}', space=vmem, size = 0x1000, scoped, tag = 'scoped mem for input reshape']
    %s3 = ssub.s32 16, 1
    %v4 = vld [vmem:[%s0] sm:%s3]
    %5 = vst [vmem:[#allocation1] sm:%s3] %v4
    %v6 = vld [vmem:[#allocation1] sm:$0x1]
    %vm7 = vcmask 64512
    %8 = vst.msk [vmem:[#allocation0] sm:$0x1] %vm7, %v6
    %s9 = scalar_lea.vmem [#allocation1], 3
    %v10 = vld [vmem:[%s9] sm:$0x1]
    %11 = vrot.lane.b32.xlu0 %v10, 24
    %v12 = vpop.permute.xlu0 %11
    %vm13 = vcmask 261312
    %14 = vst.msk [vmem:[#allocation0] sm:$0x1] %vm13, %v12
    %s15 = scalar_lea.vmem [#allocation1], 2
    %v16 = vld [vmem:[%s15] sm:$0x1]
    %17 = vrot.lane.b32.xlu0 %v16, 16
    %v18 = vpop.permute.xlu0 %17
    %vm19 = vcmask 195712
    %20 = vst.msk [vmem:[#allocation0] sm:$0x1] %vm19, %v18
    %s21 = scalar_lea.vmem [#allocation1], 1
    %v22 = vld [vmem:[%s21] sm:$0x1]
    %23 = vrot.lane.b32.xlu0 %v22, 8
    %v24 = vpop.permute.xlu0 %23
    %vm25 = vcmask 130112
    %26 = vst.msk [vmem:[#allocation0] sm:$0x1] %vm25, %v24
    %s28 = ssub.s32 2, 1
    %v29 = vld [vmem:[#allocation0] sm:%s28]
    %s31 = ssub.s32 2, 1
    %32 = vst [vmem:[%s1] sm:%s31] %v29

// kernel: pixel_decoder_forward.7
$region0: #{pixel_decoder_forward.7}
  #allocation0 [shape = 'u32[]', space=smem, size = 0x4, offset = 0x4, fixed_abs, tag = 'smem constant byte address 0x4 - core index']
  #allocation1 [shape = 'u32[72,128]{1,0:T(1,128)}', space=vmem, size = 0x9000, scoped, tag = 'internal scratch']
  %s0 = inlined_call_operand.vmem [shape: bf16[128,64], index: 0, kind: input, shape index: {}]
  %s1 = inlined_call_operand.vmem [shape: bf16[64,32], index: 1, kind: input, shape index: {}]
  %s2 = inlined_call_operand.vmem [shape: f32[1,32], index: 2, kind: input, shape index: {}]
  %s3 = inlined_call_operand.vmem [shape: f32[1,32], index: 3, kind: input, shape index: {}]
  %s4 = inlined_call_operand.vmem [shape: bf16[32,8,16], index: 4, kind: output, shape index: {}]
  %s5 = sld [smem:[#allocation0]]
  $region49: #{pixel_decoder_forward.7} parent=0
    _
  %s7 = ssub.s32 1, %s5
  %s8 = scalar_select 0, %s7, %s5
  loop: start=0, step=1, limit=4
  $region2: #{pixel_decoder_forward.7} parent=0 // loop_pre_header
    _
  $region3: #{pixel_decoder_forward.7} parent=0 // loop_header
    %s10 = sphi 0, %s14
    %p11 = scmp.ge.s32.totalorder %s10, 4
    %s20 = sphi 0, %s22
    %s23 = sphi 0, %s20
    %s24 = sphi 0, %s23
    %s40 = sphi 0, %s24
    %s44 = sphi 0, %s44
    %s46 = sphi 0, %s44
    %s47 = sphi 0, %s46
    %s61 = sphi 0, %s47
    %s65 = sphi 0, %s65
    %s67 = sphi 0, %s65
    %s68 = sphi 0, %s67
    %s82 = sphi 0, %s68
    %s86 = sphi 0, %s86
    %s88 = sphi 0, %s86
    %s89 = sphi 0, %s88
    %s103 = sphi 0, %s89
    %s109 = sphi 0, %s111
    %s112 = sphi 0, %s109
    %s113 = sphi 0, %s112
    %s129 = sphi 0, %s113
  $region4: #{pixel_decoder_forward.7} parent=0 // loop_header_branch
    %13 = sbr.rel (%p11) target = $region8
  $region5: #{pixel_decoder_forward.7} parent=0 // loop_body
    %s15 = ssub.s32 %s10, 1
    %s16 = ssub.s32 %s10, 2
    %s17 = sadd.s32 %s10, 1
    %s18 = ssub.s32 %s10, %s17
    %p19 = scmp.eq.s32.totalorder %s18, 0
    %s21 = sadd.s32 %s20, 1
    %s22 = scalar_select %p19, %s20, %s21
    %p25 = pneg %p19
    %p26 = scmp.eq.s32.totalorder %s10, 1
    %p27 = por %p25, %p26
    %p28 = scmp.ne.s32.totalorder %s20, %s23
    %p29 = scmp.eq.s32.totalorder %s10, 0
    %p30 = por %p28, %p29
    %p31 = scmp.ne.s32.totalorder %s20, %s23
    %p32 = scmp.eq.s32.totalorder %s15, 1
    %p33 = por %p31, %p32
    %p34 = scmp.ne.s32.totalorder %s23, %s24
    %p35 = scmp.eq.s32.totalorder %s15, 0
    %p36 = por %p34, %p35
    %p37 = scmp.ne.s32.totalorder %s23, %s24
    %p38 = scmp.eq.s32.totalorder %s16, 1
    %p39 = por %p37, %p38
    %p41 = scmp.ne.s32.totalorder %s24, %s40
    %p42 = scmp.eq.s32.totalorder %s16, 0
    %p43 = por %p41, %p42
    %s45 = sadd.s32 %s44, 1
    %p48 = scmp.eq.s32.totalorder %s10, 1
    %p49 = scmp.ne.s32.totalorder %s44, %s46
    %p50 = scmp.eq.s32.totalorder %s10, 0
    %p51 = por %p49, %p50
    %p52 = scmp.ne.s32.totalorder %s44, %s46
    %p53 = scmp.eq.s32.totalorder %s15, 1
    %p54 = por %p52, %p53
    %p55 = scmp.ne.s32.totalorder %s46, %s47
    %p56 = scmp.eq.s32.totalorder %s15, 0
    %p57 = por %p55, %p56
    %p58 = scmp.ne.s32.totalorder %s46, %s47
    %p59 = scmp.eq.s32.totalorder %s16, 1
    %p60 = por %p58, %p59
    %p62 = scmp.ne.s32.totalorder %s47, %s61
    %p63 = scmp.eq.s32.totalorder %s16, 0
    %p64 = por %p62, %p63
    %s66 = sadd.s32 %s65, 1
    %p69 = scmp.eq.s32.totalorder %s10, 1
    %p70 = scmp.ne.s32.totalorder %s65, %s67
    %p71 = scmp.eq.s32.totalorder %s10, 0
    %p72 = por %p70, %p71
    %p73 = scmp.ne.s32.totalorder %s65, %s67
    %p74 = scmp.eq.s32.totalorder %s15, 1
    %p75 = por %p73, %p74
    %p76 = scmp.ne.s32.totalorder %s67, %s68
    %p77 = scmp.eq.s32.totalorder %s15, 0
    %p78 = por %p76, %p77
    %p79 = scmp.ne.s32.totalorder %s67, %s68
    %p80 = scmp.eq.s32.totalorder %s16, 1
    %p81 = por %p79, %p80
    %p83 = scmp.ne.s32.totalorder %s68, %s82
    %p84 = scmp.eq.s32.totalorder %s16, 0
    %p85 = por %p83, %p84
    %s87 = sadd.s32 %s86, 1
    %p90 = scmp.eq.s32.totalorder %s10, 1
    %p91 = scmp.ne.s32.totalorder %s86, %s88
    %p92 = scmp.eq.s32.totalorder %s10, 0
    %p93 = por %p91, %p92
    %p94 = scmp.ne.s32.totalorder %s86, %s88
    %p95 = scmp.eq.s32.totalorder %s15, 1
    %p96 = por %p94, %p95
    %p97 = scmp.ne.s32.totalorder %s88, %s89
    %p98 = scmp.eq.s32.totalorder %s15, 0
    %p99 = por %p97, %p98
    %p100 = scmp.ne.s32.totalorder %s88, %s89
    %p101 = scmp.eq.s32.totalorder %s16, 1
    %p102 = por %p100, %p101
    %p104 = scmp.ne.s32.totalorder %s89, %s103
    %p105 = scmp.eq.s32.totalorder %s16, 0
    %p106 = por %p104, %p105
    %s107 = ssub.s32 %s10, %s17
    %p108 = scmp.eq.s32.totalorder %s107, 0
    %s110 = sadd.s32 %s109, 1
    %s111 = scalar_select %p108, %s109, %s110
    %p114 = pneg %p108
    %p115 = scmp.eq.s32.totalorder %s10, 1
    %p116 = por %p114, %p115
    %p117 = scmp.ne.s32.totalorder %s109, %s112
    %p118 = scmp.eq.s32.totalorder %s10, 0
    %p119 = por %p117, %p118
    %p120 = scmp.ne.s32.totalorder %s109, %s112
    %p121 = scmp.eq.s32.totalorder %s15, 1
    %p122 = por %p120, %p121
    %p123 = scmp.ne.s32.totalorder %s112, %s113
    %p124 = scmp.eq.s32.totalorder %s15, 0
    %p125 = por %p123, %p124
    %p126 = scmp.ne.s32.totalorder %s112, %s113
    %p127 = scmp.eq.s32.totalorder %s16, 1
    %p128 = por %p126, %p127
    %p130 = scmp.ne.s32.totalorder %s113, %s129
    %p131 = scmp.eq.s32.totalorder %s16, 0
    %p132 = por %p130, %p131
    %p133 = scmp.le.s32.totalorder 1, %s10
    %p134 = scmp.lt.s32.totalorder %s10, 3
    %p135 = pnand %p133, %p134
    %p136 = pneg %p135
    // Predicated region
    $region9: #{pixel_decoder_forward.7} parent=5 // pred_check
      _
    $region10: #{pixel_decoder_forward.7} parent=5 // pred_check_branch
      %138 = sbr.rel (%p135) target = $region12
    $region11: #{pixel_decoder_forward.7} parent=5 // pred_region
      %s139 = ssub.s32 %s10, 1
      // Predicated region
      $region13: #{pixel_decoder_forward.7} parent=11 // pred_check
        %p140 = pneg %p57
      $region14: #{pixel_decoder_forward.7} parent=11 // pred_check_branch
        %142 = sbr.rel (%p140) target = $region16
      $region15: #{pixel_decoder_forward.7} parent=11 // pred_region
        _
      $region16: #{pixel_decoder_forward.7} parent=11 // pred_fallthru
        _
      // Predicated region
      $region17: #{pixel_decoder_forward.7} parent=11 // pred_check
        %p143 = pneg %p78
      $region18: #{pixel_decoder_forward.7} parent=11 // pred_check_branch
        %145 = sbr.rel (%p143) target = $region20
      $region19: #{pixel_decoder_forward.7} parent=11 // pred_region
        _
      $region20: #{pixel_decoder_forward.7} parent=11 // pred_fallthru
        _
      // Predicated region
      $region21: #{pixel_decoder_forward.7} parent=11 // pred_check
        %p146 = pneg %p99
      $region22: #{pixel_decoder_forward.7} parent=11 // pred_check_branch
        %148 = sbr.rel (%p146) target = $region24
      $region23: #{pixel_decoder_forward.7} parent=11 // pred_region
        _
      $region24: #{pixel_decoder_forward.7} parent=11 // pred_fallthru
        _
    $region12: #{pixel_decoder_forward.7} parent=5 // pred_fallthru
      _
    %p149 = scmp.lt.s32.totalorder %s10, 2
    // Predicated region
    $region25: #{pixel_decoder_forward.7} parent=5 // pred_check
      %p150 = pneg %p149
    $region26: #{pixel_decoder_forward.7} parent=5 // pred_check_branch
      %152 = sbr.rel (%p150) target = $region28
    $region27: #{pixel_decoder_forward.7} parent=5 // pred_region
      // Predicated region
      $region29: #{pixel_decoder_forward.7} parent=27 // pred_check
        %p153 = pneg %p30
      $region30: #{pixel_decoder_forward.7} parent=27 // pred_check_branch
        %155 = sbr.rel (%p153) target = $region32
      $region31: #{pixel_decoder_forward.7} parent=27 // pred_region
        %s156 = smul.u32 8, %s10
        %p157 = scmp.lt.s32.totalorder %s156, 15
        %s158 = scalar_select %p157, %s156, 15
        %s159 = smul.addr %s158, 4
        %s160 = scalar_lea.vmem %s0, %s159
        %s161 = smul.u32 8, %s10
      $region32: #{pixel_decoder_forward.7} parent=27 // pred_fallthru
        _
    $region28: #{pixel_decoder_forward.7} parent=5 // pred_fallthru
      _
    %p162 = scmp.le.s32.totalorder 1, %s10
    %p163 = scmp.lt.s32.totalorder %s10, 3
    %p164 = pnand %p162, %p163
    %p165 = pneg %p164
    // Predicated region
    $region33: #{pixel_decoder_forward.7} parent=5 // pred_check
      _
    $region34: #{pixel_decoder_forward.7} parent=5 // pred_check_branch
      %167 = sbr.rel (%p164) target = $region36
    $region35: #{pixel_decoder_forward.7} parent=5 // pred_region
      %s168 = ssub.s32 %s10, 1
      %s169 = smul.u32 8, %s15
      %p170 = scmp.lt.s32.totalorder %s169, 15
      %s171 = scalar_select %p170, %s169, 15
      %s172 = smul.addr %s171, 4
      %s173 = scalar_lea.vmem %s0, %s172
      %p174 = pneg %p36
      %p175 = pneg %p33
      %p176 = pneg %p57
      %p177 = pneg %p54
      %p178 = pneg %p78
      %p179 = pneg %p75
      %p180 = pneg %p99
      %p181 = pneg %p96
      %p182 = pneg %p125
      %p183 = pneg %p122
      %s184 = smul.u32 16, %s15
      %p185 = scmp.lt.s32.totalorder %s184, 31
      %s186 = scalar_select %p185, %s184, 31
      %s187 = smul.addr %s186, 4
      %s188 = scalar_lea.vmem %s4, %s187
      %s189 = smul.u32 8, %s15
      %p190 = scmp.lt.s32.totalorder %s189, 15
      %s191 = scalar_select %p190, %s189, 15
      %s192 = smul.addr %s191, 4
      %s193 = scalar_lea.vmem %s0, %s192
      %s194 = smul.u32 8, %s15
      %s195 = smul.u32 16, %s15
      %p196 = scmp.lt.s32.totalorder %s195, 31
      %s197 = scalar_select %p196, %s195, 31
      %s198 = smul.addr %s197, 4
      %s199 = scalar_lea.vmem %s4, %s198
      %s200 = smul.u32 16, %s15
      %v202 = vld [vmem:[%s193] sm:$0xf]
      %v203 = vld [vmem:[%s193 + $0x4] sm:$0xf]
      %v204 = vld [vmem:[%s193 + $0x8] sm:$0xf]
      %v205 = vld [vmem:[%s193 + $0xc] sm:$0xf]
      %v206 = vld [vmem:[%s193 + $0x10] sm:$0xf]
      %v207 = vld [vmem:[%s193 + $0x14] sm:$0xf]
      %v208 = vld [vmem:[%s193 + $0x18] sm:$0xf]
      %v209 = vld [vmem:[%s193 + $0x1c] sm:$0xf]
      %v210 = vld [vmem:[%s1] sm:$0xf]
      %v211 = vld [vmem:[%s1 + $0x4] sm:$0xf]
      %v212 = vld [vmem:[%s1 + $0x8] sm:$0xf]
      %v213 = vld [vmem:[%s1 + $0xc] sm:$0xf]
      %v214 = vld [vmem:[%s1 + $0x10] sm:$0xf]
      %v215 = vld [vmem:[%s1 + $0x14] sm:$0xf]
      %v216 = vld [vmem:[%s1 + $0x18] sm:$0xf]
      %v217 = vld [vmem:[%s1 + $0x1c] sm:$0xf]
      %v226 = vunpack.c.l.b16 %v202
      %v227 = vunpack.c.l.b16 %v203
      %v228 = vunpack.c.l.b16 %v204
      %v229 = vunpack.c.l.b16 %v205
      %v230 = vunpack.c.l.b16 %v206
      %v231 = vunpack.c.l.b16 %v207
      %v232 = vunpack.c.l.b16 %v208
      %v233 = vunpack.c.l.b16 %v209
      %v234 = vpack.c.b16 %v227, %v226
      %v235 = vpack.c.b16 %v229, %v228
      %v236 = vpack.c.b16 %v231, %v230
      %v237 = vpack.c.b16 %v233, %v232
      %v246 = vunpack.c.l.b16 %v210
      %v247 = vunpack.c.l.b16 %v211
      %v248 = vunpack.c.l.b16 %v212
      %v249 = vunpack.c.l.b16 %v213
      %v250 = vunpack.c.l.b16 %v214
      %v251 = vunpack.c.l.b16 %v215
      %v252 = vunpack.c.l.b16 %v216
      %v253 = vunpack.c.l.b16 %v217
      %v254 = vpack.c.b16 %v247, %v246
      %v255 = vpack.c.b16 %v249, %v248
      %v256 = vpack.c.b16 %v251, %v250
      %v257 = vpack.c.b16 %v253, %v252
      %vm262 = vcmask 523264
      %v264 = vsel %vm262, %v234, 0
      %v267 = vsel %vm262, %v235, 0
      %v270 = vsel %vm262, %v236, 0
      %v273 = vsel %vm262, %v237, 0
      %275 = vmatpush.bf16.msra.mxu0 0
      %276 = vmatpush.bf16.msra.mxu0 0
      %277 = vmatpush.bf16.msra.mxu0 0
      %278 = vmatpush.bf16.msra.mxu0 0
      %279 = vmatpush.bf16.msra.mxu0 %v257
      %280 = vmatpush.bf16.msra.mxu0 %v256
      %281 = vmatpush.bf16.msra.mxu0 %v255
      %282 = vmatpush.bf16.msra.mxu0 %v254
      %283 = vmatmul.bf16.gmra.mxu0 %v264
      %v284 = vpop.f32.mrf.mxu0
      %v285 = vadd.f32 0.0, %v284
      %v286 = vpop.f32.mrf.mxu0
      %v287 = vadd.f32 0.0, %v286
      %288 = vmatmul.bf16.gmra.mxu0 %v267
      %v289 = vpop.f32.mrf.mxu0
      %v290 = vadd.f32 0.0, %v289
      %v291 = vpop.f32.mrf.mxu0
      %v292 = vadd.f32 0.0, %v291
      %293 = vmatmul.bf16.gmra.mxu0 %v270
      %v294 = vpop.f32.mrf.mxu0
      %v295 = vadd.f32 0.0, %v294
      %v296 = vpop.f32.mrf.mxu0
      %v297 = vadd.f32 0.0, %v296
      %298 = vmatmul.bf16.gmra.mxu0 %v273
      %v299 = vpop.f32.mrf.mxu0
      %v300 = vadd.f32 0.0, %v299
      %v301 = vpop.f32.mrf.mxu0
      %v302 = vadd.f32 0.0, %v301
      %303 = vdwg.mxu0
      %v304 = vld [vmem:[%s2] sm:$0x1]
      %v306 = vperm.slane %v304, 0
      %v308 = vmul.f32 %v285, %v306
      %v309 = vmul.f32 %v287, %v306
      %v310 = vmul.f32 %v290, %v306
      %v311 = vmul.f32 %v292, %v306
      %v312 = vmul.f32 %v295, %v306
      %v313 = vmul.f32 %v297, %v306
      %v314 = vmul.f32 %v300, %v306
      %v315 = vmul.f32 %v302, %v306
      %v316 = vld [vmem:[%s3] sm:$0x1]
      %v318 = vperm.slane %v316, 0
      %v320 = vadd.f32 %v308, %v318
      %v321 = vadd.f32 %v309, %v318
      %v322 = vadd.f32 %v310, %v318
      %v323 = vadd.f32 %v311, %v318
      %v324 = vadd.f32 %v312, %v318
      %v325 = vadd.f32 %v313, %v318
      %v326 = vadd.f32 %v314, %v318
      %v327 = vadd.f32 %v315, %v318
      %v328 = vmax.f32 %v320, 0.0
      %v329 = vmax.f32 %v321, 0.0
      %v330 = vmax.f32 %v322, 0.0
      %v331 = vmax.f32 %v323, 0.0
      %v332 = vmax.f32 %v324, 0.0
      %v333 = vmax.f32 %v325, 0.0
      %v334 = vmax.f32 %v326, 0.0
      %v335 = vmax.f32 %v327, 0.0
      %v336 = vpack.c.bf16 %v328, %v328
      %v337 = vpack.c.bf16 %v329, %v329
      %v338 = vpack.c.bf16 %v330, %v330
      %v339 = vpack.c.bf16 %v331, %v331
      %v340 = vpack.c.bf16 %v332, %v332
      %v341 = vpack.c.bf16 %v333, %v333
      %v342 = vpack.c.bf16 %v334, %v334
      %v343 = vpack.c.bf16 %v335, %v335
      %vm344 = vcmask 125952
      %345 = vst.msk [vmem:[%s199] sm:$0xf] %vm344, %v336
      %347 = vrot.lane.b32.xlu0 %v336, 112
      %v348 = vpop.permute.xlu0 %347
      %s350 = scalar_lea.vmem %s199, 4
      %351 = vst.msk [vmem:[%s350] sm:$0xf] %vm344, %v348
      %s352 = scalar_lea.vmem %s199, 8
      %353 = vst.msk [vmem:[%s352] sm:$0xf] %vm344, %v337
      %355 = vrot.lane.b32.xlu0 %v337, 112
      %v356 = vpop.permute.xlu0 %355
      %s358 = scalar_lea.vmem %s199, 12
      %359 = vst.msk [vmem:[%s358] sm:$0xf] %vm344, %v356
      %s360 = scalar_lea.vmem %s199, 16
      %361 = vst.msk [vmem:[%s360] sm:$0xf] %vm344, %v338
      %363 = vrot.lane.b32.xlu0 %v338, 112
      %v364 = vpop.permute.xlu0 %363
      %s366 = scalar_lea.vmem %s199, 20
      %367 = vst.msk [vmem:[%s366] sm:$0xf] %vm344, %v364
      %s368 = scalar_lea.vmem %s199, 24
      %369 = vst.msk [vmem:[%s368] sm:$0xf] %vm344, %v339
      %371 = vrot.lane.b32.xlu0 %v339, 112
      %v372 = vpop.permute.xlu0 %371
      %s374 = scalar_lea.vmem %s199, 28
      %375 = vst.msk [vmem:[%s374] sm:$0xf] %vm344, %v372
      %s376 = scalar_lea.vmem %s199, 32
      %377 = vst.msk [vmem:[%s376] sm:$0xf] %vm344, %v340
      %379 = vrot.lane.b32.xlu0 %v340, 112
      %v380 = vpop.permute.xlu0 %379
      %s382 = scalar_lea.vmem %s199, 36
      %383 = vst.msk [vmem:[%s382] sm:$0xf] %vm344, %v380
      %s384 = scalar_lea.vmem %s199, 40
      %385 = vst.msk [vmem:[%s384] sm:$0xf] %vm344, %v341
      %387 = vrot.lane.b32.xlu0 %v341, 112
      %v388 = vpop.permute.xlu0 %387
      %s390 = scalar_lea.vmem %s199, 44
      %391 = vst.msk [vmem:[%s390] sm:$0xf] %vm344, %v388
      %s392 = scalar_lea.vmem %s199, 48
      %393 = vst.msk [vmem:[%s392] sm:$0xf] %vm344, %v342
      %395 = vrot.lane.b32.xlu0 %v342, 112
      %v396 = vpop.permute.xlu0 %395
      %s398 = scalar_lea.vmem %s199, 52
      %399 = vst.msk [vmem:[%s398] sm:$0xf] %vm344, %v396
      %s400 = scalar_lea.vmem %s199, 56
      %401 = vst.msk [vmem:[%s400] sm:$0xf] %vm344, %v343
      %403 = vrot.lane.b32.xlu0 %v343, 112
      %v404 = vpop.permute.xlu0 %403
      %s406 = scalar_lea.vmem %s199, 60
      %407 = vst.msk [vmem:[%s406] sm:$0xf] %vm344, %v404
      %s408 = smul.u32 16, %s15
      %p409 = scmp.lt.s32.totalorder %s408, 31
      %s410 = scalar_select %p409, %s408, 31
      %s411 = smul.addr %s410, 4
      %s412 = scalar_lea.vmem %s4, %s411
      // Predicated region
      $region37: #{pixel_decoder_forward.7} parent=35 // pred_check
        %p413 = pneg %p122
      $region38: #{pixel_decoder_forward.7} parent=35 // pred_check_branch
        %415 = sbr.rel (%p413) target = $region40
      $region39: #{pixel_decoder_forward.7} parent=35 // pred_region
        %s416 = smul.u32 16, %s15
      $region40: #{pixel_decoder_forward.7} parent=35 // pred_fallthru
        _
    $region36: #{pixel_decoder_forward.7} parent=5 // pred_fallthru
      _
    %p417 = scmp.le.s32.totalorder 2, %s10
    // Predicated region
    $region41: #{pixel_decoder_forward.7} parent=5 // pred_check
      %p418 = pneg %p417
    $region42: #{pixel_decoder_forward.7} parent=5 // pred_check_branch
      %420 = sbr.rel (%p418) target = $region44
    $region43: #{pixel_decoder_forward.7} parent=5 // pred_region
      %s421 = ssub.s32 %s10, 2
      // Predicated region
      $region45: #{pixel_decoder_forward.7} parent=43 // pred_check
        %p422 = pneg %p128
      $region46: #{pixel_decoder_forward.7} parent=43 // pred_check_branch
        %424 = sbr.rel (%p422) target = $region48
      $region47: #{pixel_decoder_forward.7} parent=43 // pred_region
        %s425 = smul.u32 16, %s16
        %p426 = scmp.lt.s32.totalorder %s425, 31
        %s427 = scalar_select %p426, %s425, 31
        %s428 = smul.addr %s427, 4
        %s429 = scalar_lea.vmem %s4, %s428
      $region48: #{pixel_decoder_forward.7} parent=43 // pred_fallthru
        _
    $region44: #{pixel_decoder_forward.7} parent=5 // pred_fallthru
      _
  $region6: #{pixel_decoder_forward.7} parent=0 // loop_footer
    %s14 = sadd.s32 1, %s10
  $region7: #{pixel_decoder_forward.7} parent=0 // loop_footer_branch
    %9 = sbr.rel target = $region3
  $region8: #{pixel_decoder_forward.7} parent=0 // loop_exit
    _

// kernel: pixel_decoder_forward.6
$region0: #{pixel_decoder_forward.6}
  #allocation0 [shape = 'u32[]', space=smem, size = 0x4, offset = 0x4, fixed_abs, tag = 'smem constant byte address 0x4 - core index']
  #allocation1 [shape = 'u32[72,128]{1,0:T(1,128)}', space=vmem, size = 0x9000, scoped, tag = 'internal scratch']
  %s0 = inlined_call_operand.vmem [shape: bf16[128,64], index: 0, kind: input, shape index: {}]
  %s1 = inlined_call_operand.vmem [shape: bf16[64,32], index: 1, kind: input, shape index: {}]
  %s2 = inlined_call_operand.vmem [shape: f32[2,8,32], index: 2, kind: output, shape index: {}]
  %s3 = sld [smem:[#allocation0]]
  $region41: #{pixel_decoder_forward.6} parent=0
    _
  %s5 = ssub.s32 1, %s3
  %s6 = scalar_select 0, %s5, %s3
  loop: start=0, step=1, limit=4
  $region2: #{pixel_decoder_forward.6} parent=0 // loop_pre_header
    _
  $region3: #{pixel_decoder_forward.6} parent=0 // loop_header
    %s8 = sphi 0, %s12
    %p9 = scmp.ge.s32.totalorder %s8, 4
    %s18 = sphi 0, %s20
    %s21 = sphi 0, %s18
    %s22 = sphi 0, %s21
    %s38 = sphi 0, %s22
    %s42 = sphi 0, %s42
    %s44 = sphi 0, %s42
    %s45 = sphi 0, %s44
    %s59 = sphi 0, %s45
    %s65 = sphi 0, %s67
    %s68 = sphi 0, %s65
    %s69 = sphi 0, %s68
    %s85 = sphi 0, %s69
  $region4: #{pixel_decoder_forward.6} parent=0 // loop_header_branch
    %11 = sbr.rel (%p9) target = $region8
  $region5: #{pixel_decoder_forward.6} parent=0 // loop_body
    %s13 = ssub.s32 %s8, 1
    %s14 = ssub.s32 %s8, 2
    %s15 = sadd.s32 %s8, 1
    %s16 = ssub.s32 %s8, %s15
    %p17 = scmp.eq.s32.totalorder %s16, 0
    %s19 = sadd.s32 %s18, 1
    %s20 = scalar_select %p17, %s18, %s19
    %p23 = pneg %p17
    %p24 = scmp.eq.s32.totalorder %s8, 1
    %p25 = por %p23, %p24
    %p26 = scmp.ne.s32.totalorder %s18, %s21
    %p27 = scmp.eq.s32.totalorder %s8, 0
    %p28 = por %p26, %p27
    %p29 = scmp.ne.s32.totalorder %s18, %s21
    %p30 = scmp.eq.s32.totalorder %s13, 1
    %p31 = por %p29, %p30
    %p32 = scmp.ne.s32.totalorder %s21, %s22
    %p33 = scmp.eq.s32.totalorder %s13, 0
    %p34 = por %p32, %p33
    %p35 = scmp.ne.s32.totalorder %s21, %s22
    %p36 = scmp.eq.s32.totalorder %s14, 1
    %p37 = por %p35, %p36
    %p39 = scmp.ne.s32.totalorder %s22, %s38
    %p40 = scmp.eq.s32.totalorder %s14, 0
    %p41 = por %p39, %p40
    %s43 = sadd.s32 %s42, 1
    %p46 = scmp.eq.s32.totalorder %s8, 1
    %p47 = scmp.ne.s32.totalorder %s42, %s44
    %p48 = scmp.eq.s32.totalorder %s8, 0
    %p49 = por %p47, %p48
    %p50 = scmp.ne.s32.totalorder %s42, %s44
    %p51 = scmp.eq.s32.totalorder %s13, 1
    %p52 = por %p50, %p51
    %p53 = scmp.ne.s32.totalorder %s44, %s45
    %p54 = scmp.eq.s32.totalorder %s13, 0
    %p55 = por %p53, %p54
    %p56 = scmp.ne.s32.totalorder %s44, %s45
    %p57 = scmp.eq.s32.totalorder %s14, 1
    %p58 = por %p56, %p57
    %p60 = scmp.ne.s32.totalorder %s45, %s59
    %p61 = scmp.eq.s32.totalorder %s14, 0
    %p62 = por %p60, %p61
    %s63 = ssub.s32 %s8, %s15
    %p64 = scmp.eq.s32.totalorder %s63, 0
    %s66 = sadd.s32 %s65, 1
    %s67 = scalar_select %p64, %s65, %s66
    %p70 = pneg %p64
    %p71 = scmp.eq.s32.totalorder %s8, 1
    %p72 = por %p70, %p71
    %p73 = scmp.ne.s32.totalorder %s65, %s68
    %p74 = scmp.eq.s32.totalorder %s8, 0
    %p75 = por %p73, %p74
    %p76 = scmp.ne.s32.totalorder %s65, %s68
    %p77 = scmp.eq.s32.totalorder %s13, 1
    %p78 = por %p76, %p77
    %p79 = scmp.ne.s32.totalorder %s68, %s69
    %p80 = scmp.eq.s32.totalorder %s13, 0
    %p81 = por %p79, %p80
    %p82 = scmp.ne.s32.totalorder %s68, %s69
    %p83 = scmp.eq.s32.totalorder %s14, 1
    %p84 = por %p82, %p83
    %p86 = scmp.ne.s32.totalorder %s69, %s85
    %p87 = scmp.eq.s32.totalorder %s14, 0
    %p88 = por %p86, %p87
    %p89 = scmp.le.s32.totalorder 1, %s8
    %p90 = scmp.lt.s32.totalorder %s8, 3
    %p91 = pnand %p89, %p90
    %p92 = pneg %p91
    // Predicated region
    $region9: #{pixel_decoder_forward.6} parent=5 // pred_check
      _
    $region10: #{pixel_decoder_forward.6} parent=5 // pred_check_branch
      %94 = sbr.rel (%p91) target = $region12
    $region11: #{pixel_decoder_forward.6} parent=5 // pred_region
      %s95 = ssub.s32 %s8, 1
      // Predicated region
      $region13: #{pixel_decoder_forward.6} parent=11 // pred_check
        %p96 = pneg %p55
      $region14: #{pixel_decoder_forward.6} parent=11 // pred_check_branch
        %98 = sbr.rel (%p96) target = $region16
      $region15: #{pixel_decoder_forward.6} parent=11 // pred_region
        _
      $region16: #{pixel_decoder_forward.6} parent=11 // pred_fallthru
        _
    $region12: #{pixel_decoder_forward.6} parent=5 // pred_fallthru
      _
    %p99 = scmp.lt.s32.totalorder %s8, 2
    // Predicated region
    $region17: #{pixel_decoder_forward.6} parent=5 // pred_check
      %p100 = pneg %p99
    $region18: #{pixel_decoder_forward.6} parent=5 // pred_check_branch
      %102 = sbr.rel (%p100) target = $region20
    $region19: #{pixel_decoder_forward.6} parent=5 // pred_region
      // Predicated region
      $region21: #{pixel_decoder_forward.6} parent=19 // pred_check
        %p103 = pneg %p28
      $region22: #{pixel_decoder_forward.6} parent=19 // pred_check_branch
        %105 = sbr.rel (%p103) target = $region24
      $region23: #{pixel_decoder_forward.6} parent=19 // pred_region
        %s106 = smul.u32 8, %s8
        %p107 = scmp.lt.s32.totalorder %s106, 15
        %s108 = scalar_select %p107, %s106, 15
        %s109 = smul.addr %s108, 4
        %s110 = scalar_lea.vmem %s0, %s109
        %s111 = smul.u32 8, %s8
      $region24: #{pixel_decoder_forward.6} parent=19 // pred_fallthru
        _
    $region20: #{pixel_decoder_forward.6} parent=5 // pred_fallthru
      _
    %p112 = scmp.le.s32.totalorder 1, %s8
    %p113 = scmp.lt.s32.totalorder %s8, 3
    %p114 = pnand %p112, %p113
    %p115 = pneg %p114
    // Predicated region
    $region25: #{pixel_decoder_forward.6} parent=5 // pred_check
      _
    $region26: #{pixel_decoder_forward.6} parent=5 // pred_check_branch
      %117 = sbr.rel (%p114) target = $region28
    $region27: #{pixel_decoder_forward.6} parent=5 // pred_region
      %s118 = ssub.s32 %s8, 1
      %s119 = smul.u32 8, %s13
      %p120 = scmp.lt.s32.totalorder %s119, 15
      %s121 = scalar_select %p120, %s119, 15
      %s122 = smul.addr %s121, 4
      %s123 = scalar_lea.vmem %s0, %s122
      %p124 = pneg %p34
      %p125 = pneg %p31
      %p126 = pneg %p55
      %p127 = pneg %p52
      %p128 = pneg %p81
      %p129 = pneg %p78
      %p130 = scmp.lt.s32.totalorder %s13, 1
      %s131 = scalar_select %p130, %s13, 1
      %s132 = smul.addr %s131, 8
      %s133 = scalar_lea.vmem %s2, %s132
      %s134 = smul.u32 8, %s13
      %p135 = scmp.lt.s32.totalorder %s134, 15
      %s136 = scalar_select %p135, %s134, 15
      %s137 = smul.addr %s136, 4
      %s138 = scalar_lea.vmem %s0, %s137
      %s139 = smul.u32 8, %s13
      %p140 = scmp.lt.s32.totalorder %s13, 1
      %s141 = scalar_select %p140, %s13, 1
      %s142 = smul.addr %s141, 8
      %s143 = scalar_lea.vmem %s2, %s142
      %v145 = vld [vmem:[%s138] sm:$0xf]
      %v146 = vld [vmem:[%s138 + $0x4] sm:$0xf]
      %v147 = vld [vmem:[%s138 + $0x8] sm:$0xf]
      %v148 = vld [vmem:[%s138 + $0xc] sm:$0xf]
      %v149 = vld [vmem:[%s138 + $0x10] sm:$0xf]
      %v150 = vld [vmem:[%s138 + $0x14] sm:$0xf]
      %v151 = vld [vmem:[%s138 + $0x18] sm:$0xf]
      %v152 = vld [vmem:[%s138 + $0x1c] sm:$0xf]
      %v153 = vld [vmem:[%s1] sm:$0xf]
      %v154 = vld [vmem:[%s1 + $0x4] sm:$0xf]
      %v155 = vld [vmem:[%s1 + $0x8] sm:$0xf]
      %v156 = vld [vmem:[%s1 + $0xc] sm:$0xf]
      %v157 = vld [vmem:[%s1 + $0x10] sm:$0xf]
      %v158 = vld [vmem:[%s1 + $0x14] sm:$0xf]
      %v159 = vld [vmem:[%s1 + $0x18] sm:$0xf]
      %v160 = vld [vmem:[%s1 + $0x1c] sm:$0xf]
      %v169 = vunpack.c.l.b16 %v145
      %v170 = vunpack.c.l.b16 %v146
      %v171 = vunpack.c.l.b16 %v147
      %v172 = vunpack.c.l.b16 %v148
      %v173 = vunpack.c.l.b16 %v149
      %v174 = vunpack.c.l.b16 %v150
      %v175 = vunpack.c.l.b16 %v151
      %v176 = vunpack.c.l.b16 %v152
      %v177 = vpack.c.b16 %v170, %v169
      %v178 = vpack.c.b16 %v172, %v171
      %v179 = vpack.c.b16 %v174, %v173
      %v180 = vpack.c.b16 %v176, %v175
      %v189 = vunpack.c.l.b16 %v153
      %v190 = vunpack.c.l.b16 %v154
      %v191 = vunpack.c.l.b16 %v155
      %v192 = vunpack.c.l.b16 %v156
      %v193 = vunpack.c.l.b16 %v157
      %v194 = vunpack.c.l.b16 %v158
      %v195 = vunpack.c.l.b16 %v159
      %v196 = vunpack.c.l.b16 %v160
      %v197 = vpack.c.b16 %v190, %v189
      %v198 = vpack.c.b16 %v192, %v191
      %v199 = vpack.c.b16 %v194, %v193
      %v200 = vpack.c.b16 %v196, %v195
      %vm205 = vcmask 523264
      %v207 = vsel %vm205, %v177, 0
      %v210 = vsel %vm205, %v178, 0
      %v213 = vsel %vm205, %v179, 0
      %v216 = vsel %vm205, %v180, 0
      %218 = vmatpush.bf16.msra.mxu0 0
      %219 = vmatpush.bf16.msra.mxu0 0
      %220 = vmatpush.bf16.msra.mxu0 0
      %221 = vmatpush.bf16.msra.mxu0 0
      %222 = vmatpush.bf16.msra.mxu0 %v200
      %223 = vmatpush.bf16.msra.mxu0 %v199
      %224 = vmatpush.bf16.msra.mxu0 %v198
      %225 = vmatpush.bf16.msra.mxu0 %v197
      %226 = vmatmul.bf16.gmra.mxu0 %v207
      %v227 = vpop.f32.mrf.mxu0
      %v228 = vadd.f32 0.0, %v227
      %v229 = vpop.f32.mrf.mxu0
      %v230 = vadd.f32 0.0, %v229
      %231 = vmatmul.bf16.gmra.mxu0 %v210
      %v232 = vpop.f32.mrf.mxu0
      %v233 = vadd.f32 0.0, %v232
      %v234 = vpop.f32.mrf.mxu0
      %v235 = vadd.f32 0.0, %v234
      %236 = vmatmul.bf16.gmra.mxu0 %v213
      %v237 = vpop.f32.mrf.mxu0
      %v238 = vadd.f32 0.0, %v237
      %v239 = vpop.f32.mrf.mxu0
      %v240 = vadd.f32 0.0, %v239
      %241 = vmatmul.bf16.gmra.mxu0 %v216
      %v242 = vpop.f32.mrf.mxu0
      %v243 = vadd.f32 0.0, %v242
      %v244 = vpop.f32.mrf.mxu0
      %v245 = vadd.f32 0.0, %v244
      %246 = vdwg.mxu0
      %vm247 = vcmask 261120
      %v248 = vsel %vm247, %v228, 0.0
      %v249 = vsel %vm247, %v230, 0.0
      %v250 = vadd.f32 %v248, %v249
      %v251 = vsel %vm247, %v233, 0.0
      %v252 = vadd.f32 %v250, %v251
      %v253 = vsel %vm247, %v235, 0.0
      %v254 = vadd.f32 %v252, %v253
      %v255 = vsel %vm247, %v238, 0.0
      %v256 = vadd.f32 %v254, %v255
      %v257 = vsel %vm247, %v240, 0.0
      %v258 = vadd.f32 %v256, %v257
      %v259 = vsel %vm247, %v243, 0.0
      %v260 = vadd.f32 %v258, %v259
      %v261 = vsel %vm247, %v245, 0.0
      %v262 = vadd.f32 %v260, %v261
      %v263 = vrot.slane %v262, 4
      %v264 = vadd.f32 %v262, %v263
      %v265 = vrot.slane %v264, 2
      %v266 = vadd.f32 %v264, %v265
      %v267 = vrot.slane %v266, 1
      %v268 = vadd.f32 %v266, %v267
      %v269 = vmul.f32 %v228, %v228
      %v270 = vmul.f32 %v230, %v230
      %v271 = vmul.f32 %v233, %v233
      %v272 = vmul.f32 %v235, %v235
      %v273 = vmul.f32 %v238, %v238
      %v274 = vmul.f32 %v240, %v240
      %v275 = vmul.f32 %v243, %v243
      %v276 = vmul.f32 %v245, %v245
      %v277 = vsel %vm247, %v269, 0.0
      %v278 = vsel %vm247, %v270, 0.0
      %v279 = vadd.f32 %v277, %v278
      %v280 = vsel %vm247, %v271, 0.0
      %v281 = vadd.f32 %v279, %v280
      %v282 = vsel %vm247, %v272, 0.0
      %v283 = vadd.f32 %v281, %v282
      %v284 = vsel %vm247, %v273, 0.0
      %v285 = vadd.f32 %v283, %v284
      %v286 = vsel %vm247, %v274, 0.0
      %v287 = vadd.f32 %v285, %v286
      %v288 = vsel %vm247, %v275, 0.0
      %v289 = vadd.f32 %v287, %v288
      %v290 = vsel %vm247, %v276, 0.0
      %v291 = vadd.f32 %v289, %v290
      %v292 = vrot.slane %v291, 4
      %v293 = vadd.f32 %v291, %v292
      %v294 = vrot.slane %v293, 2
      %v295 = vadd.f32 %v293, %v294
      %v296 = vrot.slane %v295, 1
      %v297 = vadd.f32 %v295, %v296
      %v298 = vlaneseq
      %v299 = vshrl.u32 %v298, 7
      %vm300 = vcmp.eq.s32.totalorder %v299, 0
      %vm301 = vcmp.eq.s32.totalorder %v299, 1
      %v302 = vsel %vm301, %v297, 0.0
      %v303 = vsel %vm300, %v268, %v302
      %304 = vst.msk [vmem:[%s143] sm:$0xff] %vm247, %v303
      %p305 = scmp.lt.s32.totalorder %s13, 1
      %s306 = scalar_select %p305, %s13, 1
      %s307 = smul.addr %s306, 8
      %s308 = scalar_lea.vmem %s2, %s307
      // Predicated region
      $region29: #{pixel_decoder_forward.6} parent=27 // pred_check
        %p309 = pneg %p78
      $region30: #{pixel_decoder_forward.6} parent=27 // pred_check_branch
        %311 = sbr.rel (%p309) target = $region32
      $region31: #{pixel_decoder_forward.6} parent=27 // pred_region
        _
      $region32: #{pixel_decoder_forward.6} parent=27 // pred_fallthru
        _
    $region28: #{pixel_decoder_forward.6} parent=5 // pred_fallthru
      _
    %p312 = scmp.le.s32.totalorder 2, %s8
    // Predicated region
    $region33: #{pixel_decoder_forward.6} parent=5 // pred_check
      %p313 = pneg %p312
    $region34: #{pixel_decoder_forward.6} parent=5 // pred_check_branch
      %315 = sbr.rel (%p313) target = $region36
    $region35: #{pixel_decoder_forward.6} parent=5 // pred_region
      %s316 = ssub.s32 %s8, 2
      // Predicated region
      $region37: #{pixel_decoder_forward.6} parent=35 // pred_check
        %p317 = pneg %p84
      $region38: #{pixel_decoder_forward.6} parent=35 // pred_check_branch
        %319 = sbr.rel (%p317) target = $region40
      $region39: #{pixel_decoder_forward.6} parent=35 // pred_region
        %p320 = scmp.lt.s32.totalorder %s14, 1
        %s321 = scalar_select %p320, %s14, 1
        %s322 = smul.addr %s321, 8
        %s323 = scalar_lea.vmem %s2, %s322
      $region40: #{pixel_decoder_forward.6} parent=35 // pred_fallthru
        _
    $region36: #{pixel_decoder_forward.6} parent=5 // pred_fallthru
      _
  $region6: #{pixel_decoder_forward.6} parent=0 // loop_footer
    %s12 = sadd.s32 1, %s8
  $region7: #{pixel_decoder_forward.6} parent=0 // loop_footer_branch
    %7 = sbr.rel target = $region3
  $region8: #{pixel_decoder_forward.6} parent=0 // loop_exit
    _

// kernel: tile.43
$region0: #{tile.43}
  #allocation0 [shape = 's32[1]{0}', space=sflag, size = 0x4, scoped, tag = 'scoped memory for tile.43']
  %s0 = inlined_call_operand.vmem [shape: f32[4], index: 0, kind: input, shape index: {}]
  %s1 = inlined_call_operand.vmem [shape: f32[4,4], index: 1, kind: output, shape index: {}]
  // Predicated region
  $region2: #{tile.43} parent=0 // pred_check
    _
  $region3: #{tile.43} parent=0 // pred_check_branch
    %3 = sbr.rel (0) target = $region5
  $region4: #{tile.43} parent=0 // pred_region
    _
  $region5: #{tile.43} parent=0 // pred_fallthru
    _
  %v4 = vld [vmem:[%s0] ss:$0 sm:$0xff]
  %5 = vst [vmem:[%s1] sm:$0xf] %v4

// kernel: tile.44
$region0: #{tile.44}
  %s0 = inlined_call_operand.vmem [shape: f32[4,4], index: 0, kind: input, shape index: {}]
  %s1 = inlined_call_operand.vmem [shape: f32[1,16], index: 1, kind: output, shape index: {}]
  $region1: #{tile.44} parent=0
    #allocation0 [shape = 'u8[4096]{0}', space=vmem, size = 0x1000, scoped, tag = 'scoped mem for output reshape']
    #allocation1 [shape = 'u8[4096]{0}', space=vmem, size = 0x1000, scoped, tag = 'scoped mem for input reshape']
    %s3 = ssub.s32 16, 1
    %v4 = vld [vmem:[%s0] sm:%s3]
    %5 = vst [vmem:[#allocation1] sm:%s3] %v4
    %v6 = vld [vmem:[#allocation1] sm:$0x1]
    %vm7 = vcmask 31744
    %8 = vst.msk [vmem:[#allocation0] sm:$0x1] %vm7, %v6
    %s9 = scalar_lea.vmem [#allocation1], 3
    %v10 = vld [vmem:[%s9] sm:$0x1]
    %11 = vrot.lane.b32.xlu0 %v10, 12
    %v12 = vpop.permute.xlu0 %11
    %vm13 = vcmask 130144
    %14 = vst.msk [vmem:[#allocation0] sm:$0x1] %vm13, %v12
    %s15 = scalar_lea.vmem [#allocation1], 2
    %v16 = vld [vmem:[%s15] sm:$0x1]
    %17 = vrot.lane.b32.xlu0 %v16, 8
    %v18 = vpop.permute.xlu0 %17
    %vm19 = vcmask 97344
    %20 = vst.msk [vmem:[#allocation0] sm:$0x1] %vm19, %v18
    %s21 = scalar_lea.vmem [#allocation1], 1
    %v22 = vld [vmem:[%s21] sm:$0x1]
    %23 = vrot.lane.b32.xlu0 %v22, 4
    %v24 = vpop.permute.xlu0 %23
    %vm25 = vcmask 64544
    %26 = vst.msk [vmem:[#allocation0] sm:$0x1] %vm25, %v24
    %s28 = ssub.s32 2, 1
    %v29 = vld [vmem:[#allocation0] sm:%s28]
    %s31 = ssub.s32 2, 1
    %32 = vst [vmem:[%s1] sm:%s31] %v29

// kernel: pixel_decoder_forward.8
$region0: #{pixel_decoder_forward.8}
  #allocation0 [shape = 'u32[]', space=smem, size = 0x4, offset = 0x4, fixed_abs, tag = 'smem constant byte address 0x4 - core index']
  #allocation1 [shape = 'u32[72,128]{1,0:T(1,128)}', space=vmem, size = 0x9000, scoped, tag = 'internal scratch']
  %s0 = inlined_call_operand.vmem [shape: bf16[512,32], index: 0, kind: input, shape index: {}]
  %s1 = inlined_call_operand.vmem [shape: bf16[32,16], index: 1, kind: input, shape index: {}]
  %s2 = inlined_call_operand.vmem [shape: f32[2,8,16], index: 2, kind: output, shape index: {}]
  %s3 = sld [smem:[#allocation0]]
  $region41: #{pixel_decoder_forward.8} parent=0
    _
  %s5 = ssub.s32 1, %s3
  %s6 = scalar_select 0, %s5, %s3
  loop: start=0, step=1, limit=4
  $region2: #{pixel_decoder_forward.8} parent=0 // loop_pre_header
    _
  $region3: #{pixel_decoder_forward.8} parent=0 // loop_header
    %s8 = sphi 0, %s12
    %p9 = scmp.ge.s32.totalorder %s8, 4
    %s18 = sphi 0, %s20
    %s21 = sphi 0, %s18
    %s22 = sphi 0, %s21
    %s38 = sphi 0, %s22
    %s42 = sphi 0, %s42
    %s44 = sphi 0, %s42
    %s45 = sphi 0, %s44
    %s59 = sphi 0, %s45
    %s65 = sphi 0, %s67
    %s68 = sphi 0, %s65
    %s69 = sphi 0, %s68
    %s85 = sphi 0, %s69
  $region4: #{pixel_decoder_forward.8} parent=0 // loop_header_branch
    %11 = sbr.rel (%p9) target = $region8
  $region5: #{pixel_decoder_forward.8} parent=0 // loop_body
    %s13 = ssub.s32 %s8, 1
    %s14 = ssub.s32 %s8, 2
    %s15 = sadd.s32 %s8, 1
    %s16 = ssub.s32 %s8, %s15
    %p17 = scmp.eq.s32.totalorder %s16, 0
    %s19 = sadd.s32 %s18, 1
    %s20 = scalar_select %p17, %s18, %s19
    %p23 = pneg %p17
    %p24 = scmp.eq.s32.totalorder %s8, 1
    %p25 = por %p23, %p24
    %p26 = scmp.ne.s32.totalorder %s18, %s21
    %p27 = scmp.eq.s32.totalorder %s8, 0
    %p28 = por %p26, %p27
    %p29 = scmp.ne.s32.totalorder %s18, %s21
    %p30 = scmp.eq.s32.totalorder %s13, 1
    %p31 = por %p29, %p30
    %p32 = scmp.ne.s32.totalorder %s21, %s22
    %p33 = scmp.eq.s32.totalorder %s13, 0
    %p34 = por %p32, %p33
    %p35 = scmp.ne.s32.totalorder %s21, %s22
    %p36 = scmp.eq.s32.totalorder %s14, 1
    %p37 = por %p35, %p36
    %p39 = scmp.ne.s32.totalorder %s22, %s38
    %p40 = scmp.eq.s32.totalorder %s14, 0
    %p41 = por %p39, %p40
    %s43 = sadd.s32 %s42, 1
    %p46 = scmp.eq.s32.totalorder %s8, 1
    %p47 = scmp.ne.s32.totalorder %s42, %s44
    %p48 = scmp.eq.s32.totalorder %s8, 0
    %p49 = por %p47, %p48
    %p50 = scmp.ne.s32.totalorder %s42, %s44
    %p51 = scmp.eq.s32.totalorder %s13, 1
    %p52 = por %p50, %p51
    %p53 = scmp.ne.s32.totalorder %s44, %s45
    %p54 = scmp.eq.s32.totalorder %s13, 0
    %p55 = por %p53, %p54
    %p56 = scmp.ne.s32.totalorder %s44, %s45
    %p57 = scmp.eq.s32.totalorder %s14, 1
    %p58 = por %p56, %p57
    %p60 = scmp.ne.s32.totalorder %s45, %s59
    %p61 = scmp.eq.s32.totalorder %s14, 0
    %p62 = por %p60, %p61
    %s63 = ssub.s32 %s8, %s15
    %p64 = scmp.eq.s32.totalorder %s63, 0
    %s66 = sadd.s32 %s65, 1
    %s67 = scalar_select %p64, %s65, %s66
    %p70 = pneg %p64
    %p71 = scmp.eq.s32.totalorder %s8, 1
    %p72 = por %p70, %p71
    %p73 = scmp.ne.s32.totalorder %s65, %s68
    %p74 = scmp.eq.s32.totalorder %s8, 0
    %p75 = por %p73, %p74
    %p76 = scmp.ne.s32.totalorder %s65, %s68
    %p77 = scmp.eq.s32.totalorder %s13, 1
    %p78 = por %p76, %p77
    %p79 = scmp.ne.s32.totalorder %s68, %s69
    %p80 = scmp.eq.s32.totalorder %s13, 0
    %p81 = por %p79, %p80
    %p82 = scmp.ne.s32.totalorder %s68, %s69
    %p83 = scmp.eq.s32.totalorder %s14, 1
    %p84 = por %p82, %p83
    %p86 = scmp.ne.s32.totalorder %s69, %s85
    %p87 = scmp.eq.s32.totalorder %s14, 0
    %p88 = por %p86, %p87
    %p89 = scmp.le.s32.totalorder 1, %s8
    %p90 = scmp.lt.s32.totalorder %s8, 3
    %p91 = pnand %p89, %p90
    %p92 = pneg %p91
    // Predicated region
    $region9: #{pixel_decoder_forward.8} parent=5 // pred_check
      _
    $region10: #{pixel_decoder_forward.8} parent=5 // pred_check_branch
      %94 = sbr.rel (%p91) target = $region12
    $region11: #{pixel_decoder_forward.8} parent=5 // pred_region
      %s95 = ssub.s32 %s8, 1
      // Predicated region
      $region13: #{pixel_decoder_forward.8} parent=11 // pred_check
        %p96 = pneg %p55
      $region14: #{pixel_decoder_forward.8} parent=11 // pred_check_branch
        %98 = sbr.rel (%p96) target = $region16
      $region15: #{pixel_decoder_forward.8} parent=11 // pred_region
        _
      $region16: #{pixel_decoder_forward.8} parent=11 // pred_fallthru
        _
    $region12: #{pixel_decoder_forward.8} parent=5 // pred_fallthru
      _
    %p99 = scmp.lt.s32.totalorder %s8, 2
    // Predicated region
    $region17: #{pixel_decoder_forward.8} parent=5 // pred_check
      %p100 = pneg %p99
    $region18: #{pixel_decoder_forward.8} parent=5 // pred_check_branch
      %102 = sbr.rel (%p100) target = $region20
    $region19: #{pixel_decoder_forward.8} parent=5 // pred_region
      // Predicated region
      $region21: #{pixel_decoder_forward.8} parent=19 // pred_check
        %p103 = pneg %p28
      $region22: #{pixel_decoder_forward.8} parent=19 // pred_check_branch
        %105 = sbr.rel (%p103) target = $region24
      $region23: #{pixel_decoder_forward.8} parent=19 // pred_region
        %s106 = smul.u32 32, %s8
        %p107 = scmp.lt.s32.totalorder %s106, 63
        %s108 = scalar_select %p107, %s106, 63
        %s109 = smul.addr %s108, 4
        %s110 = scalar_lea.vmem %s0, %s109
        %s111 = smul.u32 32, %s8
      $region24: #{pixel_decoder_forward.8} parent=19 // pred_fallthru
        _
    $region20: #{pixel_decoder_forward.8} parent=5 // pred_fallthru
      _
    %p112 = scmp.le.s32.totalorder 1, %s8
    %p113 = scmp.lt.s32.totalorder %s8, 3
    %p114 = pnand %p112, %p113
    %p115 = pneg %p114
    // Predicated region
    $region25: #{pixel_decoder_forward.8} parent=5 // pred_check
      _
    $region26: #{pixel_decoder_forward.8} parent=5 // pred_check_branch
      %117 = sbr.rel (%p114) target = $region28
    $region27: #{pixel_decoder_forward.8} parent=5 // pred_region
      %s118 = ssub.s32 %s8, 1
      %s119 = smul.u32 32, %s13
      %p120 = scmp.lt.s32.totalorder %s119, 63
      %s121 = scalar_select %p120, %s119, 63
      %s122 = smul.addr %s121, 4
      %s123 = scalar_lea.vmem %s0, %s122
      %p124 = pneg %p34
      %p125 = pneg %p31
      %p126 = pneg %p55
      %p127 = pneg %p52
      %p128 = pneg %p81
      %p129 = pneg %p78
      %p130 = scmp.lt.s32.totalorder %s13, 1
      %s131 = scalar_select %p130, %s13, 1
      %s132 = smul.addr %s131, 8
      %s133 = scalar_lea.vmem %s2, %s132
      %s134 = smul.u32 32, %s13
      %p135 = scmp.lt.s32.totalorder %s134, 63
      %s136 = scalar_select %p135, %s134, 63
      %s137 = smul.addr %s136, 4
      %s138 = scalar_lea.vmem %s0, %s137
      %s139 = smul.u32 32, %s13
      %p140 = scmp.lt.s32.totalorder %s13, 1
      %s141 = scalar_select %p140, %s13, 1
      %s142 = smul.addr %s141, 8
      %s143 = scalar_lea.vmem %s2, %s142
      %v145 = vld [vmem:[%s138] sm:$0xf]
      %v146 = vld [vmem:[%s138 + $0x4] sm:$0xf]
      %v147 = vld [vmem:[%s138 + $0x8] sm:$0xf]
      %v148 = vld [vmem:[%s138 + $0xc] sm:$0xf]
      %v149 = vld [vmem:[%s138 + $0x10] sm:$0xf]
      %v150 = vld [vmem:[%s138 + $0x14] sm:$0xf]
      %v151 = vld [vmem:[%s138 + $0x18] sm:$0xf]
      %v152 = vld [vmem:[%s138 + $0x1c] sm:$0xf]
      %v153 = vld [vmem:[%s138 + $0x20] sm:$0xf]
      %v154 = vld [vmem:[%s138 + $0x24] sm:$0xf]
      %v155 = vld [vmem:[%s138 + $0x28] sm:$0xf]
      %v156 = vld [vmem:[%s138 + $0x2c] sm:$0xf]
      %v157 = vld [vmem:[%s138 + $0x30] sm:$0xf]
      %v158 = vld [vmem:[%s138 + $0x34] sm:$0xf]
      %v159 = vld [vmem:[%s138 + $0x38] sm:$0xf]
      %v160 = vld [vmem:[%s138 + $0x3c] sm:$0xf]
      %v161 = vld [vmem:[%s138 + $0x40] sm:$0xf]
      %v162 = vld [vmem:[%s138 + $0x44] sm:$0xf]
      %v163 = vld [vmem:[%s138 + $0x48] sm:$0xf]
      %v164 = vld [vmem:[%s138 + $0x4c] sm:$0xf]
      %v165 = vld [vmem:[%s138 + $0x50] sm:$0xf]
      %v166 = vld [vmem:[%s138 + $0x54] sm:$0xf]
      %v167 = vld [vmem:[%s138 + $0x58] sm:$0xf]
      %v168 = vld [vmem:[%s138 + $0x5c] sm:$0xf]
      %v169 = vld [vmem:[%s138 + $0x60] sm:$0xf]
      %v170 = vld [vmem:[%s138 + $0x64] sm:$0xf]
      %v171 = vld [vmem:[%s138 + $0x68] sm:$0xf]
      %v172 = vld [vmem:[%s138 + $0x6c] sm:$0xf]
      %v173 = vld [vmem:[%s138 + $0x70] sm:$0xf]
      %v174 = vld [vmem:[%s138 + $0x74] sm:$0xf]
      %v175 = vld [vmem:[%s138 + $0x78] sm:$0xf]
      %v176 = vld [vmem:[%s138 + $0x7c] sm:$0xf]
      %v177 = vld [vmem:[%s1] sm:$0xf]
      %v178 = vld [vmem:[%s1 + $0x4] sm:$0xf]
      %v179 = vld [vmem:[%s1 + $0x8] sm:$0xf]
      %v180 = vld [vmem:[%s1 + $0xc] sm:$0xf]
      %v213 = vunpack.c.l.b16 %v145
      %v214 = vunpack.c.l.b16 %v146
      %v215 = vunpack.c.l.b16 %v147
      %v216 = vunpack.c.l.b16 %v148
      %v217 = vunpack.c.l.b16 %v149
      %v218 = vunpack.c.l.b16 %v150
      %v219 = vunpack.c.l.b16 %v151
      %v220 = vunpack.c.l.b16 %v152
      %v221 = vunpack.c.l.b16 %v153
      %v222 = vunpack.c.l.b16 %v154
      %v223 = vunpack.c.l.b16 %v155
      %v224 = vunpack.c.l.b16 %v156
      %v225 = vunpack.c.l.b16 %v157
      %v226 = vunpack.c.l.b16 %v158
      %v227 = vunpack.c.l.b16 %v159
      %v228 = vunpack.c.l.b16 %v160
      %v229 = vunpack.c.l.b16 %v161
      %v230 = vunpack.c.l.b16 %v162
      %v231 = vunpack.c.l.b16 %v163
      %v232 = vunpack.c.l.b16 %v164
      %v233 = vunpack.c.l.b16 %v165
      %v234 = vunpack.c.l.b16 %v166
      %v235 = vunpack.c.l.b16 %v167
      %v236 = vunpack.c.l.b16 %v168
      %v237 = vunpack.c.l.b16 %v169
      %v238 = vunpack.c.l.b16 %v170
      %v239 = vunpack.c.l.b16 %v171
      %v240 = vunpack.c.l.b16 %v172
      %v241 = vunpack.c.l.b16 %v173
      %v242 = vunpack.c.l.b16 %v174
      %v243 = vunpack.c.l.b16 %v175
      %v244 = vunpack.c.l.b16 %v176
      %v245 = vpack.c.b16 %v214, %v213
      %v246 = vpack.c.b16 %v216, %v215
      %v247 = vpack.c.b16 %v218, %v217
      %v248 = vpack.c.b16 %v220, %v219
      %v249 = vpack.c.b16 %v222, %v221
      %v250 = vpack.c.b16 %v224, %v223
      %v251 = vpack.c.b16 %v226, %v225
      %v252 = vpack.c.b16 %v228, %v227
      %v253 = vpack.c.b16 %v230, %v229
      %v254 = vpack.c.b16 %v232, %v231
      %v255 = vpack.c.b16 %v234, %v233
      %v256 = vpack.c.b16 %v236, %v235
      %v257 = vpack.c.b16 %v238, %v237
      %v258 = vpack.c.b16 %v240, %v239
      %v259 = vpack.c.b16 %v242, %v241
      %v260 = vpack.c.b16 %v244, %v243
      %v265 = vunpack.c.l.b16 %v177
      %v266 = vunpack.c.l.b16 %v178
      %v267 = vunpack.c.l.b16 %v179
      %v268 = vunpack.c.l.b16 %v180
      %v269 = vpack.c.b16 %v266, %v265
      %v270 = vpack.c.b16 %v268, %v267
      %vm273 = vcmask 261120
      %v275 = vsel %vm273, %v245, 0
      %v278 = vsel %vm273, %v246, 0
      %v281 = vsel %vm273, %v247, 0
      %v284 = vsel %vm273, %v248, 0
      %v287 = vsel %vm273, %v249, 0
      %v290 = vsel %vm273, %v250, 0
      %v293 = vsel %vm273, %v251, 0
      %v296 = vsel %vm273, %v252, 0
      %v299 = vsel %vm273, %v253, 0
      %v302 = vsel %vm273, %v254, 0
      %v305 = vsel %vm273, %v255, 0
      %v308 = vsel %vm273, %v256, 0
      %v311 = vsel %vm273, %v257, 0
      %v314 = vsel %vm273, %v258, 0
      %v317 = vsel %vm273, %v259, 0
      %v320 = vsel %vm273, %v260, 0
      %322 = vmatpush.bf16.msra.mxu0 0
      %323 = vmatpush.bf16.msra.mxu0 0
      %324 = vmatpush.bf16.msra.mxu0 0
      %325 = vmatpush.bf16.msra.mxu0 0
      %326 = vmatpush.bf16.msra.mxu0 0
      %327 = vmatpush.bf16.msra.mxu0 0
      %328 = vmatpush.bf16.msra.mxu0 %v270
      %329 = vmatpush.bf16.msra.mxu0 %v269
      %330 = vmatmul.bf16.gmra.mxu0 %v275
      %v331 = vpop.f32.mrf.mxu0
      %v332 = vadd.f32 0.0, %v331
      %v333 = vpop.f32.mrf.mxu0
      %v334 = vadd.f32 0.0, %v333
      %335 = vmatmul.bf16.gmra.mxu0 %v278
      %v336 = vpop.f32.mrf.mxu0
      %v337 = vadd.f32 0.0, %v336
      %v338 = vpop.f32.mrf.mxu0
      %v339 = vadd.f32 0.0, %v338
      %340 = vmatmul.bf16.gmra.mxu0 %v281
      %v341 = vpop.f32.mrf.mxu0
      %v342 = vadd.f32 0.0, %v341
      %v343 = vpop.f32.mrf.mxu0
      %v344 = vadd.f32 0.0, %v343
      %345 = vmatmul.bf16.gmra.mxu0 %v284
      %v346 = vpop.f32.mrf.mxu0
      %v347 = vadd.f32 0.0, %v346
      %v348 = vpop.f32.mrf.mxu0
      %v349 = vadd.f32 0.0, %v348
      %350 = vmatmul.bf16.gmra.mxu0 %v287
      %v351 = vpop.f32.mrf.mxu0
      %v352 = vadd.f32 0.0, %v351
      %v353 = vpop.f32.mrf.mxu0
      %v354 = vadd.f32 0.0, %v353
      %355 = vmatmul.bf16.gmra.mxu0 %v290
      %v356 = vpop.f32.mrf.mxu0
      %v357 = vadd.f32 0.0, %v356
      %v358 = vpop.f32.mrf.mxu0
      %v359 = vadd.f32 0.0, %v358
      %360 = vmatmul.bf16.gmra.mxu0 %v293
      %v361 = vpop.f32.mrf.mxu0
      %v362 = vadd.f32 0.0, %v361
      %v363 = vpop.f32.mrf.mxu0
      %v364 = vadd.f32 0.0, %v363
      %365 = vmatmul.bf16.gmra.mxu0 %v296
      %v366 = vpop.f32.mrf.mxu0
      %v367 = vadd.f32 0.0, %v366
      %v368 = vpop.f32.mrf.mxu0
      %v369 = vadd.f32 0.0, %v368
      %370 = vmatmul.bf16.gmra.mxu0 %v299
      %v371 = vpop.f32.mrf.mxu0
      %v372 = vadd.f32 0.0, %v371
      %v373 = vpop.f32.mrf.mxu0
      %v374 = vadd.f32 0.0, %v373
      %375 = vmatmul.bf16.gmra.mxu0 %v302
      %v376 = vpop.f32.mrf.mxu0
      %v377 = vadd.f32 0.0, %v376
      %v378 = vpop.f32.mrf.mxu0
      %v379 = vadd.f32 0.0, %v378
      %380 = vmatmul.bf16.gmra.mxu0 %v305
      %v381 = vpop.f32.mrf.mxu0
      %v382 = vadd.f32 0.0, %v381
      %v383 = vpop.f32.mrf.mxu0
      %v384 = vadd.f32 0.0, %v383
      %385 = vmatmul.bf16.gmra.mxu0 %v308
      %v386 = vpop.f32.mrf.mxu0
      %v387 = vadd.f32 0.0, %v386
      %v388 = vpop.f32.mrf.mxu0
      %v389 = vadd.f32 0.0, %v388
      %390 = vmatmul.bf16.gmra.mxu0 %v311
      %v391 = vpop.f32.mrf.mxu0
      %v392 = vadd.f32 0.0, %v391
      %v393 = vpop.f32.mrf.mxu0
      %v394 = vadd.f32 0.0, %v393
      %395 = vmatmul.bf16.gmra.mxu0 %v314
      %v396 = vpop.f32.mrf.mxu0
      %v397 = vadd.f32 0.0, %v396
      %v398 = vpop.f32.mrf.mxu0
      %v399 = vadd.f32 0.0, %v398
      %400 = vmatmul.bf16.gmra.mxu0 %v317
      %v401 = vpop.f32.mrf.mxu0
      %v402 = vadd.f32 0.0, %v401
      %v403 = vpop.f32.mrf.mxu0
      %v404 = vadd.f32 0.0, %v403
      %405 = vmatmul.bf16.gmra.mxu0 %v320
      %v406 = vpop.f32.mrf.mxu0
      %v407 = vadd.f32 0.0, %v406
      %v408 = vpop.f32.mrf.mxu0
      %v409 = vadd.f32 0.0, %v408
      %410 = vdwg.mxu0
      %vm411 = vcmask 130048
      %v412 = vsel %vm411, %v332, 0.0
      %v413 = vsel %vm411, %v334, 0.0
      %v414 = vadd.f32 %v412, %v413
      %v415 = vsel %vm411, %v337, 0.0
      %v416 = vadd.f32 %v414, %v415
      %v417 = vsel %vm411, %v339, 0.0
      %v418 = vadd.f32 %v416, %v417
      %v419 = vsel %vm411, %v342, 0.0
      %v420 = vadd.f32 %v418, %v419
      %v421 = vsel %vm411, %v344, 0.0
      %v422 = vadd.f32 %v420, %v421
      %v423 = vsel %vm411, %v347, 0.0
      %v424 = vadd.f32 %v422, %v423
      %v425 = vsel %vm411, %v349, 0.0
      %v426 = vadd.f32 %v424, %v425
      %v427 = vsel %vm411, %v352, 0.0
      %v428 = vadd.f32 %v426, %v427
      %v429 = vsel %vm411, %v354, 0.0
      %v430 = vadd.f32 %v428, %v429
      %v431 = vsel %vm411, %v357, 0.0
      %v432 = vadd.f32 %v430, %v431
      %v433 = vsel %vm411, %v359, 0.0
      %v434 = vadd.f32 %v432, %v433
      %v435 = vsel %vm411, %v362, 0.0
      %v436 = vadd.f32 %v434, %v435
      %v437 = vsel %vm411, %v364, 0.0
      %v438 = vadd.f32 %v436, %v437
      %v439 = vsel %vm411, %v367, 0.0
      %v440 = vadd.f32 %v438, %v439
      %v441 = vsel %vm411, %v369, 0.0
      %v442 = vadd.f32 %v440, %v441
      %v443 = vsel %vm411, %v372, 0.0
      %v444 = vadd.f32 %v442, %v443
      %v445 = vsel %vm411, %v374, 0.0
      %v446 = vadd.f32 %v444, %v445
      %v447 = vsel %vm411, %v377, 0.0
      %v448 = vadd.f32 %v446, %v447
      %v449 = vsel %vm411, %v379, 0.0
      %v450 = vadd.f32 %v448, %v449
      %v451 = vsel %vm411, %v382, 0.0
      %v452 = vadd.f32 %v450, %v451
      %v453 = vsel %vm411, %v384, 0.0
      %v454 = vadd.f32 %v452, %v453
      %v455 = vsel %vm411, %v387, 0.0
      %v456 = vadd.f32 %v454, %v455
      %v457 = vsel %vm411, %v389, 0.0
      %v458 = vadd.f32 %v456, %v457
      %v459 = vsel %vm411, %v392, 0.0
      %v460 = vadd.f32 %v458, %v459
      %v461 = vsel %vm411, %v394, 0.0
      %v462 = vadd.f32 %v460, %v461
      %v463 = vsel %vm411, %v397, 0.0
      %v464 = vadd.f32 %v462, %v463
      %v465 = vsel %vm411, %v399, 0.0
      %v466 = vadd.f32 %v464, %v465
      %v467 = vsel %vm411, %v402, 0.0
      %v468 = vadd.f32 %v466, %v467
      %v469 = vsel %vm411, %v404, 0.0
      %v470 = vadd.f32 %v468, %v469
      %v471 = vsel %vm411, %v407, 0.0
      %v472 = vadd.f32 %v470, %v471
      %v473 = vsel %vm411, %v409, 0.0
      %v474 = vadd.f32 %v472, %v473
      %v475 = vrot.slane %v474, 4
      %v476 = vadd.f32 %v474, %v475
      %v477 = vrot.slane %v476, 2
      %v478 = vadd.f32 %v476, %v477
      %v479 = vrot.slane %v478, 1
      %v480 = vadd.f32 %v478, %v479
      %v481 = vmul.f32 %v332, %v332
      %v482 = vmul.f32 %v334, %v334
      %v483 = vmul.f32 %v337, %v337
      %v484 = vmul.f32 %v339, %v339
      %v485 = vmul.f32 %v342, %v342
      %v486 = vmul.f32 %v344, %v344
      %v487 = vmul.f32 %v347, %v347
      %v488 = vmul.f32 %v349, %v349
      %v489 = vmul.f32 %v352, %v352
      %v490 = vmul.f32 %v354, %v354
      %v491 = vmul.f32 %v357, %v357
      %v492 = vmul.f32 %v359, %v359
      %v493 = vmul.f32 %v362, %v362
      %v494 = vmul.f32 %v364, %v364
      %v495 = vmul.f32 %v367, %v367
      %v496 = vmul.f32 %v369, %v369
      %v497 = vmul.f32 %v372, %v372
      %v498 = vmul.f32 %v374, %v374
      %v499 = vmul.f32 %v377, %v377
      %v500 = vmul.f32 %v379, %v379
      %v501 = vmul.f32 %v382, %v382
      %v502 = vmul.f32 %v384, %v384
      %v503 = vmul.f32 %v387, %v387
      %v504 = vmul.f32 %v389, %v389
      %v505 = vmul.f32 %v392, %v392
      %v506 = vmul.f32 %v394, %v394
      %v507 = vmul.f32 %v397, %v397
      %v508 = vmul.f32 %v399, %v399
      %v509 = vmul.f32 %v402, %v402
      %v510 = vmul.f32 %v404, %v404
      %v511 = vmul.f32 %v407, %v407
      %v512 = vmul.f32 %v409, %v409
      %v513 = vsel %vm411, %v481, 0.0
      %v514 = vsel %vm411, %v482, 0.0
      %v515 = vadd.f32 %v513, %v514
      %v516 = vsel %vm411, %v483, 0.0
      %v517 = vadd.f32 %v515, %v516
      %v518 = vsel %vm411, %v484, 0.0
      %v519 = vadd.f32 %v517, %v518
      %v520 = vsel %vm411, %v485, 0.0
      %v521 = vadd.f32 %v519, %v520
      %v522 = vsel %vm411, %v486, 0.0
      %v523 = vadd.f32 %v521, %v522
      %v524 = vsel %vm411, %v487, 0.0
      %v525 = vadd.f32 %v523, %v524
      %v526 = vsel %vm411, %v488, 0.0
      %v527 = vadd.f32 %v525, %v526
      %v528 = vsel %vm411, %v489, 0.0
      %v529 = vadd.f32 %v527, %v528
      %v530 = vsel %vm411, %v490, 0.0
      %v531 = vadd.f32 %v529, %v530
      %v532 = vsel %vm411, %v491, 0.0
      %v533 = vadd.f32 %v531, %v532
      %v534 = vsel %vm411, %v492, 0.0
      %v535 = vadd.f32 %v533, %v534
      %v536 = vsel %vm411, %v493, 0.0
      %v537 = vadd.f32 %v535, %v536
      %v538 = vsel %vm411, %v494, 0.0
      %v539 = vadd.f32 %v537, %v538
      %v540 = vsel %vm411, %v495, 0.0
      %v541 = vadd.f32 %v539, %v540
      %v542 = vsel %vm411, %v496, 0.0
      %v543 = vadd.f32 %v541, %v542
      %v544 = vsel %vm411, %v497, 0.0
      %v545 = vadd.f32 %v543, %v544
      %v546 = vsel %vm411, %v498, 0.0
      %v547 = vadd.f32 %v545, %v546
      %v548 = vsel %vm411, %v499, 0.0
      %v549 = vadd.f32 %v547, %v548
      %v550 = vsel %vm411, %v500, 0.0
      %v551 = vadd.f32 %v549, %v550
      %v552 = vsel %vm411, %v501, 0.0
      %v553 = vadd.f32 %v551, %v552
      %v554 = vsel %vm411, %v502, 0.0
      %v555 = vadd.f32 %v553, %v554
      %v556 = vsel %vm411, %v503, 0.0
      %v557 = vadd.f32 %v555, %v556
      %v558 = vsel %vm411, %v504, 0.0
      %v559 = vadd.f32 %v557, %v558
      %v560 = vsel %vm411, %v505, 0.0
      %v561 = vadd.f32 %v559, %v560
      %v562 = vsel %vm411, %v506, 0.0
      %v563 = vadd.f32 %v561, %v562
      %v564 = vsel %vm411, %v507, 0.0
      %v565 = vadd.f32 %v563, %v564
      %v566 = vsel %vm411, %v508, 0.0
      %v567 = vadd.f32 %v565, %v566
      %v568 = vsel %vm411, %v509, 0.0
      %v569 = vadd.f32 %v567, %v568
      %v570 = vsel %vm411, %v510, 0.0
      %v571 = vadd.f32 %v569, %v570
      %v572 = vsel %vm411, %v511, 0.0
      %v573 = vadd.f32 %v571, %v572
      %v574 = vsel %vm411, %v512, 0.0
      %v575 = vadd.f32 %v573, %v574
      %v576 = vrot.slane %v575, 4
      %v577 = vadd.f32 %v575, %v576
      %v578 = vrot.slane %v577, 2
      %v579 = vadd.f32 %v577, %v578
      %v580 = vrot.slane %v579, 1
      %v581 = vadd.f32 %v579, %v580
      %v582 = vlaneseq
      %v583 = vshrl.u32 %v582, 7
      %vm584 = vcmp.eq.s32.totalorder %v583, 0
      %vm585 = vcmp.eq.s32.totalorder %v583, 1
      %v586 = vsel %vm585, %v581, 0.0
      %v587 = vsel %vm584, %v480, %v586
      %588 = vst.msk [vmem:[%s143] sm:$0xff] %vm411, %v587
      %p589 = scmp.lt.s32.totalorder %s13, 1
      %s590 = scalar_select %p589, %s13, 1
      %s591 = smul.addr %s590, 8
      %s592 = scalar_lea.vmem %s2, %s591
      // Predicated region
      $region29: #{pixel_decoder_forward.8} parent=27 // pred_check
        %p593 = pneg %p78
      $region30: #{pixel_decoder_forward.8} parent=27 // pred_check_branch
        %595 = sbr.rel (%p593) target = $region32
      $region31: #{pixel_decoder_forward.8} parent=27 // pred_region
        _
      $region32: #{pixel_decoder_forward.8} parent=27 // pred_fallthru
        _
    $region28: #{pixel_decoder_forward.8} parent=5 // pred_fallthru
      _
    %p596 = scmp.le.s32.totalorder 2, %s8
    // Predicated region
    $region33: #{pixel_decoder_forward.8} parent=5 // pred_check
      %p597 = pneg %p596
    $region34: #{pixel_decoder_forward.8} parent=5 // pred_check_branch
      %599 = sbr.rel (%p597) target = $region36
    $region35: #{pixel_decoder_forward.8} parent=5 // pred_region
      %s600 = ssub.s32 %s8, 2
      // Predicated region
      $region37: #{pixel_decoder_forward.8} parent=35 // pred_check
        %p601 = pneg %p84
      $region38: #{pixel_decoder_forward.8} parent=35 // pred_check_branch
        %603 = sbr.rel (%p601) target = $region40
      $region39: #{pixel_decoder_forward.8} parent=35 // pred_region
        %p604 = scmp.lt.s32.totalorder %s14, 1
        %s605 = scalar_select %p604, %s14, 1
        %s606 = smul.addr %s605, 8
        %s607 = scalar_lea.vmem %s2, %s606
      $region40: #{pixel_decoder_forward.8} parent=35 // pred_fallthru
        _
    $region36: #{pixel_decoder_forward.8} parent=5 // pred_fallthru
      _
  $region6: #{pixel_decoder_forward.8} parent=0 // loop_footer
    %s12 = sadd.s32 1, %s8
  $region7: #{pixel_decoder_forward.8} parent=0 // loop_footer_branch
    %7 = sbr.rel target = $region3
  $region8: #{pixel_decoder_forward.8} parent=0 // loop_exit
    _

// kernel: pixel_decoder_forward.9
$region0: #{pixel_decoder_forward.9}
  #allocation0 [shape = 'u32[]', space=smem, size = 0x4, offset = 0x4, fixed_abs, tag = 'smem constant byte address 0x4 - core index']
  #allocation1 [shape = 'u32[72,128]{1,0:T(1,128)}', space=vmem, size = 0x9000, scoped, tag = 'internal scratch']
  %s0 = inlined_call_operand.vmem [shape: bf16[512,32], index: 0, kind: input, shape index: {}]
  %s1 = inlined_call_operand.vmem [shape: bf16[32,16], index: 1, kind: input, shape index: {}]
  %s2 = inlined_call_operand.vmem [shape: f32[1,16], index: 2, kind: input, shape index: {}]
  %s3 = inlined_call_operand.vmem [shape: f32[1,16], index: 3, kind: input, shape index: {}]
  %s4 = inlined_call_operand.vmem [shape: bf16[64,16,8], index: 4, kind: output, shape index: {}]
  %s5 = sld [smem:[#allocation0]]
  $region49: #{pixel_decoder_forward.9} parent=0
    _
  %s7 = ssub.s32 1, %s5
  %s8 = scalar_select 0, %s7, %s5
  loop: start=0, step=1, limit=4
  $region2: #{pixel_decoder_forward.9} parent=0 // loop_pre_header
    _
  $region3: #{pixel_decoder_forward.9} parent=0 // loop_header
    %s10 = sphi 0, %s14
    %p11 = scmp.ge.s32.totalorder %s10, 4
    %s20 = sphi 0, %s22
    %s23 = sphi 0, %s20
    %s24 = sphi 0, %s23
    %s40 = sphi 0, %s24
    %s44 = sphi 0, %s44
    %s46 = sphi 0, %s44
    %s47 = sphi 0, %s46
    %s61 = sphi 0, %s47
    %s65 = sphi 0, %s65
    %s67 = sphi 0, %s65
    %s68 = sphi 0, %s67
    %s82 = sphi 0, %s68
    %s86 = sphi 0, %s86
    %s88 = sphi 0, %s86
    %s89 = sphi 0, %s88
    %s103 = sphi 0, %s89
    %s109 = sphi 0, %s111
    %s112 = sphi 0, %s109
    %s113 = sphi 0, %s112
    %s129 = sphi 0, %s113
  $region4: #{pixel_decoder_forward.9} parent=0 // loop_header_branch
    %13 = sbr.rel (%p11) target = $region8
  $region5: #{pixel_decoder_forward.9} parent=0 // loop_body
    %s15 = ssub.s32 %s10, 1
    %s16 = ssub.s32 %s10, 2
    %s17 = sadd.s32 %s10, 1
    %s18 = ssub.s32 %s10, %s17
    %p19 = scmp.eq.s32.totalorder %s18, 0
    %s21 = sadd.s32 %s20, 1
    %s22 = scalar_select %p19, %s20, %s21
    %p25 = pneg %p19
    %p26 = scmp.eq.s32.totalorder %s10, 1
    %p27 = por %p25, %p26
    %p28 = scmp.ne.s32.totalorder %s20, %s23
    %p29 = scmp.eq.s32.totalorder %s10, 0
    %p30 = por %p28, %p29
    %p31 = scmp.ne.s32.totalorder %s20, %s23
    %p32 = scmp.eq.s32.totalorder %s15, 1
    %p33 = por %p31, %p32
    %p34 = scmp.ne.s32.totalorder %s23, %s24
    %p35 = scmp.eq.s32.totalorder %s15, 0
    %p36 = por %p34, %p35
    %p37 = scmp.ne.s32.totalorder %s23, %s24
    %p38 = scmp.eq.s32.totalorder %s16, 1
    %p39 = por %p37, %p38
    %p41 = scmp.ne.s32.totalorder %s24, %s40
    %p42 = scmp.eq.s32.totalorder %s16, 0
    %p43 = por %p41, %p42
    %s45 = sadd.s32 %s44, 1
    %p48 = scmp.eq.s32.totalorder %s10, 1
    %p49 = scmp.ne.s32.totalorder %s44, %s46
    %p50 = scmp.eq.s32.totalorder %s10, 0
    %p51 = por %p49, %p50
    %p52 = scmp.ne.s32.totalorder %s44, %s46
    %p53 = scmp.eq.s32.totalorder %s15, 1
    %p54 = por %p52, %p53
    %p55 = scmp.ne.s32.totalorder %s46, %s47
    %p56 = scmp.eq.s32.totalorder %s15, 0
    %p57 = por %p55, %p56
    %p58 = scmp.ne.s32.totalorder %s46, %s47
    %p59 = scmp.eq.s32.totalorder %s16, 1
    %p60 = por %p58, %p59
    %p62 = scmp.ne.s32.totalorder %s47, %s61
    %p63 = scmp.eq.s32.totalorder %s16, 0
    %p64 = por %p62, %p63
    %s66 = sadd.s32 %s65, 1
    %p69 = scmp.eq.s32.totalorder %s10, 1
    %p70 = scmp.ne.s32.totalorder %s65, %s67
    %p71 = scmp.eq.s32.totalorder %s10, 0
    %p72 = por %p70, %p71
    %p73 = scmp.ne.s32.totalorder %s65, %s67
    %p74 = scmp.eq.s32.totalorder %s15, 1
    %p75 = por %p73, %p74
    %p76 = scmp.ne.s32.totalorder %s67, %s68
    %p77 = scmp.eq.s32.totalorder %s15, 0
    %p78 = por %p76, %p77
    %p79 = scmp.ne.s32.totalorder %s67, %s68
    %p80 = scmp.eq.s32.totalorder %s16, 1
    %p81 = por %p79, %p80
    %p83 = scmp.ne.s32.totalorder %s68, %s82
    %p84 = scmp.eq.s32.totalorder %s16, 0
    %p85 = por %p83, %p84
    %s87 = sadd.s32 %s86, 1
    %p90 = scmp.eq.s32.totalorder %s10, 1
    %p91 = scmp.ne.s32.totalorder %s86, %s88
    %p92 = scmp.eq.s32.totalorder %s10, 0
    %p93 = por %p91, %p92
    %p94 = scmp.ne.s32.totalorder %s86, %s88
    %p95 = scmp.eq.s32.totalorder %s15, 1
    %p96 = por %p94, %p95
    %p97 = scmp.ne.s32.totalorder %s88, %s89
    %p98 = scmp.eq.s32.totalorder %s15, 0
    %p99 = por %p97, %p98
    %p100 = scmp.ne.s32.totalorder %s88, %s89
    %p101 = scmp.eq.s32.totalorder %s16, 1
    %p102 = por %p100, %p101
    %p104 = scmp.ne.s32.totalorder %s89, %s103
    %p105 = scmp.eq.s32.totalorder %s16, 0
    %p106 = por %p104, %p105
    %s107 = ssub.s32 %s10, %s17
    %p108 = scmp.eq.s32.totalorder %s107, 0
    %s110 = sadd.s32 %s109, 1
    %s111 = scalar_select %p108, %s109, %s110
    %p114 = pneg %p108
    %p115 = scmp.eq.s32.totalorder %s10, 1
    %p116 = por %p114, %p115
    %p117 = scmp.ne.s32.totalorder %s109, %s112
    %p118 = scmp.eq.s32.totalorder %s10, 0
    %p119 = por %p117, %p118
    %p120 = scmp.ne.s32.totalorder %s109, %s112
    %p121 = scmp.eq.s32.totalorder %s15, 1
    %p122 = por %p120, %p121
    %p123 = scmp.ne.s32.totalorder %s112, %s113
    %p124 = scmp.eq.s32.totalorder %s15, 0
    %p125 = por %p123, %p124
    %p126 = scmp.ne.s32.totalorder %s112, %s113
    %p127 = scmp.eq.s32.totalorder %s16, 1
    %p128 = por %p126, %p127
    %p130 = scmp.ne.s32.totalorder %s113, %s129
    %p131 = scmp.eq.s32.totalorder %s16, 0
    %p132 = por %p130, %p131
    %p133 = scmp.le.s32.totalorder 1, %s10
    %p134 = scmp.lt.s32.totalorder %s10, 3
    %p135 = pnand %p133, %p134
    %p136 = pneg %p135
    // Predicated region
    $region9: #{pixel_decoder_forward.9} parent=5 // pred_check
      _
    $region10: #{pixel_decoder_forward.9} parent=5 // pred_check_branch
      %138 = sbr.rel (%p135) target = $region12
    $region11: #{pixel_decoder_forward.9} parent=5 // pred_region
      %s139 = ssub.s32 %s10, 1
      // Predicated region
      $region13: #{pixel_decoder_forward.9} parent=11 // pred_check
        %p140 = pneg %p57
      $region14: #{pixel_decoder_forward.9} parent=11 // pred_check_branch
        %142 = sbr.rel (%p140) target = $region16
      $region15: #{pixel_decoder_forward.9} parent=11 // pred_region
        _
      $region16: #{pixel_decoder_forward.9} parent=11 // pred_fallthru
        _
      // Predicated region
      $region17: #{pixel_decoder_forward.9} parent=11 // pred_check
        %p143 = pneg %p78
      $region18: #{pixel_decoder_forward.9} parent=11 // pred_check_branch
        %145 = sbr.rel (%p143) target = $region20
      $region19: #{pixel_decoder_forward.9} parent=11 // pred_region
        _
      $region20: #{pixel_decoder_forward.9} parent=11 // pred_fallthru
        _
      // Predicated region
      $region21: #{pixel_decoder_forward.9} parent=11 // pred_check
        %p146 = pneg %p99
      $region22: #{pixel_decoder_forward.9} parent=11 // pred_check_branch
        %148 = sbr.rel (%p146) target = $region24
      $region23: #{pixel_decoder_forward.9} parent=11 // pred_region
        _
      $region24: #{pixel_decoder_forward.9} parent=11 // pred_fallthru
        _
    $region12: #{pixel_decoder_forward.9} parent=5 // pred_fallthru
      _
    %p149 = scmp.lt.s32.totalorder %s10, 2
    // Predicated region
    $region25: #{pixel_decoder_forward.9} parent=5 // pred_check
      %p150 = pneg %p149
    $region26: #{pixel_decoder_forward.9} parent=5 // pred_check_branch
      %152 = sbr.rel (%p150) target = $region28
    $region27: #{pixel_decoder_forward.9} parent=5 // pred_region
      // Predicated region
      $region29: #{pixel_decoder_forward.9} parent=27 // pred_check
        %p153 = pneg %p30
      $region30: #{pixel_decoder_forward.9} parent=27 // pred_check_branch
        %155 = sbr.rel (%p153) target = $region32
      $region31: #{pixel_decoder_forward.9} parent=27 // pred_region
        %s156 = smul.u32 32, %s10
        %p157 = scmp.lt.s32.totalorder %s156, 63
        %s158 = scalar_select %p157, %s156, 63
        %s159 = smul.addr %s158, 4
        %s160 = scalar_lea.vmem %s0, %s159
        %s161 = smul.u32 32, %s10
      $region32: #{pixel_decoder_forward.9} parent=27 // pred_fallthru
        _
    $region28: #{pixel_decoder_forward.9} parent=5 // pred_fallthru
      _
    %p162 = scmp.le.s32.totalorder 1, %s10
    %p163 = scmp.lt.s32.totalorder %s10, 3
    %p164 = pnand %p162, %p163
    %p165 = pneg %p164
    // Predicated region
    $region33: #{pixel_decoder_forward.9} parent=5 // pred_check
      _
    $region34: #{pixel_decoder_forward.9} parent=5 // pred_check_branch
      %167 = sbr.rel (%p164) target = $region36
    $region35: #{pixel_decoder_forward.9} parent=5 // pred_region
      %s168 = ssub.s32 %s10, 1
      %s169 = smul.u32 32, %s15
      %p170 = scmp.lt.s32.totalorder %s169, 63
      %s171 = scalar_select %p170, %s169, 63
      %s172 = smul.addr %s171, 4
      %s173 = scalar_lea.vmem %s0, %s172
      %p174 = pneg %p36
      %p175 = pneg %p33
      %p176 = pneg %p57
      %p177 = pneg %p54
      %p178 = pneg %p78
      %p179 = pneg %p75
      %p180 = pneg %p99
      %p181 = pneg %p96
      %p182 = pneg %p125
      %p183 = pneg %p122
      %s184 = smul.u32 32, %s15
      %p185 = scmp.lt.s32.totalorder %s184, 63
      %s186 = scalar_select %p185, %s184, 63
      %s187 = smul.addr %s186, 2
      %s188 = smul.addr %s187, 4
      %s189 = scalar_lea.vmem %s4, %s188
      %s190 = smul.u32 32, %s15
      %p191 = scmp.lt.s32.totalorder %s190, 63
      %s192 = scalar_select %p191, %s190, 63
      %s193 = smul.addr %s192, 4
      %s194 = scalar_lea.vmem %s0, %s193
      %s195 = smul.u32 32, %s15
      %s196 = smul.u32 32, %s15
      %p197 = scmp.lt.s32.totalorder %s196, 63
      %s198 = scalar_select %p197, %s196, 63
      %s199 = smul.addr %s198, 2
      %s200 = smul.addr %s199, 4
      %s201 = scalar_lea.vmem %s4, %s200
      %s202 = smul.u32 32, %s15
      %v204 = vld [vmem:[%s194] sm:$0xf]
      %v205 = vld [vmem:[%s194 + $0x4] sm:$0xf]
      %v206 = vld [vmem:[%s194 + $0x8] sm:$0xf]
      %v207 = vld [vmem:[%s194 + $0xc] sm:$0xf]
      %v208 = vld [vmem:[%s194 + $0x10] sm:$0xf]
      %v209 = vld [vmem:[%s194 + $0x14] sm:$0xf]
      %v210 = vld [vmem:[%s194 + $0x18] sm:$0xf]
      %v211 = vld [vmem:[%s194 + $0x1c] sm:$0xf]
      %v212 = vld [vmem:[%s194 + $0x20] sm:$0xf]
      %v213 = vld [vmem:[%s194 + $0x24] sm:$0xf]
      %v214 = vld [vmem:[%s194 + $0x28] sm:$0xf]
      %v215 = vld [vmem:[%s194 + $0x2c] sm:$0xf]
      %v216 = vld [vmem:[%s194 + $0x30] sm:$0xf]
      %v217 = vld [vmem:[%s194 + $0x34] sm:$0xf]
      %v218 = vld [vmem:[%s194 + $0x38] sm:$0xf]
      %v219 = vld [vmem:[%s194 + $0x3c] sm:$0xf]
      %v220 = vld [vmem:[%s194 + $0x40] sm:$0xf]
      %v221 = vld [vmem:[%s194 + $0x44] sm:$0xf]
      %v222 = vld [vmem:[%s194 + $0x48] sm:$0xf]
      %v223 = vld [vmem:[%s194 + $0x4c] sm:$0xf]
      %v224 = vld [vmem:[%s194 + $0x50] sm:$0xf]
      %v225 = vld [vmem:[%s194 + $0x54] sm:$0xf]
      %v226 = vld [vmem:[%s194 + $0x58] sm:$0xf]
      %v227 = vld [vmem:[%s194 + $0x5c] sm:$0xf]
      %v228 = vld [vmem:[%s194 + $0x60] sm:$0xf]
      %v229 = vld [vmem:[%s194 + $0x64] sm:$0xf]
      %v230 = vld [vmem:[%s194 + $0x68] sm:$0xf]
      %v231 = vld [vmem:[%s194 + $0x6c] sm:$0xf]
      %v232 = vld [vmem:[%s194 + $0x70] sm:$0xf]
      %v233 = vld [vmem:[%s194 + $0x74] sm:$0xf]
      %v234 = vld [vmem:[%s194 + $0x78] sm:$0xf]
      %v235 = vld [vmem:[%s194 + $0x7c] sm:$0xf]
      %v236 = vld [vmem:[%s1] sm:$0xf]
      %v237 = vld [vmem:[%s1 + $0x4] sm:$0xf]
      %v238 = vld [vmem:[%s1 + $0x8] sm:$0xf]
      %v239 = vld [vmem:[%s1 + $0xc] sm:$0xf]
      %v272 = vunpack.c.l.b16 %v204
      %v273 = vunpack.c.l.b16 %v205
      %v274 = vunpack.c.l.b16 %v206
      %v275 = vunpack.c.l.b16 %v207
      %v276 = vunpack.c.l.b16 %v208
      %v277 = vunpack.c.l.b16 %v209
      %v278 = vunpack.c.l.b16 %v210
      %v279 = vunpack.c.l.b16 %v211
      %v280 = vunpack.c.l.b16 %v212
      %v281 = vunpack.c.l.b16 %v213
      %v282 = vunpack.c.l.b16 %v214
      %v283 = vunpack.c.l.b16 %v215
      %v284 = vunpack.c.l.b16 %v216
      %v285 = vunpack.c.l.b16 %v217
      %v286 = vunpack.c.l.b16 %v218
      %v287 = vunpack.c.l.b16 %v219
      %v288 = vunpack.c.l.b16 %v220
      %v289 = vunpack.c.l.b16 %v221
      %v290 = vunpack.c.l.b16 %v222
      %v291 = vunpack.c.l.b16 %v223
      %v292 = vunpack.c.l.b16 %v224
      %v293 = vunpack.c.l.b16 %v225
      %v294 = vunpack.c.l.b16 %v226
      %v295 = vunpack.c.l.b16 %v227
      %v296 = vunpack.c.l.b16 %v228
      %v297 = vunpack.c.l.b16 %v229
      %v298 = vunpack.c.l.b16 %v230
      %v299 = vunpack.c.l.b16 %v231
      %v300 = vunpack.c.l.b16 %v232
      %v301 = vunpack.c.l.b16 %v233
      %v302 = vunpack.c.l.b16 %v234
      %v303 = vunpack.c.l.b16 %v235
      %v304 = vpack.c.b16 %v273, %v272
      %v305 = vpack.c.b16 %v275, %v274
      %v306 = vpack.c.b16 %v277, %v276
      %v307 = vpack.c.b16 %v279, %v278
      %v308 = vpack.c.b16 %v281, %v280
      %v309 = vpack.c.b16 %v283, %v282
      %v310 = vpack.c.b16 %v285, %v284
      %v311 = vpack.c.b16 %v287, %v286
      %v312 = vpack.c.b16 %v289, %v288
      %v313 = vpack.c.b16 %v291, %v290
      %v314 = vpack.c.b16 %v293, %v292
      %v315 = vpack.c.b16 %v295, %v294
      %v316 = vpack.c.b16 %v297, %v296
      %v317 = vpack.c.b16 %v299, %v298
      %v318 = vpack.c.b16 %v301, %v300
      %v319 = vpack.c.b16 %v303, %v302
      %v324 = vunpack.c.l.b16 %v236
      %v325 = vunpack.c.l.b16 %v237
      %v326 = vunpack.c.l.b16 %v238
      %v327 = vunpack.c.l.b16 %v239
      %v328 = vpack.c.b16 %v325, %v324
      %v329 = vpack.c.b16 %v327, %v326
      %vm332 = vcmask 261120
      %v334 = vsel %vm332, %v304, 0
      %v337 = vsel %vm332, %v305, 0
      %v340 = vsel %vm332, %v306, 0
      %v343 = vsel %vm332, %v307, 0
      %v346 = vsel %vm332, %v308, 0
      %v349 = vsel %vm332, %v309, 0
      %v352 = vsel %vm332, %v310, 0
      %v355 = vsel %vm332, %v311, 0
      %v358 = vsel %vm332, %v312, 0
      %v361 = vsel %vm332, %v313, 0
      %v364 = vsel %vm332, %v314, 0
      %v367 = vsel %vm332, %v315, 0
      %v370 = vsel %vm332, %v316, 0
      %v373 = vsel %vm332, %v317, 0
      %v376 = vsel %vm332, %v318, 0
      %v379 = vsel %vm332, %v319, 0
      %381 = vmatpush.bf16.msra.mxu0 0
      %382 = vmatpush.bf16.msra.mxu0 0
      %383 = vmatpush.bf16.msra.mxu0 0
      %384 = vmatpush.bf16.msra.mxu0 0
      %385 = vmatpush.bf16.msra.mxu0 0
      %386 = vmatpush.bf16.msra.mxu0 0
      %387 = vmatpush.bf16.msra.mxu0 %v329
      %388 = vmatpush.bf16.msra.mxu0 %v328
      %389 = vmatmul.bf16.gmra.mxu0 %v334
      %v390 = vpop.f32.mrf.mxu0
      %v391 = vadd.f32 0.0, %v390
      %v392 = vpop.f32.mrf.mxu0
      %v393 = vadd.f32 0.0, %v392
      %394 = vmatmul.bf16.gmra.mxu0 %v337
      %v395 = vpop.f32.mrf.mxu0
      %v396 = vadd.f32 0.0, %v395
      %v397 = vpop.f32.mrf.mxu0
      %v398 = vadd.f32 0.0, %v397
      %399 = vmatmul.bf16.gmra.mxu0 %v340
      %v400 = vpop.f32.mrf.mxu0
      %v401 = vadd.f32 0.0, %v400
      %v402 = vpop.f32.mrf.mxu0
      %v403 = vadd.f32 0.0, %v402
      %404 = vmatmul.bf16.gmra.mxu0 %v343
      %v405 = vpop.f32.mrf.mxu0
      %v406 = vadd.f32 0.0, %v405
      %v407 = vpop.f32.mrf.mxu0
      %v408 = vadd.f32 0.0, %v407
      %409 = vmatmul.bf16.gmra.mxu0 %v346
      %v410 = vpop.f32.mrf.mxu0
      %v411 = vadd.f32 0.0, %v410
      %v412 = vpop.f32.mrf.mxu0
      %v413 = vadd.f32 0.0, %v412
      %414 = vmatmul.bf16.gmra.mxu0 %v349
      %v415 = vpop.f32.mrf.mxu0
      %v416 = vadd.f32 0.0, %v415
      %v417 = vpop.f32.mrf.mxu0
      %v418 = vadd.f32 0.0, %v417
      %419 = vmatmul.bf16.gmra.mxu0 %v352
      %v420 = vpop.f32.mrf.mxu0
      %v421 = vadd.f32 0.0, %v420
      %v422 = vpop.f32.mrf.mxu0
      %v423 = vadd.f32 0.0, %v422
      %424 = vmatmul.bf16.gmra.mxu0 %v355
      %v425 = vpop.f32.mrf.mxu0
      %v426 = vadd.f32 0.0, %v425
      %v427 = vpop.f32.mrf.mxu0
      %v428 = vadd.f32 0.0, %v427
      %429 = vmatmul.bf16.gmra.mxu0 %v358
      %v430 = vpop.f32.mrf.mxu0
      %v431 = vadd.f32 0.0, %v430
      %v432 = vpop.f32.mrf.mxu0
      %v433 = vadd.f32 0.0, %v432
      %434 = vmatmul.bf16.gmra.mxu0 %v361
      %v435 = vpop.f32.mrf.mxu0
      %v436 = vadd.f32 0.0, %v435
      %v437 = vpop.f32.mrf.mxu0
      %v438 = vadd.f32 0.0, %v437
      %439 = vmatmul.bf16.gmra.mxu0 %v364
      %v440 = vpop.f32.mrf.mxu0
      %v441 = vadd.f32 0.0, %v440
      %v442 = vpop.f32.mrf.mxu0
      %v443 = vadd.f32 0.0, %v442
      %444 = vmatmul.bf16.gmra.mxu0 %v367
      %v445 = vpop.f32.mrf.mxu0
      %v446 = vadd.f32 0.0, %v445
      %v447 = vpop.f32.mrf.mxu0
      %v448 = vadd.f32 0.0, %v447
      %449 = vmatmul.bf16.gmra.mxu0 %v370
      %v450 = vpop.f32.mrf.mxu0
      %v451 = vadd.f32 0.0, %v450
      %v452 = vpop.f32.mrf.mxu0
      %v453 = vadd.f32 0.0, %v452
      %454 = vmatmul.bf16.gmra.mxu0 %v373
      %v455 = vpop.f32.mrf.mxu0
      %v456 = vadd.f32 0.0, %v455
      %v457 = vpop.f32.mrf.mxu0
      %v458 = vadd.f32 0.0, %v457
      %459 = vmatmul.bf16.gmra.mxu0 %v376
      %v460 = vpop.f32.mrf.mxu0
      %v461 = vadd.f32 0.0, %v460
      %v462 = vpop.f32.mrf.mxu0
      %v463 = vadd.f32 0.0, %v462
      %464 = vmatmul.bf16.gmra.mxu0 %v379
      %v465 = vpop.f32.mrf.mxu0
      %v466 = vadd.f32 0.0, %v465
      %v467 = vpop.f32.mrf.mxu0
      %v468 = vadd.f32 0.0, %v467
      %469 = vdwg.mxu0
      %v470 = vld [vmem:[%s2] sm:$0x1]
      %v472 = vperm.slane %v470, 0
      %v474 = vmul.f32 %v391, %v472
      %v475 = vmul.f32 %v393, %v472
      %v476 = vmul.f32 %v396, %v472
      %v477 = vmul.f32 %v398, %v472
      %v478 = vmul.f32 %v401, %v472
      %v479 = vmul.f32 %v403, %v472
      %v480 = vmul.f32 %v406, %v472
      %v481 = vmul.f32 %v408, %v472
      %v482 = vmul.f32 %v411, %v472
      %v483 = vmul.f32 %v413, %v472
      %v484 = vmul.f32 %v416, %v472
      %v485 = vmul.f32 %v418, %v472
      %v486 = vmul.f32 %v421, %v472
      %v487 = vmul.f32 %v423, %v472
      %v488 = vmul.f32 %v426, %v472
      %v489 = vmul.f32 %v428, %v472
      %v490 = vmul.f32 %v431, %v472
      %v491 = vmul.f32 %v433, %v472
      %v492 = vmul.f32 %v436, %v472
      %v493 = vmul.f32 %v438, %v472
      %v494 = vmul.f32 %v441, %v472
      %v495 = vmul.f32 %v443, %v472
      %v496 = vmul.f32 %v446, %v472
      %v497 = vmul.f32 %v448, %v472
      %v498 = vmul.f32 %v451, %v472
      %v499 = vmul.f32 %v453, %v472
      %v500 = vmul.f32 %v456, %v472
      %v501 = vmul.f32 %v458, %v472
      %v502 = vmul.f32 %v461, %v472
      %v503 = vmul.f32 %v463, %v472
      %v504 = vmul.f32 %v466, %v472
      %v505 = vmul.f32 %v468, %v472
      %v506 = vld [vmem:[%s3] sm:$0x1]
      %v508 = vperm.slane %v506, 0
      %v510 = vadd.f32 %v474, %v508
      %v511 = vadd.f32 %v475, %v508
      %v512 = vadd.f32 %v476, %v508
      %v513 = vadd.f32 %v477, %v508
      %v514 = vadd.f32 %v478, %v508
      %v515 = vadd.f32 %v479, %v508
      %v516 = vadd.f32 %v480, %v508
      %v517 = vadd.f32 %v481, %v508
      %v518 = vadd.f32 %v482, %v508
      %v519 = vadd.f32 %v483, %v508
      %v520 = vadd.f32 %v484, %v508
      %v521 = vadd.f32 %v485, %v508
      %v522 = vadd.f32 %v486, %v508
      %v523 = vadd.f32 %v487, %v508
      %v524 = vadd.f32 %v488, %v508
      %v525 = vadd.f32 %v489, %v508
      %v526 = vadd.f32 %v490, %v508
      %v527 = vadd.f32 %v491, %v508
      %v528 = vadd.f32 %v492, %v508
      %v529 = vadd.f32 %v493, %v508
      %v530 = vadd.f32 %v494, %v508
      %v531 = vadd.f32 %v495, %v508
      %v532 = vadd.f32 %v496, %v508
      %v533 = vadd.f32 %v497, %v508
      %v534 = vadd.f32 %v498, %v508
      %v535 = vadd.f32 %v499, %v508
      %v536 = vadd.f32 %v500, %v508
      %v537 = vadd.f32 %v501, %v508
      %v538 = vadd.f32 %v502, %v508
      %v539 = vadd.f32 %v503, %v508
      %v540 = vadd.f32 %v504, %v508
      %v541 = vadd.f32 %v505, %v508
      %v542 = vmax.f32 %v510, 0.0
      %v543 = vmax.f32 %v511, 0.0
      %v544 = vmax.f32 %v512, 0.0
      %v545 = vmax.f32 %v513, 0.0
      %v546 = vmax.f32 %v514, 0.0
      %v547 = vmax.f32 %v515, 0.0
      %v548 = vmax.f32 %v516, 0.0
      %v549 = vmax.f32 %v517, 0.0
      %v550 = vmax.f32 %v518, 0.0
      %v551 = vmax.f32 %v519, 0.0
      %v552 = vmax.f32 %v520, 0.0
      %v553 = vmax.f32 %v521, 0.0
      %v554 = vmax.f32 %v522, 0.0
      %v555 = vmax.f32 %v523, 0.0
      %v556 = vmax.f32 %v524, 0.0
      %v557 = vmax.f32 %v525, 0.0
      %v558 = vmax.f32 %v526, 0.0
      %v559 = vmax.f32 %v527, 0.0
      %v560 = vmax.f32 %v528, 0.0
      %v561 = vmax.f32 %v529, 0.0
      %v562 = vmax.f32 %v530, 0.0
      %v563 = vmax.f32 %v531, 0.0
      %v564 = vmax.f32 %v532, 0.0
      %v565 = vmax.f32 %v533, 0.0
      %v566 = vmax.f32 %v534, 0.0
      %v567 = vmax.f32 %v535, 0.0
      %v568 = vmax.f32 %v536, 0.0
      %v569 = vmax.f32 %v537, 0.0
      %v570 = vmax.f32 %v538, 0.0
      %v571 = vmax.f32 %v539, 0.0
      %v572 = vmax.f32 %v540, 0.0
      %v573 = vmax.f32 %v541, 0.0
      %v574 = vpack.c.bf16 %v542, %v542
      %v575 = vpack.c.bf16 %v543, %v543
      %v576 = vpack.c.bf16 %v544, %v544
      %v577 = vpack.c.bf16 %v545, %v545
      %v578 = vpack.c.bf16 %v546, %v546
      %v579 = vpack.c.bf16 %v547, %v547
      %v580 = vpack.c.bf16 %v548, %v548
      %v581 = vpack.c.bf16 %v549, %v549
      %v582 = vpack.c.bf16 %v550, %v550
      %v583 = vpack.c.bf16 %v551, %v551
      %v584 = vpack.c.bf16 %v552, %v552
      %v585 = vpack.c.bf16 %v553, %v553
      %v586 = vpack.c.bf16 %v554, %v554
      %v587 = vpack.c.bf16 %v555, %v555
      %v588 = vpack.c.bf16 %v556, %v556
      %v589 = vpack.c.bf16 %v557, %v557
      %v590 = vpack.c.bf16 %v558, %v558
      %v591 = vpack.c.bf16 %v559, %v559
      %v592 = vpack.c.bf16 %v560, %v560
      %v593 = vpack.c.bf16 %v561, %v561
      %v594 = vpack.c.bf16 %v562, %v562
      %v595 = vpack.c.bf16 %v563, %v563
      %v596 = vpack.c.bf16 %v564, %v564
      %v597 = vpack.c.bf16 %v565, %v565
      %v598 = vpack.c.bf16 %v566, %v566
      %v599 = vpack.c.bf16 %v567, %v567
      %v600 = vpack.c.bf16 %v568, %v568
      %v601 = vpack.c.bf16 %v569, %v569
      %v602 = vpack.c.bf16 %v570, %v570
      %v603 = vpack.c.bf16 %v571, %v571
      %v604 = vpack.c.bf16 %v572, %v572
      %v605 = vpack.c.bf16 %v573, %v573
      %vm606 = vcmask 60416
      %607 = vst.msk [vmem:[%s201] sm:$0xf] %vm606, %v574
      %608 = vst.msk [vmem:[%s201 + $0x4] sm:$0xf] %vm606, %v575
      %611 = vrot.lane.b32.xlu0 %v574, 120
      %v612 = vpop.permute.xlu0 %611
      %613 = vrot.lane.b32.xlu0 %v575, 120
      %v614 = vpop.permute.xlu0 %613
      %s617 = scalar_lea.vmem %s201, 8
      %618 = vst.msk [vmem:[%s617] sm:$0xf] %vm606, %v612
      %619 = vst.msk [vmem:[%s617 + $0x4] sm:$0xf] %vm606, %v614
      %s620 = scalar_lea.vmem %s201, 16
      %621 = vst.msk [vmem:[%s620] sm:$0xf] %vm606, %v576
      %622 = vst.msk [vmem:[%s620 + $0x4] sm:$0xf] %vm606, %v577
      %625 = vrot.lane.b32.xlu0 %v576, 120
      %v626 = vpop.permute.xlu0 %625
      %627 = vrot.lane.b32.xlu0 %v577, 120
      %v628 = vpop.permute.xlu0 %627
      %s631 = scalar_lea.vmem %s201, 24
      %632 = vst.msk [vmem:[%s631] sm:$0xf] %vm606, %v626
      %633 = vst.msk [vmem:[%s631 + $0x4] sm:$0xf] %vm606, %v628
      %s634 = scalar_lea.vmem %s201, 32
      %635 = vst.msk [vmem:[%s634] sm:$0xf] %vm606, %v578
      %636 = vst.msk [vmem:[%s634 + $0x4] sm:$0xf] %vm606, %v579
      %639 = vrot.lane.b32.xlu0 %v578, 120
      %v640 = vpop.permute.xlu0 %639
      %641 = vrot.lane.b32.xlu0 %v579, 120
      %v642 = vpop.permute.xlu0 %641
      %s645 = scalar_lea.vmem %s201, 40
      %646 = vst.msk [vmem:[%s645] sm:$0xf] %vm606, %v640
      %647 = vst.msk [vmem:[%s645 + $0x4] sm:$0xf] %vm606, %v642
      %s648 = scalar_lea.vmem %s201, 48
      %649 = vst.msk [vmem:[%s648] sm:$0xf] %vm606, %v580
      %650 = vst.msk [vmem:[%s648 + $0x4] sm:$0xf] %vm606, %v581
      %653 = vrot.lane.b32.xlu0 %v580, 120
      %v654 = vpop.permute.xlu0 %653
      %655 = vrot.lane.b32.xlu0 %v581, 120
      %v656 = vpop.permute.xlu0 %655
      %s659 = scalar_lea.vmem %s201, 56
      %660 = vst.msk [vmem:[%s659] sm:$0xf] %vm606, %v654
      %661 = vst.msk [vmem:[%s659 + $0x4] sm:$0xf] %vm606, %v656
      %s662 = scalar_lea.vmem %s201, 64
      %663 = vst.msk [vmem:[%s662] sm:$0xf] %vm606, %v582
      %664 = vst.msk [vmem:[%s662 + $0x4] sm:$0xf] %vm606, %v583
      %667 = vrot.lane.b32.xlu0 %v582, 120
      %v668 = vpop.permute.xlu0 %667
      %669 = vrot.lane.b32.xlu0 %v583, 120
      %v670 = vpop.permute.xlu0 %669
      %s673 = scalar_lea.vmem %s201, 72
      %674 = vst.msk [vmem:[%s673] sm:$0xf] %vm606, %v668
      %675 = vst.msk [vmem:[%s673 + $0x4] sm:$0xf] %vm606, %v670
      %s676 = scalar_lea.vmem %s201, 80
      %677 = vst.msk [vmem:[%s676] sm:$0xf] %vm606, %v584
      %678 = vst.msk [vmem:[%s676 + $0x4] sm:$0xf] %vm606, %v585
      %681 = vrot.lane.b32.xlu0 %v584, 120
      %v682 = vpop.permute.xlu0 %681
      %683 = vrot.lane.b32.xlu0 %v585, 120
      %v684 = vpop.permute.xlu0 %683
      %s687 = scalar_lea.vmem %s201, 88
      %688 = vst.msk [vmem:[%s687] sm:$0xf] %vm606, %v682
      %689 = vst.msk [vmem:[%s687 + $0x4] sm:$0xf] %vm606, %v684
      %s690 = scalar_lea.vmem %s201, 96
      %691 = vst.msk [vmem:[%s690] sm:$0xf] %vm606, %v586
      %692 = vst.msk [vmem:[%s690 + $0x4] sm:$0xf] %vm606, %v587
      %695 = vrot.lane.b32.xlu0 %v586, 120
      %v696 = vpop.permute.xlu0 %695
      %697 = vrot.lane.b32.xlu0 %v587, 120
      %v698 = vpop.permute.xlu0 %697
      %s701 = scalar_lea.vmem %s201, 104
      %702 = vst.msk [vmem:[%s701] sm:$0xf] %vm606, %v696
      %703 = vst.msk [vmem:[%s701 + $0x4] sm:$0xf] %vm606, %v698
      %s704 = scalar_lea.vmem %s201, 112
      %705 = vst.msk [vmem:[%s704] sm:$0xf] %vm606, %v588
      %706 = vst.msk [vmem:[%s704 + $0x4] sm:$0xf] %vm606, %v589
      %709 = vrot.lane.b32.xlu0 %v588, 120
      %v710 = vpop.permute.xlu0 %709
      %711 = vrot.lane.b32.xlu0 %v589, 120
      %v712 = vpop.permute.xlu0 %711
      %s715 = scalar_lea.vmem %s201, 120
      %716 = vst.msk [vmem:[%s715] sm:$0xf] %vm606, %v710
      %717 = vst.msk [vmem:[%s715 + $0x4] sm:$0xf] %vm606, %v712
      %s718 = scalar_lea.vmem %s201, 128
      %719 = vst.msk [vmem:[%s718] sm:$0xf] %vm606, %v590
      %720 = vst.msk [vmem:[%s718 + $0x4] sm:$0xf] %vm606, %v591
      %723 = vrot.lane.b32.xlu0 %v590, 120
      %v724 = vpop.permute.xlu0 %723
      %725 = vrot.lane.b32.xlu0 %v591, 120
      %v726 = vpop.permute.xlu0 %725
      %s729 = scalar_lea.vmem %s201, 136
      %730 = vst.msk [vmem:[%s729] sm:$0xf] %vm606, %v724
      %731 = vst.msk [vmem:[%s729 + $0x4] sm:$0xf] %vm606, %v726
      %s732 = scalar_lea.vmem %s201, 144
      %733 = vst.msk [vmem:[%s732] sm:$0xf] %vm606, %v592
      %734 = vst.msk [vmem:[%s732 + $0x4] sm:$0xf] %vm606, %v593
      %737 = vrot.lane.b32.xlu0 %v592, 120
      %v738 = vpop.permute.xlu0 %737
      %739 = vrot.lane.b32.xlu0 %v593, 120
      %v740 = vpop.permute.xlu0 %739
      %s743 = scalar_lea.vmem %s201, 152
      %744 = vst.msk [vmem:[%s743] sm:$0xf] %vm606, %v738
      %745 = vst.msk [vmem:[%s743 + $0x4] sm:$0xf] %vm606, %v740
      %s746 = scalar_lea.vmem %s201, 160
      %747 = vst.msk [vmem:[%s746] sm:$0xf] %vm606, %v594
      %748 = vst.msk [vmem:[%s746 + $0x4] sm:$0xf] %vm606, %v595
      %751 = vrot.lane.b32.xlu0 %v594, 120
      %v752 = vpop.permute.xlu0 %751
      %753 = vrot.lane.b32.xlu0 %v595, 120
      %v754 = vpop.permute.xlu0 %753
      %s757 = scalar_lea.vmem %s201, 168
      %758 = vst.msk [vmem:[%s757] sm:$0xf] %vm606, %v752
      %759 = vst.msk [vmem:[%s757 + $0x4] sm:$0xf] %vm606, %v754
      %s760 = scalar_lea.vmem %s201, 176
      %761 = vst.msk [vmem:[%s760] sm:$0xf] %vm606, %v596
      %762 = vst.msk [vmem:[%s760 + $0x4] sm:$0xf] %vm606, %v597
      %765 = vrot.lane.b32.xlu0 %v596, 120
      %v766 = vpop.permute.xlu0 %765
      %767 = vrot.lane.b32.xlu0 %v597, 120
      %v768 = vpop.permute.xlu0 %767
      %s771 = scalar_lea.vmem %s201, 184
      %772 = vst.msk [vmem:[%s771] sm:$0xf] %vm606, %v766
      %773 = vst.msk [vmem:[%s771 + $0x4] sm:$0xf] %vm606, %v768
      %s774 = scalar_lea.vmem %s201, 192
      %775 = vst.msk [vmem:[%s774] sm:$0xf] %vm606, %v598
      %776 = vst.msk [vmem:[%s774 + $0x4] sm:$0xf] %vm606, %v599
      %779 = vrot.lane.b32.xlu0 %v598, 120
      %v780 = vpop.permute.xlu0 %779
      %781 = vrot.lane.b32.xlu0 %v599, 120
      %v782 = vpop.permute.xlu0 %781
      %s785 = scalar_lea.vmem %s201, 200
      %786 = vst.msk [vmem:[%s785] sm:$0xf] %vm606, %v780
      %787 = vst.msk [vmem:[%s785 + $0x4] sm:$0xf] %vm606, %v782
      %s788 = scalar_lea.vmem %s201, 208
      %789 = vst.msk [vmem:[%s788] sm:$0xf] %vm606, %v600
      %790 = vst.msk [vmem:[%s788 + $0x4] sm:$0xf] %vm606, %v601
      %793 = vrot.lane.b32.xlu0 %v600, 120
      %v794 = vpop.permute.xlu0 %793
      %795 = vrot.lane.b32.xlu0 %v601, 120
      %v796 = vpop.permute.xlu0 %795
      %s799 = scalar_lea.vmem %s201, 216
      %800 = vst.msk [vmem:[%s799] sm:$0xf] %vm606, %v794
      %801 = vst.msk [vmem:[%s799 + $0x4] sm:$0xf] %vm606, %v796
      %s802 = scalar_lea.vmem %s201, 224
      %803 = vst.msk [vmem:[%s802] sm:$0xf] %vm606, %v602
      %804 = vst.msk [vmem:[%s802 + $0x4] sm:$0xf] %vm606, %v603
      %807 = vrot.lane.b32.xlu0 %v602, 120
      %v808 = vpop.permute.xlu0 %807
      %809 = vrot.lane.b32.xlu0 %v603, 120
      %v810 = vpop.permute.xlu0 %809
      %s813 = scalar_lea.vmem %s201, 232
      %814 = vst.msk [vmem:[%s813] sm:$0xf] %vm606, %v808
      %815 = vst.msk [vmem:[%s813 + $0x4] sm:$0xf] %vm606, %v810
      %s816 = scalar_lea.vmem %s201, 240
      %817 = vst.msk [vmem:[%s816] sm:$0xf] %vm606, %v604
      %818 = vst.msk [vmem:[%s816 + $0x4] sm:$0xf] %vm606, %v605
      %821 = vrot.lane.b32.xlu0 %v604, 120
      %v822 = vpop.permute.xlu0 %821
      %823 = vrot.lane.b32.xlu0 %v605, 120
      %v824 = vpop.permute.xlu0 %823
      %s827 = scalar_lea.vmem %s201, 248
      %828 = vst.msk [vmem:[%s827] sm:$0xf] %vm606, %v822
      %829 = vst.msk [vmem:[%s827 + $0x4] sm:$0xf] %vm606, %v824
      %s830 = smul.u32 32, %s15
      %p831 = scmp.lt.s32.totalorder %s830, 63
      %s832 = scalar_select %p831, %s830, 63
      %s833 = smul.addr %s832, 2
      %s834 = smul.addr %s833, 4
      %s835 = scalar_lea.vmem %s4, %s834
      // Predicated region
      $region37: #{pixel_decoder_forward.9} parent=35 // pred_check
        %p836 = pneg %p122
      $region38: #{pixel_decoder_forward.9} parent=35 // pred_check_branch
        %838 = sbr.rel (%p836) target = $region40
      $region39: #{pixel_decoder_forward.9} parent=35 // pred_region
        %s839 = smul.u32 32, %s15
      $region40: #{pixel_decoder_forward.9} parent=35 // pred_fallthru
        _
    $region36: #{pixel_decoder_forward.9} parent=5 // pred_fallthru
      _
    %p840 = scmp.le.s32.totalorder 2, %s10
    // Predicated region
    $region41: #{pixel_decoder_forward.9} parent=5 // pred_check
      %p841 = pneg %p840
    $region42: #{pixel_decoder_forward.9} parent=5 // pred_check_branch
      %843 = sbr.rel (%p841) target = $region44
    $region43: #{pixel_decoder_forward.9} parent=5 // pred_region
      %s844 = ssub.s32 %s10, 2
      // Predicated region
      $region45: #{pixel_decoder_forward.9} parent=43 // pred_check
        %p845 = pneg %p128
      $region46: #{pixel_decoder_forward.9} parent=43 // pred_check_branch
        %847 = sbr.rel (%p845) target = $region48
      $region47: #{pixel_decoder_forward.9} parent=43 // pred_region
        %s848 = smul.u32 32, %s16
        %p849 = scmp.lt.s32.totalorder %s848, 63
        %s850 = scalar_select %p849, %s848, 63
        %s851 = smul.addr %s850, 2
        %s852 = smul.addr %s851, 4
        %s853 = scalar_lea.vmem %s4, %s852
      $region48: #{pixel_decoder_forward.9} parent=43 // pred_fallthru
        _
    $region44: #{pixel_decoder_forward.9} parent=5 // pred_fallthru
      _
  $region6: #{pixel_decoder_forward.9} parent=0 // loop_footer
    %s14 = sadd.s32 1, %s10
  $region7: #{pixel_decoder_forward.9} parent=0 // loop_footer_branch
    %9 = sbr.rel target = $region3
  $region8: #{pixel_decoder_forward.9} parent=0 // loop_exit
    _

// kernel: pixel_decoder_forward.10
$region0: #{pixel_decoder_forward.10}
  #allocation0 [shape = 'u32[]', space=smem, size = 0x4, offset = 0x4, fixed_abs, tag = 'smem constant byte address 0x4 - core index']
  #allocation1 [shape = 'u32[72,128]{1,0:T(1,128)}', space=vmem, size = 0x9000, scoped, tag = 'internal scratch']
  %s0 = inlined_call_operand.vmem [shape: bf16[2048,16], index: 0, kind: input, shape index: {}]
  %s1 = inlined_call_operand.vmem [shape: bf16[16,128], index: 1, kind: input, shape index: {}]
  %s2 = inlined_call_operand.vmem [shape: f32[2,8,128], index: 2, kind: output, shape index: {}]
  %s3 = sld [smem:[#allocation0]]
  $region41: #{pixel_decoder_forward.10} parent=0
    _
  %s5 = ssub.s32 1, %s3
  %s6 = scalar_select 0, %s5, %s3
  loop: start=0, step=1, limit=4
  $region2: #{pixel_decoder_forward.10} parent=0 // loop_pre_header
    _
  $region3: #{pixel_decoder_forward.10} parent=0 // loop_header
    %s8 = sphi 0, %s12
    %p9 = scmp.ge.s32.totalorder %s8, 4
    %s18 = sphi 0, %s20
    %s21 = sphi 0, %s18
    %s22 = sphi 0, %s21
    %s38 = sphi 0, %s22
    %s42 = sphi 0, %s42
    %s44 = sphi 0, %s42
    %s45 = sphi 0, %s44
    %s59 = sphi 0, %s45
    %s65 = sphi 0, %s67
    %s68 = sphi 0, %s65
    %s69 = sphi 0, %s68
    %s85 = sphi 0, %s69
  $region4: #{pixel_decoder_forward.10} parent=0 // loop_header_branch
    %11 = sbr.rel (%p9) target = $region8
  $region5: #{pixel_decoder_forward.10} parent=0 // loop_body
    %s13 = ssub.s32 %s8, 1
    %s14 = ssub.s32 %s8, 2
    %s15 = sadd.s32 %s8, 1
    %s16 = ssub.s32 %s8, %s15
    %p17 = scmp.eq.s32.totalorder %s16, 0
    %s19 = sadd.s32 %s18, 1
    %s20 = scalar_select %p17, %s18, %s19
    %p23 = pneg %p17
    %p24 = scmp.eq.s32.totalorder %s8, 1
    %p25 = por %p23, %p24
    %p26 = scmp.ne.s32.totalorder %s18, %s21
    %p27 = scmp.eq.s32.totalorder %s8, 0
    %p28 = por %p26, %p27
    %p29 = scmp.ne.s32.totalorder %s18, %s21
    %p30 = scmp.eq.s32.totalorder %s13, 1
    %p31 = por %p29, %p30
    %p32 = scmp.ne.s32.totalorder %s21, %s22
    %p33 = scmp.eq.s32.totalorder %s13, 0
    %p34 = por %p32, %p33
    %p35 = scmp.ne.s32.totalorder %s21, %s22
    %p36 = scmp.eq.s32.totalorder %s14, 1
    %p37 = por %p35, %p36
    %p39 = scmp.ne.s32.totalorder %s22, %s38
    %p40 = scmp.eq.s32.totalorder %s14, 0
    %p41 = por %p39, %p40
    %s43 = sadd.s32 %s42, 1
    %p46 = scmp.eq.s32.totalorder %s8, 1
    %p47 = scmp.ne.s32.totalorder %s42, %s44
    %p48 = scmp.eq.s32.totalorder %s8, 0
    %p49 = por %p47, %p48
    %p50 = scmp.ne.s32.totalorder %s42, %s44
    %p51 = scmp.eq.s32.totalorder %s13, 1
    %p52 = por %p50, %p51
    %p53 = scmp.ne.s32.totalorder %s44, %s45
    %p54 = scmp.eq.s32.totalorder %s13, 0
    %p55 = por %p53, %p54
    %p56 = scmp.ne.s32.totalorder %s44, %s45
    %p57 = scmp.eq.s32.totalorder %s14, 1
    %p58 = por %p56, %p57
    %p60 = scmp.ne.s32.totalorder %s45, %s59
    %p61 = scmp.eq.s32.totalorder %s14, 0
    %p62 = por %p60, %p61
    %s63 = ssub.s32 %s8, %s15
    %p64 = scmp.eq.s32.totalorder %s63, 0
    %s66 = sadd.s32 %s65, 1
    %s67 = scalar_select %p64, %s65, %s66
    %p70 = pneg %p64
    %p71 = scmp.eq.s32.totalorder %s8, 1
    %p72 = por %p70, %p71
    %p73 = scmp.ne.s32.totalorder %s65, %s68
    %p74 = scmp.eq.s32.totalorder %s8, 0
    %p75 = por %p73, %p74
    %p76 = scmp.ne.s32.totalorder %s65, %s68
    %p77 = scmp.eq.s32.totalorder %s13, 1
    %p78 = por %p76, %p77
    %p79 = scmp.ne.s32.totalorder %s68, %s69
    %p80 = scmp.eq.s32.totalorder %s13, 0
    %p81 = por %p79, %p80
    %p82 = scmp.ne.s32.totalorder %s68, %s69
    %p83 = scmp.eq.s32.totalorder %s14, 1
    %p84 = por %p82, %p83
    %p86 = scmp.ne.s32.totalorder %s69, %s85
    %p87 = scmp.eq.s32.totalorder %s14, 0
    %p88 = por %p86, %p87
    %p89 = scmp.le.s32.totalorder 1, %s8
    %p90 = scmp.lt.s32.totalorder %s8, 3
    %p91 = pnand %p89, %p90
    %p92 = pneg %p91
    // Predicated region
    $region9: #{pixel_decoder_forward.10} parent=5 // pred_check
      _
    $region10: #{pixel_decoder_forward.10} parent=5 // pred_check_branch
      %94 = sbr.rel (%p91) target = $region12
    $region11: #{pixel_decoder_forward.10} parent=5 // pred_region
      %s95 = ssub.s32 %s8, 1
      // Predicated region
      $region13: #{pixel_decoder_forward.10} parent=11 // pred_check
        %p96 = pneg %p55
      $region14: #{pixel_decoder_forward.10} parent=11 // pred_check_branch
        %98 = sbr.rel (%p96) target = $region16
      $region15: #{pixel_decoder_forward.10} parent=11 // pred_region
        _
      $region16: #{pixel_decoder_forward.10} parent=11 // pred_fallthru
        _
    $region12: #{pixel_decoder_forward.10} parent=5 // pred_fallthru
      _
    %p99 = scmp.lt.s32.totalorder %s8, 2
    // Predicated region
    $region17: #{pixel_decoder_forward.10} parent=5 // pred_check
      %p100 = pneg %p99
    $region18: #{pixel_decoder_forward.10} parent=5 // pred_check_branch
      %102 = sbr.rel (%p100) target = $region20
    $region19: #{pixel_decoder_forward.10} parent=5 // pred_region
      // Predicated region
      $region21: #{pixel_decoder_forward.10} parent=19 // pred_check
        %p103 = pneg %p28
      $region22: #{pixel_decoder_forward.10} parent=19 // pred_check_branch
        %105 = sbr.rel (%p103) target = $region24
      $region23: #{pixel_decoder_forward.10} parent=19 // pred_region
        %s106 = smul.u32 128, %s8
        %p107 = scmp.lt.s32.totalorder %s106, 255
        %s108 = scalar_select %p107, %s106, 255
        %s109 = smul.addr %s108, 4
        %s110 = scalar_lea.vmem %s0, %s109
        %s111 = smul.u32 128, %s8
      $region24: #{pixel_decoder_forward.10} parent=19 // pred_fallthru
        _
    $region20: #{pixel_decoder_forward.10} parent=5 // pred_fallthru
      _
    %p112 = scmp.le.s32.totalorder 1, %s8
    %p113 = scmp.lt.s32.totalorder %s8, 3
    %p114 = pnand %p112, %p113
    %p115 = pneg %p114
    // Predicated region
    $region25: #{pixel_decoder_forward.10} parent=5 // pred_check
      _
    $region26: #{pixel_decoder_forward.10} parent=5 // pred_check_branch
      %117 = sbr.rel (%p114) target = $region28
    $region27: #{pixel_decoder_forward.10} parent=5 // pred_region
      %s118 = ssub.s32 %s8, 1
      %s119 = smul.u32 128, %s13
      %p120 = scmp.lt.s32.totalorder %s119, 255
      %s121 = scalar_select %p120, %s119, 255
      %s122 = smul.addr %s121, 4
      %s123 = scalar_lea.vmem %s0, %s122
      %p124 = pneg %p34
      %p125 = pneg %p31
      %p126 = pneg %p55
      %p127 = pneg %p52
      %p128 = pneg %p81
      %p129 = pneg %p78
      %p130 = scmp.lt.s32.totalorder %s13, 1
      %s131 = scalar_select %p130, %s13, 1
      %s132 = smul.addr %s131, 8
      %s133 = scalar_lea.vmem %s2, %s132
      %s134 = smul.u32 128, %s13
      %p135 = scmp.lt.s32.totalorder %s134, 255
      %s136 = scalar_select %p135, %s134, 255
      %s137 = smul.addr %s136, 4
      %s138 = scalar_lea.vmem %s0, %s137
      %s139 = smul.u32 128, %s13
      %p140 = scmp.lt.s32.totalorder %s13, 1
      %s141 = scalar_select %p140, %s13, 1
      %s142 = smul.addr %s141, 8
      %s143 = scalar_lea.vmem %s2, %s142
      %v145 = vld [vmem:[%s138] sm:$0xf]
      %v146 = vld [vmem:[%s138 + $0x4] sm:$0xf]
      %v147 = vld [vmem:[%s138 + $0x8] sm:$0xf]
      %v148 = vld [vmem:[%s138 + $0xc] sm:$0xf]
      %v149 = vld [vmem:[%s138 + $0x10] sm:$0xf]
      %v150 = vld [vmem:[%s138 + $0x14] sm:$0xf]
      %v151 = vld [vmem:[%s138 + $0x18] sm:$0xf]
      %v152 = vld [vmem:[%s138 + $0x1c] sm:$0xf]
      %v153 = vld [vmem:[%s138 + $0x20] sm:$0xf]
      %v154 = vld [vmem:[%s138 + $0x24] sm:$0xf]
      %v155 = vld [vmem:[%s138 + $0x28] sm:$0xf]
      %v156 = vld [vmem:[%s138 + $0x2c] sm:$0xf]
      %v157 = vld [vmem:[%s138 + $0x30] sm:$0xf]
      %v158 = vld [vmem:[%s138 + $0x34] sm:$0xf]
      %v159 = vld [vmem:[%s138 + $0x38] sm:$0xf]
      %v160 = vld [vmem:[%s138 + $0x3c] sm:$0xf]
      %v161 = vld [vmem:[%s138 + $0x40] sm:$0xf]
      %v162 = vld [vmem:[%s138 + $0x44] sm:$0xf]
      %v163 = vld [vmem:[%s138 + $0x48] sm:$0xf]
      %v164 = vld [vmem:[%s138 + $0x4c] sm:$0xf]
      %v165 = vld [vmem:[%s138 + $0x50] sm:$0xf]
      %v166 = vld [vmem:[%s138 + $0x54] sm:$0xf]
      %v167 = vld [vmem:[%s138 + $0x58] sm:$0xf]
      %v168 = vld [vmem:[%s138 + $0x5c] sm:$0xf]
      %v169 = vld [vmem:[%s138 + $0x60] sm:$0xf]
      %v170 = vld [vmem:[%s138 + $0x64] sm:$0xf]
      %v171 = vld [vmem:[%s138 + $0x68] sm:$0xf]
      %v172 = vld [vmem:[%s138 + $0x6c] sm:$0xf]
      %v173 = vld [vmem:[%s138 + $0x70] sm:$0xf]
      %v174 = vld [vmem:[%s138 + $0x74] sm:$0xf]
      %v175 = vld [vmem:[%s138 + $0x78] sm:$0xf]
      %v176 = vld [vmem:[%s138 + $0x7c] sm:$0xf]
      %v177 = vld [vmem:[%s138 + $0x80] sm:$0xf]
      %v178 = vld [vmem:[%s138 + $0x84] sm:$0xf]
      %v179 = vld [vmem:[%s138 + $0x88] sm:$0xf]
      %v180 = vld [vmem:[%s138 + $0x8c] sm:$0xf]
      %v181 = vld [vmem:[%s138 + $0x90] sm:$0xf]
      %v182 = vld [vmem:[%s138 + $0x94] sm:$0xf]
      %v183 = vld [vmem:[%s138 + $0x98] sm:$0xf]
      %v184 = vld [vmem:[%s138 + $0x9c] sm:$0xf]
      %v185 = vld [vmem:[%s138 + $0xa0] sm:$0xf]
      %v186 = vld [vmem:[%s138 + $0xa4] sm:$0xf]
      %v187 = vld [vmem:[%s138 + $0xa8] sm:$0xf]
      %v188 = vld [vmem:[%s138 + $0xac] sm:$0xf]
      %v189 = vld [vmem:[%s138 + $0xb0] sm:$0xf]
      %v190 = vld [vmem:[%s138 + $0xb4] sm:$0xf]
      %v191 = vld [vmem:[%s138 + $0xb8] sm:$0xf]
      %v192 = vld [vmem:[%s138 + $0xbc] sm:$0xf]
      %v193 = vld [vmem:[%s138 + $0xc0] sm:$0xf]
      %v194 = vld [vmem:[%s138 + $0xc4] sm:$0xf]
      %v195 = vld [vmem:[%s138 + $0xc8] sm:$0xf]
      %v196 = vld [vmem:[%s138 + $0xcc] sm:$0xf]
      %v197 = vld [vmem:[%s138 + $0xd0] sm:$0xf]
      %v198 = vld [vmem:[%s138 + $0xd4] sm:$0xf]
      %v199 = vld [vmem:[%s138 + $0xd8] sm:$0xf]
      %v200 = vld [vmem:[%s138 + $0xdc] sm:$0xf]
      %v201 = vld [vmem:[%s138 + $0xe0] sm:$0xf]
      %v202 = vld [vmem:[%s138 + $0xe4] sm:$0xf]
      %v203 = vld [vmem:[%s138 + $0xe8] sm:$0xf]
      %v204 = vld [vmem:[%s138 + $0xec] sm:$0xf]
      %v205 = vld [vmem:[%s138 + $0xf0] sm:$0xf]
      %v206 = vld [vmem:[%s138 + $0xf4] sm:$0xf]
      %v207 = vld [vmem:[%s138 + $0xf8] sm:$0xf]
      %v208 = vld [vmem:[%s138 + $0xfc] sm:$0xf]
      %v209 = vld [vmem:[%s138 + $0x100] sm:$0xf]
      %v210 = vld [vmem:[%s138 + $0x104] sm:$0xf]
      %v211 = vld [vmem:[%s138 + $0x108] sm:$0xf]
      %v212 = vld [vmem:[%s138 + $0x10c] sm:$0xf]
      %v213 = vld [vmem:[%s138 + $0x110] sm:$0xf]
      %v214 = vld [vmem:[%s138 + $0x114] sm:$0xf]
      %v215 = vld [vmem:[%s138 + $0x118] sm:$0xf]
      %v216 = vld [vmem:[%s138 + $0x11c] sm:$0xf]
      %v217 = vld [vmem:[%s138 + $0x120] sm:$0xf]
      %v218 = vld [vmem:[%s138 + $0x124] sm:$0xf]
      %v219 = vld [vmem:[%s138 + $0x128] sm:$0xf]
      %v220 = vld [vmem:[%s138 + $0x12c] sm:$0xf]
      %v221 = vld [vmem:[%s138 + $0x130] sm:$0xf]
      %v222 = vld [vmem:[%s138 + $0x134] sm:$0xf]
      %v223 = vld [vmem:[%s138 + $0x138] sm:$0xf]
      %v224 = vld [vmem:[%s138 + $0x13c] sm:$0xf]
      %v225 = vld [vmem:[%s138 + $0x140] sm:$0xf]
      %v226 = vld [vmem:[%s138 + $0x144] sm:$0xf]
      %v227 = vld [vmem:[%s138 + $0x148] sm:$0xf]
      %v228 = vld [vmem:[%s138 + $0x14c] sm:$0xf]
      %v229 = vld [vmem:[%s138 + $0x150] sm:$0xf]
      %v230 = vld [vmem:[%s138 + $0x154] sm:$0xf]
      %v231 = vld [vmem:[%s138 + $0x158] sm:$0xf]
      %v232 = vld [vmem:[%s138 + $0x15c] sm:$0xf]
      %v233 = vld [vmem:[%s138 + $0x160] sm:$0xf]
      %v234 = vld [vmem:[%s138 + $0x164] sm:$0xf]
      %v235 = vld [vmem:[%s138 + $0x168] sm:$0xf]
      %v236 = vld [vmem:[%s138 + $0x16c] sm:$0xf]
      %v237 = vld [vmem:[%s138 + $0x170] sm:$0xf]
      %v238 = vld [vmem:[%s138 + $0x174] sm:$0xf]
      %v239 = vld [vmem:[%s138 + $0x178] sm:$0xf]
      %v240 = vld [vmem:[%s138 + $0x17c] sm:$0xf]
      %v241 = vld [vmem:[%s138 + $0x180] sm:$0xf]
      %v242 = vld [vmem:[%s138 + $0x184] sm:$0xf]
      %v243 = vld [vmem:[%s138 + $0x188] sm:$0xf]
      %v244 = vld [vmem:[%s138 + $0x18c] sm:$0xf]
      %v245 = vld [vmem:[%s138 + $0x190] sm:$0xf]
      %v246 = vld [vmem:[%s138 + $0x194] sm:$0xf]
      %v247 = vld [vmem:[%s138 + $0x198] sm:$0xf]
      %v248 = vld [vmem:[%s138 + $0x19c] sm:$0xf]
      %v249 = vld [vmem:[%s138 + $0x1a0] sm:$0xf]
      %v250 = vld [vmem:[%s138 + $0x1a4] sm:$0xf]
      %v251 = vld [vmem:[%s138 + $0x1a8] sm:$0xf]
      %v252 = vld [vmem:[%s138 + $0x1ac] sm:$0xf]
      %v253 = vld [vmem:[%s138 + $0x1b0] sm:$0xf]
      %v254 = vld [vmem:[%s138 + $0x1b4] sm:$0xf]
      %v255 = vld [vmem:[%s138 + $0x1b8] sm:$0xf]
      %v256 = vld [vmem:[%s138 + $0x1bc] sm:$0xf]
      %v257 = vld [vmem:[%s138 + $0x1c0] sm:$0xf]
      %v258 = vld [vmem:[%s138 + $0x1c4] sm:$0xf]
      %v259 = vld [vmem:[%s138 + $0x1c8] sm:$0xf]
      %v260 = vld [vmem:[%s138 + $0x1cc] sm:$0xf]
      %v261 = vld [vmem:[%s138 + $0x1d0] sm:$0xf]
      %v262 = vld [vmem:[%s138 + $0x1d4] sm:$0xf]
      %v263 = vld [vmem:[%s138 + $0x1d8] sm:$0xf]
      %v264 = vld [vmem:[%s138 + $0x1dc] sm:$0xf]
      %v265 = vld [vmem:[%s138 + $0x1e0] sm:$0xf]
      %v266 = vld [vmem:[%s138 + $0x1e4] sm:$0xf]
      %v267 = vld [vmem:[%s138 + $0x1e8] sm:$0xf]
      %v268 = vld [vmem:[%s138 + $0x1ec] sm:$0xf]
      %v269 = vld [vmem:[%s138 + $0x1f0] sm:$0xf]
      %v270 = vld [vmem:[%s138 + $0x1f4] sm:$0xf]
      %v271 = vld [vmem:[%s138 + $0x1f8] sm:$0xf]
      %v272 = vld [vmem:[%s138 + $0x1fc] sm:$0xf]
      %v273 = vld [vmem:[%s1] sm:$0xf]
      %v274 = vld [vmem:[%s1 + $0x4] sm:$0xf]
      %v403 = vunpack.c.l.b16 %v145
      %v404 = vunpack.c.l.b16 %v146
      %v405 = vunpack.c.l.b16 %v147
      %v406 = vunpack.c.l.b16 %v148
      %v407 = vunpack.c.l.b16 %v149
      %v408 = vunpack.c.l.b16 %v150
      %v409 = vunpack.c.l.b16 %v151
      %v410 = vunpack.c.l.b16 %v152
      %v411 = vunpack.c.l.b16 %v153
      %v412 = vunpack.c.l.b16 %v154
      %v413 = vunpack.c.l.b16 %v155
      %v414 = vunpack.c.l.b16 %v156
      %v415 = vunpack.c.l.b16 %v157
      %v416 = vunpack.c.l.b16 %v158
      %v417 = vunpack.c.l.b16 %v159
      %v418 = vunpack.c.l.b16 %v160
      %v419 = vunpack.c.l.b16 %v161
      %v420 = vunpack.c.l.b16 %v162
      %v421 = vunpack.c.l.b16 %v163
      %v422 = vunpack.c.l.b16 %v164
      %v423 = vunpack.c.l.b16 %v165
      %v424 = vunpack.c.l.b16 %v166
      %v425 = vunpack.c.l.b16 %v167
      %v426 = vunpack.c.l.b16 %v168
      %v427 = vunpack.c.l.b16 %v169
      %v428 = vunpack.c.l.b16 %v170
      %v429 = vunpack.c.l.b16 %v171
      %v430 = vunpack.c.l.b16 %v172
      %v431 = vunpack.c.l.b16 %v173
      %v432 = vunpack.c.l.b16 %v174
      %v433 = vunpack.c.l.b16 %v175
      %v434 = vunpack.c.l.b16 %v176
      %v435 = vunpack.c.l.b16 %v177
      %v436 = vunpack.c.l.b16 %v178
      %v437 = vunpack.c.l.b16 %v179
      %v438 = vunpack.c.l.b16 %v180
      %v439 = vunpack.c.l.b16 %v181
      %v440 = vunpack.c.l.b16 %v182
      %v441 = vunpack.c.l.b16 %v183
      %v442 = vunpack.c.l.b16 %v184
      %v443 = vunpack.c.l.b16 %v185
      %v444 = vunpack.c.l.b16 %v186
      %v445 = vunpack.c.l.b16 %v187
      %v446 = vunpack.c.l.b16 %v188
      %v447 = vunpack.c.l.b16 %v189
      %v448 = vunpack.c.l.b16 %v190
      %v449 = vunpack.c.l.b16 %v191
      %v450 = vunpack.c.l.b16 %v192
      %v451 = vunpack.c.l.b16 %v193
      %v452 = vunpack.c.l.b16 %v194
      %v453 = vunpack.c.l.b16 %v195
      %v454 = vunpack.c.l.b16 %v196
      %v455 = vunpack.c.l.b16 %v197
      %v456 = vunpack.c.l.b16 %v198
      %v457 = vunpack.c.l.b16 %v199
      %v458 = vunpack.c.l.b16 %v200
      %v459 = vunpack.c.l.b16 %v201
      %v460 = vunpack.c.l.b16 %v202
      %v461 = vunpack.c.l.b16 %v203
      %v462 = vunpack.c.l.b16 %v204
      %v463 = vunpack.c.l.b16 %v205
      %v464 = vunpack.c.l.b16 %v206
      %v465 = vunpack.c.l.b16 %v207
      %v466 = vunpack.c.l.b16 %v208
      %v467 = vunpack.c.l.b16 %v209
      %v468 = vunpack.c.l.b16 %v210
      %v469 = vunpack.c.l.b16 %v211
      %v470 = vunpack.c.l.b16 %v212
      %v471 = vunpack.c.l.b16 %v213
      %v472 = vunpack.c.l.b16 %v214
      %v473 = vunpack.c.l.b16 %v215
      %v474 = vunpack.c.l.b16 %v216
      %v475 = vunpack.c.l.b16 %v217
      %v476 = vunpack.c.l.b16 %v218
      %v477 = vunpack.c.l.b16 %v219
      %v478 = vunpack.c.l.b16 %v220
      %v479 = vunpack.c.l.b16 %v221
      %v480 = vunpack.c.l.b16 %v222
      %v481 = vunpack.c.l.b16 %v223
      %v482 = vunpack.c.l.b16 %v224
      %v483 = vunpack.c.l.b16 %v225
      %v484 = vunpack.c.l.b16 %v226
      %v485 = vunpack.c.l.b16 %v227
      %v486 = vunpack.c.l.b16 %v228
      %v487 = vunpack.c.l.b16 %v229
      %v488 = vunpack.c.l.b16 %v230
      %v489 = vunpack.c.l.b16 %v231
      %v490 = vunpack.c.l.b16 %v232
      %v491 = vunpack.c.l.b16 %v233
      %v492 = vunpack.c.l.b16 %v234
      %v493 = vunpack.c.l.b16 %v235
      %v494 = vunpack.c.l.b16 %v236
      %v495 = vunpack.c.l.b16 %v237
      %v496 = vunpack.c.l.b16 %v238
      %v497 = vunpack.c.l.b16 %v239
      %v498 = vunpack.c.l.b16 %v240
      %v499 = vunpack.c.l.b16 %v241
      %v500 = vunpack.c.l.b16 %v242
      %v501 = vunpack.c.l.b16 %v243
      %v502 = vunpack.c.l.b16 %v244
      %v503 = vunpack.c.l.b16 %v245
      %v504 = vunpack.c.l.b16 %v246
      %v505 = vunpack.c.l.b16 %v247
      %v506 = vunpack.c.l.b16 %v248
      %v507 = vunpack.c.l.b16 %v249
      %v508 = vunpack.c.l.b16 %v250
      %v509 = vunpack.c.l.b16 %v251
      %v510 = vunpack.c.l.b16 %v252
      %v511 = vunpack.c.l.b16 %v253
      %v512 = vunpack.c.l.b16 %v254
      %v513 = vunpack.c.l.b16 %v255
      %v514 = vunpack.c.l.b16 %v256
      %v515 = vunpack.c.l.b16 %v257
      %v516 = vunpack.c.l.b16 %v258
      %v517 = vunpack.c.l.b16 %v259
      %v518 = vunpack.c.l.b16 %v260
      %v519 = vunpack.c.l.b16 %v261
      %v520 = vunpack.c.l.b16 %v262
      %v521 = vunpack.c.l.b16 %v263
      %v522 = vunpack.c.l.b16 %v264
      %v523 = vunpack.c.l.b16 %v265
      %v524 = vunpack.c.l.b16 %v266
      %v525 = vunpack.c.l.b16 %v267
      %v526 = vunpack.c.l.b16 %v268
      %v527 = vunpack.c.l.b16 %v269
      %v528 = vunpack.c.l.b16 %v270
      %v529 = vunpack.c.l.b16 %v271
      %v530 = vunpack.c.l.b16 %v272
      %v531 = vpack.c.b16 %v404, %v403
      %v532 = vpack.c.b16 %v406, %v405
      %v533 = vpack.c.b16 %v408, %v407
      %v534 = vpack.c.b16 %v410, %v409
      %v535 = vpack.c.b16 %v412, %v411
      %v536 = vpack.c.b16 %v414, %v413
      %v537 = vpack.c.b16 %v416, %v415
      %v538 = vpack.c.b16 %v418, %v417
      %v539 = vpack.c.b16 %v420, %v419
      %v540 = vpack.c.b16 %v422, %v421
      %v541 = vpack.c.b16 %v424, %v423
      %v542 = vpack.c.b16 %v426, %v425
      %v543 = vpack.c.b16 %v428, %v427
      %v544 = vpack.c.b16 %v430, %v429
      %v545 = vpack.c.b16 %v432, %v431
      %v546 = vpack.c.b16 %v434, %v433
      %v547 = vpack.c.b16 %v436, %v435
      %v548 = vpack.c.b16 %v438, %v437
      %v549 = vpack.c.b16 %v440, %v439
      %v550 = vpack.c.b16 %v442, %v441
      %v551 = vpack.c.b16 %v444, %v443
      %v552 = vpack.c.b16 %v446, %v445
      %v553 = vpack.c.b16 %v448, %v447
      %v554 = vpack.c.b16 %v450, %v449
      %v555 = vpack.c.b16 %v452, %v451
      %v556 = vpack.c.b16 %v454, %v453
      %v557 = vpack.c.b16 %v456, %v455
      %v558 = vpack.c.b16 %v458, %v457
      %v559 = vpack.c.b16 %v460, %v459
      %v560 = vpack.c.b16 %v462, %v461
      %v561 = vpack.c.b16 %v464, %v463
      %v562 = vpack.c.b16 %v466, %v465
      %v563 = vpack.c.b16 %v468, %v467
      %v564 = vpack.c.b16 %v470, %v469
      %v565 = vpack.c.b16 %v472, %v471
      %v566 = vpack.c.b16 %v474, %v473
      %v567 = vpack.c.b16 %v476, %v475
      %v568 = vpack.c.b16 %v478, %v477
      %v569 = vpack.c.b16 %v480, %v479
      %v570 = vpack.c.b16 %v482, %v481
      %v571 = vpack.c.b16 %v484, %v483
      %v572 = vpack.c.b16 %v486, %v485
      %v573 = vpack.c.b16 %v488, %v487
      %v574 = vpack.c.b16 %v490, %v489
      %v575 = vpack.c.b16 %v492, %v491
      %v576 = vpack.c.b16 %v494, %v493
      %v577 = vpack.c.b16 %v496, %v495
      %v578 = vpack.c.b16 %v498, %v497
      %v579 = vpack.c.b16 %v500, %v499
      %v580 = vpack.c.b16 %v502, %v501
      %v581 = vpack.c.b16 %v504, %v503
      %v582 = vpack.c.b16 %v506, %v505
      %v583 = vpack.c.b16 %v508, %v507
      %v584 = vpack.c.b16 %v510, %v509
      %v585 = vpack.c.b16 %v512, %v511
      %v586 = vpack.c.b16 %v514, %v513
      %v587 = vpack.c.b16 %v516, %v515
      %v588 = vpack.c.b16 %v518, %v517
      %v589 = vpack.c.b16 %v520, %v519
      %v590 = vpack.c.b16 %v522, %v521
      %v591 = vpack.c.b16 %v524, %v523
      %v592 = vpack.c.b16 %v526, %v525
      %v593 = vpack.c.b16 %v528, %v527
      %v594 = vpack.c.b16 %v530, %v529
      %v597 = vunpack.c.l.b16 %v273
      %v598 = vunpack.c.l.b16 %v274
      %v599 = vpack.c.b16 %v598, %v597
      %vm601 = vcmask 130048
      %v603 = vsel %vm601, %v531, 0
      %v606 = vsel %vm601, %v532, 0
      %v609 = vsel %vm601, %v533, 0
      %v612 = vsel %vm601, %v534, 0
      %v615 = vsel %vm601, %v535, 0
      %v618 = vsel %vm601, %v536, 0
      %v621 = vsel %vm601, %v537, 0
      %v624 = vsel %vm601, %v538, 0
      %v627 = vsel %vm601, %v539, 0
      %v630 = vsel %vm601, %v540, 0
      %v633 = vsel %vm601, %v541, 0
      %v636 = vsel %vm601, %v542, 0
      %v639 = vsel %vm601, %v543, 0
      %v642 = vsel %vm601, %v544, 0
      %v645 = vsel %vm601, %v545, 0
      %v648 = vsel %vm601, %v546, 0
      %v651 = vsel %vm601, %v547, 0
      %v654 = vsel %vm601, %v548, 0
      %v657 = vsel %vm601, %v549, 0
      %v660 = vsel %vm601, %v550, 0
      %v663 = vsel %vm601, %v551, 0
      %v666 = vsel %vm601, %v552, 0
      %v669 = vsel %vm601, %v553, 0
      %v672 = vsel %vm601, %v554, 0
      %v675 = vsel %vm601, %v555, 0
      %v678 = vsel %vm601, %v556, 0
      %v681 = vsel %vm601, %v557, 0
      %v684 = vsel %vm601, %v558, 0
      %v687 = vsel %vm601, %v559, 0
      %v690 = vsel %vm601, %v560, 0
      %v693 = vsel %vm601, %v561, 0
      %v696 = vsel %vm601, %v562, 0
      %v699 = vsel %vm601, %v563, 0
      %v702 = vsel %vm601, %v564, 0
      %v705 = vsel %vm601, %v565, 0
      %v708 = vsel %vm601, %v566, 0
      %v711 = vsel %vm601, %v567, 0
      %v714 = vsel %vm601, %v568, 0
      %v717 = vsel %vm601, %v569, 0
      %v720 = vsel %vm601, %v570, 0
      %v723 = vsel %vm601, %v571, 0
      %v726 = vsel %vm601, %v572, 0
      %v729 = vsel %vm601, %v573, 0
      %v732 = vsel %vm601, %v574, 0
      %v735 = vsel %vm601, %v575, 0
      %v738 = vsel %vm601, %v576, 0
      %v741 = vsel %vm601, %v577, 0
      %v744 = vsel %vm601, %v578, 0
      %v747 = vsel %vm601, %v579, 0
      %v750 = vsel %vm601, %v580, 0
      %v753 = vsel %vm601, %v581, 0
      %v756 = vsel %vm601, %v582, 0
      %v759 = vsel %vm601, %v583, 0
      %v762 = vsel %vm601, %v584, 0
      %v765 = vsel %vm601, %v585, 0
      %v768 = vsel %vm601, %v586, 0
      %v771 = vsel %vm601, %v587, 0
      %v774 = vsel %vm601, %v588, 0
      %v777 = vsel %vm601, %v589, 0
      %v780 = vsel %vm601, %v590, 0
      %v783 = vsel %vm601, %v591, 0
      %v786 = vsel %vm601, %v592, 0
      %v789 = vsel %vm601, %v593, 0
      %v792 = vsel %vm601, %v594, 0
      %794 = vmatpush.bf16.msra.mxu0 0
      %795 = vmatpush.bf16.msra.mxu0 0
      %796 = vmatpush.bf16.msra.mxu0 0
      %797 = vmatpush.bf16.msra.mxu0 0
      %798 = vmatpush.bf16.msra.mxu0 0
      %799 = vmatpush.bf16.msra.mxu0 0
      %800 = vmatpush.bf16.msra.mxu0 0
      %801 = vmatpush.bf16.msra.mxu0 %v599
      %802 = vmatmul.bf16.gmra.mxu0 %v603
      %v803 = vpop.f32.mrf.mxu0
      %v804 = vadd.f32 0.0, %v803
      %v805 = vpop.f32.mrf.mxu0
      %v806 = vadd.f32 0.0, %v805
      %807 = vmatmul.bf16.gmra.mxu0 %v606
      %v808 = vpop.f32.mrf.mxu0
      %v809 = vadd.f32 0.0, %v808
      %v810 = vpop.f32.mrf.mxu0
      %v811 = vadd.f32 0.0, %v810
      %812 = vmatmul.bf16.gmra.mxu0 %v609
      %v813 = vpop.f32.mrf.mxu0
      %v814 = vadd.f32 0.0, %v813
      %v815 = vpop.f32.mrf.mxu0
      %v816 = vadd.f32 0.0, %v815
      %817 = vmatmul.bf16.gmra.mxu0 %v612
      %v818 = vpop.f32.mrf.mxu0
      %v819 = vadd.f32 0.0, %v818
      %v820 = vpop.f32.mrf.mxu0
      %v821 = vadd.f32 0.0, %v820
      %822 = vmatmul.bf16.gmra.mxu0 %v615
      %v823 = vpop.f32.mrf.mxu0
      %v824 = vadd.f32 0.0, %v823
      %v825 = vpop.f32.mrf.mxu0
      %v826 = vadd.f32 0.0, %v825
      %827 = vmatmul.bf16.gmra.mxu0 %v618
      %v828 = vpop.f32.mrf.mxu0
      %v829 = vadd.f32 0.0, %v828
      %v830 = vpop.f32.mrf.mxu0
      %v831 = vadd.f32 0.0, %v830
      %832 = vmatmul.bf16.gmra.mxu0 %v621
      %v833 = vpop.f32.mrf.mxu0
      %v834 = vadd.f32 0.0, %v833
      %v835 = vpop.f32.mrf.mxu0
      %v836 = vadd.f32 0.0, %v835
      %837 = vmatmul.bf16.gmra.mxu0 %v624
      %v838 = vpop.f32.mrf.mxu0
      %v839 = vadd.f32 0.0, %v838
      %v840 = vpop.f32.mrf.mxu0
      %v841 = vadd.f32 0.0, %v840
      %842 = vmatmul.bf16.gmra.mxu0 %v627
      %v843 = vpop.f32.mrf.mxu0
      %v844 = vadd.f32 0.0, %v843
      %v845 = vpop.f32.mrf.mxu0
      %v846 = vadd.f32 0.0, %v845
      %847 = vmatmul.bf16.gmra.mxu0 %v630
      %v848 = vpop.f32.mrf.mxu0
      %v849 = vadd.f32 0.0, %v848
      %v850 = vpop.f32.mrf.mxu0
      %v851 = vadd.f32 0.0, %v850
      %852 = vmatmul.bf16.gmra.mxu0 %v633
      %v853 = vpop.f32.mrf.mxu0
      %v854 = vadd.f32 0.0, %v853
      %v855 = vpop.f32.mrf.mxu0
      %v856 = vadd.f32 0.0, %v855
      %857 = vmatmul.bf16.gmra.mxu0 %v636
      %v858 = vpop.f32.mrf.mxu0
      %v859 = vadd.f32 0.0, %v858
      %v860 = vpop.f32.mrf.mxu0
      %v861 = vadd.f32 0.0, %v860
      %862 = vmatmul.bf16.gmra.mxu0 %v639
      %v863 = vpop.f32.mrf.mxu0
      %v864 = vadd.f32 0.0, %v863
      %v865 = vpop.f32.mrf.mxu0
      %v866 = vadd.f32 0.0, %v865
      %867 = vmatmul.bf16.gmra.mxu0 %v642
      %v868 = vpop.f32.mrf.mxu0
      %v869 = vadd.f32 0.0, %v868
      %v870 = vpop.f32.mrf.mxu0
      %v871 = vadd.f32 0.0, %v870
      %872 = vmatmul.bf16.gmra.mxu0 %v645
      %v873 = vpop.f32.mrf.mxu0
      %v874 = vadd.f32 0.0, %v873
      %v875 = vpop.f32.mrf.mxu0
      %v876 = vadd.f32 0.0, %v875
      %877 = vmatmul.bf16.gmra.mxu0 %v648
      %v878 = vpop.f32.mrf.mxu0
      %v879 = vadd.f32 0.0, %v878
      %v880 = vpop.f32.mrf.mxu0
      %v881 = vadd.f32 0.0, %v880
      %882 = vmatmul.bf16.gmra.mxu0 %v651
      %v883 = vpop.f32.mrf.mxu0
      %v884 = vadd.f32 0.0, %v883
      %v885 = vpop.f32.mrf.mxu0
      %v886 = vadd.f32 0.0, %v885
      %887 = vmatmul.bf16.gmra.mxu0 %v654
      %v888 = vpop.f32.mrf.mxu0
      %v889 = vadd.f32 0.0, %v888
      %v890 = vpop.f32.mrf.mxu0
      %v891 = vadd.f32 0.0, %v890
      %892 = vmatmul.bf16.gmra.mxu0 %v657
      %v893 = vpop.f32.mrf.mxu0
      %v894 = vadd.f32 0.0, %v893
      %v895 = vpop.f32.mrf.mxu0
      %v896 = vadd.f32 0.0, %v895
      %897 = vmatmul.bf16.gmra.mxu0 %v660
      %v898 = vpop.f32.mrf.mxu0
      %v899 = vadd.f32 0.0, %v898
      %v900 = vpop.f32.mrf.mxu0
      %v901 = vadd.f32 0.0, %v900
      %902 = vmatmul.bf16.gmra.mxu0 %v663
      %v903 = vpop.f32.mrf.mxu0
      %v904 = vadd.f32 0.0, %v903
      %v905 = vpop.f32.mrf.mxu0
      %v906 = vadd.f32 0.0, %v905
      %907 = vmatmul.bf16.gmra.mxu0 %v666
      %v908 = vpop.f32.mrf.mxu0
      %v909 = vadd.f32 0.0, %v908
      %v910 = vpop.f32.mrf.mxu0
      %v911 = vadd.f32 0.0, %v910
      %912 = vmatmul.bf16.gmra.mxu0 %v669
      %v913 = vpop.f32.mrf.mxu0
      %v914 = vadd.f32 0.0, %v913
      %v915 = vpop.f32.mrf.mxu0
      %v916 = vadd.f32 0.0, %v915
      %917 = vmatmul.bf16.gmra.mxu0 %v672
      %v918 = vpop.f32.mrf.mxu0
      %v919 = vadd.f32 0.0, %v918
      %v920 = vpop.f32.mrf.mxu0
      %v921 = vadd.f32 0.0, %v920
      %922 = vmatmul.bf16.gmra.mxu0 %v675
      %v923 = vpop.f32.mrf.mxu0
      %v924 = vadd.f32 0.0, %v923
      %v925 = vpop.f32.mrf.mxu0
      %v926 = vadd.f32 0.0, %v925
      %927 = vmatmul.bf16.gmra.mxu0 %v678
      %v928 = vpop.f32.mrf.mxu0
      %v929 = vadd.f32 0.0, %v928
      %v930 = vpop.f32.mrf.mxu0
      %v931 = vadd.f32 0.0, %v930
      %932 = vmatmul.bf16.gmra.mxu0 %v681
      %v933 = vpop.f32.mrf.mxu0
      %v934 = vadd.f32 0.0, %v933
      %v935 = vpop.f32.mrf.mxu0
      %v936 = vadd.f32 0.0, %v935
      %937 = vmatmul.bf16.gmra.mxu0 %v684
      %v938 = vpop.f32.mrf.mxu0
      %v939 = vadd.f32 0.0, %v938
      %v940 = vpop.f32.mrf.mxu0
      %v941 = vadd.f32 0.0, %v940
      %942 = vmatmul.bf16.gmra.mxu0 %v687
      %v943 = vpop.f32.mrf.mxu0
      %v944 = vadd.f32 0.0, %v943
      %v945 = vpop.f32.mrf.mxu0
      %v946 = vadd.f32 0.0, %v945
      %947 = vmatmul.bf16.gmra.mxu0 %v690
      %v948 = vpop.f32.mrf.mxu0
      %v949 = vadd.f32 0.0, %v948
      %v950 = vpop.f32.mrf.mxu0
      %v951 = vadd.f32 0.0, %v950
      %952 = vmatmul.bf16.gmra.mxu0 %v693
      %v953 = vpop.f32.mrf.mxu0
      %v954 = vadd.f32 0.0, %v953
      %v955 = vpop.f32.mrf.mxu0
      %v956 = vadd.f32 0.0, %v955
      %957 = vmatmul.bf16.gmra.mxu0 %v696
      %v958 = vpop.f32.mrf.mxu0
      %v959 = vadd.f32 0.0, %v958
      %v960 = vpop.f32.mrf.mxu0
      %v961 = vadd.f32 0.0, %v960
      %962 = vmatmul.bf16.gmra.mxu0 %v699
      %v963 = vpop.f32.mrf.mxu0
      %v964 = vadd.f32 0.0, %v963
      %v965 = vpop.f32.mrf.mxu0
      %v966 = vadd.f32 0.0, %v965
      %967 = vmatmul.bf16.gmra.mxu0 %v702
      %v968 = vpop.f32.mrf.mxu0
      %v969 = vadd.f32 0.0, %v968
      %v970 = vpop.f32.mrf.mxu0
      %v971 = vadd.f32 0.0, %v970
      %972 = vmatmul.bf16.gmra.mxu0 %v705
      %v973 = vpop.f32.mrf.mxu0
      %v974 = vadd.f32 0.0, %v973
      %v975 = vpop.f32.mrf.mxu0
      %v976 = vadd.f32 0.0, %v975
      %977 = vmatmul.bf16.gmra.mxu0 %v708
      %v978 = vpop.f32.mrf.mxu0
      %v979 = vadd.f32 0.0, %v978
      %v980 = vpop.f32.mrf.mxu0
      %v981 = vadd.f32 0.0, %v980
      %982 = vmatmul.bf16.gmra.mxu0 %v711
      %v983 = vpop.f32.mrf.mxu0
      %v984 = vadd.f32 0.0, %v983
      %v985 = vpop.f32.mrf.mxu0
      %v986 = vadd.f32 0.0, %v985
      %987 = vmatmul.bf16.gmra.mxu0 %v714
      %v988 = vpop.f32.mrf.mxu0
      %v989 = vadd.f32 0.0, %v988
      %v990 = vpop.f32.mrf.mxu0
      %v991 = vadd.f32 0.0, %v990
      %992 = vmatmul.bf16.gmra.mxu0 %v717
      %v993 = vpop.f32.mrf.mxu0
      %v994 = vadd.f32 0.0, %v993
      %v995 = vpop.f32.mrf.mxu0
      %v996 = vadd.f32 0.0, %v995
      %997 = vmatmul.bf16.gmra.mxu0 %v720
      %v998 = vpop.f32.mrf.mxu0
      %v999 = vadd.f32 0.0, %v998
      %v1000 = vpop.f32.mrf.mxu0
      %v1001 = vadd.f32 0.0, %v1000
      %1002 = vmatmul.bf16.gmra.mxu0 %v723
      %v1003 = vpop.f32.mrf.mxu0
      %v1004 = vadd.f32 0.0, %v1003
      %v1005 = vpop.f32.mrf.mxu0
      %v1006 = vadd.f32 0.0, %v1005
      %1007 = vmatmul.bf16.gmra.mxu0 %v726
      %v1008 = vpop.f32.mrf.mxu0
      %v1009 = vadd.f32 0.0, %v1008
      %v1010 = vpop.f32.mrf.mxu0
      %v1011 = vadd.f32 0.0, %v1010
      %1012 = vmatmul.bf16.gmra.mxu0 %v729
      %v1013 = vpop.f32.mrf.mxu0
      %v1014 = vadd.f32 0.0, %v1013
      %v1015 = vpop.f32.mrf.mxu0
      %v1016 = vadd.f32 0.0, %v1015
      %1017 = vmatmul.bf16.gmra.mxu0 %v732
      %v1018 = vpop.f32.mrf.mxu0
      %v1019 = vadd.f32 0.0, %v1018
      %v1020 = vpop.f32.mrf.mxu0
      %v1021 = vadd.f32 0.0, %v1020
      %1022 = vmatmul.bf16.gmra.mxu0 %v735
      %v1023 = vpop.f32.mrf.mxu0
      %v1024 = vadd.f32 0.0, %v1023
      %v1025 = vpop.f32.mrf.mxu0
      %v1026 = vadd.f32 0.0, %v1025
      %1027 = vmatmul.bf16.gmra.mxu0 %v738
      %v1028 = vpop.f32.mrf.mxu0
      %v1029 = vadd.f32 0.0, %v1028
      %v1030 = vpop.f32.mrf.mxu0
      %v1031 = vadd.f32 0.0, %v1030
      %1032 = vmatmul.bf16.gmra.mxu0 %v741
      %v1033 = vpop.f32.mrf.mxu0
      %v1034 = vadd.f32 0.0, %v1033
      %v1035 = vpop.f32.mrf.mxu0
      %v1036 = vadd.f32 0.0, %v1035
      %1037 = vmatmul.bf16.gmra.mxu0 %v744
      %v1038 = vpop.f32.mrf.mxu0
      %v1039 = vadd.f32 0.0, %v1038
      %v1040 = vpop.f32.mrf.mxu0
      %v1041 = vadd.f32 0.0, %v1040
      %1042 = vmatmul.bf16.gmra.mxu0 %v747
      %v1043 = vpop.f32.mrf.mxu0
      %v1044 = vadd.f32 0.0, %v1043
      %v1045 = vpop.f32.mrf.mxu0
      %v1046 = vadd.f32 0.0, %v1045
      %1047 = vmatmul.bf16.gmra.mxu0 %v750
      %v1048 = vpop.f32.mrf.mxu0
      %v1049 = vadd.f32 0.0, %v1048
      %v1050 = vpop.f32.mrf.mxu0
      %v1051 = vadd.f32 0.0, %v1050
      %1052 = vmatmul.bf16.gmra.mxu0 %v753
      %v1053 = vpop.f32.mrf.mxu0
      %v1054 = vadd.f32 0.0, %v1053
      %v1055 = vpop.f32.mrf.mxu0
      %v1056 = vadd.f32 0.0, %v1055
      %1057 = vmatmul.bf16.gmra.mxu0 %v756
      %v1058 = vpop.f32.mrf.mxu0
      %v1059 = vadd.f32 0.0, %v1058
      %v1060 = vpop.f32.mrf.mxu0
      %v1061 = vadd.f32 0.0, %v1060
      %1062 = vmatmul.bf16.gmra.mxu0 %v759
      %v1063 = vpop.f32.mrf.mxu0
      %v1064 = vadd.f32 0.0, %v1063
      %v1065 = vpop.f32.mrf.mxu0
      %v1066 = vadd.f32 0.0, %v1065
      %1067 = vmatmul.bf16.gmra.mxu0 %v762
      %v1068 = vpop.f32.mrf.mxu0
      %v1069 = vadd.f32 0.0, %v1068
      %v1070 = vpop.f32.mrf.mxu0
      %v1071 = vadd.f32 0.0, %v1070
      %1072 = vmatmul.bf16.gmra.mxu0 %v765
      %v1073 = vpop.f32.mrf.mxu0
      %v1074 = vadd.f32 0.0, %v1073
      %v1075 = vpop.f32.mrf.mxu0
      %v1076 = vadd.f32 0.0, %v1075
      %1077 = vmatmul.bf16.gmra.mxu0 %v768
      %v1078 = vpop.f32.mrf.mxu0
      %v1079 = vadd.f32 0.0, %v1078
      %v1080 = vpop.f32.mrf.mxu0
      %v1081 = vadd.f32 0.0, %v1080
      %1082 = vmatmul.bf16.gmra.mxu0 %v771
      %v1083 = vpop.f32.mrf.mxu0
      %v1084 = vadd.f32 0.0, %v1083
      %v1085 = vpop.f32.mrf.mxu0
      %v1086 = vadd.f32 0.0, %v1085
      %1087 = vmatmul.bf16.gmra.mxu0 %v774
      %v1088 = vpop.f32.mrf.mxu0
      %v1089 = vadd.f32 0.0, %v1088
      %v1090 = vpop.f32.mrf.mxu0
      %v1091 = vadd.f32 0.0, %v1090
      %1092 = vmatmul.bf16.gmra.mxu0 %v777
      %v1093 = vpop.f32.mrf.mxu0
      %v1094 = vadd.f32 0.0, %v1093
      %v1095 = vpop.f32.mrf.mxu0
      %v1096 = vadd.f32 0.0, %v1095
      %1097 = vmatmul.bf16.gmra.mxu0 %v780
      %v1098 = vpop.f32.mrf.mxu0
      %v1099 = vadd.f32 0.0, %v1098
      %v1100 = vpop.f32.mrf.mxu0
      %v1101 = vadd.f32 0.0, %v1100
      %1102 = vmatmul.bf16.gmra.mxu0 %v783
      %v1103 = vpop.f32.mrf.mxu0
      %v1104 = vadd.f32 0.0, %v1103
      %v1105 = vpop.f32.mrf.mxu0
      %v1106 = vadd.f32 0.0, %v1105
      %1107 = vmatmul.bf16.gmra.mxu0 %v786
      %v1108 = vpop.f32.mrf.mxu0
      %v1109 = vadd.f32 0.0, %v1108
      %v1110 = vpop.f32.mrf.mxu0
      %v1111 = vadd.f32 0.0, %v1110
      %1112 = vmatmul.bf16.gmra.mxu0 %v789
      %v1113 = vpop.f32.mrf.mxu0
      %v1114 = vadd.f32 0.0, %v1113
      %v1115 = vpop.f32.mrf.mxu0
      %v1116 = vadd.f32 0.0, %v1115
      %1117 = vmatmul.bf16.gmra.mxu0 %v792
      %v1118 = vpop.f32.mrf.mxu0
      %v1119 = vadd.f32 0.0, %v1118
      %v1120 = vpop.f32.mrf.mxu0
      %v1121 = vadd.f32 0.0, %v1120
      %1122 = vdwg.mxu0
      %v1123 = vadd.f32 %v804, %v806
      %v1124 = vadd.f32 %v1123, %v809
      %v1125 = vadd.f32 %v1124, %v811
      %v1126 = vadd.f32 %v1125, %v814
      %v1127 = vadd.f32 %v1126, %v816
      %v1128 = vadd.f32 %v1127, %v819
      %v1129 = vadd.f32 %v1128, %v821
      %v1130 = vadd.f32 %v1129, %v824
      %v1131 = vadd.f32 %v1130, %v826
      %v1132 = vadd.f32 %v1131, %v829
      %v1133 = vadd.f32 %v1132, %v831
      %v1134 = vadd.f32 %v1133, %v834
      %v1135 = vadd.f32 %v1134, %v836
      %v1136 = vadd.f32 %v1135, %v839
      %v1137 = vadd.f32 %v1136, %v841
      %v1138 = vadd.f32 %v1137, %v844
      %v1139 = vadd.f32 %v1138, %v846
      %v1140 = vadd.f32 %v1139, %v849
      %v1141 = vadd.f32 %v1140, %v851
      %v1142 = vadd.f32 %v1141, %v854
      %v1143 = vadd.f32 %v1142, %v856
      %v1144 = vadd.f32 %v1143, %v859
      %v1145 = vadd.f32 %v1144, %v861
      %v1146 = vadd.f32 %v1145, %v864
      %v1147 = vadd.f32 %v1146, %v866
      %v1148 = vadd.f32 %v1147, %v869
      %v1149 = vadd.f32 %v1148, %v871
      %v1150 = vadd.f32 %v1149, %v874
      %v1151 = vadd.f32 %v1150, %v876
      %v1152 = vadd.f32 %v1151, %v879
      %v1153 = vadd.f32 %v1152, %v881
      %v1154 = vadd.f32 %v1153, %v884
      %v1155 = vadd.f32 %v1154, %v886
      %v1156 = vadd.f32 %v1155, %v889
      %v1157 = vadd.f32 %v1156, %v891
      %v1158 = vadd.f32 %v1157, %v894
      %v1159 = vadd.f32 %v1158, %v896
      %v1160 = vadd.f32 %v1159, %v899
      %v1161 = vadd.f32 %v1160, %v901
      %v1162 = vadd.f32 %v1161, %v904
      %v1163 = vadd.f32 %v1162, %v906
      %v1164 = vadd.f32 %v1163, %v909
      %v1165 = vadd.f32 %v1164, %v911
      %v1166 = vadd.f32 %v1165, %v914
      %v1167 = vadd.f32 %v1166, %v916
      %v1168 = vadd.f32 %v1167, %v919
      %v1169 = vadd.f32 %v1168, %v921
      %v1170 = vadd.f32 %v1169, %v924
      %v1171 = vadd.f32 %v1170, %v926
      %v1172 = vadd.f32 %v1171, %v929
      %v1173 = vadd.f32 %v1172, %v931
      %v1174 = vadd.f32 %v1173, %v934
      %v1175 = vadd.f32 %v1174, %v936
      %v1176 = vadd.f32 %v1175, %v939
      %v1177 = vadd.f32 %v1176, %v941
      %v1178 = vadd.f32 %v1177, %v944
      %v1179 = vadd.f32 %v1178, %v946
      %v1180 = vadd.f32 %v1179, %v949
      %v1181 = vadd.f32 %v1180, %v951
      %v1182 = vadd.f32 %v1181, %v954
      %v1183 = vadd.f32 %v1182, %v956
      %v1184 = vadd.f32 %v1183, %v959
      %v1185 = vadd.f32 %v1184, %v961
      %v1186 = vadd.f32 %v1185, %v964
      %v1187 = vadd.f32 %v1186, %v966
      %v1188 = vadd.f32 %v1187, %v969
      %v1189 = vadd.f32 %v1188, %v971
      %v1190 = vadd.f32 %v1189, %v974
      %v1191 = vadd.f32 %v1190, %v976
      %v1192 = vadd.f32 %v1191, %v979
      %v1193 = vadd.f32 %v1192, %v981
      %v1194 = vadd.f32 %v1193, %v984
      %v1195 = vadd.f32 %v1194, %v986
      %v1196 = vadd.f32 %v1195, %v989
      %v1197 = vadd.f32 %v1196, %v991
      %v1198 = vadd.f32 %v1197, %v994
      %v1199 = vadd.f32 %v1198, %v996
      %v1200 = vadd.f32 %v1199, %v999
      %v1201 = vadd.f32 %v1200, %v1001
      %v1202 = vadd.f32 %v1201, %v1004
      %v1203 = vadd.f32 %v1202, %v1006
      %v1204 = vadd.f32 %v1203, %v1009
      %v1205 = vadd.f32 %v1204, %v1011
      %v1206 = vadd.f32 %v1205, %v1014
      %v1207 = vadd.f32 %v1206, %v1016
      %v1208 = vadd.f32 %v1207, %v1019
      %v1209 = vadd.f32 %v1208, %v1021
      %v1210 = vadd.f32 %v1209, %v1024
      %v1211 = vadd.f32 %v1210, %v1026
      %v1212 = vadd.f32 %v1211, %v1029
      %v1213 = vadd.f32 %v1212, %v1031
      %v1214 = vadd.f32 %v1213, %v1034
      %v1215 = vadd.f32 %v1214, %v1036
      %v1216 = vadd.f32 %v1215, %v1039
      %v1217 = vadd.f32 %v1216, %v1041
      %v1218 = vadd.f32 %v1217, %v1044
      %v1219 = vadd.f32 %v1218, %v1046
      %v1220 = vadd.f32 %v1219, %v1049
      %v1221 = vadd.f32 %v1220, %v1051
      %v1222 = vadd.f32 %v1221, %v1054
      %v1223 = vadd.f32 %v1222, %v1056
      %v1224 = vadd.f32 %v1223, %v1059
      %v1225 = vadd.f32 %v1224, %v1061
      %v1226 = vadd.f32 %v1225, %v1064
      %v1227 = vadd.f32 %v1226, %v1066
      %v1228 = vadd.f32 %v1227, %v1069
      %v1229 = vadd.f32 %v1228, %v1071
      %v1230 = vadd.f32 %v1229, %v1074
      %v1231 = vadd.f32 %v1230, %v1076
      %v1232 = vadd.f32 %v1231, %v1079
      %v1233 = vadd.f32 %v1232, %v1081
      %v1234 = vadd.f32 %v1233, %v1084
      %v1235 = vadd.f32 %v1234, %v1086
      %v1236 = vadd.f32 %v1235, %v1089
      %v1237 = vadd.f32 %v1236, %v1091
      %v1238 = vadd.f32 %v1237, %v1094
      %v1239 = vadd.f32 %v1238, %v1096
      %v1240 = vadd.f32 %v1239, %v1099
      %v1241 = vadd.f32 %v1240, %v1101
      %v1242 = vadd.f32 %v1241, %v1104
      %v1243 = vadd.f32 %v1242, %v1106
      %v1244 = vadd.f32 %v1243, %v1109
      %v1245 = vadd.f32 %v1244, %v1111
      %v1246 = vadd.f32 %v1245, %v1114
      %v1247 = vadd.f32 %v1246, %v1116
      %v1248 = vadd.f32 %v1247, %v1119
      %v1249 = vadd.f32 %v1248, %v1121
      %v1250 = vrot.slane %v1249, 4
      %v1251 = vadd.f32 %v1249, %v1250
      %v1252 = vrot.slane %v1251, 2
      %v1253 = vadd.f32 %v1251, %v1252
      %v1254 = vrot.slane %v1253, 1
      %v1255 = vadd.f32 %v1253, %v1254
      %v1256 = vmul.f32 %v804, %v804
      %v1257 = vmul.f32 %v806, %v806
      %v1258 = vmul.f32 %v809, %v809
      %v1259 = vmul.f32 %v811, %v811
      %v1260 = vmul.f32 %v814, %v814
      %v1261 = vmul.f32 %v816, %v816
      %v1262 = vmul.f32 %v819, %v819
      %v1263 = vmul.f32 %v821, %v821
      %v1264 = vmul.f32 %v824, %v824
      %v1265 = vmul.f32 %v826, %v826
      %v1266 = vmul.f32 %v829, %v829
      %v1267 = vmul.f32 %v831, %v831
      %v1268 = vmul.f32 %v834, %v834
      %v1269 = vmul.f32 %v836, %v836
      %v1270 = vmul.f32 %v839, %v839
      %v1271 = vmul.f32 %v841, %v841
      %v1272 = vmul.f32 %v844, %v844
      %v1273 = vmul.f32 %v846, %v846
      %v1274 = vmul.f32 %v849, %v849
      %v1275 = vmul.f32 %v851, %v851
      %v1276 = vmul.f32 %v854, %v854
      %v1277 = vmul.f32 %v856, %v856
      %v1278 = vmul.f32 %v859, %v859
      %v1279 = vmul.f32 %v861, %v861
      %v1280 = vmul.f32 %v864, %v864
      %v1281 = vmul.f32 %v866, %v866
      %v1282 = vmul.f32 %v869, %v869
      %v1283 = vmul.f32 %v871, %v871
      %v1284 = vmul.f32 %v874, %v874
      %v1285 = vmul.f32 %v876, %v876
      %v1286 = vmul.f32 %v879, %v879
      %v1287 = vmul.f32 %v881, %v881
      %v1288 = vmul.f32 %v884, %v884
      %v1289 = vmul.f32 %v886, %v886
      %v1290 = vmul.f32 %v889, %v889
      %v1291 = vmul.f32 %v891, %v891
      %v1292 = vmul.f32 %v894, %v894
      %v1293 = vmul.f32 %v896, %v896
      %v1294 = vmul.f32 %v899, %v899
      %v1295 = vmul.f32 %v901, %v901
      %v1296 = vmul.f32 %v904, %v904
      %v1297 = vmul.f32 %v906, %v906
      %v1298 = vmul.f32 %v909, %v909
      %v1299 = vmul.f32 %v911, %v911
      %v1300 = vmul.f32 %v914, %v914
      %v1301 = vmul.f32 %v916, %v916
      %v1302 = vmul.f32 %v919, %v919
      %v1303 = vmul.f32 %v921, %v921
      %v1304 = vmul.f32 %v924, %v924
      %v1305 = vmul.f32 %v926, %v926
      %v1306 = vmul.f32 %v929, %v929
      %v1307 = vmul.f32 %v931, %v931
      %v1308 = vmul.f32 %v934, %v934
      %v1309 = vmul.f32 %v936, %v936
      %v1310 = vmul.f32 %v939, %v939
      %v1311 = vmul.f32 %v941, %v941
      %v1312 = vmul.f32 %v944, %v944
      %v1313 = vmul.f32 %v946, %v946
      %v1314 = vmul.f32 %v949, %v949
      %v1315 = vmul.f32 %v951, %v951
      %v1316 = vmul.f32 %v954, %v954
      %v1317 = vmul.f32 %v956, %v956
      %v1318 = vmul.f32 %v959, %v959
      %v1319 = vmul.f32 %v961, %v961
      %v1320 = vmul.f32 %v964, %v964
      %v1321 = vmul.f32 %v966, %v966
      %v1322 = vmul.f32 %v969, %v969
      %v1323 = vmul.f32 %v971, %v971
      %v1324 = vmul.f32 %v974, %v974
      %v1325 = vmul.f32 %v976, %v976
      %v1326 = vmul.f32 %v979, %v979
      %v1327 = vmul.f32 %v981, %v981
      %v1328 = vmul.f32 %v984, %v984
      %v1329 = vmul.f32 %v986, %v986
      %v1330 = vmul.f32 %v989, %v989
      %v1331 = vmul.f32 %v991, %v991
      %v1332 = vmul.f32 %v994, %v994
      %v1333 = vmul.f32 %v996, %v996
      %v1334 = vmul.f32 %v999, %v999
      %v1335 = vmul.f32 %v1001, %v1001
      %v1336 = vmul.f32 %v1004, %v1004
      %v1337 = vmul.f32 %v1006, %v1006
      %v1338 = vmul.f32 %v1009, %v1009
      %v1339 = vmul.f32 %v1011, %v1011
      %v1340 = vmul.f32 %v1014, %v1014
      %v1341 = vmul.f32 %v1016, %v1016
      %v1342 = vmul.f32 %v1019, %v1019
      %v1343 = vmul.f32 %v1021, %v1021
      %v1344 = vmul.f32 %v1024, %v1024
      %v1345 = vmul.f32 %v1026, %v1026
      %v1346 = vmul.f32 %v1029, %v1029
      %v1347 = vmul.f32 %v1031, %v1031
      %v1348 = vmul.f32 %v1034, %v1034
      %v1349 = vmul.f32 %v1036, %v1036
      %v1350 = vmul.f32 %v1039, %v1039
      %v1351 = vmul.f32 %v1041, %v1041
      %v1352 = vmul.f32 %v1044, %v1044
      %v1353 = vmul.f32 %v1046, %v1046
      %v1354 = vmul.f32 %v1049, %v1049
      %v1355 = vmul.f32 %v1051, %v1051
      %v1356 = vmul.f32 %v1054, %v1054
      %v1357 = vmul.f32 %v1056, %v1056
      %v1358 = vmul.f32 %v1059, %v1059
      %v1359 = vmul.f32 %v1061, %v1061
      %v1360 = vmul.f32 %v1064, %v1064
      %v1361 = vmul.f32 %v1066, %v1066
      %v1362 = vmul.f32 %v1069, %v1069
      %v1363 = vmul.f32 %v1071, %v1071
      %v1364 = vmul.f32 %v1074, %v1074
      %v1365 = vmul.f32 %v1076, %v1076
      %v1366 = vmul.f32 %v1079, %v1079
      %v1367 = vmul.f32 %v1081, %v1081
      %v1368 = vmul.f32 %v1084, %v1084
      %v1369 = vmul.f32 %v1086, %v1086
      %v1370 = vmul.f32 %v1089, %v1089
      %v1371 = vmul.f32 %v1091, %v1091
      %v1372 = vmul.f32 %v1094, %v1094
      %v1373 = vmul.f32 %v1096, %v1096
      %v1374 = vmul.f32 %v1099, %v1099
      %v1375 = vmul.f32 %v1101, %v1101
      %v1376 = vmul.f32 %v1104, %v1104
      %v1377 = vmul.f32 %v1106, %v1106
      %v1378 = vmul.f32 %v1109, %v1109
      %v1379 = vmul.f32 %v1111, %v1111
      %v1380 = vmul.f32 %v1114, %v1114
      %v1381 = vmul.f32 %v1116, %v1116
      %v1382 = vmul.f32 %v1119, %v1119
      %v1383 = vmul.f32 %v1121, %v1121
      %v1384 = vadd.f32 %v1256, %v1257
      %v1385 = vadd.f32 %v1384, %v1258
      %v1386 = vadd.f32 %v1385, %v1259
      %v1387 = vadd.f32 %v1386, %v1260
      %v1388 = vadd.f32 %v1387, %v1261
      %v1389 = vadd.f32 %v1388, %v1262
      %v1390 = vadd.f32 %v1389, %v1263
      %v1391 = vadd.f32 %v1390, %v1264
      %v1392 = vadd.f32 %v1391, %v1265
      %v1393 = vadd.f32 %v1392, %v1266
      %v1394 = vadd.f32 %v1393, %v1267
      %v1395 = vadd.f32 %v1394, %v1268
      %v1396 = vadd.f32 %v1395, %v1269
      %v1397 = vadd.f32 %v1396, %v1270
      %v1398 = vadd.f32 %v1397, %v1271
      %v1399 = vadd.f32 %v1398, %v1272
      %v1400 = vadd.f32 %v1399, %v1273
      %v1401 = vadd.f32 %v1400, %v1274
      %v1402 = vadd.f32 %v1401, %v1275
      %v1403 = vadd.f32 %v1402, %v1276
      %v1404 = vadd.f32 %v1403, %v1277
      %v1405 = vadd.f32 %v1404, %v1278
      %v1406 = vadd.f32 %v1405, %v1279
      %v1407 = vadd.f32 %v1406, %v1280
      %v1408 = vadd.f32 %v1407, %v1281
      %v1409 = vadd.f32 %v1408, %v1282
      %v1410 = vadd.f32 %v1409, %v1283
      %v1411 = vadd.f32 %v1410, %v1284
      %v1412 = vadd.f32 %v1411, %v1285
      %v1413 = vadd.f32 %v1412, %v1286
      %v1414 = vadd.f32 %v1413, %v1287
      %v1415 = vadd.f32 %v1414, %v1288
      %v1416 = vadd.f32 %v1415, %v1289
      %v1417 = vadd.f32 %v1416, %v1290
      %v1418 = vadd.f32 %v1417, %v1291
      %v1419 = vadd.f32 %v1418, %v1292
      %v1420 = vadd.f32 %v1419, %v1293
      %v1421 = vadd.f32 %v1420, %v1294
      %v1422 = vadd.f32 %v1421, %v1295
      %v1423 = vadd.f32 %v1422, %v1296
      %v1424 = vadd.f32 %v1423, %v1297
      %v1425 = vadd.f32 %v1424, %v1298
      %v1426 = vadd.f32 %v1425, %v1299
      %v1427 = vadd.f32 %v1426, %v1300
      %v1428 = vadd.f32 %v1427, %v1301
      %v1429 = vadd.f32 %v1428, %v1302
      %v1430 = vadd.f32 %v1429, %v1303
      %v1431 = vadd.f32 %v1430, %v1304
      %v1432 = vadd.f32 %v1431, %v1305
      %v1433 = vadd.f32 %v1432, %v1306
      %v1434 = vadd.f32 %v1433, %v1307
      %v1435 = vadd.f32 %v1434, %v1308
      %v1436 = vadd.f32 %v1435, %v1309
      %v1437 = vadd.f32 %v1436, %v1310
      %v1438 = vadd.f32 %v1437, %v1311
      %v1439 = vadd.f32 %v1438, %v1312
      %v1440 = vadd.f32 %v1439, %v1313
      %v1441 = vadd.f32 %v1440, %v1314
      %v1442 = vadd.f32 %v1441, %v1315
      %v1443 = vadd.f32 %v1442, %v1316
      %v1444 = vadd.f32 %v1443, %v1317
      %v1445 = vadd.f32 %v1444, %v1318
      %v1446 = vadd.f32 %v1445, %v1319
      %v1447 = vadd.f32 %v1446, %v1320
      %v1448 = vadd.f32 %v1447, %v1321
      %v1449 = vadd.f32 %v1448, %v1322
      %v1450 = vadd.f32 %v1449, %v1323
      %v1451 = vadd.f32 %v1450, %v1324
      %v1452 = vadd.f32 %v1451, %v1325
      %v1453 = vadd.f32 %v1452, %v1326
      %v1454 = vadd.f32 %v1453, %v1327
      %v1455 = vadd.f32 %v1454, %v1328
      %v1456 = vadd.f32 %v1455, %v1329
      %v1457 = vadd.f32 %v1456, %v1330
      %v1458 = vadd.f32 %v1457, %v1331
      %v1459 = vadd.f32 %v1458, %v1332
      %v1460 = vadd.f32 %v1459, %v1333
      %v1461 = vadd.f32 %v1460, %v1334
      %v1462 = vadd.f32 %v1461, %v1335
      %v1463 = vadd.f32 %v1462, %v1336
      %v1464 = vadd.f32 %v1463, %v1337
      %v1465 = vadd.f32 %v1464, %v1338
      %v1466 = vadd.f32 %v1465, %v1339
      %v1467 = vadd.f32 %v1466, %v1340
      %v1468 = vadd.f32 %v1467, %v1341
      %v1469 = vadd.f32 %v1468, %v1342
      %v1470 = vadd.f32 %v1469, %v1343
      %v1471 = vadd.f32 %v1470, %v1344
      %v1472 = vadd.f32 %v1471, %v1345
      %v1473 = vadd.f32 %v1472, %v1346
      %v1474 = vadd.f32 %v1473, %v1347
      %v1475 = vadd.f32 %v1474, %v1348
      %v1476 = vadd.f32 %v1475, %v1349
      %v1477 = vadd.f32 %v1476, %v1350
      %v1478 = vadd.f32 %v1477, %v1351
      %v1479 = vadd.f32 %v1478, %v1352
      %v1480 = vadd.f32 %v1479, %v1353
      %v1481 = vadd.f32 %v1480, %v1354
      %v1482 = vadd.f32 %v1481, %v1355
      %v1483 = vadd.f32 %v1482, %v1356
      %v1484 = vadd.f32 %v1483, %v1357
      %v1485 = vadd.f32 %v1484, %v1358
      %v1486 = vadd.f32 %v1485, %v1359
      %v1487 = vadd.f32 %v1486, %v1360
      %v1488 = vadd.f32 %v1487, %v1361
      %v1489 = vadd.f32 %v1488, %v1362
      %v1490 = vadd.f32 %v1489, %v1363
      %v1491 = vadd.f32 %v1490, %v1364
      %v1492 = vadd.f32 %v1491, %v1365
      %v1493 = vadd.f32 %v1492, %v1366
      %v1494 = vadd.f32 %v1493, %v1367
      %v1495 = vadd.f32 %v1494, %v1368
      %v1496 = vadd.f32 %v1495, %v1369
      %v1497 = vadd.f32 %v1496, %v1370
      %v1498 = vadd.f32 %v1497, %v1371
      %v1499 = vadd.f32 %v1498, %v1372
      %v1500 = vadd.f32 %v1499, %v1373
      %v1501 = vadd.f32 %v1500, %v1374
      %v1502 = vadd.f32 %v1501, %v1375
      %v1503 = vadd.f32 %v1502, %v1376
      %v1504 = vadd.f32 %v1503, %v1377
      %v1505 = vadd.f32 %v1504, %v1378
      %v1506 = vadd.f32 %v1505, %v1379
      %v1507 = vadd.f32 %v1506, %v1380
      %v1508 = vadd.f32 %v1507, %v1381
      %v1509 = vadd.f32 %v1508, %v1382
      %v1510 = vadd.f32 %v1509, %v1383
      %v1511 = vrot.slane %v1510, 4
      %v1512 = vadd.f32 %v1510, %v1511
      %v1513 = vrot.slane %v1512, 2
      %v1514 = vadd.f32 %v1512, %v1513
      %v1515 = vrot.slane %v1514, 1
      %v1516 = vadd.f32 %v1514, %v1515
      %v1517 = vlaneseq
      %v1518 = vshrl.u32 %v1517, 7
      %vm1519 = vcmp.eq.s32.totalorder %v1518, 0
      %vm1520 = vcmp.eq.s32.totalorder %v1518, 1
      %v1521 = vsel %vm1520, %v1516, 0.0
      %v1522 = vsel %vm1519, %v1255, %v1521
      %1523 = vst [vmem:[%s143] sm:$0xff] %v1522
      %p1524 = scmp.lt.s32.totalorder %s13, 1
      %s1525 = scalar_select %p1524, %s13, 1
      %s1526 = smul.addr %s1525, 8
      %s1527 = scalar_lea.vmem %s2, %s1526
      // Predicated region
      $region29: #{pixel_decoder_forward.10} parent=27 // pred_check
        %p1528 = pneg %p78
      $region30: #{pixel_decoder_forward.10} parent=27 // pred_check_branch
        %1530 = sbr.rel (%p1528) target = $region32
      $region31: #{pixel_decoder_forward.10} parent=27 // pred_region
        _
      $region32: #{pixel_decoder_forward.10} parent=27 // pred_fallthru
        _
    $region28: #{pixel_decoder_forward.10} parent=5 // pred_fallthru
      _
    %p1531 = scmp.le.s32.totalorder 2, %s8
    // Predicated region
    $region33: #{pixel_decoder_forward.10} parent=5 // pred_check
      %p1532 = pneg %p1531
    $region34: #{pixel_decoder_forward.10} parent=5 // pred_check_branch
      %1534 = sbr.rel (%p1532) target = $region36
    $region35: #{pixel_decoder_forward.10} parent=5 // pred_region
      %s1535 = ssub.s32 %s8, 2
      // Predicated region
      $region37: #{pixel_decoder_forward.10} parent=35 // pred_check
        %p1536 = pneg %p84
      $region38: #{pixel_decoder_forward.10} parent=35 // pred_check_branch
        %1538 = sbr.rel (%p1536) target = $region40
      $region39: #{pixel_decoder_forward.10} parent=35 // pred_region
        %p1539 = scmp.lt.s32.totalorder %s14, 1
        %s1540 = scalar_select %p1539, %s14, 1
        %s1541 = smul.addr %s1540, 8
        %s1542 = scalar_lea.vmem %s2, %s1541
      $region40: #{pixel_decoder_forward.10} parent=35 // pred_fallthru
        _
    $region36: #{pixel_decoder_forward.10} parent=5 // pred_fallthru
      _
  $region6: #{pixel_decoder_forward.10} parent=0 // loop_footer
    %s12 = sadd.s32 1, %s8
  $region7: #{pixel_decoder_forward.10} parent=0 // loop_footer_branch
    %7 = sbr.rel target = $region3
  $region8: #{pixel_decoder_forward.10} parent=0 // loop_exit
    _

// kernel: tile.53
$region0: #{tile.53}
  #allocation0 [shape = 's32[1]{0}', space=sflag, size = 0x4, scoped, tag = 'scoped memory for tile.53']
  %s0 = inlined_call_operand.vmem [shape: f32[32], index: 0, kind: input, shape index: {}]
  %s1 = inlined_call_operand.vmem [shape: f32[4,32], index: 1, kind: output, shape index: {}]
  // Predicated region
  $region2: #{tile.53} parent=0 // pred_check
    _
  $region3: #{tile.53} parent=0 // pred_check_branch
    %3 = sbr.rel (0) target = $region5
  $region4: #{tile.53} parent=0 // pred_region
    _
  $region5: #{tile.53} parent=0 // pred_fallthru
    _
  %v4 = vld [vmem:[%s0] ss:$0 sm:$0xff]
  %5 = vst [vmem:[%s1] sm:$0xf] %v4

// kernel: tile.54
$region0: #{tile.54}
  %s0 = inlined_call_operand.vmem [shape: f32[4,32], index: 0, kind: input, shape index: {}]
  %s1 = inlined_call_operand.vmem [shape: f32[1,128], index: 1, kind: output, shape index: {}]
  $region1: #{tile.54} parent=0
    #allocation0 [shape = 'u8[4096]{0}', space=vmem, size = 0x1000, scoped, tag = 'scoped mem for output reshape']
    #allocation1 [shape = 'u8[4096]{0}', space=vmem, size = 0x1000, scoped, tag = 'scoped mem for input reshape']
    %s3 = ssub.s32 16, 1
    %v4 = vld [vmem:[%s0] sm:%s3]
    %5 = vst [vmem:[#allocation1] sm:%s3] %v4
    %v6 = vld [vmem:[#allocation1] sm:$0x1]
    %vm7 = vcmask 261120
    %8 = vst.msk [vmem:[#allocation0] sm:$0x1] %vm7, %v6
    %s9 = scalar_lea.vmem [#allocation1], 3
    %v10 = vld [vmem:[%s9] sm:$0x1]
    %11 = vrot.lane.b32.xlu0 %v10, 96
    %v12 = vpop.permute.xlu0 %11
    %vm13 = vcmask 1048320
    %14 = vst.msk [vmem:[#allocation0] sm:$0x1] %vm13, %v12
    %s15 = scalar_lea.vmem [#allocation1], 2
    %v16 = vld [vmem:[%s15] sm:$0x1]
    %17 = vrot.lane.b32.xlu0 %v16, 64
    %v18 = vpop.permute.xlu0 %17
    %vm19 = vcmask 785920
    %20 = vst.msk [vmem:[#allocation0] sm:$0x1] %vm19, %v18
    %s21 = scalar_lea.vmem [#allocation1], 1
    %v22 = vld [vmem:[%s21] sm:$0x1]
    %23 = vrot.lane.b32.xlu0 %v22, 32
    %v24 = vpop.permute.xlu0 %23
    %vm25 = vcmask 523520
    %26 = vst.msk [vmem:[#allocation0] sm:$0x1] %vm25, %v24
    %s28 = ssub.s32 2, 1
    %v29 = vld [vmem:[#allocation0] sm:%s28]
    %s31 = ssub.s32 2, 1
    %32 = vst [vmem:[%s1] sm:%s31] %v29

// kernel: pixel_decoder_forward.11
$region0: #{pixel_decoder_forward.11}
  #allocation0 [shape = 'u32[]', space=smem, size = 0x4, offset = 0x4, fixed_abs, tag = 'smem constant byte address 0x4 - core index']
  #allocation1 [shape = 'u32[72,128]{1,0:T(1,128)}', space=vmem, size = 0x9000, scoped, tag = 'internal scratch']
  %s0 = inlined_call_operand.vmem [shape: bf16[2048,16], index: 0, kind: input, shape index: {}]
  %s1 = inlined_call_operand.vmem [shape: bf16[16,128], index: 1, kind: input, shape index: {}]
  %s2 = inlined_call_operand.vmem [shape: f32[1,128], index: 2, kind: input, shape index: {}]
  %s3 = inlined_call_operand.vmem [shape: f32[1,128], index: 3, kind: input, shape index: {}]
  %s4 = inlined_call_operand.vmem [shape: bf16[128,32,64], index: 4, kind: output, shape index: {}]
  %s5 = sld [smem:[#allocation0]]
  $region49: #{pixel_decoder_forward.11} parent=0
    _
  %s7 = ssub.s32 1, %s5
  %s8 = scalar_select 0, %s7, %s5
  loop: start=0, step=1, limit=4
  $region2: #{pixel_decoder_forward.11} parent=0 // loop_pre_header
    _
  $region3: #{pixel_decoder_forward.11} parent=0 // loop_header
    %s10 = sphi 0, %s14
    %p11 = scmp.ge.s32.totalorder %s10, 4
    %s20 = sphi 0, %s22
    %s23 = sphi 0, %s20
    %s24 = sphi 0, %s23
    %s40 = sphi 0, %s24
    %s44 = sphi 0, %s44
    %s46 = sphi 0, %s44
    %s47 = sphi 0, %s46
    %s61 = sphi 0, %s47
    %s65 = sphi 0, %s65
    %s67 = sphi 0, %s65
    %s68 = sphi 0, %s67
    %s82 = sphi 0, %s68
    %s86 = sphi 0, %s86
    %s88 = sphi 0, %s86
    %s89 = sphi 0, %s88
    %s103 = sphi 0, %s89
    %s109 = sphi 0, %s111
    %s112 = sphi 0, %s109
    %s113 = sphi 0, %s112
    %s129 = sphi 0, %s113
  $region4: #{pixel_decoder_forward.11} parent=0 // loop_header_branch
    %13 = sbr.rel (%p11) target = $region8
  $region5: #{pixel_decoder_forward.11} parent=0 // loop_body
    %s15 = ssub.s32 %s10, 1
    %s16 = ssub.s32 %s10, 2
    %s17 = sadd.s32 %s10, 1
    %s18 = ssub.s32 %s10, %s17
    %p19 = scmp.eq.s32.totalorder %s18, 0
    %s21 = sadd.s32 %s20, 1
    %s22 = scalar_select %p19, %s20, %s21
    %p25 = pneg %p19
    %p26 = scmp.eq.s32.totalorder %s10, 1
    %p27 = por %p25, %p26
    %p28 = scmp.ne.s32.totalorder %s20, %s23
    %p29 = scmp.eq.s32.totalorder %s10, 0
    %p30 = por %p28, %p29
    %p31 = scmp.ne.s32.totalorder %s20, %s23
    %p32 = scmp.eq.s32.totalorder %s15, 1
    %p33 = por %p31, %p32
    %p34 = scmp.ne.s32.totalorder %s23, %s24
    %p35 = scmp.eq.s32.totalorder %s15, 0
    %p36 = por %p34, %p35
    %p37 = scmp.ne.s32.totalorder %s23, %s24
    %p38 = scmp.eq.s32.totalorder %s16, 1
    %p39 = por %p37, %p38
    %p41 = scmp.ne.s32.totalorder %s24, %s40
    %p42 = scmp.eq.s32.totalorder %s16, 0
    %p43 = por %p41, %p42
    %s45 = sadd.s32 %s44, 1
    %p48 = scmp.eq.s32.totalorder %s10, 1
    %p49 = scmp.ne.s32.totalorder %s44, %s46
    %p50 = scmp.eq.s32.totalorder %s10, 0
    %p51 = por %p49, %p50
    %p52 = scmp.ne.s32.totalorder %s44, %s46
    %p53 = scmp.eq.s32.totalorder %s15, 1
    %p54 = por %p52, %p53
    %p55 = scmp.ne.s32.totalorder %s46, %s47
    %p56 = scmp.eq.s32.totalorder %s15, 0
    %p57 = por %p55, %p56
    %p58 = scmp.ne.s32.totalorder %s46, %s47
    %p59 = scmp.eq.s32.totalorder %s16, 1
    %p60 = por %p58, %p59
    %p62 = scmp.ne.s32.totalorder %s47, %s61
    %p63 = scmp.eq.s32.totalorder %s16, 0
    %p64 = por %p62, %p63
    %s66 = sadd.s32 %s65, 1
    %p69 = scmp.eq.s32.totalorder %s10, 1
    %p70 = scmp.ne.s32.totalorder %s65, %s67
    %p71 = scmp.eq.s32.totalorder %s10, 0
    %p72 = por %p70, %p71
    %p73 = scmp.ne.s32.totalorder %s65, %s67
    %p74 = scmp.eq.s32.totalorder %s15, 1
    %p75 = por %p73, %p74
    %p76 = scmp.ne.s32.totalorder %s67, %s68
    %p77 = scmp.eq.s32.totalorder %s15, 0
    %p78 = por %p76, %p77
    %p79 = scmp.ne.s32.totalorder %s67, %s68
    %p80 = scmp.eq.s32.totalorder %s16, 1
    %p81 = por %p79, %p80
    %p83 = scmp.ne.s32.totalorder %s68, %s82
    %p84 = scmp.eq.s32.totalorder %s16, 0
    %p85 = por %p83, %p84
    %s87 = sadd.s32 %s86, 1
    %p90 = scmp.eq.s32.totalorder %s10, 1
    %p91 = scmp.ne.s32.totalorder %s86, %s88
    %p92 = scmp.eq.s32.totalorder %s10, 0
    %p93 = por %p91, %p92
    %p94 = scmp.ne.s32.totalorder %s86, %s88
    %p95 = scmp.eq.s32.totalorder %s15, 1
    %p96 = por %p94, %p95
    %p97 = scmp.ne.s32.totalorder %s88, %s89
    %p98 = scmp.eq.s32.totalorder %s15, 0
    %p99 = por %p97, %p98
    %p100 = scmp.ne.s32.totalorder %s88, %s89
    %p101 = scmp.eq.s32.totalorder %s16, 1
    %p102 = por %p100, %p101
    %p104 = scmp.ne.s32.totalorder %s89, %s103
    %p105 = scmp.eq.s32.totalorder %s16, 0
    %p106 = por %p104, %p105
    %s107 = ssub.s32 %s10, %s17
    %p108 = scmp.eq.s32.totalorder %s107, 0
    %s110 = sadd.s32 %s109, 1
    %s111 = scalar_select %p108, %s109, %s110
    %p114 = pneg %p108
    %p115 = scmp.eq.s32.totalorder %s10, 1
    %p116 = por %p114, %p115
    %p117 = scmp.ne.s32.totalorder %s109, %s112
    %p118 = scmp.eq.s32.totalorder %s10, 0
    %p119 = por %p117, %p118
    %p120 = scmp.ne.s32.totalorder %s109, %s112
    %p121 = scmp.eq.s32.totalorder %s15, 1
    %p122 = por %p120, %p121
    %p123 = scmp.ne.s32.totalorder %s112, %s113
    %p124 = scmp.eq.s32.totalorder %s15, 0
    %p125 = por %p123, %p124
    %p126 = scmp.ne.s32.totalorder %s112, %s113
    %p127 = scmp.eq.s32.totalorder %s16, 1
    %p128 = por %p126, %p127
    %p130 = scmp.ne.s32.totalorder %s113, %s129
    %p131 = scmp.eq.s32.totalorder %s16, 0
    %p132 = por %p130, %p131
    %p133 = scmp.le.s32.totalorder 1, %s10
    %p134 = scmp.lt.s32.totalorder %s10, 3
    %p135 = pnand %p133, %p134
    %p136 = pneg %p135
    // Predicated region
    $region9: #{pixel_decoder_forward.11} parent=5 // pred_check
      _
    $region10: #{pixel_decoder_forward.11} parent=5 // pred_check_branch
      %138 = sbr.rel (%p135) target = $region12
    $region11: #{pixel_decoder_forward.11} parent=5 // pred_region
      %s139 = ssub.s32 %s10, 1
      // Predicated region
      $region13: #{pixel_decoder_forward.11} parent=11 // pred_check
        %p140 = pneg %p57
      $region14: #{pixel_decoder_forward.11} parent=11 // pred_check_branch
        %142 = sbr.rel (%p140) target = $region16
      $region15: #{pixel_decoder_forward.11} parent=11 // pred_region
        _
      $region16: #{pixel_decoder_forward.11} parent=11 // pred_fallthru
        _
      // Predicated region
      $region17: #{pixel_decoder_forward.11} parent=11 // pred_check
        %p143 = pneg %p78
      $region18: #{pixel_decoder_forward.11} parent=11 // pred_check_branch
        %145 = sbr.rel (%p143) target = $region20
      $region19: #{pixel_decoder_forward.11} parent=11 // pred_region
        _
      $region20: #{pixel_decoder_forward.11} parent=11 // pred_fallthru
        _
      // Predicated region
      $region21: #{pixel_decoder_forward.11} parent=11 // pred_check
        %p146 = pneg %p99
      $region22: #{pixel_decoder_forward.11} parent=11 // pred_check_branch
        %148 = sbr.rel (%p146) target = $region24
      $region23: #{pixel_decoder_forward.11} parent=11 // pred_region
        _
      $region24: #{pixel_decoder_forward.11} parent=11 // pred_fallthru
        _
    $region12: #{pixel_decoder_forward.11} parent=5 // pred_fallthru
      _
    %p149 = scmp.lt.s32.totalorder %s10, 2
    // Predicated region
    $region25: #{pixel_decoder_forward.11} parent=5 // pred_check
      %p150 = pneg %p149
    $region26: #{pixel_decoder_forward.11} parent=5 // pred_check_branch
      %152 = sbr.rel (%p150) target = $region28
    $region27: #{pixel_decoder_forward.11} parent=5 // pred_region
      // Predicated region
      $region29: #{pixel_decoder_forward.11} parent=27 // pred_check
        %p153 = pneg %p30
      $region30: #{pixel_decoder_forward.11} parent=27 // pred_check_branch
        %155 = sbr.rel (%p153) target = $region32
      $region31: #{pixel_decoder_forward.11} parent=27 // pred_region
        %s156 = smul.u32 128, %s10
        %p157 = scmp.lt.s32.totalorder %s156, 255
        %s158 = scalar_select %p157, %s156, 255
        %s159 = smul.addr %s158, 4
        %s160 = scalar_lea.vmem %s0, %s159
        %s161 = smul.u32 128, %s10
      $region32: #{pixel_decoder_forward.11} parent=27 // pred_fallthru
        _
    $region28: #{pixel_decoder_forward.11} parent=5 // pred_fallthru
      _
    %p162 = scmp.le.s32.totalorder 1, %s10
    %p163 = scmp.lt.s32.totalorder %s10, 3
    %p164 = pnand %p162, %p163
    %p165 = pneg %p164
    // Predicated region
    $region33: #{pixel_decoder_forward.11} parent=5 // pred_check
      _
    $region34: #{pixel_decoder_forward.11} parent=5 // pred_check_branch
      %167 = sbr.rel (%p164) target = $region36
    $region35: #{pixel_decoder_forward.11} parent=5 // pred_region
      %s168 = ssub.s32 %s10, 1
      %s169 = smul.u32 128, %s15
      %p170 = scmp.lt.s32.totalorder %s169, 255
      %s171 = scalar_select %p170, %s169, 255
      %s172 = smul.addr %s171, 4
      %s173 = scalar_lea.vmem %s0, %s172
      %p174 = pneg %p36
      %p175 = pneg %p33
      %p176 = pneg %p57
      %p177 = pneg %p54
      %p178 = pneg %p78
      %p179 = pneg %p75
      %p180 = pneg %p99
      %p181 = pneg %p96
      %p182 = pneg %p125
      %p183 = pneg %p122
      %s184 = smul.u32 64, %s15
      %p185 = scmp.lt.s32.totalorder %s184, 127
      %s186 = scalar_select %p185, %s184, 127
      %s187 = smul.addr %s186, 4
      %s188 = smul.addr %s187, 4
      %s189 = scalar_lea.vmem %s4, %s188
      %s190 = smul.u32 128, %s15
      %p191 = scmp.lt.s32.totalorder %s190, 255
      %s192 = scalar_select %p191, %s190, 255
      %s193 = smul.addr %s192, 4
      %s194 = scalar_lea.vmem %s0, %s193
      %s195 = smul.u32 128, %s15
      %s196 = smul.u32 64, %s15
      %p197 = scmp.lt.s32.totalorder %s196, 127
      %s198 = scalar_select %p197, %s196, 127
      %s199 = smul.addr %s198, 4
      %s200 = smul.addr %s199, 4
      %s201 = scalar_lea.vmem %s4, %s200
      %s202 = smul.u32 64, %s15
      %v204 = vld [vmem:[%s194] sm:$0xf]
      %v205 = vld [vmem:[%s194 + $0x4] sm:$0xf]
      %v206 = vld [vmem:[%s194 + $0x8] sm:$0xf]
      %v207 = vld [vmem:[%s194 + $0xc] sm:$0xf]
      %v208 = vld [vmem:[%s194 + $0x10] sm:$0xf]
      %v209 = vld [vmem:[%s194 + $0x14] sm:$0xf]
      %v210 = vld [vmem:[%s194 + $0x18] sm:$0xf]
      %v211 = vld [vmem:[%s194 + $0x1c] sm:$0xf]
      %v212 = vld [vmem:[%s194 + $0x20] sm:$0xf]
      %v213 = vld [vmem:[%s194 + $0x24] sm:$0xf]
      %v214 = vld [vmem:[%s194 + $0x28] sm:$0xf]
      %v215 = vld [vmem:[%s194 + $0x2c] sm:$0xf]
      %v216 = vld [vmem:[%s194 + $0x30] sm:$0xf]
      %v217 = vld [vmem:[%s194 + $0x34] sm:$0xf]
      %v218 = vld [vmem:[%s194 + $0x38] sm:$0xf]
      %v219 = vld [vmem:[%s194 + $0x3c] sm:$0xf]
      %v220 = vld [vmem:[%s194 + $0x40] sm:$0xf]
      %v221 = vld [vmem:[%s194 + $0x44] sm:$0xf]
      %v222 = vld [vmem:[%s194 + $0x48] sm:$0xf]
      %v223 = vld [vmem:[%s194 + $0x4c] sm:$0xf]
      %v224 = vld [vmem:[%s194 + $0x50] sm:$0xf]
      %v225 = vld [vmem:[%s194 + $0x54] sm:$0xf]
      %v226 = vld [vmem:[%s194 + $0x58] sm:$0xf]
      %v227 = vld [vmem:[%s194 + $0x5c] sm:$0xf]
      %v228 = vld [vmem:[%s194 + $0x60] sm:$0xf]
      %v229 = vld [vmem:[%s194 + $0x64] sm:$0xf]
      %v230 = vld [vmem:[%s194 + $0x68] sm:$0xf]
      %v231 = vld [vmem:[%s194 + $0x6c] sm:$0xf]
      %v232 = vld [vmem:[%s194 + $0x70] sm:$0xf]
      %v233 = vld [vmem:[%s194 + $0x74] sm:$0xf]
      %v234 = vld [vmem:[%s194 + $0x78] sm:$0xf]
      %v235 = vld [vmem:[%s194 + $0x7c] sm:$0xf]
      %v236 = vld [vmem:[%s194 + $0x80] sm:$0xf]
      %v237 = vld [vmem:[%s194 + $0x84] sm:$0xf]
      %v238 = vld [vmem:[%s194 + $0x88] sm:$0xf]
      %v239 = vld [vmem:[%s194 + $0x8c] sm:$0xf]
      %v240 = vld [vmem:[%s194 + $0x90] sm:$0xf]
      %v241 = vld [vmem:[%s194 + $0x94] sm:$0xf]
      %v242 = vld [vmem:[%s194 + $0x98] sm:$0xf]
      %v243 = vld [vmem:[%s194 + $0x9c] sm:$0xf]
      %v244 = vld [vmem:[%s194 + $0xa0] sm:$0xf]
      %v245 = vld [vmem:[%s194 + $0xa4] sm:$0xf]
      %v246 = vld [vmem:[%s194 + $0xa8] sm:$0xf]
      %v247 = vld [vmem:[%s194 + $0xac] sm:$0xf]
      %v248 = vld [vmem:[%s194 + $0xb0] sm:$0xf]
      %v249 = vld [vmem:[%s194 + $0xb4] sm:$0xf]
      %v250 = vld [vmem:[%s194 + $0xb8] sm:$0xf]
      %v251 = vld [vmem:[%s194 + $0xbc] sm:$0xf]
      %v252 = vld [vmem:[%s194 + $0xc0] sm:$0xf]
      %v253 = vld [vmem:[%s194 + $0xc4] sm:$0xf]
      %v254 = vld [vmem:[%s194 + $0xc8] sm:$0xf]
      %v255 = vld [vmem:[%s194 + $0xcc] sm:$0xf]
      %v256 = vld [vmem:[%s194 + $0xd0] sm:$0xf]
      %v257 = vld [vmem:[%s194 + $0xd4] sm:$0xf]
      %v258 = vld [vmem:[%s194 + $0xd8] sm:$0xf]
      %v259 = vld [vmem:[%s194 + $0xdc] sm:$0xf]
      %v260 = vld [vmem:[%s194 + $0xe0] sm:$0xf]
      %v261 = vld [vmem:[%s194 + $0xe4] sm:$0xf]
      %v262 = vld [vmem:[%s194 + $0xe8] sm:$0xf]
      %v263 = vld [vmem:[%s194 + $0xec] sm:$0xf]
      %v264 = vld [vmem:[%s194 + $0xf0] sm:$0xf]
      %v265 = vld [vmem:[%s194 + $0xf4] sm:$0xf]
      %v266 = vld [vmem:[%s194 + $0xf8] sm:$0xf]
      %v267 = vld [vmem:[%s194 + $0xfc] sm:$0xf]
      %v268 = vld [vmem:[%s194 + $0x100] sm:$0xf]
      %v269 = vld [vmem:[%s194 + $0x104] sm:$0xf]
      %v270 = vld [vmem:[%s194 + $0x108] sm:$0xf]
      %v271 = vld [vmem:[%s194 + $0x10c] sm:$0xf]
      %v272 = vld [vmem:[%s194 + $0x110] sm:$0xf]
      %v273 = vld [vmem:[%s194 + $0x114] sm:$0xf]
      %v274 = vld [vmem:[%s194 + $0x118] sm:$0xf]
      %v275 = vld [vmem:[%s194 + $0x11c] sm:$0xf]
      %v276 = vld [vmem:[%s194 + $0x120] sm:$0xf]
      %v277 = vld [vmem:[%s194 + $0x124] sm:$0xf]
      %v278 = vld [vmem:[%s194 + $0x128] sm:$0xf]
      %v279 = vld [vmem:[%s194 + $0x12c] sm:$0xf]
      %v280 = vld [vmem:[%s194 + $0x130] sm:$0xf]
      %v281 = vld [vmem:[%s194 + $0x134] sm:$0xf]
      %v282 = vld [vmem:[%s194 + $0x138] sm:$0xf]
      %v283 = vld [vmem:[%s194 + $0x13c] sm:$0xf]
      %v284 = vld [vmem:[%s194 + $0x140] sm:$0xf]
      %v285 = vld [vmem:[%s194 + $0x144] sm:$0xf]
      %v286 = vld [vmem:[%s194 + $0x148] sm:$0xf]
      %v287 = vld [vmem:[%s194 + $0x14c] sm:$0xf]
      %v288 = vld [vmem:[%s194 + $0x150] sm:$0xf]
      %v289 = vld [vmem:[%s194 + $0x154] sm:$0xf]
      %v290 = vld [vmem:[%s194 + $0x158] sm:$0xf]
      %v291 = vld [vmem:[%s194 + $0x15c] sm:$0xf]
      %v292 = vld [vmem:[%s194 + $0x160] sm:$0xf]
      %v293 = vld [vmem:[%s194 + $0x164] sm:$0xf]
      %v294 = vld [vmem:[%s194 + $0x168] sm:$0xf]
      %v295 = vld [vmem:[%s194 + $0x16c] sm:$0xf]
      %v296 = vld [vmem:[%s194 + $0x170] sm:$0xf]
      %v297 = vld [vmem:[%s194 + $0x174] sm:$0xf]
      %v298 = vld [vmem:[%s194 + $0x178] sm:$0xf]
      %v299 = vld [vmem:[%s194 + $0x17c] sm:$0xf]
      %v300 = vld [vmem:[%s194 + $0x180] sm:$0xf]
      %v301 = vld [vmem:[%s194 + $0x184] sm:$0xf]
      %v302 = vld [vmem:[%s194 + $0x188] sm:$0xf]
      %v303 = vld [vmem:[%s194 + $0x18c] sm:$0xf]
      %v304 = vld [vmem:[%s194 + $0x190] sm:$0xf]
      %v305 = vld [vmem:[%s194 + $0x194] sm:$0xf]
      %v306 = vld [vmem:[%s194 + $0x198] sm:$0xf]
      %v307 = vld [vmem:[%s194 + $0x19c] sm:$0xf]
      %v308 = vld [vmem:[%s194 + $0x1a0] sm:$0xf]
      %v309 = vld [vmem:[%s194 + $0x1a4] sm:$0xf]
      %v310 = vld [vmem:[%s194 + $0x1a8] sm:$0xf]
      %v311 = vld [vmem:[%s194 + $0x1ac] sm:$0xf]
      %v312 = vld [vmem:[%s194 + $0x1b0] sm:$0xf]
      %v313 = vld [vmem:[%s194 + $0x1b4] sm:$0xf]
      %v314 = vld [vmem:[%s194 + $0x1b8] sm:$0xf]
      %v315 = vld [vmem:[%s194 + $0x1bc] sm:$0xf]
      %v316 = vld [vmem:[%s194 + $0x1c0] sm:$0xf]
      %v317 = vld [vmem:[%s194 + $0x1c4] sm:$0xf]
      %v318 = vld [vmem:[%s194 + $0x1c8] sm:$0xf]
      %v319 = vld [vmem:[%s194 + $0x1cc] sm:$0xf]
      %v320 = vld [vmem:[%s194 + $0x1d0] sm:$0xf]
      %v321 = vld [vmem:[%s194 + $0x1d4] sm:$0xf]
      %v322 = vld [vmem:[%s194 + $0x1d8] sm:$0xf]
      %v323 = vld [vmem:[%s194 + $0x1dc] sm:$0xf]
      %v324 = vld [vmem:[%s194 + $0x1e0] sm:$0xf]
      %v325 = vld [vmem:[%s194 + $0x1e4] sm:$0xf]
      %v326 = vld [vmem:[%s194 + $0x1e8] sm:$0xf]
      %v327 = vld [vmem:[%s194 + $0x1ec] sm:$0xf]
      %v328 = vld [vmem:[%s194 + $0x1f0] sm:$0xf]
      %v329 = vld [vmem:[%s194 + $0x1f4] sm:$0xf]
      %v330 = vld [vmem:[%s194 + $0x1f8] sm:$0xf]
      %v331 = vld [vmem:[%s194 + $0x1fc] sm:$0xf]
      %v332 = vld [vmem:[%s1] sm:$0xf]
      %v333 = vld [vmem:[%s1 + $0x4] sm:$0xf]
      %v462 = vunpack.c.l.b16 %v204
      %v463 = vunpack.c.l.b16 %v205
      %v464 = vunpack.c.l.b16 %v206
      %v465 = vunpack.c.l.b16 %v207
      %v466 = vunpack.c.l.b16 %v208
      %v467 = vunpack.c.l.b16 %v209
      %v468 = vunpack.c.l.b16 %v210
      %v469 = vunpack.c.l.b16 %v211
      %v470 = vunpack.c.l.b16 %v212
      %v471 = vunpack.c.l.b16 %v213
      %v472 = vunpack.c.l.b16 %v214
      %v473 = vunpack.c.l.b16 %v215
      %v474 = vunpack.c.l.b16 %v216
      %v475 = vunpack.c.l.b16 %v217
      %v476 = vunpack.c.l.b16 %v218
      %v477 = vunpack.c.l.b16 %v219
      %v478 = vunpack.c.l.b16 %v220
      %v479 = vunpack.c.l.b16 %v221
      %v480 = vunpack.c.l.b16 %v222
      %v481 = vunpack.c.l.b16 %v223
      %v482 = vunpack.c.l.b16 %v224
      %v483 = vunpack.c.l.b16 %v225
      %v484 = vunpack.c.l.b16 %v226
      %v485 = vunpack.c.l.b16 %v227
      %v486 = vunpack.c.l.b16 %v228
      %v487 = vunpack.c.l.b16 %v229
      %v488 = vunpack.c.l.b16 %v230
      %v489 = vunpack.c.l.b16 %v231
      %v490 = vunpack.c.l.b16 %v232
      %v491 = vunpack.c.l.b16 %v233
      %v492 = vunpack.c.l.b16 %v234
      %v493 = vunpack.c.l.b16 %v235
      %v494 = vunpack.c.l.b16 %v236
      %v495 = vunpack.c.l.b16 %v237
      %v496 = vunpack.c.l.b16 %v238
      %v497 = vunpack.c.l.b16 %v239
      %v498 = vunpack.c.l.b16 %v240
      %v499 = vunpack.c.l.b16 %v241
      %v500 = vunpack.c.l.b16 %v242
      %v501 = vunpack.c.l.b16 %v243
      %v502 = vunpack.c.l.b16 %v244
      %v503 = vunpack.c.l.b16 %v245
      %v504 = vunpack.c.l.b16 %v246
      %v505 = vunpack.c.l.b16 %v247
      %v506 = vunpack.c.l.b16 %v248
      %v507 = vunpack.c.l.b16 %v249
      %v508 = vunpack.c.l.b16 %v250
      %v509 = vunpack.c.l.b16 %v251
      %v510 = vunpack.c.l.b16 %v252
      %v511 = vunpack.c.l.b16 %v253
      %v512 = vunpack.c.l.b16 %v254
      %v513 = vunpack.c.l.b16 %v255
      %v514 = vunpack.c.l.b16 %v256
      %v515 = vunpack.c.l.b16 %v257
      %v516 = vunpack.c.l.b16 %v258
      %v517 = vunpack.c.l.b16 %v259
      %v518 = vunpack.c.l.b16 %v260
      %v519 = vunpack.c.l.b16 %v261
      %v520 = vunpack.c.l.b16 %v262
      %v521 = vunpack.c.l.b16 %v263
      %v522 = vunpack.c.l.b16 %v264
      %v523 = vunpack.c.l.b16 %v265
      %v524 = vunpack.c.l.b16 %v266
      %v525 = vunpack.c.l.b16 %v267
      %v526 = vunpack.c.l.b16 %v268
      %v527 = vunpack.c.l.b16 %v269
      %v528 = vunpack.c.l.b16 %v270
      %v529 = vunpack.c.l.b16 %v271
      %v530 = vunpack.c.l.b16 %v272
      %v531 = vunpack.c.l.b16 %v273
      %v532 = vunpack.c.l.b16 %v274
      %v533 = vunpack.c.l.b16 %v275
      %v534 = vunpack.c.l.b16 %v276
      %v535 = vunpack.c.l.b16 %v277
      %v536 = vunpack.c.l.b16 %v278
      %v537 = vunpack.c.l.b16 %v279
      %v538 = vunpack.c.l.b16 %v280
      %v539 = vunpack.c.l.b16 %v281
      %v540 = vunpack.c.l.b16 %v282
      %v541 = vunpack.c.l.b16 %v283
      %v542 = vunpack.c.l.b16 %v284
      %v543 = vunpack.c.l.b16 %v285
      %v544 = vunpack.c.l.b16 %v286
      %v545 = vunpack.c.l.b16 %v287
      %v546 = vunpack.c.l.b16 %v288
      %v547 = vunpack.c.l.b16 %v289
      %v548 = vunpack.c.l.b16 %v290
      %v549 = vunpack.c.l.b16 %v291
      %v550 = vunpack.c.l.b16 %v292
      %v551 = vunpack.c.l.b16 %v293
      %v552 = vunpack.c.l.b16 %v294
      %v553 = vunpack.c.l.b16 %v295
      %v554 = vunpack.c.l.b16 %v296
      %v555 = vunpack.c.l.b16 %v297
      %v556 = vunpack.c.l.b16 %v298
      %v557 = vunpack.c.l.b16 %v299
      %v558 = vunpack.c.l.b16 %v300
      %v559 = vunpack.c.l.b16 %v301
      %v560 = vunpack.c.l.b16 %v302
      %v561 = vunpack.c.l.b16 %v303
      %v562 = vunpack.c.l.b16 %v304
      %v563 = vunpack.c.l.b16 %v305
      %v564 = vunpack.c.l.b16 %v306
      %v565 = vunpack.c.l.b16 %v307
      %v566 = vunpack.c.l.b16 %v308
      %v567 = vunpack.c.l.b16 %v309
      %v568 = vunpack.c.l.b16 %v310
      %v569 = vunpack.c.l.b16 %v311
      %v570 = vunpack.c.l.b16 %v312
      %v571 = vunpack.c.l.b16 %v313
      %v572 = vunpack.c.l.b16 %v314
      %v573 = vunpack.c.l.b16 %v315
      %v574 = vunpack.c.l.b16 %v316
      %v575 = vunpack.c.l.b16 %v317
      %v576 = vunpack.c.l.b16 %v318
      %v577 = vunpack.c.l.b16 %v319
      %v578 = vunpack.c.l.b16 %v320
      %v579 = vunpack.c.l.b16 %v321
      %v580 = vunpack.c.l.b16 %v322
      %v581 = vunpack.c.l.b16 %v323
      %v582 = vunpack.c.l.b16 %v324
      %v583 = vunpack.c.l.b16 %v325
      %v584 = vunpack.c.l.b16 %v326
      %v585 = vunpack.c.l.b16 %v327
      %v586 = vunpack.c.l.b16 %v328
      %v587 = vunpack.c.l.b16 %v329
      %v588 = vunpack.c.l.b16 %v330
      %v589 = vunpack.c.l.b16 %v331
      %v590 = vpack.c.b16 %v463, %v462
      %v591 = vpack.c.b16 %v465, %v464
      %v592 = vpack.c.b16 %v467, %v466
      %v593 = vpack.c.b16 %v469, %v468
      %v594 = vpack.c.b16 %v471, %v470
      %v595 = vpack.c.b16 %v473, %v472
      %v596 = vpack.c.b16 %v475, %v474
      %v597 = vpack.c.b16 %v477, %v476
      %v598 = vpack.c.b16 %v479, %v478
      %v599 = vpack.c.b16 %v481, %v480
      %v600 = vpack.c.b16 %v483, %v482
      %v601 = vpack.c.b16 %v485, %v484
      %v602 = vpack.c.b16 %v487, %v486
      %v603 = vpack.c.b16 %v489, %v488
      %v604 = vpack.c.b16 %v491, %v490
      %v605 = vpack.c.b16 %v493, %v492
      %v606 = vpack.c.b16 %v495, %v494
      %v607 = vpack.c.b16 %v497, %v496
      %v608 = vpack.c.b16 %v499, %v498
      %v609 = vpack.c.b16 %v501, %v500
      %v610 = vpack.c.b16 %v503, %v502
      %v611 = vpack.c.b16 %v505, %v504
      %v612 = vpack.c.b16 %v507, %v506
      %v613 = vpack.c.b16 %v509, %v508
      %v614 = vpack.c.b16 %v511, %v510
      %v615 = vpack.c.b16 %v513, %v512
      %v616 = vpack.c.b16 %v515, %v514
      %v617 = vpack.c.b16 %v517, %v516
      %v618 = vpack.c.b16 %v519, %v518
      %v619 = vpack.c.b16 %v521, %v520
      %v620 = vpack.c.b16 %v523, %v522
      %v621 = vpack.c.b16 %v525, %v524
      %v622 = vpack.c.b16 %v527, %v526
      %v623 = vpack.c.b16 %v529, %v528
      %v624 = vpack.c.b16 %v531, %v530
      %v625 = vpack.c.b16 %v533, %v532
      %v626 = vpack.c.b16 %v535, %v534
      %v627 = vpack.c.b16 %v537, %v536
      %v628 = vpack.c.b16 %v539, %v538
      %v629 = vpack.c.b16 %v541, %v540
      %v630 = vpack.c.b16 %v543, %v542
      %v631 = vpack.c.b16 %v545, %v544
      %v632 = vpack.c.b16 %v547, %v546
      %v633 = vpack.c.b16 %v549, %v548
      %v634 = vpack.c.b16 %v551, %v550
      %v635 = vpack.c.b16 %v553, %v552
      %v636 = vpack.c.b16 %v555, %v554
      %v637 = vpack.c.b16 %v557, %v556
      %v638 = vpack.c.b16 %v559, %v558
      %v639 = vpack.c.b16 %v561, %v560
      %v640 = vpack.c.b16 %v563, %v562
      %v641 = vpack.c.b16 %v565, %v564
      %v642 = vpack.c.b16 %v567, %v566
      %v643 = vpack.c.b16 %v569, %v568
      %v644 = vpack.c.b16 %v571, %v570
      %v645 = vpack.c.b16 %v573, %v572
      %v646 = vpack.c.b16 %v575, %v574
      %v647 = vpack.c.b16 %v577, %v576
      %v648 = vpack.c.b16 %v579, %v578
      %v649 = vpack.c.b16 %v581, %v580
      %v650 = vpack.c.b16 %v583, %v582
      %v651 = vpack.c.b16 %v585, %v584
      %v652 = vpack.c.b16 %v587, %v586
      %v653 = vpack.c.b16 %v589, %v588
      %v656 = vunpack.c.l.b16 %v332
      %v657 = vunpack.c.l.b16 %v333
      %v658 = vpack.c.b16 %v657, %v656
      %vm660 = vcmask 130048
      %v662 = vsel %vm660, %v590, 0
      %v665 = vsel %vm660, %v591, 0
      %v668 = vsel %vm660, %v592, 0
      %v671 = vsel %vm660, %v593, 0
      %v674 = vsel %vm660, %v594, 0
      %v677 = vsel %vm660, %v595, 0
      %v680 = vsel %vm660, %v596, 0
      %v683 = vsel %vm660, %v597, 0
      %v686 = vsel %vm660, %v598, 0
      %v689 = vsel %vm660, %v599, 0
      %v692 = vsel %vm660, %v600, 0
      %v695 = vsel %vm660, %v601, 0
      %v698 = vsel %vm660, %v602, 0
      %v701 = vsel %vm660, %v603, 0
      %v704 = vsel %vm660, %v604, 0
      %v707 = vsel %vm660, %v605, 0
      %v710 = vsel %vm660, %v606, 0
      %v713 = vsel %vm660, %v607, 0
      %v716 = vsel %vm660, %v608, 0
      %v719 = vsel %vm660, %v609, 0
      %v722 = vsel %vm660, %v610, 0
      %v725 = vsel %vm660, %v611, 0
      %v728 = vsel %vm660, %v612, 0
      %v731 = vsel %vm660, %v613, 0
      %v734 = vsel %vm660, %v614, 0
      %v737 = vsel %vm660, %v615, 0
      %v740 = vsel %vm660, %v616, 0
      %v743 = vsel %vm660, %v617, 0
      %v746 = vsel %vm660, %v618, 0
      %v749 = vsel %vm660, %v619, 0
      %v752 = vsel %vm660, %v620, 0
      %v755 = vsel %vm660, %v621, 0
      %v758 = vsel %vm660, %v622, 0
      %v761 = vsel %vm660, %v623, 0
      %v764 = vsel %vm660, %v624, 0
      %v767 = vsel %vm660, %v625, 0
      %v770 = vsel %vm660, %v626, 0
      %v773 = vsel %vm660, %v627, 0
      %v776 = vsel %vm660, %v628, 0
      %v779 = vsel %vm660, %v629, 0
      %v782 = vsel %vm660, %v630, 0
      %v785 = vsel %vm660, %v631, 0
      %v788 = vsel %vm660, %v632, 0
      %v791 = vsel %vm660, %v633, 0
      %v794 = vsel %vm660, %v634, 0
      %v797 = vsel %vm660, %v635, 0
      %v800 = vsel %vm660, %v636, 0
      %v803 = vsel %vm660, %v637, 0
      %v806 = vsel %vm660, %v638, 0
      %v809 = vsel %vm660, %v639, 0
      %v812 = vsel %vm660, %v640, 0
      %v815 = vsel %vm660, %v641, 0
      %v818 = vsel %vm660, %v642, 0
      %v821 = vsel %vm660, %v643, 0
      %v824 = vsel %vm660, %v644, 0
      %v827 = vsel %vm660, %v645, 0
      %v830 = vsel %vm660, %v646, 0
      %v833 = vsel %vm660, %v647, 0
      %v836 = vsel %vm660, %v648, 0
      %v839 = vsel %vm660, %v649, 0
      %v842 = vsel %vm660, %v650, 0
      %v845 = vsel %vm660, %v651, 0
      %v848 = vsel %vm660, %v652, 0
      %v851 = vsel %vm660, %v653, 0
      %853 = vmatpush.bf16.msra.mxu0 0
      %854 = vmatpush.bf16.msra.mxu0 0
      %855 = vmatpush.bf16.msra.mxu0 0
      %856 = vmatpush.bf16.msra.mxu0 0
      %857 = vmatpush.bf16.msra.mxu0 0
      %858 = vmatpush.bf16.msra.mxu0 0
      %859 = vmatpush.bf16.msra.mxu0 0
      %860 = vmatpush.bf16.msra.mxu0 %v658
      %861 = vmatmul.bf16.gmra.mxu0 %v662
      %v862 = vpop.f32.mrf.mxu0
      %v863 = vadd.f32 0.0, %v862
      %v864 = vpop.f32.mrf.mxu0
      %v865 = vadd.f32 0.0, %v864
      %866 = vmatmul.bf16.gmra.mxu0 %v665
      %v867 = vpop.f32.mrf.mxu0
      %v868 = vadd.f32 0.0, %v867
      %v869 = vpop.f32.mrf.mxu0
      %v870 = vadd.f32 0.0, %v869
      %871 = vmatmul.bf16.gmra.mxu0 %v668
      %v872 = vpop.f32.mrf.mxu0
      %v873 = vadd.f32 0.0, %v872
      %v874 = vpop.f32.mrf.mxu0
      %v875 = vadd.f32 0.0, %v874
      %876 = vmatmul.bf16.gmra.mxu0 %v671
      %v877 = vpop.f32.mrf.mxu0
      %v878 = vadd.f32 0.0, %v877
      %v879 = vpop.f32.mrf.mxu0
      %v880 = vadd.f32 0.0, %v879
      %881 = vmatmul.bf16.gmra.mxu0 %v674
      %v882 = vpop.f32.mrf.mxu0
      %v883 = vadd.f32 0.0, %v882
      %v884 = vpop.f32.mrf.mxu0
      %v885 = vadd.f32 0.0, %v884
      %886 = vmatmul.bf16.gmra.mxu0 %v677
      %v887 = vpop.f32.mrf.mxu0
      %v888 = vadd.f32 0.0, %v887
      %v889 = vpop.f32.mrf.mxu0
      %v890 = vadd.f32 0.0, %v889
      %891 = vmatmul.bf16.gmra.mxu0 %v680
      %v892 = vpop.f32.mrf.mxu0
      %v893 = vadd.f32 0.0, %v892
      %v894 = vpop.f32.mrf.mxu0
      %v895 = vadd.f32 0.0, %v894
      %896 = vmatmul.bf16.gmra.mxu0 %v683
      %v897 = vpop.f32.mrf.mxu0
      %v898 = vadd.f32 0.0, %v897
      %v899 = vpop.f32.mrf.mxu0
      %v900 = vadd.f32 0.0, %v899
      %901 = vmatmul.bf16.gmra.mxu0 %v686
      %v902 = vpop.f32.mrf.mxu0
      %v903 = vadd.f32 0.0, %v902
      %v904 = vpop.f32.mrf.mxu0
      %v905 = vadd.f32 0.0, %v904
      %906 = vmatmul.bf16.gmra.mxu0 %v689
      %v907 = vpop.f32.mrf.mxu0
      %v908 = vadd.f32 0.0, %v907
      %v909 = vpop.f32.mrf.mxu0
      %v910 = vadd.f32 0.0, %v909
      %911 = vmatmul.bf16.gmra.mxu0 %v692
      %v912 = vpop.f32.mrf.mxu0
      %v913 = vadd.f32 0.0, %v912
      %v914 = vpop.f32.mrf.mxu0
      %v915 = vadd.f32 0.0, %v914
      %916 = vmatmul.bf16.gmra.mxu0 %v695
      %v917 = vpop.f32.mrf.mxu0
      %v918 = vadd.f32 0.0, %v917
      %v919 = vpop.f32.mrf.mxu0
      %v920 = vadd.f32 0.0, %v919
      %921 = vmatmul.bf16.gmra.mxu0 %v698
      %v922 = vpop.f32.mrf.mxu0
      %v923 = vadd.f32 0.0, %v922
      %v924 = vpop.f32.mrf.mxu0
      %v925 = vadd.f32 0.0, %v924
      %926 = vmatmul.bf16.gmra.mxu0 %v701
      %v927 = vpop.f32.mrf.mxu0
      %v928 = vadd.f32 0.0, %v927
      %v929 = vpop.f32.mrf.mxu0
      %v930 = vadd.f32 0.0, %v929
      %931 = vmatmul.bf16.gmra.mxu0 %v704
      %v932 = vpop.f32.mrf.mxu0
      %v933 = vadd.f32 0.0, %v932
      %v934 = vpop.f32.mrf.mxu0
      %v935 = vadd.f32 0.0, %v934
      %936 = vmatmul.bf16.gmra.mxu0 %v707
      %v937 = vpop.f32.mrf.mxu0
      %v938 = vadd.f32 0.0, %v937
      %v939 = vpop.f32.mrf.mxu0
      %v940 = vadd.f32 0.0, %v939
      %941 = vmatmul.bf16.gmra.mxu0 %v710
      %v942 = vpop.f32.mrf.mxu0
      %v943 = vadd.f32 0.0, %v942
      %v944 = vpop.f32.mrf.mxu0
      %v945 = vadd.f32 0.0, %v944
      %946 = vmatmul.bf16.gmra.mxu0 %v713
      %v947 = vpop.f32.mrf.mxu0
      %v948 = vadd.f32 0.0, %v947
      %v949 = vpop.f32.mrf.mxu0
      %v950 = vadd.f32 0.0, %v949
      %951 = vmatmul.bf16.gmra.mxu0 %v716
      %v952 = vpop.f32.mrf.mxu0
      %v953 = vadd.f32 0.0, %v952
      %v954 = vpop.f32.mrf.mxu0
      %v955 = vadd.f32 0.0, %v954
      %956 = vmatmul.bf16.gmra.mxu0 %v719
      %v957 = vpop.f32.mrf.mxu0
      %v958 = vadd.f32 0.0, %v957
      %v959 = vpop.f32.mrf.mxu0
      %v960 = vadd.f32 0.0, %v959
      %961 = vmatmul.bf16.gmra.mxu0 %v722
      %v962 = vpop.f32.mrf.mxu0
      %v963 = vadd.f32 0.0, %v962
      %v964 = vpop.f32.mrf.mxu0
      %v965 = vadd.f32 0.0, %v964
      %966 = vmatmul.bf16.gmra.mxu0 %v725
      %v967 = vpop.f32.mrf.mxu0
      %v968 = vadd.f32 0.0, %v967
      %v969 = vpop.f32.mrf.mxu0
      %v970 = vadd.f32 0.0, %v969
      %971 = vmatmul.bf16.gmra.mxu0 %v728
      %v972 = vpop.f32.mrf.mxu0
      %v973 = vadd.f32 0.0, %v972
      %v974 = vpop.f32.mrf.mxu0
      %v975 = vadd.f32 0.0, %v974
      %976 = vmatmul.bf16.gmra.mxu0 %v731
      %v977 = vpop.f32.mrf.mxu0
      %v978 = vadd.f32 0.0, %v977
      %v979 = vpop.f32.mrf.mxu0
      %v980 = vadd.f32 0.0, %v979
      %981 = vmatmul.bf16.gmra.mxu0 %v734
      %v982 = vpop.f32.mrf.mxu0
      %v983 = vadd.f32 0.0, %v982
      %v984 = vpop.f32.mrf.mxu0
      %v985 = vadd.f32 0.0, %v984
      %986 = vmatmul.bf16.gmra.mxu0 %v737
      %v987 = vpop.f32.mrf.mxu0
      %v988 = vadd.f32 0.0, %v987
      %v989 = vpop.f32.mrf.mxu0
      %v990 = vadd.f32 0.0, %v989
      %991 = vmatmul.bf16.gmra.mxu0 %v740
      %v992 = vpop.f32.mrf.mxu0
      %v993 = vadd.f32 0.0, %v992
      %v994 = vpop.f32.mrf.mxu0
      %v995 = vadd.f32 0.0, %v994
      %996 = vmatmul.bf16.gmra.mxu0 %v743
      %v997 = vpop.f32.mrf.mxu0
      %v998 = vadd.f32 0.0, %v997
      %v999 = vpop.f32.mrf.mxu0
      %v1000 = vadd.f32 0.0, %v999
      %1001 = vmatmul.bf16.gmra.mxu0 %v746
      %v1002 = vpop.f32.mrf.mxu0
      %v1003 = vadd.f32 0.0, %v1002
      %v1004 = vpop.f32.mrf.mxu0
      %v1005 = vadd.f32 0.0, %v1004
      %1006 = vmatmul.bf16.gmra.mxu0 %v749
      %v1007 = vpop.f32.mrf.mxu0
      %v1008 = vadd.f32 0.0, %v1007
      %v1009 = vpop.f32.mrf.mxu0
      %v1010 = vadd.f32 0.0, %v1009
      %1011 = vmatmul.bf16.gmra.mxu0 %v752
      %v1012 = vpop.f32.mrf.mxu0
      %v1013 = vadd.f32 0.0, %v1012
      %v1014 = vpop.f32.mrf.mxu0
      %v1015 = vadd.f32 0.0, %v1014
      %1016 = vmatmul.bf16.gmra.mxu0 %v755
      %v1017 = vpop.f32.mrf.mxu0
      %v1018 = vadd.f32 0.0, %v1017
      %v1019 = vpop.f32.mrf.mxu0
      %v1020 = vadd.f32 0.0, %v1019
      %1021 = vmatmul.bf16.gmra.mxu0 %v758
      %v1022 = vpop.f32.mrf.mxu0
      %v1023 = vadd.f32 0.0, %v1022
      %v1024 = vpop.f32.mrf.mxu0
      %v1025 = vadd.f32 0.0, %v1024
      %1026 = vmatmul.bf16.gmra.mxu0 %v761
      %v1027 = vpop.f32.mrf.mxu0
      %v1028 = vadd.f32 0.0, %v1027
      %v1029 = vpop.f32.mrf.mxu0
      %v1030 = vadd.f32 0.0, %v1029
      %1031 = vmatmul.bf16.gmra.mxu0 %v764
      %v1032 = vpop.f32.mrf.mxu0
      %v1033 = vadd.f32 0.0, %v1032
      %v1034 = vpop.f32.mrf.mxu0
      %v1035 = vadd.f32 0.0, %v1034
      %1036 = vmatmul.bf16.gmra.mxu0 %v767
      %v1037 = vpop.f32.mrf.mxu0
      %v1038 = vadd.f32 0.0, %v1037
      %v1039 = vpop.f32.mrf.mxu0
      %v1040 = vadd.f32 0.0, %v1039
      %1041 = vmatmul.bf16.gmra.mxu0 %v770
      %v1042 = vpop.f32.mrf.mxu0
      %v1043 = vadd.f32 0.0, %v1042
      %v1044 = vpop.f32.mrf.mxu0
      %v1045 = vadd.f32 0.0, %v1044
      %1046 = vmatmul.bf16.gmra.mxu0 %v773
      %v1047 = vpop.f32.mrf.mxu0
      %v1048 = vadd.f32 0.0, %v1047
      %v1049 = vpop.f32.mrf.mxu0
      %v1050 = vadd.f32 0.0, %v1049
      %1051 = vmatmul.bf16.gmra.mxu0 %v776
      %v1052 = vpop.f32.mrf.mxu0
      %v1053 = vadd.f32 0.0, %v1052
      %v1054 = vpop.f32.mrf.mxu0
      %v1055 = vadd.f32 0.0, %v1054
      %1056 = vmatmul.bf16.gmra.mxu0 %v779
      %v1057 = vpop.f32.mrf.mxu0
      %v1058 = vadd.f32 0.0, %v1057
      %v1059 = vpop.f32.mrf.mxu0
      %v1060 = vadd.f32 0.0, %v1059
      %1061 = vmatmul.bf16.gmra.mxu0 %v782
      %v1062 = vpop.f32.mrf.mxu0
      %v1063 = vadd.f32 0.0, %v1062
      %v1064 = vpop.f32.mrf.mxu0
      %v1065 = vadd.f32 0.0, %v1064
      %1066 = vmatmul.bf16.gmra.mxu0 %v785
      %v1067 = vpop.f32.mrf.mxu0
      %v1068 = vadd.f32 0.0, %v1067
      %v1069 = vpop.f32.mrf.mxu0
      %v1070 = vadd.f32 0.0, %v1069
      %1071 = vmatmul.bf16.gmra.mxu0 %v788
      %v1072 = vpop.f32.mrf.mxu0
      %v1073 = vadd.f32 0.0, %v1072
      %v1074 = vpop.f32.mrf.mxu0
      %v1075 = vadd.f32 0.0, %v1074
      %1076 = vmatmul.bf16.gmra.mxu0 %v791
      %v1077 = vpop.f32.mrf.mxu0
      %v1078 = vadd.f32 0.0, %v1077
      %v1079 = vpop.f32.mrf.mxu0
      %v1080 = vadd.f32 0.0, %v1079
      %1081 = vmatmul.bf16.gmra.mxu0 %v794
      %v1082 = vpop.f32.mrf.mxu0
      %v1083 = vadd.f32 0.0, %v1082
      %v1084 = vpop.f32.mrf.mxu0
      %v1085 = vadd.f32 0.0, %v1084
      %1086 = vmatmul.bf16.gmra.mxu0 %v797
      %v1087 = vpop.f32.mrf.mxu0
      %v1088 = vadd.f32 0.0, %v1087
      %v1089 = vpop.f32.mrf.mxu0
      %v1090 = vadd.f32 0.0, %v1089
      %1091 = vmatmul.bf16.gmra.mxu0 %v800
      %v1092 = vpop.f32.mrf.mxu0
      %v1093 = vadd.f32 0.0, %v1092
      %v1094 = vpop.f32.mrf.mxu0
      %v1095 = vadd.f32 0.0, %v1094
      %1096 = vmatmul.bf16.gmra.mxu0 %v803
      %v1097 = vpop.f32.mrf.mxu0
      %v1098 = vadd.f32 0.0, %v1097
      %v1099 = vpop.f32.mrf.mxu0
      %v1100 = vadd.f32 0.0, %v1099
      %1101 = vmatmul.bf16.gmra.mxu0 %v806
      %v1102 = vpop.f32.mrf.mxu0
      %v1103 = vadd.f32 0.0, %v1102
      %v1104 = vpop.f32.mrf.mxu0
      %v1105 = vadd.f32 0.0, %v1104
      %1106 = vmatmul.bf16.gmra.mxu0 %v809
      %v1107 = vpop.f32.mrf.mxu0
      %v1108 = vadd.f32 0.0, %v1107
      %v1109 = vpop.f32.mrf.mxu0
      %v1110 = vadd.f32 0.0, %v1109
      %1111 = vmatmul.bf16.gmra.mxu0 %v812
      %v1112 = vpop.f32.mrf.mxu0
      %v1113 = vadd.f32 0.0, %v1112
      %v1114 = vpop.f32.mrf.mxu0
      %v1115 = vadd.f32 0.0, %v1114
      %1116 = vmatmul.bf16.gmra.mxu0 %v815
      %v1117 = vpop.f32.mrf.mxu0
      %v1118 = vadd.f32 0.0, %v1117
      %v1119 = vpop.f32.mrf.mxu0
      %v1120 = vadd.f32 0.0, %v1119
      %1121 = vmatmul.bf16.gmra.mxu0 %v818
      %v1122 = vpop.f32.mrf.mxu0
      %v1123 = vadd.f32 0.0, %v1122
      %v1124 = vpop.f32.mrf.mxu0
      %v1125 = vadd.f32 0.0, %v1124
      %1126 = vmatmul.bf16.gmra.mxu0 %v821
      %v1127 = vpop.f32.mrf.mxu0
      %v1128 = vadd.f32 0.0, %v1127
      %v1129 = vpop.f32.mrf.mxu0
      %v1130 = vadd.f32 0.0, %v1129
      %1131 = vmatmul.bf16.gmra.mxu0 %v824
      %v1132 = vpop.f32.mrf.mxu0
      %v1133 = vadd.f32 0.0, %v1132
      %v1134 = vpop.f32.mrf.mxu0
      %v1135 = vadd.f32 0.0, %v1134
      %1136 = vmatmul.bf16.gmra.mxu0 %v827
      %v1137 = vpop.f32.mrf.mxu0
      %v1138 = vadd.f32 0.0, %v1137
      %v1139 = vpop.f32.mrf.mxu0
      %v1140 = vadd.f32 0.0, %v1139
      %1141 = vmatmul.bf16.gmra.mxu0 %v830
      %v1142 = vpop.f32.mrf.mxu0
      %v1143 = vadd.f32 0.0, %v1142
      %v1144 = vpop.f32.mrf.mxu0
      %v1145 = vadd.f32 0.0, %v1144
      %1146 = vmatmul.bf16.gmra.mxu0 %v833
      %v1147 = vpop.f32.mrf.mxu0
      %v1148 = vadd.f32 0.0, %v1147
      %v1149 = vpop.f32.mrf.mxu0
      %v1150 = vadd.f32 0.0, %v1149
      %1151 = vmatmul.bf16.gmra.mxu0 %v836
      %v1152 = vpop.f32.mrf.mxu0
      %v1153 = vadd.f32 0.0, %v1152
      %v1154 = vpop.f32.mrf.mxu0
      %v1155 = vadd.f32 0.0, %v1154
      %1156 = vmatmul.bf16.gmra.mxu0 %v839
      %v1157 = vpop.f32.mrf.mxu0
      %v1158 = vadd.f32 0.0, %v1157
      %v1159 = vpop.f32.mrf.mxu0
      %v1160 = vadd.f32 0.0, %v1159
      %1161 = vmatmul.bf16.gmra.mxu0 %v842
      %v1162 = vpop.f32.mrf.mxu0
      %v1163 = vadd.f32 0.0, %v1162
      %v1164 = vpop.f32.mrf.mxu0
      %v1165 = vadd.f32 0.0, %v1164
      %1166 = vmatmul.bf16.gmra.mxu0 %v845
      %v1167 = vpop.f32.mrf.mxu0
      %v1168 = vadd.f32 0.0, %v1167
      %v1169 = vpop.f32.mrf.mxu0
      %v1170 = vadd.f32 0.0, %v1169
      %1171 = vmatmul.bf16.gmra.mxu0 %v848
      %v1172 = vpop.f32.mrf.mxu0
      %v1173 = vadd.f32 0.0, %v1172
      %v1174 = vpop.f32.mrf.mxu0
      %v1175 = vadd.f32 0.0, %v1174
      %1176 = vmatmul.bf16.gmra.mxu0 %v851
      %v1177 = vpop.f32.mrf.mxu0
      %v1178 = vadd.f32 0.0, %v1177
      %v1179 = vpop.f32.mrf.mxu0
      %v1180 = vadd.f32 0.0, %v1179
      %1181 = vdwg.mxu0
      %v1182 = vld [vmem:[%s2] sm:$0x1]
      %v1184 = vperm.slane %v1182, 0
      %v1186 = vmul.f32 %v863, %v1184
      %v1187 = vmul.f32 %v865, %v1184
      %v1188 = vmul.f32 %v868, %v1184
      %v1189 = vmul.f32 %v870, %v1184
      %v1190 = vmul.f32 %v873, %v1184
      %v1191 = vmul.f32 %v875, %v1184
      %v1192 = vmul.f32 %v878, %v1184
      %v1193 = vmul.f32 %v880, %v1184
      %v1194 = vmul.f32 %v883, %v1184
      %v1195 = vmul.f32 %v885, %v1184
      %v1196 = vmul.f32 %v888, %v1184
      %v1197 = vmul.f32 %v890, %v1184
      %v1198 = vmul.f32 %v893, %v1184
      %v1199 = vmul.f32 %v895, %v1184
      %v1200 = vmul.f32 %v898, %v1184
      %v1201 = vmul.f32 %v900, %v1184
      %v1202 = vmul.f32 %v903, %v1184
      %v1203 = vmul.f32 %v905, %v1184
      %v1204 = vmul.f32 %v908, %v1184
      %v1205 = vmul.f32 %v910, %v1184
      %v1206 = vmul.f32 %v913, %v1184
      %v1207 = vmul.f32 %v915, %v1184
      %v1208 = vmul.f32 %v918, %v1184
      %v1209 = vmul.f32 %v920, %v1184
      %v1210 = vmul.f32 %v923, %v1184
      %v1211 = vmul.f32 %v925, %v1184
      %v1212 = vmul.f32 %v928, %v1184
      %v1213 = vmul.f32 %v930, %v1184
      %v1214 = vmul.f32 %v933, %v1184
      %v1215 = vmul.f32 %v935, %v1184
      %v1216 = vmul.f32 %v938, %v1184
      %v1217 = vmul.f32 %v940, %v1184
      %v1218 = vmul.f32 %v943, %v1184
      %v1219 = vmul.f32 %v945, %v1184
      %v1220 = vmul.f32 %v948, %v1184
      %v1221 = vmul.f32 %v950, %v1184
      %v1222 = vmul.f32 %v953, %v1184
      %v1223 = vmul.f32 %v955, %v1184
      %v1224 = vmul.f32 %v958, %v1184
      %v1225 = vmul.f32 %v960, %v1184
      %v1226 = vmul.f32 %v963, %v1184
      %v1227 = vmul.f32 %v965, %v1184
      %v1228 = vmul.f32 %v968, %v1184
      %v1229 = vmul.f32 %v970, %v1184
      %v1230 = vmul.f32 %v973, %v1184
      %v1231 = vmul.f32 %v975, %v1184
      %v1232 = vmul.f32 %v978, %v1184
      %v1233 = vmul.f32 %v980, %v1184
      %v1234 = vmul.f32 %v983, %v1184
      %v1235 = vmul.f32 %v985, %v1184
      %v1236 = vmul.f32 %v988, %v1184
      %v1237 = vmul.f32 %v990, %v1184
      %v1238 = vmul.f32 %v993, %v1184
      %v1239 = vmul.f32 %v995, %v1184
      %v1240 = vmul.f32 %v998, %v1184
      %v1241 = vmul.f32 %v1000, %v1184
      %v1242 = vmul.f32 %v1003, %v1184
      %v1243 = vmul.f32 %v1005, %v1184
      %v1244 = vmul.f32 %v1008, %v1184
      %v1245 = vmul.f32 %v1010, %v1184
      %v1246 = vmul.f32 %v1013, %v1184
      %v1247 = vmul.f32 %v1015, %v1184
      %v1248 = vmul.f32 %v1018, %v1184
      %v1249 = vmul.f32 %v1020, %v1184
      %v1250 = vmul.f32 %v1023, %v1184
      %v1251 = vmul.f32 %v1025, %v1184
      %v1252 = vmul.f32 %v1028, %v1184
      %v1253 = vmul.f32 %v1030, %v1184
      %v1254 = vmul.f32 %v1033, %v1184
      %v1255 = vmul.f32 %v1035, %v1184
      %v1256 = vmul.f32 %v1038, %v1184
      %v1257 = vmul.f32 %v1040, %v1184
      %v1258 = vmul.f32 %v1043, %v1184
      %v1259 = vmul.f32 %v1045, %v1184
      %v1260 = vmul.f32 %v1048, %v1184
      %v1261 = vmul.f32 %v1050, %v1184
      %v1262 = vmul.f32 %v1053, %v1184
      %v1263 = vmul.f32 %v1055, %v1184
      %v1264 = vmul.f32 %v1058, %v1184
      %v1265 = vmul.f32 %v1060, %v1184
      %v1266 = vmul.f32 %v1063, %v1184
      %v1267 = vmul.f32 %v1065, %v1184
      %v1268 = vmul.f32 %v1068, %v1184
      %v1269 = vmul.f32 %v1070, %v1184
      %v1270 = vmul.f32 %v1073, %v1184
      %v1271 = vmul.f32 %v1075, %v1184
      %v1272 = vmul.f32 %v1078, %v1184
      %v1273 = vmul.f32 %v1080, %v1184
      %v1274 = vmul.f32 %v1083, %v1184
      %v1275 = vmul.f32 %v1085, %v1184
      %v1276 = vmul.f32 %v1088, %v1184
      %v1277 = vmul.f32 %v1090, %v1184
      %v1278 = vmul.f32 %v1093, %v1184
      %v1279 = vmul.f32 %v1095, %v1184
      %v1280 = vmul.f32 %v1098, %v1184
      %v1281 = vmul.f32 %v1100, %v1184
      %v1282 = vmul.f32 %v1103, %v1184
      %v1283 = vmul.f32 %v1105, %v1184
      %v1284 = vmul.f32 %v1108, %v1184
      %v1285 = vmul.f32 %v1110, %v1184
      %v1286 = vmul.f32 %v1113, %v1184
      %v1287 = vmul.f32 %v1115, %v1184
      %v1288 = vmul.f32 %v1118, %v1184
      %v1289 = vmul.f32 %v1120, %v1184
      %v1290 = vmul.f32 %v1123, %v1184
      %v1291 = vmul.f32 %v1125, %v1184
      %v1292 = vmul.f32 %v1128, %v1184
      %v1293 = vmul.f32 %v1130, %v1184
      %v1294 = vmul.f32 %v1133, %v1184
      %v1295 = vmul.f32 %v1135, %v1184
      %v1296 = vmul.f32 %v1138, %v1184
      %v1297 = vmul.f32 %v1140, %v1184
      %v1298 = vmul.f32 %v1143, %v1184
      %v1299 = vmul.f32 %v1145, %v1184
      %v1300 = vmul.f32 %v1148, %v1184
      %v1301 = vmul.f32 %v1150, %v1184
      %v1302 = vmul.f32 %v1153, %v1184
      %v1303 = vmul.f32 %v1155, %v1184
      %v1304 = vmul.f32 %v1158, %v1184
      %v1305 = vmul.f32 %v1160, %v1184
      %v1306 = vmul.f32 %v1163, %v1184
      %v1307 = vmul.f32 %v1165, %v1184
      %v1308 = vmul.f32 %v1168, %v1184
      %v1309 = vmul.f32 %v1170, %v1184
      %v1310 = vmul.f32 %v1173, %v1184
      %v1311 = vmul.f32 %v1175, %v1184
      %v1312 = vmul.f32 %v1178, %v1184
      %v1313 = vmul.f32 %v1180, %v1184
      %v1314 = vld [vmem:[%s3] sm:$0x1]
      %v1316 = vperm.slane %v1314, 0
      %v1318 = vadd.f32 %v1186, %v1316
      %v1319 = vadd.f32 %v1187, %v1316
      %v1320 = vadd.f32 %v1188, %v1316
      %v1321 = vadd.f32 %v1189, %v1316
      %v1322 = vadd.f32 %v1190, %v1316
      %v1323 = vadd.f32 %v1191, %v1316
      %v1324 = vadd.f32 %v1192, %v1316
      %v1325 = vadd.f32 %v1193, %v1316
      %v1326 = vadd.f32 %v1194, %v1316
      %v1327 = vadd.f32 %v1195, %v1316
      %v1328 = vadd.f32 %v1196, %v1316
      %v1329 = vadd.f32 %v1197, %v1316
      %v1330 = vadd.f32 %v1198, %v1316
      %v1331 = vadd.f32 %v1199, %v1316
      %v1332 = vadd.f32 %v1200, %v1316
      %v1333 = vadd.f32 %v1201, %v1316
      %v1334 = vadd.f32 %v1202, %v1316
      %v1335 = vadd.f32 %v1203, %v1316
      %v1336 = vadd.f32 %v1204, %v1316
      %v1337 = vadd.f32 %v1205, %v1316
      %v1338 = vadd.f32 %v1206, %v1316
      %v1339 = vadd.f32 %v1207, %v1316
      %v1340 = vadd.f32 %v1208, %v1316
      %v1341 = vadd.f32 %v1209, %v1316
      %v1342 = vadd.f32 %v1210, %v1316
      %v1343 = vadd.f32 %v1211, %v1316
      %v1344 = vadd.f32 %v1212, %v1316
      %v1345 = vadd.f32 %v1213, %v1316
      %v1346 = vadd.f32 %v1214, %v1316
      %v1347 = vadd.f32 %v1215, %v1316
      %v1348 = vadd.f32 %v1216, %v1316
      %v1349 = vadd.f32 %v1217, %v1316
      %v1350 = vadd.f32 %v1218, %v1316
      %v1351 = vadd.f32 %v1219, %v1316
      %v1352 = vadd.f32 %v1220, %v1316
      %v1353 = vadd.f32 %v1221, %v1316
      %v1354 = vadd.f32 %v1222, %v1316
      %v1355 = vadd.f32 %v1223, %v1316
      %v1356 = vadd.f32 %v1224, %v1316
      %v1357 = vadd.f32 %v1225, %v1316
      %v1358 = vadd.f32 %v1226, %v1316
      %v1359 = vadd.f32 %v1227, %v1316
      %v1360 = vadd.f32 %v1228, %v1316
      %v1361 = vadd.f32 %v1229, %v1316
      %v1362 = vadd.f32 %v1230, %v1316
      %v1363 = vadd.f32 %v1231, %v1316
      %v1364 = vadd.f32 %v1232, %v1316
      %v1365 = vadd.f32 %v1233, %v1316
      %v1366 = vadd.f32 %v1234, %v1316
      %v1367 = vadd.f32 %v1235, %v1316
      %v1368 = vadd.f32 %v1236, %v1316
      %v1369 = vadd.f32 %v1237, %v1316
      %v1370 = vadd.f32 %v1238, %v1316
      %v1371 = vadd.f32 %v1239, %v1316
      %v1372 = vadd.f32 %v1240, %v1316
      %v1373 = vadd.f32 %v1241, %v1316
      %v1374 = vadd.f32 %v1242, %v1316
      %v1375 = vadd.f32 %v1243, %v1316
      %v1376 = vadd.f32 %v1244, %v1316
      %v1377 = vadd.f32 %v1245, %v1316
      %v1378 = vadd.f32 %v1246, %v1316
      %v1379 = vadd.f32 %v1247, %v1316
      %v1380 = vadd.f32 %v1248, %v1316
      %v1381 = vadd.f32 %v1249, %v1316
      %v1382 = vadd.f32 %v1250, %v1316
      %v1383 = vadd.f32 %v1251, %v1316
      %v1384 = vadd.f32 %v1252, %v1316
      %v1385 = vadd.f32 %v1253, %v1316
      %v1386 = vadd.f32 %v1254, %v1316
      %v1387 = vadd.f32 %v1255, %v1316
      %v1388 = vadd.f32 %v1256, %v1316
      %v1389 = vadd.f32 %v1257, %v1316
      %v1390 = vadd.f32 %v1258, %v1316
      %v1391 = vadd.f32 %v1259, %v1316
      %v1392 = vadd.f32 %v1260, %v1316
      %v1393 = vadd.f32 %v1261, %v1316
      %v1394 = vadd.f32 %v1262, %v1316
      %v1395 = vadd.f32 %v1263, %v1316
      %v1396 = vadd.f32 %v1264, %v1316
      %v1397 = vadd.f32 %v1265, %v1316
      %v1398 = vadd.f32 %v1266, %v1316
      %v1399 = vadd.f32 %v1267, %v1316
      %v1400 = vadd.f32 %v1268, %v1316
      %v1401 = vadd.f32 %v1269, %v1316
      %v1402 = vadd.f32 %v1270, %v1316
      %v1403 = vadd.f32 %v1271, %v1316
      %v1404 = vadd.f32 %v1272, %v1316
      %v1405 = vadd.f32 %v1273, %v1316
      %v1406 = vadd.f32 %v1274, %v1316
      %v1407 = vadd.f32 %v1275, %v1316
      %v1408 = vadd.f32 %v1276, %v1316
      %v1409 = vadd.f32 %v1277, %v1316
      %v1410 = vadd.f32 %v1278, %v1316
      %v1411 = vadd.f32 %v1279, %v1316
      %v1412 = vadd.f32 %v1280, %v1316
      %v1413 = vadd.f32 %v1281, %v1316
      %v1414 = vadd.f32 %v1282, %v1316
      %v1415 = vadd.f32 %v1283, %v1316
      %v1416 = vadd.f32 %v1284, %v1316
      %v1417 = vadd.f32 %v1285, %v1316
      %v1418 = vadd.f32 %v1286, %v1316
      %v1419 = vadd.f32 %v1287, %v1316
      %v1420 = vadd.f32 %v1288, %v1316
      %v1421 = vadd.f32 %v1289, %v1316
      %v1422 = vadd.f32 %v1290, %v1316
      %v1423 = vadd.f32 %v1291, %v1316
      %v1424 = vadd.f32 %v1292, %v1316
      %v1425 = vadd.f32 %v1293, %v1316
      %v1426 = vadd.f32 %v1294, %v1316
      %v1427 = vadd.f32 %v1295, %v1316
      %v1428 = vadd.f32 %v1296, %v1316
      %v1429 = vadd.f32 %v1297, %v1316
      %v1430 = vadd.f32 %v1298, %v1316
      %v1431 = vadd.f32 %v1299, %v1316
      %v1432 = vadd.f32 %v1300, %v1316
      %v1433 = vadd.f32 %v1301, %v1316
      %v1434 = vadd.f32 %v1302, %v1316
      %v1435 = vadd.f32 %v1303, %v1316
      %v1436 = vadd.f32 %v1304, %v1316
      %v1437 = vadd.f32 %v1305, %v1316
      %v1438 = vadd.f32 %v1306, %v1316
      %v1439 = vadd.f32 %v1307, %v1316
      %v1440 = vadd.f32 %v1308, %v1316
      %v1441 = vadd.f32 %v1309, %v1316
      %v1442 = vadd.f32 %v1310, %v1316
      %v1443 = vadd.f32 %v1311, %v1316
      %v1444 = vadd.f32 %v1312, %v1316
      %v1445 = vadd.f32 %v1313, %v1316
      %v1446 = vmax.f32 %v1318, 0.0
      %v1447 = vmax.f32 %v1319, 0.0
      %v1448 = vmax.f32 %v1320, 0.0
      %v1449 = vmax.f32 %v1321, 0.0
      %v1450 = vmax.f32 %v1322, 0.0
      %v1451 = vmax.f32 %v1323, 0.0
      %v1452 = vmax.f32 %v1324, 0.0
      %v1453 = vmax.f32 %v1325, 0.0
      %v1454 = vmax.f32 %v1326, 0.0
      %v1455 = vmax.f32 %v1327, 0.0
      %v1456 = vmax.f32 %v1328, 0.0
      %v1457 = vmax.f32 %v1329, 0.0
      %v1458 = vmax.f32 %v1330, 0.0
      %v1459 = vmax.f32 %v1331, 0.0
      %v1460 = vmax.f32 %v1332, 0.0
      %v1461 = vmax.f32 %v1333, 0.0
      %v1462 = vmax.f32 %v1334, 0.0
      %v1463 = vmax.f32 %v1335, 0.0
      %v1464 = vmax.f32 %v1336, 0.0
      %v1465 = vmax.f32 %v1337, 0.0
      %v1466 = vmax.f32 %v1338, 0.0
      %v1467 = vmax.f32 %v1339, 0.0
      %v1468 = vmax.f32 %v1340, 0.0
      %v1469 = vmax.f32 %v1341, 0.0
      %v1470 = vmax.f32 %v1342, 0.0
      %v1471 = vmax.f32 %v1343, 0.0
      %v1472 = vmax.f32 %v1344, 0.0
      %v1473 = vmax.f32 %v1345, 0.0
      %v1474 = vmax.f32 %v1346, 0.0
      %v1475 = vmax.f32 %v1347, 0.0
      %v1476 = vmax.f32 %v1348, 0.0
      %v1477 = vmax.f32 %v1349, 0.0
      %v1478 = vmax.f32 %v1350, 0.0
      %v1479 = vmax.f32 %v1351, 0.0
      %v1480 = vmax.f32 %v1352, 0.0
      %v1481 = vmax.f32 %v1353, 0.0
      %v1482 = vmax.f32 %v1354, 0.0
      %v1483 = vmax.f32 %v1355, 0.0
      %v1484 = vmax.f32 %v1356, 0.0
      %v1485 = vmax.f32 %v1357, 0.0
      %v1486 = vmax.f32 %v1358, 0.0
      %v1487 = vmax.f32 %v1359, 0.0
      %v1488 = vmax.f32 %v1360, 0.0
      %v1489 = vmax.f32 %v1361, 0.0
      %v1490 = vmax.f32 %v1362, 0.0
      %v1491 = vmax.f32 %v1363, 0.0
      %v1492 = vmax.f32 %v1364, 0.0
      %v1493 = vmax.f32 %v1365, 0.0
      %v1494 = vmax.f32 %v1366, 0.0
      %v1495 = vmax.f32 %v1367, 0.0
      %v1496 = vmax.f32 %v1368, 0.0
      %v1497 = vmax.f32 %v1369, 0.0
      %v1498 = vmax.f32 %v1370, 0.0
      %v1499 = vmax.f32 %v1371, 0.0
      %v1500 = vmax.f32 %v1372, 0.0
      %v1501 = vmax.f32 %v1373, 0.0
      %v1502 = vmax.f32 %v1374, 0.0
      %v1503 = vmax.f32 %v1375, 0.0
      %v1504 = vmax.f32 %v1376, 0.0
      %v1505 = vmax.f32 %v1377, 0.0
      %v1506 = vmax.f32 %v1378, 0.0
      %v1507 = vmax.f32 %v1379, 0.0
      %v1508 = vmax.f32 %v1380, 0.0
      %v1509 = vmax.f32 %v1381, 0.0
      %v1510 = vmax.f32 %v1382, 0.0
      %v1511 = vmax.f32 %v1383, 0.0
      %v1512 = vmax.f32 %v1384, 0.0
      %v1513 = vmax.f32 %v1385, 0.0
      %v1514 = vmax.f32 %v1386, 0.0
      %v1515 = vmax.f32 %v1387, 0.0
      %v1516 = vmax.f32 %v1388, 0.0
      %v1517 = vmax.f32 %v1389, 0.0
      %v1518 = vmax.f32 %v1390, 0.0
      %v1519 = vmax.f32 %v1391, 0.0
      %v1520 = vmax.f32 %v1392, 0.0
      %v1521 = vmax.f32 %v1393, 0.0
      %v1522 = vmax.f32 %v1394, 0.0
      %v1523 = vmax.f32 %v1395, 0.0
      %v1524 = vmax.f32 %v1396, 0.0
      %v1525 = vmax.f32 %v1397, 0.0
      %v1526 = vmax.f32 %v1398, 0.0
      %v1527 = vmax.f32 %v1399, 0.0
      %v1528 = vmax.f32 %v1400, 0.0
      %v1529 = vmax.f32 %v1401, 0.0
      %v1530 = vmax.f32 %v1402, 0.0
      %v1531 = vmax.f32 %v1403, 0.0
      %v1532 = vmax.f32 %v1404, 0.0
      %v1533 = vmax.f32 %v1405, 0.0
      %v1534 = vmax.f32 %v1406, 0.0
      %v1535 = vmax.f32 %v1407, 0.0
      %v1536 = vmax.f32 %v1408, 0.0
      %v1537 = vmax.f32 %v1409, 0.0
      %v1538 = vmax.f32 %v1410, 0.0
      %v1539 = vmax.f32 %v1411, 0.0
      %v1540 = vmax.f32 %v1412, 0.0
      %v1541 = vmax.f32 %v1413, 0.0
      %v1542 = vmax.f32 %v1414, 0.0
      %v1543 = vmax.f32 %v1415, 0.0
      %v1544 = vmax.f32 %v1416, 0.0
      %v1545 = vmax.f32 %v1417, 0.0
      %v1546 = vmax.f32 %v1418, 0.0
      %v1547 = vmax.f32 %v1419, 0.0
      %v1548 = vmax.f32 %v1420, 0.0
      %v1549 = vmax.f32 %v1421, 0.0
      %v1550 = vmax.f32 %v1422, 0.0
      %v1551 = vmax.f32 %v1423, 0.0
      %v1552 = vmax.f32 %v1424, 0.0
      %v1553 = vmax.f32 %v1425, 0.0
      %v1554 = vmax.f32 %v1426, 0.0
      %v1555 = vmax.f32 %v1427, 0.0
      %v1556 = vmax.f32 %v1428, 0.0
      %v1557 = vmax.f32 %v1429, 0.0
      %v1558 = vmax.f32 %v1430, 0.0
      %v1559 = vmax.f32 %v1431, 0.0
      %v1560 = vmax.f32 %v1432, 0.0
      %v1561 = vmax.f32 %v1433, 0.0
      %v1562 = vmax.f32 %v1434, 0.0
      %v1563 = vmax.f32 %v1435, 0.0
      %v1564 = vmax.f32 %v1436, 0.0
      %v1565 = vmax.f32 %v1437, 0.0
      %v1566 = vmax.f32 %v1438, 0.0
      %v1567 = vmax.f32 %v1439, 0.0
      %v1568 = vmax.f32 %v1440, 0.0
      %v1569 = vmax.f32 %v1441, 0.0
      %v1570 = vmax.f32 %v1442, 0.0
      %v1571 = vmax.f32 %v1443, 0.0
      %v1572 = vmax.f32 %v1444, 0.0
      %v1573 = vmax.f32 %v1445, 0.0
      %v1574 = vpack.c.bf16 %v1446, %v1446
      %v1575 = vpack.c.bf16 %v1447, %v1447
      %v1576 = vpack.c.bf16 %v1448, %v1448
      %v1577 = vpack.c.bf16 %v1449, %v1449
      %v1578 = vpack.c.bf16 %v1450, %v1450
      %v1579 = vpack.c.bf16 %v1451, %v1451
      %v1580 = vpack.c.bf16 %v1452, %v1452
      %v1581 = vpack.c.bf16 %v1453, %v1453
      %v1582 = vpack.c.bf16 %v1454, %v1454
      %v1583 = vpack.c.bf16 %v1455, %v1455
      %v1584 = vpack.c.bf16 %v1456, %v1456
      %v1585 = vpack.c.bf16 %v1457, %v1457
      %v1586 = vpack.c.bf16 %v1458, %v1458
      %v1587 = vpack.c.bf16 %v1459, %v1459
      %v1588 = vpack.c.bf16 %v1460, %v1460
      %v1589 = vpack.c.bf16 %v1461, %v1461
      %v1590 = vpack.c.bf16 %v1462, %v1462
      %v1591 = vpack.c.bf16 %v1463, %v1463
      %v1592 = vpack.c.bf16 %v1464, %v1464
      %v1593 = vpack.c.bf16 %v1465, %v1465
      %v1594 = vpack.c.bf16 %v1466, %v1466
      %v1595 = vpack.c.bf16 %v1467, %v1467
      %v1596 = vpack.c.bf16 %v1468, %v1468
      %v1597 = vpack.c.bf16 %v1469, %v1469
      %v1598 = vpack.c.bf16 %v1470, %v1470
      %v1599 = vpack.c.bf16 %v1471, %v1471
      %v1600 = vpack.c.bf16 %v1472, %v1472
      %v1601 = vpack.c.bf16 %v1473, %v1473
      %v1602 = vpack.c.bf16 %v1474, %v1474
      %v1603 = vpack.c.bf16 %v1475, %v1475
      %v1604 = vpack.c.bf16 %v1476, %v1476
      %v1605 = vpack.c.bf16 %v1477, %v1477
      %v1606 = vpack.c.bf16 %v1478, %v1478
      %v1607 = vpack.c.bf16 %v1479, %v1479
      %v1608 = vpack.c.bf16 %v1480, %v1480
      %v1609 = vpack.c.bf16 %v1481, %v1481
      %v1610 = vpack.c.bf16 %v1482, %v1482
      %v1611 = vpack.c.bf16 %v1483, %v1483
      %v1612 = vpack.c.bf16 %v1484, %v1484
      %v1613 = vpack.c.bf16 %v1485, %v1485
      %v1614 = vpack.c.bf16 %v1486, %v1486
      %v1615 = vpack.c.bf16 %v1487, %v1487
      %v1616 = vpack.c.bf16 %v1488, %v1488
      %v1617 = vpack.c.bf16 %v1489, %v1489
      %v1618 = vpack.c.bf16 %v1490, %v1490
      %v1619 = vpack.c.bf16 %v1491, %v1491
      %v1620 = vpack.c.bf16 %v1492, %v1492
      %v1621 = vpack.c.bf16 %v1493, %v1493
      %v1622 = vpack.c.bf16 %v1494, %v1494
      %v1623 = vpack.c.bf16 %v1495, %v1495
      %v1624 = vpack.c.bf16 %v1496, %v1496
      %v1625 = vpack.c.bf16 %v1497, %v1497
      %v1626 = vpack.c.bf16 %v1498, %v1498
      %v1627 = vpack.c.bf16 %v1499, %v1499
      %v1628 = vpack.c.bf16 %v1500, %v1500
      %v1629 = vpack.c.bf16 %v1501, %v1501
      %v1630 = vpack.c.bf16 %v1502, %v1502
      %v1631 = vpack.c.bf16 %v1503, %v1503
      %v1632 = vpack.c.bf16 %v1504, %v1504
      %v1633 = vpack.c.bf16 %v1505, %v1505
      %v1634 = vpack.c.bf16 %v1506, %v1506
      %v1635 = vpack.c.bf16 %v1507, %v1507
      %v1636 = vpack.c.bf16 %v1508, %v1508
      %v1637 = vpack.c.bf16 %v1509, %v1509
      %v1638 = vpack.c.bf16 %v1510, %v1510
      %v1639 = vpack.c.bf16 %v1511, %v1511
      %v1640 = vpack.c.bf16 %v1512, %v1512
      %v1641 = vpack.c.bf16 %v1513, %v1513
      %v1642 = vpack.c.bf16 %v1514, %v1514
      %v1643 = vpack.c.bf16 %v1515, %v1515
      %v1644 = vpack.c.bf16 %v1516, %v1516
      %v1645 = vpack.c.bf16 %v1517, %v1517
      %v1646 = vpack.c.bf16 %v1518, %v1518
      %v1647 = vpack.c.bf16 %v1519, %v1519
      %v1648 = vpack.c.bf16 %v1520, %v1520
      %v1649 = vpack.c.bf16 %v1521, %v1521
      %v1650 = vpack.c.bf16 %v1522, %v1522
      %v1651 = vpack.c.bf16 %v1523, %v1523
      %v1652 = vpack.c.bf16 %v1524, %v1524
      %v1653 = vpack.c.bf16 %v1525, %v1525
      %v1654 = vpack.c.bf16 %v1526, %v1526
      %v1655 = vpack.c.bf16 %v1527, %v1527
      %v1656 = vpack.c.bf16 %v1528, %v1528
      %v1657 = vpack.c.bf16 %v1529, %v1529
      %v1658 = vpack.c.bf16 %v1530, %v1530
      %v1659 = vpack.c.bf16 %v1531, %v1531
      %v1660 = vpack.c.bf16 %v1532, %v1532
      %v1661 = vpack.c.bf16 %v1533, %v1533
      %v1662 = vpack.c.bf16 %v1534, %v1534
      %v1663 = vpack.c.bf16 %v1535, %v1535
      %v1664 = vpack.c.bf16 %v1536, %v1536
      %v1665 = vpack.c.bf16 %v1537, %v1537
      %v1666 = vpack.c.bf16 %v1538, %v1538
      %v1667 = vpack.c.bf16 %v1539, %v1539
      %v1668 = vpack.c.bf16 %v1540, %v1540
      %v1669 = vpack.c.bf16 %v1541, %v1541
      %v1670 = vpack.c.bf16 %v1542, %v1542
      %v1671 = vpack.c.bf16 %v1543, %v1543
      %v1672 = vpack.c.bf16 %v1544, %v1544
      %v1673 = vpack.c.bf16 %v1545, %v1545
      %v1674 = vpack.c.bf16 %v1546, %v1546
      %v1675 = vpack.c.bf16 %v1547, %v1547
      %v1676 = vpack.c.bf16 %v1548, %v1548
      %v1677 = vpack.c.bf16 %v1549, %v1549
      %v1678 = vpack.c.bf16 %v1550, %v1550
      %v1679 = vpack.c.bf16 %v1551, %v1551
      %v1680 = vpack.c.bf16 %v1552, %v1552
      %v1681 = vpack.c.bf16 %v1553, %v1553
      %v1682 = vpack.c.bf16 %v1554, %v1554
      %v1683 = vpack.c.bf16 %v1555, %v1555
      %v1684 = vpack.c.bf16 %v1556, %v1556
      %v1685 = vpack.c.bf16 %v1557, %v1557
      %v1686 = vpack.c.bf16 %v1558, %v1558
      %v1687 = vpack.c.bf16 %v1559, %v1559
      %v1688 = vpack.c.bf16 %v1560, %v1560
      %v1689 = vpack.c.bf16 %v1561, %v1561
      %v1690 = vpack.c.bf16 %v1562, %v1562
      %v1691 = vpack.c.bf16 %v1563, %v1563
      %v1692 = vpack.c.bf16 %v1564, %v1564
      %v1693 = vpack.c.bf16 %v1565, %v1565
      %v1694 = vpack.c.bf16 %v1566, %v1566
      %v1695 = vpack.c.bf16 %v1567, %v1567
      %v1696 = vpack.c.bf16 %v1568, %v1568
      %v1697 = vpack.c.bf16 %v1569, %v1569
      %v1698 = vpack.c.bf16 %v1570, %v1570
      %v1699 = vpack.c.bf16 %v1571, %v1571
      %v1700 = vpack.c.bf16 %v1572, %v1572
      %v1701 = vpack.c.bf16 %v1573, %v1573
      %vm1702 = vcmask 519168
      %1703 = vst.msk [vmem:[%s201] sm:$0xf] %vm1702, %v1574
      %1704 = vst.msk [vmem:[%s201 + $0x4] sm:$0xf] %vm1702, %v1575
      %1705 = vst.msk [vmem:[%s201 + $0x8] sm:$0xf] %vm1702, %v1576
      %1706 = vst.msk [vmem:[%s201 + $0xc] sm:$0xf] %vm1702, %v1577
      %1711 = vrot.lane.b32.xlu0 %v1574, 64
      %v1712 = vpop.permute.xlu0 %1711
      %1713 = vrot.lane.b32.xlu0 %v1575, 64
      %v1714 = vpop.permute.xlu0 %1713
      %1715 = vrot.lane.b32.xlu0 %v1576, 64
      %v1716 = vpop.permute.xlu0 %1715
      %1717 = vrot.lane.b32.xlu0 %v1577, 64
      %v1718 = vpop.permute.xlu0 %1717
      %s1723 = scalar_lea.vmem %s201, 16
      %1724 = vst.msk [vmem:[%s1723] sm:$0xf] %vm1702, %v1712
      %1725 = vst.msk [vmem:[%s1723 + $0x4] sm:$0xf] %vm1702, %v1714
      %1726 = vst.msk [vmem:[%s1723 + $0x8] sm:$0xf] %vm1702, %v1716
      %1727 = vst.msk [vmem:[%s1723 + $0xc] sm:$0xf] %vm1702, %v1718
      %s1728 = scalar_lea.vmem %s201, 32
      %1729 = vst.msk [vmem:[%s1728] sm:$0xf] %vm1702, %v1578
      %1730 = vst.msk [vmem:[%s1728 + $0x4] sm:$0xf] %vm1702, %v1579
      %1731 = vst.msk [vmem:[%s1728 + $0x8] sm:$0xf] %vm1702, %v1580
      %1732 = vst.msk [vmem:[%s1728 + $0xc] sm:$0xf] %vm1702, %v1581
      %1737 = vrot.lane.b32.xlu0 %v1578, 64
      %v1738 = vpop.permute.xlu0 %1737
      %1739 = vrot.lane.b32.xlu0 %v1579, 64
      %v1740 = vpop.permute.xlu0 %1739
      %1741 = vrot.lane.b32.xlu0 %v1580, 64
      %v1742 = vpop.permute.xlu0 %1741
      %1743 = vrot.lane.b32.xlu0 %v1581, 64
      %v1744 = vpop.permute.xlu0 %1743
      %s1749 = scalar_lea.vmem %s201, 48
      %1750 = vst.msk [vmem:[%s1749] sm:$0xf] %vm1702, %v1738
      %1751 = vst.msk [vmem:[%s1749 + $0x4] sm:$0xf] %vm1702, %v1740
      %1752 = vst.msk [vmem:[%s1749 + $0x8] sm:$0xf] %vm1702, %v1742
      %1753 = vst.msk [vmem:[%s1749 + $0xc] sm:$0xf] %vm1702, %v1744
      %s1754 = scalar_lea.vmem %s201, 64
      %1755 = vst.msk [vmem:[%s1754] sm:$0xf] %vm1702, %v1582
      %1756 = vst.msk [vmem:[%s1754 + $0x4] sm:$0xf] %vm1702, %v1583
      %1757 = vst.msk [vmem:[%s1754 + $0x8] sm:$0xf] %vm1702, %v1584
      %1758 = vst.msk [vmem:[%s1754 + $0xc] sm:$0xf] %vm1702, %v1585
      %1763 = vrot.lane.b32.xlu0 %v1582, 64
      %v1764 = vpop.permute.xlu0 %1763
      %1765 = vrot.lane.b32.xlu0 %v1583, 64
      %v1766 = vpop.permute.xlu0 %1765
      %1767 = vrot.lane.b32.xlu0 %v1584, 64
      %v1768 = vpop.permute.xlu0 %1767
      %1769 = vrot.lane.b32.xlu0 %v1585, 64
      %v1770 = vpop.permute.xlu0 %1769
      %s1775 = scalar_lea.vmem %s201, 80
      %1776 = vst.msk [vmem:[%s1775] sm:$0xf] %vm1702, %v1764
      %1777 = vst.msk [vmem:[%s1775 + $0x4] sm:$0xf] %vm1702, %v1766
      %1778 = vst.msk [vmem:[%s1775 + $0x8] sm:$0xf] %vm1702, %v1768
      %1779 = vst.msk [vmem:[%s1775 + $0xc] sm:$0xf] %vm1702, %v1770
      %s1780 = scalar_lea.vmem %s201, 96
      %1781 = vst.msk [vmem:[%s1780] sm:$0xf] %vm1702, %v1586
      %1782 = vst.msk [vmem:[%s1780 + $0x4] sm:$0xf] %vm1702, %v1587
      %1783 = vst.msk [vmem:[%s1780 + $0x8] sm:$0xf] %vm1702, %v1588
      %1784 = vst.msk [vmem:[%s1780 + $0xc] sm:$0xf] %vm1702, %v1589
      %1789 = vrot.lane.b32.xlu0 %v1586, 64
      %v1790 = vpop.permute.xlu0 %1789
      %1791 = vrot.lane.b32.xlu0 %v1587, 64
      %v1792 = vpop.permute.xlu0 %1791
      %1793 = vrot.lane.b32.xlu0 %v1588, 64
      %v1794 = vpop.permute.xlu0 %1793
      %1795 = vrot.lane.b32.xlu0 %v1589, 64
      %v1796 = vpop.permute.xlu0 %1795
      %s1801 = scalar_lea.vmem %s201, 112
      %1802 = vst.msk [vmem:[%s1801] sm:$0xf] %vm1702, %v1790
      %1803 = vst.msk [vmem:[%s1801 + $0x4] sm:$0xf] %vm1702, %v1792
      %1804 = vst.msk [vmem:[%s1801 + $0x8] sm:$0xf] %vm1702, %v1794
      %1805 = vst.msk [vmem:[%s1801 + $0xc] sm:$0xf] %vm1702, %v1796
      %s1806 = scalar_lea.vmem %s201, 128
      %1807 = vst.msk [vmem:[%s1806] sm:$0xf] %vm1702, %v1590
      %1808 = vst.msk [vmem:[%s1806 + $0x4] sm:$0xf] %vm1702, %v1591
      %1809 = vst.msk [vmem:[%s1806 + $0x8] sm:$0xf] %vm1702, %v1592
      %1810 = vst.msk [vmem:[%s1806 + $0xc] sm:$0xf] %vm1702, %v1593
      %1815 = vrot.lane.b32.xlu0 %v1590, 64
      %v1816 = vpop.permute.xlu0 %1815
      %1817 = vrot.lane.b32.xlu0 %v1591, 64
      %v1818 = vpop.permute.xlu0 %1817
      %1819 = vrot.lane.b32.xlu0 %v1592, 64
      %v1820 = vpop.permute.xlu0 %1819
      %1821 = vrot.lane.b32.xlu0 %v1593, 64
      %v1822 = vpop.permute.xlu0 %1821
      %s1827 = scalar_lea.vmem %s201, 144
      %1828 = vst.msk [vmem:[%s1827] sm:$0xf] %vm1702, %v1816
      %1829 = vst.msk [vmem:[%s1827 + $0x4] sm:$0xf] %vm1702, %v1818
      %1830 = vst.msk [vmem:[%s1827 + $0x8] sm:$0xf] %vm1702, %v1820
      %1831 = vst.msk [vmem:[%s1827 + $0xc] sm:$0xf] %vm1702, %v1822
      %s1832 = scalar_lea.vmem %s201, 160
      %1833 = vst.msk [vmem:[%s1832] sm:$0xf] %vm1702, %v1594
      %1834 = vst.msk [vmem:[%s1832 + $0x4] sm:$0xf] %vm1702, %v1595
      %1835 = vst.msk [vmem:[%s1832 + $0x8] sm:$0xf] %vm1702, %v1596
      %1836 = vst.msk [vmem:[%s1832 + $0xc] sm:$0xf] %vm1702, %v1597
      %1841 = vrot.lane.b32.xlu0 %v1594, 64
      %v1842 = vpop.permute.xlu0 %1841
      %1843 = vrot.lane.b32.xlu0 %v1595, 64
      %v1844 = vpop.permute.xlu0 %1843
      %1845 = vrot.lane.b32.xlu0 %v1596, 64
      %v1846 = vpop.permute.xlu0 %1845
      %1847 = vrot.lane.b32.xlu0 %v1597, 64
      %v1848 = vpop.permute.xlu0 %1847
      %s1853 = scalar_lea.vmem %s201, 176
      %1854 = vst.msk [vmem:[%s1853] sm:$0xf] %vm1702, %v1842
      %1855 = vst.msk [vmem:[%s1853 + $0x4] sm:$0xf] %vm1702, %v1844
      %1856 = vst.msk [vmem:[%s1853 + $0x8] sm:$0xf] %vm1702, %v1846
      %1857 = vst.msk [vmem:[%s1853 + $0xc] sm:$0xf] %vm1702, %v1848
      %s1858 = scalar_lea.vmem %s201, 192
      %1859 = vst.msk [vmem:[%s1858] sm:$0xf] %vm1702, %v1598
      %1860 = vst.msk [vmem:[%s1858 + $0x4] sm:$0xf] %vm1702, %v1599
      %1861 = vst.msk [vmem:[%s1858 + $0x8] sm:$0xf] %vm1702, %v1600
      %1862 = vst.msk [vmem:[%s1858 + $0xc] sm:$0xf] %vm1702, %v1601
      %1867 = vrot.lane.b32.xlu0 %v1598, 64
      %v1868 = vpop.permute.xlu0 %1867
      %1869 = vrot.lane.b32.xlu0 %v1599, 64
      %v1870 = vpop.permute.xlu0 %1869
      %1871 = vrot.lane.b32.xlu0 %v1600, 64
      %v1872 = vpop.permute.xlu0 %1871
      %1873 = vrot.lane.b32.xlu0 %v1601, 64
      %v1874 = vpop.permute.xlu0 %1873
      %s1879 = scalar_lea.vmem %s201, 208
      %1880 = vst.msk [vmem:[%s1879] sm:$0xf] %vm1702, %v1868
      %1881 = vst.msk [vmem:[%s1879 + $0x4] sm:$0xf] %vm1702, %v1870
      %1882 = vst.msk [vmem:[%s1879 + $0x8] sm:$0xf] %vm1702, %v1872
      %1883 = vst.msk [vmem:[%s1879 + $0xc] sm:$0xf] %vm1702, %v1874
      %s1884 = scalar_lea.vmem %s201, 224
      %1885 = vst.msk [vmem:[%s1884] sm:$0xf] %vm1702, %v1602
      %1886 = vst.msk [vmem:[%s1884 + $0x4] sm:$0xf] %vm1702, %v1603
      %1887 = vst.msk [vmem:[%s1884 + $0x8] sm:$0xf] %vm1702, %v1604
      %1888 = vst.msk [vmem:[%s1884 + $0xc] sm:$0xf] %vm1702, %v1605
      %1893 = vrot.lane.b32.xlu0 %v1602, 64
      %v1894 = vpop.permute.xlu0 %1893
      %1895 = vrot.lane.b32.xlu0 %v1603, 64
      %v1896 = vpop.permute.xlu0 %1895
      %1897 = vrot.lane.b32.xlu0 %v1604, 64
      %v1898 = vpop.permute.xlu0 %1897
      %1899 = vrot.lane.b32.xlu0 %v1605, 64
      %v1900 = vpop.permute.xlu0 %1899
      %s1905 = scalar_lea.vmem %s201, 240
      %1906 = vst.msk [vmem:[%s1905] sm:$0xf] %vm1702, %v1894
      %1907 = vst.msk [vmem:[%s1905 + $0x4] sm:$0xf] %vm1702, %v1896
      %1908 = vst.msk [vmem:[%s1905 + $0x8] sm:$0xf] %vm1702, %v1898
      %1909 = vst.msk [vmem:[%s1905 + $0xc] sm:$0xf] %vm1702, %v1900
      %s1910 = scalar_lea.vmem %s201, 256
      %1911 = vst.msk [vmem:[%s1910] sm:$0xf] %vm1702, %v1606
      %1912 = vst.msk [vmem:[%s1910 + $0x4] sm:$0xf] %vm1702, %v1607
      %1913 = vst.msk [vmem:[%s1910 + $0x8] sm:$0xf] %vm1702, %v1608
      %1914 = vst.msk [vmem:[%s1910 + $0xc] sm:$0xf] %vm1702, %v1609
      %1919 = vrot.lane.b32.xlu0 %v1606, 64
      %v1920 = vpop.permute.xlu0 %1919
      %1921 = vrot.lane.b32.xlu0 %v1607, 64
      %v1922 = vpop.permute.xlu0 %1921
      %1923 = vrot.lane.b32.xlu0 %v1608, 64
      %v1924 = vpop.permute.xlu0 %1923
      %1925 = vrot.lane.b32.xlu0 %v1609, 64
      %v1926 = vpop.permute.xlu0 %1925
      %s1931 = scalar_lea.vmem %s201, 272
      %1932 = vst.msk [vmem:[%s1931] sm:$0xf] %vm1702, %v1920
      %1933 = vst.msk [vmem:[%s1931 + $0x4] sm:$0xf] %vm1702, %v1922
      %1934 = vst.msk [vmem:[%s1931 + $0x8] sm:$0xf] %vm1702, %v1924
      %1935 = vst.msk [vmem:[%s1931 + $0xc] sm:$0xf] %vm1702, %v1926
      %s1936 = scalar_lea.vmem %s201, 288
      %1937 = vst.msk [vmem:[%s1936] sm:$0xf] %vm1702, %v1610
      %1938 = vst.msk [vmem:[%s1936 + $0x4] sm:$0xf] %vm1702, %v1611
      %1939 = vst.msk [vmem:[%s1936 + $0x8] sm:$0xf] %vm1702, %v1612
      %1940 = vst.msk [vmem:[%s1936 + $0xc] sm:$0xf] %vm1702, %v1613
      %1945 = vrot.lane.b32.xlu0 %v1610, 64
      %v1946 = vpop.permute.xlu0 %1945
      %1947 = vrot.lane.b32.xlu0 %v1611, 64
      %v1948 = vpop.permute.xlu0 %1947
      %1949 = vrot.lane.b32.xlu0 %v1612, 64
      %v1950 = vpop.permute.xlu0 %1949
      %1951 = vrot.lane.b32.xlu0 %v1613, 64
      %v1952 = vpop.permute.xlu0 %1951
      %s1957 = scalar_lea.vmem %s201, 304
      %1958 = vst.msk [vmem:[%s1957] sm:$0xf] %vm1702, %v1946
      %1959 = vst.msk [vmem:[%s1957 + $0x4] sm:$0xf] %vm1702, %v1948
      %1960 = vst.msk [vmem:[%s1957 + $0x8] sm:$0xf] %vm1702, %v1950
      %1961 = vst.msk [vmem:[%s1957 + $0xc] sm:$0xf] %vm1702, %v1952
      %s1962 = scalar_lea.vmem %s201, 320
      %1963 = vst.msk [vmem:[%s1962] sm:$0xf] %vm1702, %v1614
      %1964 = vst.msk [vmem:[%s1962 + $0x4] sm:$0xf] %vm1702, %v1615
      %1965 = vst.msk [vmem:[%s1962 + $0x8] sm:$0xf] %vm1702, %v1616
      %1966 = vst.msk [vmem:[%s1962 + $0xc] sm:$0xf] %vm1702, %v1617
      %1971 = vrot.lane.b32.xlu0 %v1614, 64
      %v1972 = vpop.permute.xlu0 %1971
      %1973 = vrot.lane.b32.xlu0 %v1615, 64
      %v1974 = vpop.permute.xlu0 %1973
      %1975 = vrot.lane.b32.xlu0 %v1616, 64
      %v1976 = vpop.permute.xlu0 %1975
      %1977 = vrot.lane.b32.xlu0 %v1617, 64
      %v1978 = vpop.permute.xlu0 %1977
      %s1983 = scalar_lea.vmem %s201, 336
      %1984 = vst.msk [vmem:[%s1983] sm:$0xf] %vm1702, %v1972
      %1985 = vst.msk [vmem:[%s1983 + $0x4] sm:$0xf] %vm1702, %v1974
      %1986 = vst.msk [vmem:[%s1983 + $0x8] sm:$0xf] %vm1702, %v1976
      %1987 = vst.msk [vmem:[%s1983 + $0xc] sm:$0xf] %vm1702, %v1978
      %s1988 = scalar_lea.vmem %s201, 352
      %1989 = vst.msk [vmem:[%s1988] sm:$0xf] %vm1702, %v1618
      %1990 = vst.msk [vmem:[%s1988 + $0x4] sm:$0xf] %vm1702, %v1619
      %1991 = vst.msk [vmem:[%s1988 + $0x8] sm:$0xf] %vm1702, %v1620
      %1992 = vst.msk [vmem:[%s1988 + $0xc] sm:$0xf] %vm1702, %v1621
      %1997 = vrot.lane.b32.xlu0 %v1618, 64
      %v1998 = vpop.permute.xlu0 %1997
      %1999 = vrot.lane.b32.xlu0 %v1619, 64
      %v2000 = vpop.permute.xlu0 %1999
      %2001 = vrot.lane.b32.xlu0 %v1620, 64
      %v2002 = vpop.permute.xlu0 %2001
      %2003 = vrot.lane.b32.xlu0 %v1621, 64
      %v2004 = vpop.permute.xlu0 %2003
      %s2009 = scalar_lea.vmem %s201, 368
      %2010 = vst.msk [vmem:[%s2009] sm:$0xf] %vm1702, %v1998
      %2011 = vst.msk [vmem:[%s2009 + $0x4] sm:$0xf] %vm1702, %v2000
      %2012 = vst.msk [vmem:[%s2009 + $0x8] sm:$0xf] %vm1702, %v2002
      %2013 = vst.msk [vmem:[%s2009 + $0xc] sm:$0xf] %vm1702, %v2004
      %s2014 = scalar_lea.vmem %s201, 384
      %2015 = vst.msk [vmem:[%s2014] sm:$0xf] %vm1702, %v1622
      %2016 = vst.msk [vmem:[%s2014 + $0x4] sm:$0xf] %vm1702, %v1623
      %2017 = vst.msk [vmem:[%s2014 + $0x8] sm:$0xf] %vm1702, %v1624
      %2018 = vst.msk [vmem:[%s2014 + $0xc] sm:$0xf] %vm1702, %v1625
      %2023 = vrot.lane.b32.xlu0 %v1622, 64
      %v2024 = vpop.permute.xlu0 %2023
      %2025 = vrot.lane.b32.xlu0 %v1623, 64
      %v2026 = vpop.permute.xlu0 %2025
      %2027 = vrot.lane.b32.xlu0 %v1624, 64
      %v2028 = vpop.permute.xlu0 %2027
      %2029 = vrot.lane.b32.xlu0 %v1625, 64
      %v2030 = vpop.permute.xlu0 %2029
      %s2035 = scalar_lea.vmem %s201, 400
      %2036 = vst.msk [vmem:[%s2035] sm:$0xf] %vm1702, %v2024
      %2037 = vst.msk [vmem:[%s2035 + $0x4] sm:$0xf] %vm1702, %v2026
      %2038 = vst.msk [vmem:[%s2035 + $0x8] sm:$0xf] %vm1702, %v2028
      %2039 = vst.msk [vmem:[%s2035 + $0xc] sm:$0xf] %vm1702, %v2030
      %s2040 = scalar_lea.vmem %s201, 416
      %2041 = vst.msk [vmem:[%s2040] sm:$0xf] %vm1702, %v1626
      %2042 = vst.msk [vmem:[%s2040 + $0x4] sm:$0xf] %vm1702, %v1627
      %2043 = vst.msk [vmem:[%s2040 + $0x8] sm:$0xf] %vm1702, %v1628
      %2044 = vst.msk [vmem:[%s2040 + $0xc] sm:$0xf] %vm1702, %v1629
      %2049 = vrot.lane.b32.xlu0 %v1626, 64
      %v2050 = vpop.permute.xlu0 %2049
      %2051 = vrot.lane.b32.xlu0 %v1627, 64
      %v2052 = vpop.permute.xlu0 %2051
      %2053 = vrot.lane.b32.xlu0 %v1628, 64
      %v2054 = vpop.permute.xlu0 %2053
      %2055 = vrot.lane.b32.xlu0 %v1629, 64
      %v2056 = vpop.permute.xlu0 %2055
      %s2061 = scalar_lea.vmem %s201, 432
      %2062 = vst.msk [vmem:[%s2061] sm:$0xf] %vm1702, %v2050
      %2063 = vst.msk [vmem:[%s2061 + $0x4] sm:$0xf] %vm1702, %v2052
      %2064 = vst.msk [vmem:[%s2061 + $0x8] sm:$0xf] %vm1702, %v2054
      %2065 = vst.msk [vmem:[%s2061 + $0xc] sm:$0xf] %vm1702, %v2056
      %s2066 = scalar_lea.vmem %s201, 448
      %2067 = vst.msk [vmem:[%s2066] sm:$0xf] %vm1702, %v1630
      %2068 = vst.msk [vmem:[%s2066 + $0x4] sm:$0xf] %vm1702, %v1631
      %2069 = vst.msk [vmem:[%s2066 + $0x8] sm:$0xf] %vm1702, %v1632
      %2070 = vst.msk [vmem:[%s2066 + $0xc] sm:$0xf] %vm1702, %v1633
      %2075 = vrot.lane.b32.xlu0 %v1630, 64
      %v2076 = vpop.permute.xlu0 %2075
      %2077 = vrot.lane.b32.xlu0 %v1631, 64
      %v2078 = vpop.permute.xlu0 %2077
      %2079 = vrot.lane.b32.xlu0 %v1632, 64
      %v2080 = vpop.permute.xlu0 %2079
      %2081 = vrot.lane.b32.xlu0 %v1633, 64
      %v2082 = vpop.permute.xlu0 %2081
      %s2087 = scalar_lea.vmem %s201, 464
      %2088 = vst.msk [vmem:[%s2087] sm:$0xf] %vm1702, %v2076
      %2089 = vst.msk [vmem:[%s2087 + $0x4] sm:$0xf] %vm1702, %v2078
      %2090 = vst.msk [vmem:[%s2087 + $0x8] sm:$0xf] %vm1702, %v2080
      %2091 = vst.msk [vmem:[%s2087 + $0xc] sm:$0xf] %vm1702, %v2082
      %s2092 = scalar_lea.vmem %s201, 480
      %2093 = vst.msk [vmem:[%s2092] sm:$0xf] %vm1702, %v1634
      %2094 = vst.msk [vmem:[%s2092 + $0x4] sm:$0xf] %vm1702, %v1635
      %2095 = vst.msk [vmem:[%s2092 + $0x8] sm:$0xf] %vm1702, %v1636
      %2096 = vst.msk [vmem:[%s2092 + $0xc] sm:$0xf] %vm1702, %v1637
      %2101 = vrot.lane.b32.xlu0 %v1634, 64
      %v2102 = vpop.permute.xlu0 %2101
      %2103 = vrot.lane.b32.xlu0 %v1635, 64
      %v2104 = vpop.permute.xlu0 %2103
      %2105 = vrot.lane.b32.xlu0 %v1636, 64
      %v2106 = vpop.permute.xlu0 %2105
      %2107 = vrot.lane.b32.xlu0 %v1637, 64
      %v2108 = vpop.permute.xlu0 %2107
      %s2113 = scalar_lea.vmem %s201, 496
      %2114 = vst.msk [vmem:[%s2113] sm:$0xf] %vm1702, %v2102
      %2115 = vst.msk [vmem:[%s2113 + $0x4] sm:$0xf] %vm1702, %v2104
      %2116 = vst.msk [vmem:[%s2113 + $0x8] sm:$0xf] %vm1702, %v2106
      %2117 = vst.msk [vmem:[%s2113 + $0xc] sm:$0xf] %vm1702, %v2108
      %s2118 = scalar_lea.vmem %s201, 512
      %2119 = vst.msk [vmem:[%s2118] sm:$0xf] %vm1702, %v1638
      %2120 = vst.msk [vmem:[%s2118 + $0x4] sm:$0xf] %vm1702, %v1639
      %2121 = vst.msk [vmem:[%s2118 + $0x8] sm:$0xf] %vm1702, %v1640
      %2122 = vst.msk [vmem:[%s2118 + $0xc] sm:$0xf] %vm1702, %v1641
      %2127 = vrot.lane.b32.xlu0 %v1638, 64
      %v2128 = vpop.permute.xlu0 %2127
      %2129 = vrot.lane.b32.xlu0 %v1639, 64
      %v2130 = vpop.permute.xlu0 %2129
      %2131 = vrot.lane.b32.xlu0 %v1640, 64
      %v2132 = vpop.permute.xlu0 %2131
      %2133 = vrot.lane.b32.xlu0 %v1641, 64
      %v2134 = vpop.permute.xlu0 %2133
      %s2139 = scalar_lea.vmem %s201, 528
      %2140 = vst.msk [vmem:[%s2139] sm:$0xf] %vm1702, %v2128
      %2141 = vst.msk [vmem:[%s2139 + $0x4] sm:$0xf] %vm1702, %v2130
      %2142 = vst.msk [vmem:[%s2139 + $0x8] sm:$0xf] %vm1702, %v2132
      %2143 = vst.msk [vmem:[%s2139 + $0xc] sm:$0xf] %vm1702, %v2134
      %s2144 = scalar_lea.vmem %s201, 544
      %2145 = vst.msk [vmem:[%s2144] sm:$0xf] %vm1702, %v1642
      %2146 = vst.msk [vmem:[%s2144 + $0x4] sm:$0xf] %vm1702, %v1643
      %2147 = vst.msk [vmem:[%s2144 + $0x8] sm:$0xf] %vm1702, %v1644
      %2148 = vst.msk [vmem:[%s2144 + $0xc] sm:$0xf] %vm1702, %v1645
      %2153 = vrot.lane.b32.xlu0 %v1642, 64
      %v2154 = vpop.permute.xlu0 %2153
      %2155 = vrot.lane.b32.xlu0 %v1643, 64
      %v2156 = vpop.permute.xlu0 %2155
      %2157 = vrot.lane.b32.xlu0 %v1644, 64
      %v2158 = vpop.permute.xlu0 %2157
      %2159 = vrot.lane.b32.xlu0 %v1645, 64
      %v2160 = vpop.permute.xlu0 %2159
      %s2165 = scalar_lea.vmem %s201, 560
      %2166 = vst.msk [vmem:[%s2165] sm:$0xf] %vm1702, %v2154
      %2167 = vst.msk [vmem:[%s2165 + $0x4] sm:$0xf] %vm1702, %v2156
      %2168 = vst.msk [vmem:[%s2165 + $0x8] sm:$0xf] %vm1702, %v2158
      %2169 = vst.msk [vmem:[%s2165 + $0xc] sm:$0xf] %vm1702, %v2160
      %s2170 = scalar_lea.vmem %s201, 576
      %2171 = vst.msk [vmem:[%s2170] sm:$0xf] %vm1702, %v1646
      %2172 = vst.msk [vmem:[%s2170 + $0x4] sm:$0xf] %vm1702, %v1647
      %2173 = vst.msk [vmem:[%s2170 + $0x8] sm:$0xf] %vm1702, %v1648
      %2174 = vst.msk [vmem:[%s2170 + $0xc] sm:$0xf] %vm1702, %v1649
      %2179 = vrot.lane.b32.xlu0 %v1646, 64
      %v2180 = vpop.permute.xlu0 %2179
      %2181 = vrot.lane.b32.xlu0 %v1647, 64
      %v2182 = vpop.permute.xlu0 %2181
      %2183 = vrot.lane.b32.xlu0 %v1648, 64
      %v2184 = vpop.permute.xlu0 %2183
      %2185 = vrot.lane.b32.xlu0 %v1649, 64
      %v2186 = vpop.permute.xlu0 %2185
      %s2191 = scalar_lea.vmem %s201, 592
      %2192 = vst.msk [vmem:[%s2191] sm:$0xf] %vm1702, %v2180
      %2193 = vst.msk [vmem:[%s2191 + $0x4] sm:$0xf] %vm1702, %v2182
      %2194 = vst.msk [vmem:[%s2191 + $0x8] sm:$0xf] %vm1702, %v2184
      %2195 = vst.msk [vmem:[%s2191 + $0xc] sm:$0xf] %vm1702, %v2186
      %s2196 = scalar_lea.vmem %s201, 608
      %2197 = vst.msk [vmem:[%s2196] sm:$0xf] %vm1702, %v1650
      %2198 = vst.msk [vmem:[%s2196 + $0x4] sm:$0xf] %vm1702, %v1651
      %2199 = vst.msk [vmem:[%s2196 + $0x8] sm:$0xf] %vm1702, %v1652
      %2200 = vst.msk [vmem:[%s2196 + $0xc] sm:$0xf] %vm1702, %v1653
      %2205 = vrot.lane.b32.xlu0 %v1650, 64
      %v2206 = vpop.permute.xlu0 %2205
      %2207 = vrot.lane.b32.xlu0 %v1651, 64
      %v2208 = vpop.permute.xlu0 %2207
      %2209 = vrot.lane.b32.xlu0 %v1652, 64
      %v2210 = vpop.permute.xlu0 %2209
      %2211 = vrot.lane.b32.xlu0 %v1653, 64
      %v2212 = vpop.permute.xlu0 %2211
      %s2217 = scalar_lea.vmem %s201, 624
      %2218 = vst.msk [vmem:[%s2217] sm:$0xf] %vm1702, %v2206
      %2219 = vst.msk [vmem:[%s2217 + $0x4] sm:$0xf] %vm1702, %v2208
      %2220 = vst.msk [vmem:[%s2217 + $0x8] sm:$0xf] %vm1702, %v2210
      %2221 = vst.msk [vmem:[%s2217 + $0xc] sm:$0xf] %vm1702, %v2212
      %s2222 = scalar_lea.vmem %s201, 640
      %2223 = vst.msk [vmem:[%s2222] sm:$0xf] %vm1702, %v1654
      %2224 = vst.msk [vmem:[%s2222 + $0x4] sm:$0xf] %vm1702, %v1655
      %2225 = vst.msk [vmem:[%s2222 + $0x8] sm:$0xf] %vm1702, %v1656
      %2226 = vst.msk [vmem:[%s2222 + $0xc] sm:$0xf] %vm1702, %v1657
      %2231 = vrot.lane.b32.xlu0 %v1654, 64
      %v2232 = vpop.permute.xlu0 %2231
      %2233 = vrot.lane.b32.xlu0 %v1655, 64
      %v2234 = vpop.permute.xlu0 %2233
      %2235 = vrot.lane.b32.xlu0 %v1656, 64
      %v2236 = vpop.permute.xlu0 %2235
      %2237 = vrot.lane.b32.xlu0 %v1657, 64
      %v2238 = vpop.permute.xlu0 %2237
      %s2243 = scalar_lea.vmem %s201, 656
      %2244 = vst.msk [vmem:[%s2243] sm:$0xf] %vm1702, %v2232
      %2245 = vst.msk [vmem:[%s2243 + $0x4] sm:$0xf] %vm1702, %v2234
      %2246 = vst.msk [vmem:[%s2243 + $0x8] sm:$0xf] %vm1702, %v2236
      %2247 = vst.msk [vmem:[%s2243 + $0xc] sm:$0xf] %vm1702, %v2238
      %s2248 = scalar_lea.vmem %s201, 672
      %2249 = vst.msk [vmem:[%s2248] sm:$0xf] %vm1702, %v1658
      %2250 = vst.msk [vmem:[%s2248 + $0x4] sm:$0xf] %vm1702, %v1659
      %2251 = vst.msk [vmem:[%s2248 + $0x8] sm:$0xf] %vm1702, %v1660
      %2252 = vst.msk [vmem:[%s2248 + $0xc] sm:$0xf] %vm1702, %v1661
      %2257 = vrot.lane.b32.xlu0 %v1658, 64
      %v2258 = vpop.permute.xlu0 %2257
      %2259 = vrot.lane.b32.xlu0 %v1659, 64
      %v2260 = vpop.permute.xlu0 %2259
      %2261 = vrot.lane.b32.xlu0 %v1660, 64
      %v2262 = vpop.permute.xlu0 %2261
      %2263 = vrot.lane.b32.xlu0 %v1661, 64
      %v2264 = vpop.permute.xlu0 %2263
      %s2269 = scalar_lea.vmem %s201, 688
      %2270 = vst.msk [vmem:[%s2269] sm:$0xf] %vm1702, %v2258
      %2271 = vst.msk [vmem:[%s2269 + $0x4] sm:$0xf] %vm1702, %v2260
      %2272 = vst.msk [vmem:[%s2269 + $0x8] sm:$0xf] %vm1702, %v2262
      %2273 = vst.msk [vmem:[%s2269 + $0xc] sm:$0xf] %vm1702, %v2264
      %s2274 = scalar_lea.vmem %s201, 704
      %2275 = vst.msk [vmem:[%s2274] sm:$0xf] %vm1702, %v1662
      %2276 = vst.msk [vmem:[%s2274 + $0x4] sm:$0xf] %vm1702, %v1663
      %2277 = vst.msk [vmem:[%s2274 + $0x8] sm:$0xf] %vm1702, %v1664
      %2278 = vst.msk [vmem:[%s2274 + $0xc] sm:$0xf] %vm1702, %v1665
      %2283 = vrot.lane.b32.xlu0 %v1662, 64
      %v2284 = vpop.permute.xlu0 %2283
      %2285 = vrot.lane.b32.xlu0 %v1663, 64
      %v2286 = vpop.permute.xlu0 %2285
      %2287 = vrot.lane.b32.xlu0 %v1664, 64
      %v2288 = vpop.permute.xlu0 %2287
      %2289 = vrot.lane.b32.xlu0 %v1665, 64
      %v2290 = vpop.permute.xlu0 %2289
      %s2295 = scalar_lea.vmem %s201, 720
      %2296 = vst.msk [vmem:[%s2295] sm:$0xf] %vm1702, %v2284
      %2297 = vst.msk [vmem:[%s2295 + $0x4] sm:$0xf] %vm1702, %v2286
      %2298 = vst.msk [vmem:[%s2295 + $0x8] sm:$0xf] %vm1702, %v2288
      %2299 = vst.msk [vmem:[%s2295 + $0xc] sm:$0xf] %vm1702, %v2290
      %s2300 = scalar_lea.vmem %s201, 736
      %2301 = vst.msk [vmem:[%s2300] sm:$0xf] %vm1702, %v1666
      %2302 = vst.msk [vmem:[%s2300 + $0x4] sm:$0xf] %vm1702, %v1667
      %2303 = vst.msk [vmem:[%s2300 + $0x8] sm:$0xf] %vm1702, %v1668
      %2304 = vst.msk [vmem:[%s2300 + $0xc] sm:$0xf] %vm1702, %v1669
      %2309 = vrot.lane.b32.xlu0 %v1666, 64
      %v2310 = vpop.permute.xlu0 %2309
      %2311 = vrot.lane.b32.xlu0 %v1667, 64
      %v2312 = vpop.permute.xlu0 %2311
      %2313 = vrot.lane.b32.xlu0 %v1668, 64
      %v2314 = vpop.permute.xlu0 %2313
      %2315 = vrot.lane.b32.xlu0 %v1669, 64
      %v2316 = vpop.permute.xlu0 %2315
      %s2321 = scalar_lea.vmem %s201, 752
      %2322 = vst.msk [vmem:[%s2321] sm:$0xf] %vm1702, %v2310
      %2323 = vst.msk [vmem:[%s2321 + $0x4] sm:$0xf] %vm1702, %v2312
      %2324 = vst.msk [vmem:[%s2321 + $0x8] sm:$0xf] %vm1702, %v2314
      %2325 = vst.msk [vmem:[%s2321 + $0xc] sm:$0xf] %vm1702, %v2316
      %s2326 = scalar_lea.vmem %s201, 768
      %2327 = vst.msk [vmem:[%s2326] sm:$0xf] %vm1702, %v1670
      %2328 = vst.msk [vmem:[%s2326 + $0x4] sm:$0xf] %vm1702, %v1671
      %2329 = vst.msk [vmem:[%s2326 + $0x8] sm:$0xf] %vm1702, %v1672
      %2330 = vst.msk [vmem:[%s2326 + $0xc] sm:$0xf] %vm1702, %v1673
      %2335 = vrot.lane.b32.xlu0 %v1670, 64
      %v2336 = vpop.permute.xlu0 %2335
      %2337 = vrot.lane.b32.xlu0 %v1671, 64
      %v2338 = vpop.permute.xlu0 %2337
      %2339 = vrot.lane.b32.xlu0 %v1672, 64
      %v2340 = vpop.permute.xlu0 %2339
      %2341 = vrot.lane.b32.xlu0 %v1673, 64
      %v2342 = vpop.permute.xlu0 %2341
      %s2347 = scalar_lea.vmem %s201, 784
      %2348 = vst.msk [vmem:[%s2347] sm:$0xf] %vm1702, %v2336
      %2349 = vst.msk [vmem:[%s2347 + $0x4] sm:$0xf] %vm1702, %v2338
      %2350 = vst.msk [vmem:[%s2347 + $0x8] sm:$0xf] %vm1702, %v2340
      %2351 = vst.msk [vmem:[%s2347 + $0xc] sm:$0xf] %vm1702, %v2342
      %s2352 = scalar_lea.vmem %s201, 800
      %2353 = vst.msk [vmem:[%s2352] sm:$0xf] %vm1702, %v1674
      %2354 = vst.msk [vmem:[%s2352 + $0x4] sm:$0xf] %vm1702, %v1675
      %2355 = vst.msk [vmem:[%s2352 + $0x8] sm:$0xf] %vm1702, %v1676
      %2356 = vst.msk [vmem:[%s2352 + $0xc] sm:$0xf] %vm1702, %v1677
      %2361 = vrot.lane.b32.xlu0 %v1674, 64
      %v2362 = vpop.permute.xlu0 %2361
      %2363 = vrot.lane.b32.xlu0 %v1675, 64
      %v2364 = vpop.permute.xlu0 %2363
      %2365 = vrot.lane.b32.xlu0 %v1676, 64
      %v2366 = vpop.permute.xlu0 %2365
      %2367 = vrot.lane.b32.xlu0 %v1677, 64
      %v2368 = vpop.permute.xlu0 %2367
      %s2373 = scalar_lea.vmem %s201, 816
      %2374 = vst.msk [vmem:[%s2373] sm:$0xf] %vm1702, %v2362
      %2375 = vst.msk [vmem:[%s2373 + $0x4] sm:$0xf] %vm1702, %v2364
      %2376 = vst.msk [vmem:[%s2373 + $0x8] sm:$0xf] %vm1702, %v2366
      %2377 = vst.msk [vmem:[%s2373 + $0xc] sm:$0xf] %vm1702, %v2368
      %s2378 = scalar_lea.vmem %s201, 832
      %2379 = vst.msk [vmem:[%s2378] sm:$0xf] %vm1702, %v1678
      %2380 = vst.msk [vmem:[%s2378 + $0x4] sm:$0xf] %vm1702, %v1679
      %2381 = vst.msk [vmem:[%s2378 + $0x8] sm:$0xf] %vm1702, %v1680
      %2382 = vst.msk [vmem:[%s2378 + $0xc] sm:$0xf] %vm1702, %v1681
      %2387 = vrot.lane.b32.xlu0 %v1678, 64
      %v2388 = vpop.permute.xlu0 %2387
      %2389 = vrot.lane.b32.xlu0 %v1679, 64
      %v2390 = vpop.permute.xlu0 %2389
      %2391 = vrot.lane.b32.xlu0 %v1680, 64
      %v2392 = vpop.permute.xlu0 %2391
      %2393 = vrot.lane.b32.xlu0 %v1681, 64
      %v2394 = vpop.permute.xlu0 %2393
      %s2399 = scalar_lea.vmem %s201, 848
      %2400 = vst.msk [vmem:[%s2399] sm:$0xf] %vm1702, %v2388
      %2401 = vst.msk [vmem:[%s2399 + $0x4] sm:$0xf] %vm1702, %v2390
      %2402 = vst.msk [vmem:[%s2399 + $0x8] sm:$0xf] %vm1702, %v2392
      %2403 = vst.msk [vmem:[%s2399 + $0xc] sm:$0xf] %vm1702, %v2394
      %s2404 = scalar_lea.vmem %s201, 864
      %2405 = vst.msk [vmem:[%s2404] sm:$0xf] %vm1702, %v1682
      %2406 = vst.msk [vmem:[%s2404 + $0x4] sm:$0xf] %vm1702, %v1683
      %2407 = vst.msk [vmem:[%s2404 + $0x8] sm:$0xf] %vm1702, %v1684
      %2408 = vst.msk [vmem:[%s2404 + $0xc] sm:$0xf] %vm1702, %v1685
      %2413 = vrot.lane.b32.xlu0 %v1682, 64
      %v2414 = vpop.permute.xlu0 %2413
      %2415 = vrot.lane.b32.xlu0 %v1683, 64
      %v2416 = vpop.permute.xlu0 %2415
      %2417 = vrot.lane.b32.xlu0 %v1684, 64
      %v2418 = vpop.permute.xlu0 %2417
      %2419 = vrot.lane.b32.xlu0 %v1685, 64
      %v2420 = vpop.permute.xlu0 %2419
      %s2425 = scalar_lea.vmem %s201, 880
      %2426 = vst.msk [vmem:[%s2425] sm:$0xf] %vm1702, %v2414
      %2427 = vst.msk [vmem:[%s2425 + $0x4] sm:$0xf] %vm1702, %v2416
      %2428 = vst.msk [vmem:[%s2425 + $0x8] sm:$0xf] %vm1702, %v2418
      %2429 = vst.msk [vmem:[%s2425 + $0xc] sm:$0xf] %vm1702, %v2420
      %s2430 = scalar_lea.vmem %s201, 896
      %2431 = vst.msk [vmem:[%s2430] sm:$0xf] %vm1702, %v1686
      %2432 = vst.msk [vmem:[%s2430 + $0x4] sm:$0xf] %vm1702, %v1687
      %2433 = vst.msk [vmem:[%s2430 + $0x8] sm:$0xf] %vm1702, %v1688
      %2434 = vst.msk [vmem:[%s2430 + $0xc] sm:$0xf] %vm1702, %v1689
      %2439 = vrot.lane.b32.xlu0 %v1686, 64
      %v2440 = vpop.permute.xlu0 %2439
      %2441 = vrot.lane.b32.xlu0 %v1687, 64
      %v2442 = vpop.permute.xlu0 %2441
      %2443 = vrot.lane.b32.xlu0 %v1688, 64
      %v2444 = vpop.permute.xlu0 %2443
      %2445 = vrot.lane.b32.xlu0 %v1689, 64
      %v2446 = vpop.permute.xlu0 %2445
      %s2451 = scalar_lea.vmem %s201, 912
      %2452 = vst.msk [vmem:[%s2451] sm:$0xf] %vm1702, %v2440
      %2453 = vst.msk [vmem:[%s2451 + $0x4] sm:$0xf] %vm1702, %v2442
      %2454 = vst.msk [vmem:[%s2451 + $0x8] sm:$0xf] %vm1702, %v2444
      %2455 = vst.msk [vmem:[%s2451 + $0xc] sm:$0xf] %vm1702, %v2446
      %s2456 = scalar_lea.vmem %s201, 928
      %2457 = vst.msk [vmem:[%s2456] sm:$0xf] %vm1702, %v1690
      %2458 = vst.msk [vmem:[%s2456 + $0x4] sm:$0xf] %vm1702, %v1691
      %2459 = vst.msk [vmem:[%s2456 + $0x8] sm:$0xf] %vm1702, %v1692
      %2460 = vst.msk [vmem:[%s2456 + $0xc] sm:$0xf] %vm1702, %v1693
      %2465 = vrot.lane.b32.xlu0 %v1690, 64
      %v2466 = vpop.permute.xlu0 %2465
      %2467 = vrot.lane.b32.xlu0 %v1691, 64
      %v2468 = vpop.permute.xlu0 %2467
      %2469 = vrot.lane.b32.xlu0 %v1692, 64
      %v2470 = vpop.permute.xlu0 %2469
      %2471 = vrot.lane.b32.xlu0 %v1693, 64
      %v2472 = vpop.permute.xlu0 %2471
      %s2477 = scalar_lea.vmem %s201, 944
      %2478 = vst.msk [vmem:[%s2477] sm:$0xf] %vm1702, %v2466
      %2479 = vst.msk [vmem:[%s2477 + $0x4] sm:$0xf] %vm1702, %v2468
      %2480 = vst.msk [vmem:[%s2477 + $0x8] sm:$0xf] %vm1702, %v2470
      %2481 = vst.msk [vmem:[%s2477 + $0xc] sm:$0xf] %vm1702, %v2472
      %s2482 = scalar_lea.vmem %s201, 960
      %2483 = vst.msk [vmem:[%s2482] sm:$0xf] %vm1702, %v1694
      %2484 = vst.msk [vmem:[%s2482 + $0x4] sm:$0xf] %vm1702, %v1695
      %2485 = vst.msk [vmem:[%s2482 + $0x8] sm:$0xf] %vm1702, %v1696
      %2486 = vst.msk [vmem:[%s2482 + $0xc] sm:$0xf] %vm1702, %v1697
      %2491 = vrot.lane.b32.xlu0 %v1694, 64
      %v2492 = vpop.permute.xlu0 %2491
      %2493 = vrot.lane.b32.xlu0 %v1695, 64
      %v2494 = vpop.permute.xlu0 %2493
      %2495 = vrot.lane.b32.xlu0 %v1696, 64
      %v2496 = vpop.permute.xlu0 %2495
      %2497 = vrot.lane.b32.xlu0 %v1697, 64
      %v2498 = vpop.permute.xlu0 %2497
      %s2503 = scalar_lea.vmem %s201, 976
      %2504 = vst.msk [vmem:[%s2503] sm:$0xf] %vm1702, %v2492
      %2505 = vst.msk [vmem:[%s2503 + $0x4] sm:$0xf] %vm1702, %v2494
      %2506 = vst.msk [vmem:[%s2503 + $0x8] sm:$0xf] %vm1702, %v2496
      %2507 = vst.msk [vmem:[%s2503 + $0xc] sm:$0xf] %vm1702, %v2498
      %s2508 = scalar_lea.vmem %s201, 992
      %2509 = vst.msk [vmem:[%s2508] sm:$0xf] %vm1702, %v1698
      %2510 = vst.msk [vmem:[%s2508 + $0x4] sm:$0xf] %vm1702, %v1699
      %2511 = vst.msk [vmem:[%s2508 + $0x8] sm:$0xf] %vm1702, %v1700
      %2512 = vst.msk [vmem:[%s2508 + $0xc] sm:$0xf] %vm1702, %v1701
      %2517 = vrot.lane.b32.xlu0 %v1698, 64
      %v2518 = vpop.permute.xlu0 %2517
      %2519 = vrot.lane.b32.xlu0 %v1699, 64
      %v2520 = vpop.permute.xlu0 %2519
      %2521 = vrot.lane.b32.xlu0 %v1700, 64
      %v2522 = vpop.permute.xlu0 %2521
      %2523 = vrot.lane.b32.xlu0 %v1701, 64
      %v2524 = vpop.permute.xlu0 %2523
      %s2529 = scalar_lea.vmem %s201, 1008
      %2530 = vst.msk [vmem:[%s2529] sm:$0xf] %vm1702, %v2518
      %2531 = vst.msk [vmem:[%s2529 + $0x4] sm:$0xf] %vm1702, %v2520
      %2532 = vst.msk [vmem:[%s2529 + $0x8] sm:$0xf] %vm1702, %v2522
      %2533 = vst.msk [vmem:[%s2529 + $0xc] sm:$0xf] %vm1702, %v2524
      %s2534 = smul.u32 64, %s15
      %p2535 = scmp.lt.s32.totalorder %s2534, 127
      %s2536 = scalar_select %p2535, %s2534, 127
      %s2537 = smul.addr %s2536, 4
      %s2538 = smul.addr %s2537, 4
      %s2539 = scalar_lea.vmem %s4, %s2538
      // Predicated region
      $region37: #{pixel_decoder_forward.11} parent=35 // pred_check
        %p2540 = pneg %p122
      $region38: #{pixel_decoder_forward.11} parent=35 // pred_check_branch
        %2542 = sbr.rel (%p2540) target = $region40
      $region39: #{pixel_decoder_forward.11} parent=35 // pred_region
        %s2543 = smul.u32 64, %s15
      $region40: #{pixel_decoder_forward.11} parent=35 // pred_fallthru
        _
    $region36: #{pixel_decoder_forward.11} parent=5 // pred_fallthru
      _
    %p2544 = scmp.le.s32.totalorder 2, %s10
    // Predicated region
    $region41: #{pixel_decoder_forward.11} parent=5 // pred_check
      %p2545 = pneg %p2544
    $region42: #{pixel_decoder_forward.11} parent=5 // pred_check_branch
      %2547 = sbr.rel (%p2545) target = $region44
    $region43: #{pixel_decoder_forward.11} parent=5 // pred_region
      %s2548 = ssub.s32 %s10, 2
      // Predicated region
      $region45: #{pixel_decoder_forward.11} parent=43 // pred_check
        %p2549 = pneg %p128
      $region46: #{pixel_decoder_forward.11} parent=43 // pred_check_branch
        %2551 = sbr.rel (%p2549) target = $region48
      $region47: #{pixel_decoder_forward.11} parent=43 // pred_region
        %s2552 = smul.u32 64, %s16
        %p2553 = scmp.lt.s32.totalorder %s2552, 127
        %s2554 = scalar_select %p2553, %s2552, 127
        %s2555 = smul.addr %s2554, 4
        %s2556 = smul.addr %s2555, 4
        %s2557 = scalar_lea.vmem %s4, %s2556
      $region48: #{pixel_decoder_forward.11} parent=43 // pred_fallthru
        _
    $region44: #{pixel_decoder_forward.11} parent=5 // pred_fallthru
      _
  $region6: #{pixel_decoder_forward.11} parent=0 // loop_footer
    %s14 = sadd.s32 1, %s10
  $region7: #{pixel_decoder_forward.11} parent=0 // loop_footer_branch
    %9 = sbr.rel target = $region3
  $region8: #{pixel_decoder_forward.11} parent=0 // loop_exit
    _

</llo_original>
